<compile_context>
chip_gen: v6e
topology: v6e:2x2x1
jax: 0.10.0
libtpu: 0.0.40
codegen_flags: <defaults>
</compile_context>

<pallas_src>
import functools

import jax
import jax.numpy as jnp
from jax.experimental import pallas as pl
from jax.experimental.pallas import tpu as pltpu

BN_EPS = 1e-5


def _tap_offsets(wp: int):
    """Row offsets of the 9 conv taps in the flattened (Hp*Wp)-row geometry."""
    return [(dy - 1) * wp + (dx - 1) for dy in range(3) for dx in range(3)]


# --------------------------------------------------------------------------- #
# Kernels
# --------------------------------------------------------------------------- #
def _conv_stats_kernel(x_ref, w_ref, mask_ref, out_ref, sum_ref, ssq_ref,
                       *, n_rows, guard, wp):
    """3x3 'same' conv (no bias) + per-image BN statistics.

    x_ref   : (1, n_rows + 2*guard, Cin) f32  zero-padded, flattened image
    w_ref   : (9, Cin, Cout)             bf16 taps in (dy, dx) row-major order
    mask_ref: (n_rows, 1)                f32  1.0 on interior pixels, 0.0 on pad
    out_ref : (1, n_rows, Cout)          f32  raw conv output (pre-BN)
    sum_ref : (1, 1, Cout)               f32  sum   of interior conv outputs
    ssq_ref : (1, 1, Cout)               f32  sumsq of interior conv outputs
    """
    acc = None
    for t, off in enumerate(_tap_offsets(wp)):
        patch = x_ref[0, pl.ds(guard + off, n_rows), :].astype(jnp.bfloat16)
        part = jnp.dot(patch, w_ref[t], preferred_element_type=jnp.float32)
        acc = part if acc is None else acc + part
    out_ref[0] = acc
    hm = jnp.where(mask_ref[...] > 0.0, acc, 0.0)      # exclude pad-border rows
    sum_ref[0] = jnp.sum(hm, axis=0, keepdims=True)
    ssq_ref[0] = jnp.sum(hm * hm, axis=0, keepdims=True)


def _bn_conv_stats_kernel(h_ref, scale_ref, shift_ref, w_ref, mask_ref,
                          out_ref, sum_ref, ssq_ref, ybuf_ref,
                          *, n_rows, guard, wp):
    """Fused BN1 (folded scale/shift) + 3x3 conv2 + BN2 statistics.

    h_ref       : (1, n_rows, C) f32  conv1 output (pre-BN)
    scale/shift : (1, C) f32          gamma*rsqrt(var+eps), beta - mean*scale
    w_ref       : (9, C, C) bf16
    ybuf_ref    : VMEM (n_rows + 2*guard, C) f32 scratch (zero-padded bn1 output)
    """
    mask = mask_ref[...]
    y = h_ref[0] * scale_ref[...] + shift_ref[...]      # BN1 as one FMA
    y = jnp.where(mask > 0.0, y, 0.0)                   # border rows = conv2 zero pad
    c = ybuf_ref.shape[-1]
    # guard rows only feed discarded border outputs, but keep them zero/finite
    ybuf_ref[pl.ds(0, guard), :] = jnp.zeros((guard, c), jnp.float32)
    ybuf_ref[pl.ds(guard + n_rows, guard), :] = jnp.zeros((guard, c), jnp.float32)
    ybuf_ref[pl.ds(guard, n_rows), :] = y

    acc = None
    for t, off in enumerate(_tap_offsets(wp)):
        patch = ybuf_ref[pl.ds(guard + off, n_rows), :].astype(jnp.bfloat16)
        part = jnp.dot(patch, w_ref[t], preferred_element_type=jnp.float32)
        acc = part if acc is None else acc + part
    out_ref[0] = acc
    hm = jnp.where(mask > 0.0, acc, 0.0)
    sum_ref[0] = jnp.sum(hm, axis=0, keepdims=True)
    ssq_ref[0] = jnp.sum(hm * hm, axis=0, keepdims=True)


def _bn_relu_kernel(h_ref, scale_ref, shift_ref, out_ref):
    """BN2 (folded scale/shift) + ReLU."""
    out_ref[0] = jnp.maximum(h_ref[0] * scale_ref[...] + shift_ref[...], 0.0)


# --------------------------------------------------------------------------- #
# Wrapper
# --------------------------------------------------------------------------- #
def conv_block(x_nchw, params):
    """ConvBlock forward (training-mode BatchNorm, matching module.train()).

    x_nchw: (N, Cin, H, W) f32  ->  (N, Cout, H, W) f32
    """
    N, Cin, H, W = x_nchw.shape
    Cout = params["w1"].shape[-1]
    Hp, Wp = H + 2, W + 2
    P = Hp * Wp                              # flattened padded pixels per image
    G = ((Wp + 1 + 7) // 8) * 8              # guard rows (>= Wp+1, 8-row aligned)
    f32 = jnp.float32

    # ---- layout prep: pads / reshapes only (Cin is tiny, so the input reorder is cheap)
    x = jnp.transpose(x_nchw, (0, 2, 3, 1)).astype(f32)        # (N, H, W, Cin)
    x = jnp.pad(x, ((0, 0), (1, 1), (1, 1), (0, 0)))           # 'same' zero pad, once
    x = x.reshape(N, P, Cin)
    x = jnp.pad(x, ((0, 0), (G, G), (0, 0)))                   # guard rows

    # tap-major weight stacks; conv biases dropped (cancelled by training-mode BN)
    w1 = params["w1"].reshape(9, Cin, Cout).astype(jnp.bfloat16)
    w2 = params["w2"].reshape(9, Cout, Cout).astype(jnp.bfloat16)

    # interior-pixel mask in the flattened padded geometry
    hp = jnp.arange(Hp)
    wp = jnp.arange(Wp)
    m = ((hp >= 1) & (hp <= H))[:, None] & ((wp >= 1) & (wp <= W))[None, :]
    mask = m.reshape(P, 1).astype(f32)

    count = float(N * H * W)

    def fold_bn(s, ss, gamma, beta):
        s = jnp.sum(s, axis=0)                                  # (1, Cout)
        ss = jnp.sum(ss, axis=0)
        mean = s / count
        var = jnp.maximum(ss / count - mean * mean, 0.0)        # one-pass var, clamped
        scale = gamma.reshape(1, -1) * jax.lax.rsqrt(var + BN_EPS)
        shift = beta.reshape(1, -1) - mean * scale
        return scale.astype(f32), shift.astype(f32)

    cparams = pltpu.CompilerParams(
        dimension_semantics=("parallel",),       # batch tiles -> both TCs on v7x
        vmem_limit_bytes=64 * 1024 * 1024,
    )

    img = lambda c: pl.BlockSpec((1, P, c), lambda i: (i, 0, 0))
    stat = pl.BlockSpec((1, 1, Cout), lambda i: (i, 0, 0))
    rep2 = lambda a, b: pl.BlockSpec((a, b), lambda i: (0, 0))
    rep3 = lambda a, b, c: pl.BlockSpec((a, b, c), lambda i: (0, 0, 0))

    # ---- pass 1: conv1 + BN1 statistics -------------------------------------
    h1, s1, ss1 = pl.pallas_call(
        functools.partial(_conv_stats_kernel, n_rows=P, guard=G, wp=Wp),
        grid=(N,),
        in_specs=[
            pl.BlockSpec((1, P + 2 * G, Cin), lambda i: (i, 0, 0)),
            rep3(9, Cin, Cout),
            rep2(P, 1),
        ],
        out_specs=(img(Cout), stat, stat),
        out_shape=(
            jax.ShapeDtypeStruct((N, P, Cout), f32),
            jax.ShapeDtypeStruct((N, 1, Cout), f32),
            jax.ShapeDtypeStruct((N, 1, Cout), f32),
        ),
        compiler_params=cparams,
        cost_estimate=pl.CostEstimate(
            flops=2 * N * P * 9 * Cin * Cout + 4 * N * P * Cout,
            transcendentals=0,
            bytes_accessed=(N * (P + 2 * G) * Cin + N * P * Cout) * 4
                           + 9 * Cin * Cout * 2,
        ),
    )(x, w1, mask)
    scale1, shift1 = fold_bn(s1, ss1, params["g1"], params["be1"])

    # ---- pass 2: BN1 (folded FMA) + conv2 + BN2 statistics -------------------
    h2, s2, ss2 = pl.pallas_call(
        functools.partial(_bn_conv_stats_kernel, n_rows=P, guard=G, wp=Wp),
        grid=(N,),
        in_specs=[
            img(Cout),
            rep2(1, Cout),
            rep2(1, Cout),
            rep3(9, Cout, Cout),
            rep2(P, 1),
        ],
        out_specs=(img(Cout), stat, stat),
        out_shape=(
            jax.ShapeDtypeStruct((N, P, Cout), f32),
            jax.ShapeDtypeStruct((N, 1, Cout), f32),
            jax.ShapeDtypeStruct((N, 1, Cout), f32),
        ),
        scratch_shapes=[pltpu.VMEM((P + 2 * G, Cout), f32)],
        compiler_params=cparams,
        cost_estimate=pl.CostEstimate(
            flops=2 * N * P * 9 * Cout * Cout + 8 * N * P * Cout,
            transcendentals=0,
            bytes_accessed=2 * N * P * Cout * 4 + 9 * Cout * Cout * 2,
        ),
    )(h1, scale1, shift1, w2, mask)
    scale2, shift2 = fold_bn(s2, ss2, params["g2"], params["be2"])

    # ---- pass 3: BN2 (folded FMA) + ReLU -------------------------------------
    out_flat = pl.pallas_call(
        _bn_relu_kernel,
        grid=(N,),
        in_specs=[img(Cout), rep2(1, Cout), rep2(1, Cout)],
        out_specs=img(Cout),
        out_shape=jax.ShapeDtypeStruct((N, P, Cout), f32),
        compiler_params=cparams,
        cost_estimate=pl.CostEstimate(
            flops=2 * N * P * Cout,
            transcendentals=0,
            bytes_accessed=2 * N * P * Cout * 4,
        ),
    )(h2, scale2, shift2)

    # drop the pad border and return in the PyTorch NCHW convention
    out = out_flat.reshape(N, Hp, Wp, Cout)[:, 1:H + 1, 1:W + 1, :]
    return jnp.transpose(out, (0, 3, 1, 2))


# --------------------------------------------------------------------------- #
# Parameters + pure-JAX reference
# --------------------------------------------------------------------------- #
def make_params(key, in_channels, out_channels):
    """Synthetic parameters with the same shapes/roles as the PyTorch module."""
    ks = jax.random.split(key, 8)
    w1_t = 0.1 * jax.random.normal(ks[0], (out_channels, in_channels, 3, 3), jnp.float32)
    w2_t = 0.1 * jax.random.normal(ks[1], (out_channels, out_channels, 3, 3), jnp.float32)
    return {
        # PyTorch Conv2d weight (Cout, Cin, kh, kw) -> HWIO (kh, kw, Cin, Cout)
        "w1": jnp.transpose(w1_t, (2, 3, 1, 0)),
        "b1": 0.05 * jax.random.normal(ks[2], (out_channels,), jnp.float32),
        "g1": 1.0 + 0.1 * jax.random.normal(ks[3], (out_channels,), jnp.float32),
        "be1": 0.1 * jax.random.normal(ks[4], (out_channels,), jnp.float32),
        "w2": jnp.transpose(w2_t, (2, 3, 1, 0)),
        "b2": 0.05 * jax.random.normal(ks[5], (out_channels,), jnp.float32),
        "g2": 1.0 + 0.1 * jax.random.normal(ks[6], (out_channels,), jnp.float32),
        "be2": 0.1 * jax.random.normal(ks[7], (out_channels,), jnp.float32),
    }


def convblock_ref(x_nchw, p):
    """Pure-JAX f32 reference of the PyTorch ConvBlock (training-mode BN)."""
    x = jnp.transpose(x_nchw, (0, 2, 3, 1))

    def conv(v, w, b):
        y = jax.lax.conv_general_dilated(
            v, w, window_strides=(1, 1), padding="SAME",
            dimension_numbers=("NHWC", "HWIO", "NHWC"),
            precision=jax.lax.Precision.HIGHEST)
        return y + b

    def bn(v, g, b):
        mean = jnp.mean(v, axis=(0, 1, 2))
        var = jnp.mean(jnp.square(v - mean), axis=(0, 1, 2))
        return (v - mean) * jax.lax.rsqrt(var + BN_EPS) * g + b

    h = bn(conv(x, p["w1"], p["b1"]), p["g1"], p["be1"])
    h = bn(conv(h, p["w2"], p["b2"]), p["g2"], p["be2"])
    return jnp.transpose(jnp.maximum(h, 0.0), (0, 3, 1, 2))


if __name__ == "__main__":
    key = jax.random.PRNGKey(0)
    kx, kp = jax.random.split(key)

    N, Cin, Cout, H, W = 2, 4, 8, 16, 16
    x = jax.random.normal(kx, (N, Cin, H, W), jnp.float32)      # NCHW, like PyTorch
    params = make_params(kp, Cin, Cout)

    out = jax.jit(conv_block)(x, params)
    jax.block_until_ready(out)
    assert out.shape == (N, Cout, H, W)

    ref = convblock_ref(x, params)
    max_err = float(jnp.max(jnp.abs(out - ref)))
    # bf16 MXU operands vs. the f32 reference -> allow a small tolerance
    assert max_err < 0.1, f"mismatch vs pure-JAX reference: max|diff|={max_err}"

    print("KERNEL_OK")
</pallas_src>

<mosaic_0001>
module attributes {stable_mosaic.version = 11 : i64} {
  func.func @_bn_relu_kernel(%arg0: i32, %arg1: memref<1x324x8xf32, #tpu.memory_space<vmem>>, %arg2: memref<1x8xf32, #tpu.memory_space<vmem>>, %arg3: memref<1x8xf32, #tpu.memory_space<vmem>>, %arg4: memref<1x324x8xf32, #tpu.memory_space<vmem>>) attributes {dimension_semantics = [#tpu.dimension_semantics<parallel>], iteration_bounds = array<i64: 2>, scalar_prefetch = 0 : i64, scratch_operands = 0 : i64, tpu.core_type = #tpu.core_type<tc>, window_params = [{transform_indices = @transform_0, window_bounds = array<i64: 1, 324, 8>}, {pipeline_mode = #tpu.pipeline_mode<synchronous>, transform_indices = @transform_1, window_bounds = array<i64: 1, 8>}, {pipeline_mode = #tpu.pipeline_mode<synchronous>, transform_indices = @transform_2, window_bounds = array<i64: 1, 8>}, {transform_indices = @transform_3, window_bounds = array<i64: 1, 324, 8>}]} {
    %c0 = arith.constant 0 : index
    %c0_0 = arith.constant 0 : index
    %c0_1 = arith.constant 0 : index
    %0 = vector.load %arg1[%c0, %c0_0, %c0_1] : memref<1x324x8xf32, #tpu.memory_space<vmem>>, vector<1x324x8xf32>
    %1 = vector.shape_cast %0 : vector<1x324x8xf32> to vector<324x8xf32>
    %c0_2 = arith.constant 0 : index
    %c0_3 = arith.constant 0 : index
    %2 = vector.load %arg2[%c0_2, %c0_3] : memref<1x8xf32, #tpu.memory_space<vmem>>, vector<1x8xf32>
    %3 = vector.broadcast %2 : vector<1x8xf32> to vector<324x8xf32>
    %4 = arith.mulf %1, %3 : vector<324x8xf32>
    %c0_4 = arith.constant 0 : index
    %c0_5 = arith.constant 0 : index
    %5 = vector.load %arg3[%c0_4, %c0_5] : memref<1x8xf32, #tpu.memory_space<vmem>>, vector<1x8xf32>
    %6 = vector.broadcast %5 : vector<1x8xf32> to vector<324x8xf32>
    %7 = arith.addf %4, %6 : vector<324x8xf32>
    %cst = arith.constant 0.000000e+00 : f32
    %8 = vector.broadcast %cst : f32 to vector<324x8xf32>
    %9 = arith.maximumf %7, %8 : vector<324x8xf32>
    %c0_6 = arith.constant 0 : index
    %c0_7 = arith.constant 0 : index
    %c0_8 = arith.constant 0 : index
    %10 = vector.load %arg4[%c0_6, %c0_7, %c0_8] : memref<1x324x8xf32, #tpu.memory_space<vmem>>, vector<1x324x8xf32>
    %11 = vector.shape_cast %10 : vector<1x324x8xf32> to vector<324x8xf32>
    %12 = vector.shape_cast %9 : vector<324x8xf32> to vector<1x324x8xf32>
    tpu.vector_store %arg4[%c0_6, %c0_7, %c0_8], %12 {strides = array<i32>} : memref<1x324x8xf32, #tpu.memory_space<vmem>>, vector<1x324x8xf32>,
    return
  }
  func.func @transform_0(%arg0: i32) -> (i32, i32, i32) {
    %c0_i32 = arith.constant 0 : i32
    %c0_i32_0 = arith.constant 0 : i32
    %c0_i32_1 = arith.constant 0 : i32
    return %arg0, %c0_i32, %c0_i32_0 : i32, i32, i32
  }
  func.func @transform_1(%arg0: i32) -> (i32, i32) {
    %c0_i32 = arith.constant 0 : i32
    %c0_i32_0 = arith.constant 0 : i32
    %c0_i32_1 = arith.constant 0 : i32
    return %c0_i32, %c0_i32_0 : i32, i32
  }
  func.func @transform_2(%arg0: i32) -> (i32, i32) {
    %c0_i32 = arith.constant 0 : i32
    %c0_i32_0 = arith.constant 0 : i32
    %c0_i32_1 = arith.constant 0 : i32
    return %c0_i32, %c0_i32_0 : i32, i32
  }
  func.func @transform_3(%arg0: i32) -> (i32, i32, i32) {
    %c0_i32 = arith.constant 0 : i32
    %c0_i32_0 = arith.constant 0 : i32
    %c0_i32_1 = arith.constant 0 : i32
    return %arg0, %c0_i32, %c0_i32_0 : i32, i32, i32
  }
}

module attributes {stable_mosaic.version = 11 : i64} {
  func.func @_conv_stats_kernel(%arg0: i32, %arg1: memref<1x372x4xf32, #tpu.memory_space<vmem>>, %arg2: memref<9x4x8xbf16, #tpu.memory_space<vmem>>, %arg3: memref<324x1xf32, #tpu.memory_space<vmem>>, %arg4: memref<1x324x8xf32, #tpu.memory_space<vmem>>, %arg5: memref<1x1x8xf32, #tpu.memory_space<vmem>>, %arg6: memref<1x1x8xf32, #tpu.memory_space<vmem>>) attributes {dimension_semantics = [#tpu.dimension_semantics<parallel>], iteration_bounds = array<i64: 2>, scalar_prefetch = 0 : i64, scratch_operands = 0 : i64, tpu.core_type = #tpu.core_type<tc>, window_params = [{transform_indices = @transform_0, window_bounds = array<i64: 1, 372, 4>}, {pipeline_mode = #tpu.pipeline_mode<synchronous>, transform_indices = @transform_1, window_bounds = array<i64: 9, 4, 8>}, {pipeline_mode = #tpu.pipeline_mode<synchronous>, transform_indices = @transform_2, window_bounds = array<i64: 324, 1>}, {transform_indices = @transform_3, window_bounds = array<i64: 1, 324, 8>}, {transform_indices = @transform_4, window_bounds = array<i64: 1, 1, 8>}, {transform_indices = @transform_5, window_bounds = array<i64: 1, 1, 8>}]} {
    %c0 = arith.constant 0 : index
    %c5 = arith.constant 5 : index
    %c0_0 = arith.constant 0 : index
    %0 = vector.load %arg1[%c0, %c5, %c0_0] : memref<1x372x4xf32, #tpu.memory_space<vmem>>, vector<1x324x4xf32>
    %1 = vector.shape_cast %0 : vector<1x324x4xf32> to vector<324x4xf32>
    %2 = arith.truncf %1 : vector<324x4xf32> to vector<324x4xbf16>
    %c0_1 = arith.constant 0 : index
    %c0_2 = arith.constant 0 : index
    %c0_3 = arith.constant 0 : index
    %3 = vector.load %arg2[%c0_1, %c0_2, %c0_3] : memref<9x4x8xbf16, #tpu.memory_space<vmem>>, vector<1x4x8xbf16>
    %4 = vector.shape_cast %3 : vector<1x4x8xbf16> to vector<4x8xbf16>
    %cst = arith.constant dense<0.000000e+00> : vector<324x8xf32>
    %5 = tpu.matmul %2, %4, %cst {dimension_numbers = #tpu.dot_dimension_numbers<[1], [0], [0], [1], [0, 0, 1, 1], [], []>} : vector<324x4xbf16>, vector<4x8xbf16>, vector<324x8xf32> -> vector<324x8xf32>
    %c0_4 = arith.constant 0 : index
    %c6 = arith.constant 6 : index
    %c0_5 = arith.constant 0 : index
    %6 = vector.load %arg1[%c0_4, %c6, %c0_5] : memref<1x372x4xf32, #tpu.memory_space<vmem>>, vector<1x324x4xf32>
    %7 = vector.shape_cast %6 : vector<1x324x4xf32> to vector<324x4xf32>
    %8 = arith.truncf %7 : vector<324x4xf32> to vector<324x4xbf16>
    %c1 = arith.constant 1 : index
    %c0_6 = arith.constant 0 : index
    %c0_7 = arith.constant 0 : index
    %9 = vector.load %arg2[%c1, %c0_6, %c0_7] : memref<9x4x8xbf16, #tpu.memory_space<vmem>>, vector<1x4x8xbf16>
    %10 = vector.shape_cast %9 : vector<1x4x8xbf16> to vector<4x8xbf16>
    %cst_8 = arith.constant dense<0.000000e+00> : vector<324x8xf32>
    %11 = tpu.matmul %8, %10, %cst_8 {dimension_numbers = #tpu.dot_dimension_numbers<[1], [0], [0], [1], [0, 0, 1, 1], [], []>} : vector<324x4xbf16>, vector<4x8xbf16>, vector<324x8xf32> -> vector<324x8xf32>
    %12 = arith.addf %5, %11 : vector<324x8xf32>
    %c0_9 = arith.constant 0 : index
    %c7 = arith.constant 7 : index
    %c0_10 = arith.constant 0 : index
    %13 = vector.load %arg1[%c0_9, %c7, %c0_10] : memref<1x372x4xf32, #tpu.memory_space<vmem>>, vector<1x324x4xf32>
    %14 = vector.shape_cast %13 : vector<1x324x4xf32> to vector<324x4xf32>
    %15 = arith.truncf %14 : vector<324x4xf32> to vector<324x4xbf16>
    %c2 = arith.constant 2 : index
    %c0_11 = arith.constant 0 : index
    %c0_12 = arith.constant 0 : index
    %16 = vector.load %arg2[%c2, %c0_11, %c0_12] : memref<9x4x8xbf16, #tpu.memory_space<vmem>>, vector<1x4x8xbf16>
    %17 = vector.shape_cast %16 : vector<1x4x8xbf16> to vector<4x8xbf16>
    %cst_13 = arith.constant dense<0.000000e+00> : vector<324x8xf32>
    %18 = tpu.matmul %15, %17, %cst_13 {dimension_numbers = #tpu.dot_dimension_numbers<[1], [0], [0], [1], [0, 0, 1, 1], [], []>} : vector<324x4xbf16>, vector<4x8xbf16>, vector<324x8xf32> -> vector<324x8xf32>
    %19 = arith.addf %12, %18 : vector<324x8xf32>
    %c0_14 = arith.constant 0 : index
    %c23 = arith.constant 23 : index
    %c0_15 = arith.constant 0 : index
    %20 = vector.load %arg1[%c0_14, %c23, %c0_15] : memref<1x372x4xf32, #tpu.memory_space<vmem>>, vector<1x324x4xf32>
    %21 = vector.shape_cast %20 : vector<1x324x4xf32> to vector<324x4xf32>
    %22 = arith.truncf %21 : vector<324x4xf32> to vector<324x4xbf16>
    %c3 = arith.constant 3 : index
    %c0_16 = arith.constant 0 : index
    %c0_17 = arith.constant 0 : index
    %23 = vector.load %arg2[%c3, %c0_16, %c0_17] : memref<9x4x8xbf16, #tpu.memory_space<vmem>>, vector<1x4x8xbf16>
    %24 = vector.shape_cast %23 : vector<1x4x8xbf16> to vector<4x8xbf16>
    %cst_18 = arith.constant dense<0.000000e+00> : vector<324x8xf32>
    %25 = tpu.matmul %22, %24, %cst_18 {dimension_numbers = #tpu.dot_dimension_numbers<[1], [0], [0], [1], [0, 0, 1, 1], [], []>} : vector<324x4xbf16>, vector<4x8xbf16>, vector<324x8xf32> -> vector<324x8xf32>
    %26 = arith.addf %19, %25 : vector<324x8xf32>
    %c0_19 = arith.constant 0 : index
    %c24 = arith.constant 24 : index
    %c0_20 = arith.constant 0 : index
    %27 = vector.load %arg1[%c0_19, %c24, %c0_20] : memref<1x372x4xf32, #tpu.memory_space<vmem>>, vector<1x324x4xf32>
    %28 = vector.shape_cast %27 : vector<1x324x4xf32> to vector<324x4xf32>
    %29 = arith.truncf %28 : vector<324x4xf32> to vector<324x4xbf16>
    %c4 = arith.constant 4 : index
    %c0_21 = arith.constant 0 : index
    %c0_22 = arith.constant 0 : index
    %30 = vector.load %arg2[%c4, %c0_21, %c0_22] : memref<9x4x8xbf16, #tpu.memory_space<vmem>>, vector<1x4x8xbf16>
    %31 = vector.shape_cast %30 : vector<1x4x8xbf16> to vector<4x8xbf16>
    %cst_23 = arith.constant dense<0.000000e+00> : vector<324x8xf32>
    %32 = tpu.matmul %29, %31, %cst_23 {dimension_numbers = #tpu.dot_dimension_numbers<[1], [0], [0], [1], [0, 0, 1, 1], [], []>} : vector<324x4xbf16>, vector<4x8xbf16>, vector<324x8xf32> -> vector<324x8xf32>
    %33 = arith.addf %26, %32 : vector<324x8xf32>
    %c0_24 = arith.constant 0 : index
    %c25 = arith.constant 25 : index
    %c0_25 = arith.constant 0 : index
    %34 = vector.load %arg1[%c0_24, %c25, %c0_25] : memref<1x372x4xf32, #tpu.memory_space<vmem>>, vector<1x324x4xf32>
    %35 = vector.shape_cast %34 : vector<1x324x4xf32> to vector<324x4xf32>
    %36 = arith.truncf %35 : vector<324x4xf32> to vector<324x4xbf16>
    %c5_26 = arith.constant 5 : index
    %c0_27 = arith.constant 0 : index
    %c0_28 = arith.constant 0 : index
    %37 = vector.load %arg2[%c5_26, %c0_27, %c0_28] : memref<9x4x8xbf16, #tpu.memory_space<vmem>>, vector<1x4x8xbf16>
    %38 = vector.shape_cast %37 : vector<1x4x8xbf16> to vector<4x8xbf16>
    %cst_29 = arith.constant dense<0.000000e+00> : vector<324x8xf32>
    %39 = tpu.matmul %36, %38, %cst_29 {dimension_numbers = #tpu.dot_dimension_numbers<[1], [0], [0], [1], [0, 0, 1, 1], [], []>} : vector<324x4xbf16>, vector<4x8xbf16>, vector<324x8xf32> -> vector<324x8xf32>
    %40 = arith.addf %33, %39 : vector<324x8xf32>
    %c0_30 = arith.constant 0 : index
    %c41 = arith.constant 41 : index
    %c0_31 = arith.constant 0 : index
    %41 = vector.load %arg1[%c0_30, %c41, %c0_31] : memref<1x372x4xf32, #tpu.memory_space<vmem>>, vector<1x324x4xf32>
    %42 = vector.shape_cast %41 : vector<1x324x4xf32> to vector<324x4xf32>
    %43 = arith.truncf %42 : vector<324x4xf32> to vector<324x4xbf16>
    %c6_32 = arith.constant 6 : index
    %c0_33 = arith.constant 0 : index
    %c0_34 = arith.constant 0 : index
    %44 = vector.load %arg2[%c6_32, %c0_33, %c0_34] : memref<9x4x8xbf16, #tpu.memory_space<vmem>>, vector<1x4x8xbf16>
    %45 = vector.shape_cast %44 : vector<1x4x8xbf16> to vector<4x8xbf16>
    %cst_35 = arith.constant dense<0.000000e+00> : vector<324x8xf32>
    %46 = tpu.matmul %43, %45, %cst_35 {dimension_numbers = #tpu.dot_dimension_numbers<[1], [0], [0], [1], [0, 0, 1, 1], [], []>} : vector<324x4xbf16>, vector<4x8xbf16>, vector<324x8xf32> -> vector<324x8xf32>
    %47 = arith.addf %40, %46 : vector<324x8xf32>
    %c0_36 = arith.constant 0 : index
    %c42 = arith.constant 42 : index
    %c0_37 = arith.constant 0 : index
    %48 = vector.load %arg1[%c0_36, %c42, %c0_37] : memref<1x372x4xf32, #tpu.memory_space<vmem>>, vector<1x324x4xf32>
    %49 = vector.shape_cast %48 : vector<1x324x4xf32> to vector<324x4xf32>
    %50 = arith.truncf %49 : vector<324x4xf32> to vector<324x4xbf16>
    %c7_38 = arith.constant 7 : index
    %c0_39 = arith.constant 0 : index
    %c0_40 = arith.constant 0 : index
    %51 = vector.load %arg2[%c7_38, %c0_39, %c0_40] : memref<9x4x8xbf16, #tpu.memory_space<vmem>>, vector<1x4x8xbf16>
    %52 = vector.shape_cast %51 : vector<1x4x8xbf16> to vector<4x8xbf16>
    %cst_41 = arith.constant dense<0.000000e+00> : vector<324x8xf32>
    %53 = tpu.matmul %50, %52, %cst_41 {dimension_numbers = #tpu.dot_dimension_numbers<[1], [0], [0], [1], [0, 0, 1, 1], [], []>} : vector<324x4xbf16>, vector<4x8xbf16>, vector<324x8xf32> -> vector<324x8xf32>
    %54 = arith.addf %47, %53 : vector<324x8xf32>
    %c0_42 = arith.constant 0 : index
    %c43 = arith.constant 43 : index
    %c0_43 = arith.constant 0 : index
    %55 = vector.load %arg1[%c0_42, %c43, %c0_43] : memref<1x372x4xf32, #tpu.memory_space<vmem>>, vector<1x324x4xf32>
    %56 = vector.shape_cast %55 : vector<1x324x4xf32> to vector<324x4xf32>
    %57 = arith.truncf %56 : vector<324x4xf32> to vector<324x4xbf16>
    %c8 = arith.constant 8 : index
    %c0_44 = arith.constant 0 : index
    %c0_45 = arith.constant 0 : index
    %58 = vector.load %arg2[%c8, %c0_44, %c0_45] : memref<9x4x8xbf16, #tpu.memory_space<vmem>>, vector<1x4x8xbf16>
    %59 = vector.shape_cast %58 : vector<1x4x8xbf16> to vector<4x8xbf16>
    %cst_46 = arith.constant dense<0.000000e+00> : vector<324x8xf32>
    %60 = tpu.matmul %57, %59, %cst_46 {dimension_numbers = #tpu.dot_dimension_numbers<[1], [0], [0], [1], [0, 0, 1, 1], [], []>} : vector<324x4xbf16>, vector<4x8xbf16>, vector<324x8xf32> -> vector<324x8xf32>
    %61 = arith.addf %54, %60 : vector<324x8xf32>
    %c0_47 = arith.constant 0 : index
    %c0_48 = arith.constant 0 : index
    %c0_49 = arith.constant 0 : index
    %62 = vector.load %arg4[%c0_47, %c0_48, %c0_49] : memref<1x324x8xf32, #tpu.memory_space<vmem>>, vector<1x324x8xf32>
    %63 = vector.shape_cast %62 : vector<1x324x8xf32> to vector<324x8xf32>
    %64 = vector.shape_cast %61 : vector<324x8xf32> to vector<1x324x8xf32>
    tpu.vector_store %arg4[%c0_47, %c0_48, %c0_49], %64 {strides = array<i32>} : memref<1x324x8xf32, #tpu.memory_space<vmem>>, vector<1x324x8xf32>,
    %c0_50 = arith.constant 0 : index
    %c0_51 = arith.constant 0 : index
    %65 = vector.load %arg3[%c0_50, %c0_51] : memref<324x1xf32, #tpu.memory_space<vmem>>, vector<324x1xf32>
    %cst_52 = arith.constant 0.000000e+00 : f32
    %66 = vector.broadcast %cst_52 : f32 to vector<324x1xf32>
    %67 = arith.cmpf ogt, %65, %66 : vector<324x1xf32>
    %cst_53 = arith.constant 0.000000e+00 : f32
    %68 = vector.shape_cast %67 : vector<324x1xi1> to vector<324x1xi1>
    %69 = vector.broadcast %68 : vector<324x1xi1> to vector<324x8xi1>
    %70 = vector.broadcast %cst_53 : f32 to vector<324x8xf32>
    %71 = arith.select %69, %61, %70 : vector<324x8xi1>, vector<324x8xf32>
    %cst_54 = arith.constant dense<0.000000e+00> : vector<8xf32>
    %72 = vector.multi_reduction <add>, %71, %cst_54 [0] : vector<324x8xf32> to vector<8xf32>
    %73 = vector.shape_cast %72 : vector<8xf32> to vector<1x8xf32>
    %c0_55 = arith.constant 0 : index
    %c0_56 = arith.constant 0 : index
    %c0_57 = arith.constant 0 : index
    %74 = vector.load %arg5[%c0_55, %c0_56, %c0_57] : memref<1x1x8xf32, #tpu.memory_space<vmem>>, vector<1x1x8xf32>
    %75 = vector.shape_cast %74 : vector<1x1x8xf32> to vector<1x8xf32>
    %76 = vector.shape_cast %73 : vector<1x8xf32> to vector<1x1x8xf32>
    tpu.vector_store %arg5[%c0_55, %c0_56, %c0_57], %76 {strides = array<i32>} : memref<1x1x8xf32, #tpu.memory_space<vmem>>, vector<1x1x8xf32>,
    %77 = arith.mulf %71, %71 : vector<324x8xf32>
    %cst_58 = arith.constant dense<0.000000e+00> : vector<8xf32>
    %78 = vector.multi_reduction <add>, %77, %cst_58 [0] : vector<324x8xf32> to vector<8xf32>
    %79 = vector.shape_cast %78 : vector<8xf32> to vector<1x8xf32>
    %c0_59 = arith.constant 0 : index
    %c0_60 = arith.constant 0 : index
    %c0_61 = arith.constant 0 : index
    %80 = vector.load %arg6[%c0_59, %c0_60, %c0_61] : memref<1x1x8xf32, #tpu.memory_space<vmem>>, vector<1x1x8xf32>
    %81 = vector.shape_cast %80 : vector<1x1x8xf32> to vector<1x8xf32>
    %82 = vector.shape_cast %79 : vector<1x8xf32> to vector<1x1x8xf32>
    tpu.vector_store %arg6[%c0_59, %c0_60, %c0_61], %82 {strides = array<i32>} : memref<1x1x8xf32, #tpu.memory_space<vmem>>, vector<1x1x8xf32>,
    return
  }
  func.func @transform_0(%arg0: i32) -> (i32, i32, i32) {
    %c0_i32 = arith.constant 0 : i32
    %c0_i32_0 = arith.constant 0 : i32
    %c0_i32_1 = arith.constant 0 : i32
    return %arg0, %c0_i32, %c0_i32_0 : i32, i32, i32
  }
  func.func @transform_1(%arg0: i32) -> (i32, i32, i32) {
    %c0_i32 = arith.constant 0 : i32
    %c0_i32_0 = arith.constant 0 : i32
    %c0_i32_1 = arith.constant 0 : i32
    %c0_i32_2 = arith.constant 0 : i32
    return %c0_i32, %c0_i32_0, %c0_i32_1 : i32, i32, i32
  }
  func.func @transform_2(%arg0: i32) -> (i32, i32) {
    %c0_i32 = arith.constant 0 : i32
    %c0_i32_0 = arith.constant 0 : i32
    %c0_i32_1 = arith.constant 0 : i32
    return %c0_i32, %c0_i32_0 : i32, i32
  }
  func.func @transform_3(%arg0: i32) -> (i32, i32, i32) {
    %c0_i32 = arith.constant 0 : i32
    %c0_i32_0 = arith.constant 0 : i32
    %c0_i32_1 = arith.constant 0 : i32
    return %arg0, %c0_i32, %c0_i32_0 : i32, i32, i32
  }
  func.func @transform_4(%arg0: i32) -> (i32, i32, i32) {
    %c0_i32 = arith.constant 0 : i32
    %c0_i32_0 = arith.constant 0 : i32
    %c0_i32_1 = arith.constant 0 : i32
    return %arg0, %c0_i32, %c0_i32_0 : i32, i32, i32
  }
  func.func @transform_5(%arg0: i32) -> (i32, i32, i32) {
    %c0_i32 = arith.constant 0 : i32
    %c0_i32_0 = arith.constant 0 : i32
    %c0_i32_1 = arith.constant 0 : i32
    return %arg0, %c0_i32, %c0_i32_0 : i32, i32, i32
  }
}

module attributes {stable_mosaic.version = 11 : i64} {
  func.func @_bn_conv_stats_kernel(%arg0: i32, %arg1: memref<1x324x8xf32, #tpu.memory_space<vmem>>, %arg2: memref<1x8xf32, #tpu.memory_space<vmem>>, %arg3: memref<1x8xf32, #tpu.memory_space<vmem>>, %arg4: memref<9x8x8xbf16, #tpu.memory_space<vmem>>, %arg5: memref<324x1xf32, #tpu.memory_space<vmem>>, %arg6: memref<1x324x8xf32, #tpu.memory_space<vmem>>, %arg7: memref<1x1x8xf32, #tpu.memory_space<vmem>>, %arg8: memref<1x1x8xf32, #tpu.memory_space<vmem>>, %arg9: memref<372x8xf32, #tpu.memory_space<vmem>>) attributes {dimension_semantics = [#tpu.dimension_semantics<parallel>], iteration_bounds = array<i64: 2>, scalar_prefetch = 0 : i64, scratch_operands = 1 : i64, tpu.core_type = #tpu.core_type<tc>, window_params = [{transform_indices = @transform_0, window_bounds = array<i64: 1, 324, 8>}, {pipeline_mode = #tpu.pipeline_mode<synchronous>, transform_indices = @transform_1, window_bounds = array<i64: 1, 8>}, {pipeline_mode = #tpu.pipeline_mode<synchronous>, transform_indices = @transform_2, window_bounds = array<i64: 1, 8>}, {pipeline_mode = #tpu.pipeline_mode<synchronous>, transform_indices = @transform_3, window_bounds = array<i64: 9, 8, 8>}, {pipeline_mode = #tpu.pipeline_mode<synchronous>, transform_indices = @transform_4, window_bounds = array<i64: 324, 1>}, {transform_indices = @transform_5, window_bounds = array<i64: 1, 324, 8>}, {transform_indices = @transform_6, window_bounds = array<i64: 1, 1, 8>}, {transform_indices = @transform_7, window_bounds = array<i64: 1, 1, 8>}]} {
    %c0 = arith.constant 0 : index
    %c0_0 = arith.constant 0 : index
    %0 = vector.load %arg5[%c0, %c0_0] : memref<324x1xf32, #tpu.memory_space<vmem>>, vector<324x1xf32>
    %c0_1 = arith.constant 0 : index
    %c0_2 = arith.constant 0 : index
    %c0_3 = arith.constant 0 : index
    %1 = vector.load %arg1[%c0_1, %c0_2, %c0_3] : memref<1x324x8xf32, #tpu.memory_space<vmem>>, vector<1x324x8xf32>
    %2 = vector.shape_cast %1 : vector<1x324x8xf32> to vector<324x8xf32>
    %c0_4 = arith.constant 0 : index
    %c0_5 = arith.constant 0 : index
    %3 = vector.load %arg2[%c0_4, %c0_5] : memref<1x8xf32, #tpu.memory_space<vmem>>, vector<1x8xf32>
    %4 = vector.broadcast %3 : vector<1x8xf32> to vector<324x8xf32>
    %5 = arith.mulf %2, %4 : vector<324x8xf32>
    %c0_6 = arith.constant 0 : index
    %c0_7 = arith.constant 0 : index
    %6 = vector.load %arg3[%c0_6, %c0_7] : memref<1x8xf32, #tpu.memory_space<vmem>>, vector<1x8xf32>
    %7 = vector.broadcast %6 : vector<1x8xf32> to vector<324x8xf32>
    %8 = arith.addf %5, %7 : vector<324x8xf32>
    %cst = arith.constant 0.000000e+00 : f32
    %9 = vector.broadcast %cst : f32 to vector<324x1xf32>
    %10 = arith.cmpf ogt, %0, %9 : vector<324x1xf32>
    %cst_8 = arith.constant 0.000000e+00 : f32
    %11 = vector.shape_cast %10 : vector<324x1xi1> to vector<324x1xi1>
    %12 = vector.broadcast %11 : vector<324x1xi1> to vector<324x8xi1>
    %13 = vector.broadcast %cst_8 : f32 to vector<324x8xf32>
    %14 = arith.select %12, %8, %13 : vector<324x8xi1>, vector<324x8xf32>
    %cst_9 = arith.constant 0.000000e+00 : f32
    %15 = vector.broadcast %cst_9 : f32 to vector<24x8xf32>
    %c0_10 = arith.constant 0 : index
    %c0_11 = arith.constant 0 : index
    %16 = vector.load %arg9[%c0_10, %c0_11] : memref<372x8xf32, #tpu.memory_space<vmem>>, vector<24x8xf32>
    tpu.vector_store %arg9[%c0_10, %c0_11], %15 {strides = array<i32>} : memref<372x8xf32, #tpu.memory_space<vmem>>, vector<24x8xf32>,
    %cst_12 = arith.constant 0.000000e+00 : f32
    %17 = vector.broadcast %cst_12 : f32 to vector<24x8xf32>
    %c348 = arith.constant 348 : index
    %c0_13 = arith.constant 0 : index
    %18 = vector.load %arg9[%c348, %c0_13] : memref<372x8xf32, #tpu.memory_space<vmem>>, vector<24x8xf32>
    tpu.vector_store %arg9[%c348, %c0_13], %17 {strides = array<i32>} : memref<372x8xf32, #tpu.memory_space<vmem>>, vector<24x8xf32>,
    %c24 = arith.constant 24 : index
    %c0_14 = arith.constant 0 : index
    %19 = vector.load %arg9[%c24, %c0_14] : memref<372x8xf32, #tpu.memory_space<vmem>>, vector<324x8xf32>
    tpu.vector_store %arg9[%c24, %c0_14], %14 {strides = array<i32>} : memref<372x8xf32, #tpu.memory_space<vmem>>, vector<324x8xf32>,
    %c5 = arith.constant 5 : index
    %c0_15 = arith.constant 0 : index
    %20 = vector.load %arg9[%c5, %c0_15] : memref<372x8xf32, #tpu.memory_space<vmem>>, vector<324x8xf32>
    %21 = arith.truncf %20 : vector<324x8xf32> to vector<324x8xbf16>
    %c0_16 = arith.constant 0 : index
    %c0_17 = arith.constant 0 : index
    %c0_18 = arith.constant 0 : index
    %22 = vector.load %arg4[%c0_16, %c0_17, %c0_18] : memref<9x8x8xbf16, #tpu.memory_space<vmem>>, vector<1x8x8xbf16>
    %23 = vector.shape_cast %22 : vector<1x8x8xbf16> to vector<8x8xbf16>
    %cst_19 = arith.constant dense<0.000000e+00> : vector<324x8xf32>
    %24 = tpu.matmul %21, %23, %cst_19 {dimension_numbers = #tpu.dot_dimension_numbers<[1], [0], [0], [1], [0, 0, 1, 1], [], []>} : vector<324x8xbf16>, vector<8x8xbf16>, vector<324x8xf32> -> vector<324x8xf32>
    %c6 = arith.constant 6 : index
    %c0_20 = arith.constant 0 : index
    %25 = vector.load %arg9[%c6, %c0_20] : memref<372x8xf32, #tpu.memory_space<vmem>>, vector<324x8xf32>
    %26 = arith.truncf %25 : vector<324x8xf32> to vector<324x8xbf16>
    %c1 = arith.constant 1 : index
    %c0_21 = arith.constant 0 : index
    %c0_22 = arith.constant 0 : index
    %27 = vector.load %arg4[%c1, %c0_21, %c0_22] : memref<9x8x8xbf16, #tpu.memory_space<vmem>>, vector<1x8x8xbf16>
    %28 = vector.shape_cast %27 : vector<1x8x8xbf16> to vector<8x8xbf16>
    %cst_23 = arith.constant dense<0.000000e+00> : vector<324x8xf32>
    %29 = tpu.matmul %26, %28, %cst_23 {dimension_numbers = #tpu.dot_dimension_numbers<[1], [0], [0], [1], [0, 0, 1, 1], [], []>} : vector<324x8xbf16>, vector<8x8xbf16>, vector<324x8xf32> -> vector<324x8xf32>
    %30 = arith.addf %24, %29 : vector<324x8xf32>
    %c7 = arith.constant 7 : index
    %c0_24 = arith.constant 0 : index
    %31 = vector.load %arg9[%c7, %c0_24] : memref<372x8xf32, #tpu.memory_space<vmem>>, vector<324x8xf32>
    %32 = arith.truncf %31 : vector<324x8xf32> to vector<324x8xbf16>
    %c2 = arith.constant 2 : index
    %c0_25 = arith.constant 0 : index
    %c0_26 = arith.constant 0 : index
    %33 = vector.load %arg4[%c2, %c0_25, %c0_26] : memref<9x8x8xbf16, #tpu.memory_space<vmem>>, vector<1x8x8xbf16>
    %34 = vector.shape_cast %33 : vector<1x8x8xbf16> to vector<8x8xbf16>
    %cst_27 = arith.constant dense<0.000000e+00> : vector<324x8xf32>
    %35 = tpu.matmul %32, %34, %cst_27 {dimension_numbers = #tpu.dot_dimension_numbers<[1], [0], [0], [1], [0, 0, 1, 1], [], []>} : vector<324x8xbf16>, vector<8x8xbf16>, vector<324x8xf32> -> vector<324x8xf32>
    %36 = arith.addf %30, %35 : vector<324x8xf32>
    %c23 = arith.constant 23 : index
    %c0_28 = arith.constant 0 : index
    %37 = vector.load %arg9[%c23, %c0_28] : memref<372x8xf32, #tpu.memory_space<vmem>>, vector<324x8xf32>
    %38 = arith.truncf %37 : vector<324x8xf32> to vector<324x8xbf16>
    %c3 = arith.constant 3 : index
    %c0_29 = arith.constant 0 : index
    %c0_30 = arith.constant 0 : index
    %39 = vector.load %arg4[%c3, %c0_29, %c0_30] : memref<9x8x8xbf16, #tpu.memory_space<vmem>>, vector<1x8x8xbf16>
    %40 = vector.shape_cast %39 : vector<1x8x8xbf16> to vector<8x8xbf16>
    %cst_31 = arith.constant dense<0.000000e+00> : vector<324x8xf32>
    %41 = tpu.matmul %38, %40, %cst_31 {dimension_numbers = #tpu.dot_dimension_numbers<[1], [0], [0], [1], [0, 0, 1, 1], [], []>} : vector<324x8xbf16>, vector<8x8xbf16>, vector<324x8xf32> -> vector<324x8xf32>
    %42 = arith.addf %36, %41 : vector<324x8xf32>
    %c24_32 = arith.constant 24 : index
    %c0_33 = arith.constant 0 : index
    %43 = vector.load %arg9[%c24_32, %c0_33] : memref<372x8xf32, #tpu.memory_space<vmem>>, vector<324x8xf32>
    %44 = arith.truncf %43 : vector<324x8xf32> to vector<324x8xbf16>
    %c4 = arith.constant 4 : index
    %c0_34 = arith.constant 0 : index
    %c0_35 = arith.constant 0 : index
    %45 = vector.load %arg4[%c4, %c0_34, %c0_35] : memref<9x8x8xbf16, #tpu.memory_space<vmem>>, vector<1x8x8xbf16>
    %46 = vector.shape_cast %45 : vector<1x8x8xbf16> to vector<8x8xbf16>
    %cst_36 = arith.constant dense<0.000000e+00> : vector<324x8xf32>
    %47 = tpu.matmul %44, %46, %cst_36 {dimension_numbers = #tpu.dot_dimension_numbers<[1], [0], [0], [1], [0, 0, 1, 1], [], []>} : vector<324x8xbf16>, vector<8x8xbf16>, vector<324x8xf32> -> vector<324x8xf32>
    %48 = arith.addf %42, %47 : vector<324x8xf32>
    %c25 = arith.constant 25 : index
    %c0_37 = arith.constant 0 : index
    %49 = vector.load %arg9[%c25, %c0_37] : memref<372x8xf32, #tpu.memory_space<vmem>>, vector<324x8xf32>
    %50 = arith.truncf %49 : vector<324x8xf32> to vector<324x8xbf16>
    %c5_38 = arith.constant 5 : index
    %c0_39 = arith.constant 0 : index
    %c0_40 = arith.constant 0 : index
    %51 = vector.load %arg4[%c5_38, %c0_39, %c0_40] : memref<9x8x8xbf16, #tpu.memory_space<vmem>>, vector<1x8x8xbf16>
    %52 = vector.shape_cast %51 : vector<1x8x8xbf16> to vector<8x8xbf16>
    %cst_41 = arith.constant dense<0.000000e+00> : vector<324x8xf32>
    %53 = tpu.matmul %50, %52, %cst_41 {dimension_numbers = #tpu.dot_dimension_numbers<[1], [0], [0], [1], [0, 0, 1, 1], [], []>} : vector<324x8xbf16>, vector<8x8xbf16>, vector<324x8xf32> -> vector<324x8xf32>
    %54 = arith.addf %48, %53 : vector<324x8xf32>
    %c41 = arith.constant 41 : index
    %c0_42 = arith.constant 0 : index
    %55 = vector.load %arg9[%c41, %c0_42] : memref<372x8xf32, #tpu.memory_space<vmem>>, vector<324x8xf32>
    %56 = arith.truncf %55 : vector<324x8xf32> to vector<324x8xbf16>
    %c6_43 = arith.constant 6 : index
    %c0_44 = arith.constant 0 : index
    %c0_45 = arith.constant 0 : index
    %57 = vector.load %arg4[%c6_43, %c0_44, %c0_45] : memref<9x8x8xbf16, #tpu.memory_space<vmem>>, vector<1x8x8xbf16>
    %58 = vector.shape_cast %57 : vector<1x8x8xbf16> to vector<8x8xbf16>
    %cst_46 = arith.constant dense<0.000000e+00> : vector<324x8xf32>
    %59 = tpu.matmul %56, %58, %cst_46 {dimension_numbers = #tpu.dot_dimension_numbers<[1], [0], [0], [1], [0, 0, 1, 1], [], []>} : vector<324x8xbf16>, vector<8x8xbf16>, vector<324x8xf32> -> vector<324x8xf32>
    %60 = arith.addf %54, %59 : vector<324x8xf32>
    %c42 = arith.constant 42 : index
    %c0_47 = arith.constant 0 : index
    %61 = vector.load %arg9[%c42, %c0_47] : memref<372x8xf32, #tpu.memory_space<vmem>>, vector<324x8xf32>
    %62 = arith.truncf %61 : vector<324x8xf32> to vector<324x8xbf16>
    %c7_48 = arith.constant 7 : index
    %c0_49 = arith.constant 0 : index
    %c0_50 = arith.constant 0 : index
    %63 = vector.load %arg4[%c7_48, %c0_49, %c0_50] : memref<9x8x8xbf16, #tpu.memory_space<vmem>>, vector<1x8x8xbf16>
    %64 = vector.shape_cast %63 : vector<1x8x8xbf16> to vector<8x8xbf16>
    %cst_51 = arith.constant dense<0.000000e+00> : vector<324x8xf32>
    %65 = tpu.matmul %62, %64, %cst_51 {dimension_numbers = #tpu.dot_dimension_numbers<[1], [0], [0], [1], [0, 0, 1, 1], [], []>} : vector<324x8xbf16>, vector<8x8xbf16>, vector<324x8xf32> -> vector<324x8xf32>
    %66 = arith.addf %60, %65 : vector<324x8xf32>
    %c43 = arith.constant 43 : index
    %c0_52 = arith.constant 0 : index
    %67 = vector.load %arg9[%c43, %c0_52] : memref<372x8xf32, #tpu.memory_space<vmem>>, vector<324x8xf32>
    %68 = arith.truncf %67 : vector<324x8xf32> to vector<324x8xbf16>
    %c8 = arith.constant 8 : index
    %c0_53 = arith.constant 0 : index
    %c0_54 = arith.constant 0 : index
    %69 = vector.load %arg4[%c8, %c0_53, %c0_54] : memref<9x8x8xbf16, #tpu.memory_space<vmem>>, vector<1x8x8xbf16>
    %70 = vector.shape_cast %69 : vector<1x8x8xbf16> to vector<8x8xbf16>
    %cst_55 = arith.constant dense<0.000000e+00> : vector<324x8xf32>
    %71 = tpu.matmul %68, %70, %cst_55 {dimension_numbers = #tpu.dot_dimension_numbers<[1], [0], [0], [1], [0, 0, 1, 1], [], []>} : vector<324x8xbf16>, vector<8x8xbf16>, vector<324x8xf32> -> vector<324x8xf32>
    %72 = arith.addf %66, %71 : vector<324x8xf32>
    %c0_56 = arith.constant 0 : index
    %c0_57 = arith.constant 0 : index
    %c0_58 = arith.constant 0 : index
    %73 = vector.load %arg6[%c0_56, %c0_57, %c0_58] : memref<1x324x8xf32, #tpu.memory_space<vmem>>, vector<1x324x8xf32>
    %74 = vector.shape_cast %73 : vector<1x324x8xf32> to vector<324x8xf32>
    %75 = vector.shape_cast %72 : vector<324x8xf32> to vector<1x324x8xf32>
    tpu.vector_store %arg6[%c0_56, %c0_57, %c0_58], %75 {strides = array<i32>} : memref<1x324x8xf32, #tpu.memory_space<vmem>>, vector<1x324x8xf32>,
    %cst_59 = arith.constant 0.000000e+00 : f32
    %76 = vector.broadcast %cst_59 : f32 to vector<324x1xf32>
    %77 = arith.cmpf ogt, %0, %76 : vector<324x1xf32>
    %cst_60 = arith.constant 0.000000e+00 : f32
    %78 = vector.shape_cast %77 : vector<324x1xi1> to vector<324x1xi1>
    %79 = vector.broadcast %78 : vector<324x1xi1> to vector<324x8xi1>
    %80 = vector.broadcast %cst_60 : f32 to vector<324x8xf32>
    %81 = arith.select %79, %72, %80 : vector<324x8xi1>, vector<324x8xf32>
    %cst_61 = arith.constant dense<0.000000e+00> : vector<8xf32>
    %82 = vector.multi_reduction <add>, %81, %cst_61 [0] : vector<324x8xf32> to vector<8xf32>
    %83 = vector.shape_cast %82 : vector<8xf32> to vector<1x8xf32>
    %c0_62 = arith.constant 0 : index
    %c0_63 = arith.constant 0 : index
    %c0_64 = arith.constant 0 : index
    %84 = vector.load %arg7[%c0_62, %c0_63, %c0_64] : memref<1x1x8xf32, #tpu.memory_space<vmem>>, vector<1x1x8xf32>
    %85 = vector.shape_cast %84 : vector<1x1x8xf32> to vector<1x8xf32>
    %86 = vector.shape_cast %83 : vector<1x8xf32> to vector<1x1x8xf32>
    tpu.vector_store %arg7[%c0_62, %c0_63, %c0_64], %86 {strides = array<i32>} : memref<1x1x8xf32, #tpu.memory_space<vmem>>, vector<1x1x8xf32>,
    %87 = arith.mulf %81, %81 : vector<324x8xf32>
    %cst_65 = arith.constant dense<0.000000e+00> : vector<8xf32>
    %88 = vector.multi_reduction <add>, %87, %cst_65 [0] : vector<324x8xf32> to vector<8xf32>
    %89 = vector.shape_cast %88 : vector<8xf32> to vector<1x8xf32>
    %c0_66 = arith.constant 0 : index
    %c0_67 = arith.constant 0 : index
    %c0_68 = arith.constant 0 : index
    %90 = vector.load %arg8[%c0_66, %c0_67, %c0_68] : memref<1x1x8xf32, #tpu.memory_space<vmem>>, vector<1x1x8xf32>
    %91 = vector.shape_cast %90 : vector<1x1x8xf32> to vector<1x8xf32>
    %92 = vector.shape_cast %89 : vector<1x8xf32> to vector<1x1x8xf32>
    tpu.vector_store %arg8[%c0_66, %c0_67, %c0_68], %92 {strides = array<i32>} : memref<1x1x8xf32, #tpu.memory_space<vmem>>, vector<1x1x8xf32>,
    return
  }
  func.func @transform_0(%arg0: i32) -> (i32, i32, i32) {
    %c0_i32 = arith.constant 0 : i32
    %c0_i32_0 = arith.constant 0 : i32
    %c0_i32_1 = arith.constant 0 : i32
    return %arg0, %c0_i32, %c0_i32_0 : i32, i32, i32
  }
  func.func @transform_1(%arg0: i32) -> (i32, i32) {
    %c0_i32 = arith.constant 0 : i32
    %c0_i32_0 = arith.constant 0 : i32
    %c0_i32_1 = arith.constant 0 : i32
    return %c0_i32, %c0_i32_0 : i32, i32
  }
  func.func @transform_2(%arg0: i32) -> (i32, i32) {
    %c0_i32 = arith.constant 0 : i32
    %c0_i32_0 = arith.constant 0 : i32
    %c0_i32_1 = arith.constant 0 : i32
    return %c0_i32, %c0_i32_0 : i32, i32
  }
  func.func @transform_3(%arg0: i32) -> (i32, i32, i32) {
    %c0_i32 = arith.constant 0 : i32
    %c0_i32_0 = arith.constant 0 : i32
    %c0_i32_1 = arith.constant 0 : i32
    %c0_i32_2 = arith.constant 0 : i32
    return %c0_i32, %c0_i32_0, %c0_i32_1 : i32, i32, i32
  }
  func.func @transform_4(%arg0: i32) -> (i32, i32) {
    %c0_i32 = arith.constant 0 : i32
    %c0_i32_0 = arith.constant 0 : i32
    %c0_i32_1 = arith.constant 0 : i32
    return %c0_i32, %c0_i32_0 : i32, i32
  }
  func.func @transform_5(%arg0: i32) -> (i32, i32, i32) {
    %c0_i32 = arith.constant 0 : i32
    %c0_i32_0 = arith.constant 0 : i32
    %c0_i32_1 = arith.constant 0 : i32
    return %arg0, %c0_i32, %c0_i32_0 : i32, i32, i32
  }
  func.func @transform_6(%arg0: i32) -> (i32, i32, i32) {
    %c0_i32 = arith.constant 0 : i32
    %c0_i32_0 = arith.constant 0 : i32
    %c0_i32_1 = arith.constant 0 : i32
    return %arg0, %c0_i32, %c0_i32_0 : i32, i32, i32
  }
  func.func @transform_7(%arg0: i32) -> (i32, i32, i32) {
    %c0_i32 = arith.constant 0 : i32
    %c0_i32_0 = arith.constant 0 : i32
    %c0_i32_1 = arith.constant 0 : i32
    return %arg0, %c0_i32, %c0_i32_0 : i32, i32, i32
  }
}

</mosaic_0001>

<llo_original>
// kernel: conv_block.5
$region0: #{conv_block.5}
  #allocation0 [shape = 'u32[]', space=smem, size = 0x4, offset = 0x4, fixed_abs, tag = 'smem constant byte address 0x4 - core index']
  #allocation1 [shape = 'u32[144,128]{1,0:T(1,128)}', space=vmem, size = 0x12000, scoped, tag = 'internal scratch']
  %s0 = inlined_call_operand.vmem [shape: f32[2,324,8], index: 0, kind: input, shape index: {}]
  %s1 = inlined_call_operand.vmem [shape: f32[1,8], index: 1, kind: input, shape index: {}]
  %s2 = inlined_call_operand.vmem [shape: f32[1,8], index: 2, kind: input, shape index: {}]
  %s3 = inlined_call_operand.vmem [shape: f32[2,324,8], index: 3, kind: output, shape index: {}]
  %s4 = sld [smem:[#allocation0]]
  $region45: #{conv_block.5} parent=0
    _
  %s6 = ssub.s32 1, %s4
  %s7 = scalar_select 0, %s6, %s4
  loop: start=0, step=1, limit=4
  $region2: #{conv_block.5} parent=0 // loop_pre_header
    _
  $region3: #{conv_block.5} parent=0 // loop_header
    %s9 = sphi 0, %s13
    %p10 = scmp.ge.s32.totalorder %s9, 4
    %s19 = sphi 0, %s21
    %s22 = sphi 0, %s19
    %s23 = sphi 0, %s22
    %s39 = sphi 0, %s23
    %s43 = sphi 0, %s43
    %s45 = sphi 0, %s43
    %s46 = sphi 0, %s45
    %s60 = sphi 0, %s46
    %s64 = sphi 0, %s64
    %s66 = sphi 0, %s64
    %s67 = sphi 0, %s66
    %s81 = sphi 0, %s67
    %s87 = sphi 0, %s89
    %s90 = sphi 0, %s87
    %s91 = sphi 0, %s90
    %s107 = sphi 0, %s91
  $region4: #{conv_block.5} parent=0 // loop_header_branch
    %12 = sbr.rel (%p10) target = $region8
  $region5: #{conv_block.5} parent=0 // loop_body
    %s14 = ssub.s32 %s9, 1
    %s15 = ssub.s32 %s9, 2
    %s16 = sadd.s32 %s9, 1
    %s17 = ssub.s32 %s9, %s16
    %p18 = scmp.eq.s32.totalorder %s17, 0
    %s20 = sadd.s32 %s19, 1
    %s21 = scalar_select %p18, %s19, %s20
    %p24 = pneg %p18
    %p25 = scmp.eq.s32.totalorder %s9, 1
    %p26 = por %p24, %p25
    %p27 = scmp.ne.s32.totalorder %s19, %s22
    %p28 = scmp.eq.s32.totalorder %s9, 0
    %p29 = por %p27, %p28
    %p30 = scmp.ne.s32.totalorder %s19, %s22
    %p31 = scmp.eq.s32.totalorder %s14, 1
    %p32 = por %p30, %p31
    %p33 = scmp.ne.s32.totalorder %s22, %s23
    %p34 = scmp.eq.s32.totalorder %s14, 0
    %p35 = por %p33, %p34
    %p36 = scmp.ne.s32.totalorder %s22, %s23
    %p37 = scmp.eq.s32.totalorder %s15, 1
    %p38 = por %p36, %p37
    %p40 = scmp.ne.s32.totalorder %s23, %s39
    %p41 = scmp.eq.s32.totalorder %s15, 0
    %p42 = por %p40, %p41
    %s44 = sadd.s32 %s43, 1
    %p47 = scmp.eq.s32.totalorder %s9, 1
    %p48 = scmp.ne.s32.totalorder %s43, %s45
    %p49 = scmp.eq.s32.totalorder %s9, 0
    %p50 = por %p48, %p49
    %p51 = scmp.ne.s32.totalorder %s43, %s45
    %p52 = scmp.eq.s32.totalorder %s14, 1
    %p53 = por %p51, %p52
    %p54 = scmp.ne.s32.totalorder %s45, %s46
    %p55 = scmp.eq.s32.totalorder %s14, 0
    %p56 = por %p54, %p55
    %p57 = scmp.ne.s32.totalorder %s45, %s46
    %p58 = scmp.eq.s32.totalorder %s15, 1
    %p59 = por %p57, %p58
    %p61 = scmp.ne.s32.totalorder %s46, %s60
    %p62 = scmp.eq.s32.totalorder %s15, 0
    %p63 = por %p61, %p62
    %s65 = sadd.s32 %s64, 1
    %p68 = scmp.eq.s32.totalorder %s9, 1
    %p69 = scmp.ne.s32.totalorder %s64, %s66
    %p70 = scmp.eq.s32.totalorder %s9, 0
    %p71 = por %p69, %p70
    %p72 = scmp.ne.s32.totalorder %s64, %s66
    %p73 = scmp.eq.s32.totalorder %s14, 1
    %p74 = por %p72, %p73
    %p75 = scmp.ne.s32.totalorder %s66, %s67
    %p76 = scmp.eq.s32.totalorder %s14, 0
    %p77 = por %p75, %p76
    %p78 = scmp.ne.s32.totalorder %s66, %s67
    %p79 = scmp.eq.s32.totalorder %s15, 1
    %p80 = por %p78, %p79
    %p82 = scmp.ne.s32.totalorder %s67, %s81
    %p83 = scmp.eq.s32.totalorder %s15, 0
    %p84 = por %p82, %p83
    %s85 = ssub.s32 %s9, %s16
    %p86 = scmp.eq.s32.totalorder %s85, 0
    %s88 = sadd.s32 %s87, 1
    %s89 = scalar_select %p86, %s87, %s88
    %p92 = pneg %p86
    %p93 = scmp.eq.s32.totalorder %s9, 1
    %p94 = por %p92, %p93
    %p95 = scmp.ne.s32.totalorder %s87, %s90
    %p96 = scmp.eq.s32.totalorder %s9, 0
    %p97 = por %p95, %p96
    %p98 = scmp.ne.s32.totalorder %s87, %s90
    %p99 = scmp.eq.s32.totalorder %s14, 1
    %p100 = por %p98, %p99
    %p101 = scmp.ne.s32.totalorder %s90, %s91
    %p102 = scmp.eq.s32.totalorder %s14, 0
    %p103 = por %p101, %p102
    %p104 = scmp.ne.s32.totalorder %s90, %s91
    %p105 = scmp.eq.s32.totalorder %s15, 1
    %p106 = por %p104, %p105
    %p108 = scmp.ne.s32.totalorder %s91, %s107
    %p109 = scmp.eq.s32.totalorder %s15, 0
    %p110 = por %p108, %p109
    %p111 = scmp.le.s32.totalorder 1, %s9
    %p112 = scmp.lt.s32.totalorder %s9, 3
    %p113 = pnand %p111, %p112
    %p114 = pneg %p113
    // Predicated region
    $region9: #{conv_block.5} parent=5 // pred_check
      _
    $region10: #{conv_block.5} parent=5 // pred_check_branch
      %116 = sbr.rel (%p113) target = $region12
    $region11: #{conv_block.5} parent=5 // pred_region
      %s117 = ssub.s32 %s9, 1
      // Predicated region
      $region13: #{conv_block.5} parent=11 // pred_check
        %p118 = pneg %p56
      $region14: #{conv_block.5} parent=11 // pred_check_branch
        %120 = sbr.rel (%p118) target = $region16
      $region15: #{conv_block.5} parent=11 // pred_region
        _
      $region16: #{conv_block.5} parent=11 // pred_fallthru
        _
      // Predicated region
      $region17: #{conv_block.5} parent=11 // pred_check
        %p121 = pneg %p77
      $region18: #{conv_block.5} parent=11 // pred_check_branch
        %123 = sbr.rel (%p121) target = $region20
      $region19: #{conv_block.5} parent=11 // pred_region
        _
      $region20: #{conv_block.5} parent=11 // pred_fallthru
        _
    $region12: #{conv_block.5} parent=5 // pred_fallthru
      _
    %p124 = scmp.lt.s32.totalorder %s9, 2
    // Predicated region
    $region21: #{conv_block.5} parent=5 // pred_check
      %p125 = pneg %p124
    $region22: #{conv_block.5} parent=5 // pred_check_branch
      %127 = sbr.rel (%p125) target = $region24
    $region23: #{conv_block.5} parent=5 // pred_region
      // Predicated region
      $region25: #{conv_block.5} parent=23 // pred_check
        %p128 = pneg %p29
      $region26: #{conv_block.5} parent=23 // pred_check_branch
        %130 = sbr.rel (%p128) target = $region28
      $region27: #{conv_block.5} parent=23 // pred_region
        %p131 = scmp.lt.s32.totalorder %s9, 1
        %s132 = scalar_select %p131, %s9, 1
        %s133 = smul.addr %s132, 41
        %s134 = smul.addr %s133, 8
        %s135 = scalar_lea.vmem %s0, %s134
      $region28: #{conv_block.5} parent=23 // pred_fallthru
        _
    $region24: #{conv_block.5} parent=5 // pred_fallthru
      _
    %p136 = scmp.le.s32.totalorder 1, %s9
    %p137 = scmp.lt.s32.totalorder %s9, 3
    %p138 = pnand %p136, %p137
    %p139 = pneg %p138
    // Predicated region
    $region29: #{conv_block.5} parent=5 // pred_check
      _
    $region30: #{conv_block.5} parent=5 // pred_check_branch
      %141 = sbr.rel (%p138) target = $region32
    $region31: #{conv_block.5} parent=5 // pred_region
      %s142 = ssub.s32 %s9, 1
      %p143 = scmp.lt.s32.totalorder %s14, 1
      %s144 = scalar_select %p143, %s14, 1
      %s145 = smul.addr %s144, 41
      %s146 = smul.addr %s145, 8
      %s147 = scalar_lea.vmem %s0, %s146
      %p148 = pneg %p35
      %p149 = pneg %p32
      %p150 = pneg %p56
      %p151 = pneg %p53
      %p152 = pneg %p77
      %p153 = pneg %p74
      %p154 = pneg %p103
      %p155 = pneg %p100
      %p156 = scmp.lt.s32.totalorder %s14, 1
      %s157 = scalar_select %p156, %s14, 1
      %s158 = smul.addr %s157, 41
      %s159 = smul.addr %s158, 8
      %s160 = scalar_lea.vmem %s3, %s159
      %p161 = scmp.lt.s32.totalorder %s14, 1
      %s162 = scalar_select %p161, %s14, 1
      %s163 = smul.addr %s162, 41
      %s164 = smul.addr %s163, 8
      %s165 = scalar_lea.vmem %s0, %s164
      %p166 = scmp.lt.s32.totalorder %s14, 1
      %s167 = scalar_select %p166, %s14, 1
      %s168 = smul.addr %s167, 41
      %s169 = smul.addr %s168, 8
      %s170 = scalar_lea.vmem %s3, %s169
      %v171 = vld [vmem:[%s165] sm:$0xff]
      %v172 = vld [vmem:[%s165 + $0x8] sm:$0xff]
      %v173 = vld [vmem:[%s165 + $0x10] sm:$0xff]
      %v174 = vld [vmem:[%s165 + $0x18] sm:$0xff]
      %v175 = vld [vmem:[%s165 + $0x20] sm:$0xff]
      %v176 = vld [vmem:[%s165 + $0x28] sm:$0xff]
      %v177 = vld [vmem:[%s165 + $0x30] sm:$0xff]
      %v178 = vld [vmem:[%s165 + $0x38] sm:$0xff]
      %v179 = vld [vmem:[%s165 + $0x40] sm:$0xff]
      %v180 = vld [vmem:[%s165 + $0x48] sm:$0xff]
      %v181 = vld [vmem:[%s165 + $0x50] sm:$0xff]
      %v182 = vld [vmem:[%s165 + $0x58] sm:$0xff]
      %v183 = vld [vmem:[%s165 + $0x60] sm:$0xff]
      %v184 = vld [vmem:[%s165 + $0x68] sm:$0xff]
      %v185 = vld [vmem:[%s165 + $0x70] sm:$0xff]
      %v186 = vld [vmem:[%s165 + $0x78] sm:$0xff]
      %v187 = vld [vmem:[%s165 + $0x80] sm:$0xff]
      %v188 = vld [vmem:[%s165 + $0x88] sm:$0xff]
      %v189 = vld [vmem:[%s165 + $0x90] sm:$0xff]
      %v190 = vld [vmem:[%s165 + $0x98] sm:$0xff]
      %v191 = vld [vmem:[%s165 + $0xa0] sm:$0xff]
      %v192 = vld [vmem:[%s165 + $0xa8] sm:$0xff]
      %v193 = vld [vmem:[%s165 + $0xb0] sm:$0xff]
      %v194 = vld [vmem:[%s165 + $0xb8] sm:$0xff]
      %v195 = vld [vmem:[%s165 + $0xc0] sm:$0xff]
      %v196 = vld [vmem:[%s165 + $0xc8] sm:$0xff]
      %v197 = vld [vmem:[%s165 + $0xd0] sm:$0xff]
      %v198 = vld [vmem:[%s165 + $0xd8] sm:$0xff]
      %v199 = vld [vmem:[%s165 + $0xe0] sm:$0xff]
      %v200 = vld [vmem:[%s165 + $0xe8] sm:$0xff]
      %v201 = vld [vmem:[%s165 + $0xf0] sm:$0xff]
      %v202 = vld [vmem:[%s165 + $0xf8] sm:$0xff]
      %v203 = vld [vmem:[%s165 + $0x100] sm:$0xff]
      %v204 = vld [vmem:[%s165 + $0x108] sm:$0xff]
      %v205 = vld [vmem:[%s165 + $0x110] sm:$0xff]
      %v206 = vld [vmem:[%s165 + $0x118] sm:$0xff]
      %v207 = vld [vmem:[%s165 + $0x120] sm:$0xff]
      %v208 = vld [vmem:[%s165 + $0x128] sm:$0xff]
      %v209 = vld [vmem:[%s165 + $0x130] sm:$0xff]
      %v210 = vld [vmem:[%s165 + $0x138] sm:$0xff]
      %v211 = vld [vmem:[%s165 + $0x140] sm:$0xf]
      %v212 = vld [vmem:[%s1] sm:$0x1]
      %v214 = vlaneseq
      %v215 = vshrl.u32 %v214, 7
      %v216 = vsub.s32 0, %v215
      %v217 = vrot.slane %v212, %v216
      %v219 = vmul.f32 %v171, %v217
      %v220 = vmul.f32 %v172, %v217
      %v221 = vmul.f32 %v173, %v217
      %v222 = vmul.f32 %v174, %v217
      %v223 = vmul.f32 %v175, %v217
      %v224 = vmul.f32 %v176, %v217
      %v225 = vmul.f32 %v177, %v217
      %v226 = vmul.f32 %v178, %v217
      %v227 = vmul.f32 %v179, %v217
      %v228 = vmul.f32 %v180, %v217
      %v229 = vmul.f32 %v181, %v217
      %v230 = vmul.f32 %v182, %v217
      %v231 = vmul.f32 %v183, %v217
      %v232 = vmul.f32 %v184, %v217
      %v233 = vmul.f32 %v185, %v217
      %v234 = vmul.f32 %v186, %v217
      %v235 = vmul.f32 %v187, %v217
      %v236 = vmul.f32 %v188, %v217
      %v237 = vmul.f32 %v189, %v217
      %v238 = vmul.f32 %v190, %v217
      %v239 = vmul.f32 %v191, %v217
      %v240 = vmul.f32 %v192, %v217
      %v241 = vmul.f32 %v193, %v217
      %v242 = vmul.f32 %v194, %v217
      %v243 = vmul.f32 %v195, %v217
      %v244 = vmul.f32 %v196, %v217
      %v245 = vmul.f32 %v197, %v217
      %v246 = vmul.f32 %v198, %v217
      %v247 = vmul.f32 %v199, %v217
      %v248 = vmul.f32 %v200, %v217
      %v249 = vmul.f32 %v201, %v217
      %v250 = vmul.f32 %v202, %v217
      %v251 = vmul.f32 %v203, %v217
      %v252 = vmul.f32 %v204, %v217
      %v253 = vmul.f32 %v205, %v217
      %v254 = vmul.f32 %v206, %v217
      %v255 = vmul.f32 %v207, %v217
      %v256 = vmul.f32 %v208, %v217
      %v257 = vmul.f32 %v209, %v217
      %v258 = vmul.f32 %v210, %v217
      %v259 = vmul.f32 %v211, %v217
      %v260 = vld [vmem:[%s2] sm:$0x1]
      %v262 = vlaneseq
      %v263 = vshrl.u32 %v262, 7
      %v264 = vsub.s32 0, %v263
      %v265 = vrot.slane %v260, %v264
      %v267 = vadd.f32 %v219, %v265
      %v268 = vadd.f32 %v220, %v265
      %v269 = vadd.f32 %v221, %v265
      %v270 = vadd.f32 %v222, %v265
      %v271 = vadd.f32 %v223, %v265
      %v272 = vadd.f32 %v224, %v265
      %v273 = vadd.f32 %v225, %v265
      %v274 = vadd.f32 %v226, %v265
      %v275 = vadd.f32 %v227, %v265
      %v276 = vadd.f32 %v228, %v265
      %v277 = vadd.f32 %v229, %v265
      %v278 = vadd.f32 %v230, %v265
      %v279 = vadd.f32 %v231, %v265
      %v280 = vadd.f32 %v232, %v265
      %v281 = vadd.f32 %v233, %v265
      %v282 = vadd.f32 %v234, %v265
      %v283 = vadd.f32 %v235, %v265
      %v284 = vadd.f32 %v236, %v265
      %v285 = vadd.f32 %v237, %v265
      %v286 = vadd.f32 %v238, %v265
      %v287 = vadd.f32 %v239, %v265
      %v288 = vadd.f32 %v240, %v265
      %v289 = vadd.f32 %v241, %v265
      %v290 = vadd.f32 %v242, %v265
      %v291 = vadd.f32 %v243, %v265
      %v292 = vadd.f32 %v244, %v265
      %v293 = vadd.f32 %v245, %v265
      %v294 = vadd.f32 %v246, %v265
      %v295 = vadd.f32 %v247, %v265
      %v296 = vadd.f32 %v248, %v265
      %v297 = vadd.f32 %v249, %v265
      %v298 = vadd.f32 %v250, %v265
      %v299 = vadd.f32 %v251, %v265
      %v300 = vadd.f32 %v252, %v265
      %v301 = vadd.f32 %v253, %v265
      %v302 = vadd.f32 %v254, %v265
      %v303 = vadd.f32 %v255, %v265
      %v304 = vadd.f32 %v256, %v265
      %v305 = vadd.f32 %v257, %v265
      %v306 = vadd.f32 %v258, %v265
      %v307 = vadd.f32 %v259, %v265
      %v308 = vmax.f32 %v267, 0.0
      %v309 = vmax.f32 %v268, 0.0
      %v310 = vmax.f32 %v269, 0.0
      %v311 = vmax.f32 %v270, 0.0
      %v312 = vmax.f32 %v271, 0.0
      %v313 = vmax.f32 %v272, 0.0
      %v314 = vmax.f32 %v273, 0.0
      %v315 = vmax.f32 %v274, 0.0
      %v316 = vmax.f32 %v275, 0.0
      %v317 = vmax.f32 %v276, 0.0
      %v318 = vmax.f32 %v277, 0.0
      %v319 = vmax.f32 %v278, 0.0
      %v320 = vmax.f32 %v279, 0.0
      %v321 = vmax.f32 %v280, 0.0
      %v322 = vmax.f32 %v281, 0.0
      %v323 = vmax.f32 %v282, 0.0
      %v324 = vmax.f32 %v283, 0.0
      %v325 = vmax.f32 %v284, 0.0
      %v326 = vmax.f32 %v285, 0.0
      %v327 = vmax.f32 %v286, 0.0
      %v328 = vmax.f32 %v287, 0.0
      %v329 = vmax.f32 %v288, 0.0
      %v330 = vmax.f32 %v289, 0.0
      %v331 = vmax.f32 %v290, 0.0
      %v332 = vmax.f32 %v291, 0.0
      %v333 = vmax.f32 %v292, 0.0
      %v334 = vmax.f32 %v293, 0.0
      %v335 = vmax.f32 %v294, 0.0
      %v336 = vmax.f32 %v295, 0.0
      %v337 = vmax.f32 %v296, 0.0
      %v338 = vmax.f32 %v297, 0.0
      %v339 = vmax.f32 %v298, 0.0
      %v340 = vmax.f32 %v299, 0.0
      %v341 = vmax.f32 %v300, 0.0
      %v342 = vmax.f32 %v301, 0.0
      %v343 = vmax.f32 %v302, 0.0
      %v344 = vmax.f32 %v303, 0.0
      %v345 = vmax.f32 %v304, 0.0
      %v346 = vmax.f32 %v305, 0.0
      %v347 = vmax.f32 %v306, 0.0
      %v348 = vmax.f32 %v307, 0.0
      %vm349 = vcmask 64512
      %350 = vst.msk [vmem:[%s170] sm:$0xff] %vm349, %v308
      %351 = vst.msk [vmem:[%s170 + $0x8] sm:$0xff] %vm349, %v309
      %352 = vst.msk [vmem:[%s170 + $0x10] sm:$0xff] %vm349, %v310
      %353 = vst.msk [vmem:[%s170 + $0x18] sm:$0xff] %vm349, %v311
      %354 = vst.msk [vmem:[%s170 + $0x20] sm:$0xff] %vm349, %v312
      %355 = vst.msk [vmem:[%s170 + $0x28] sm:$0xff] %vm349, %v313
      %356 = vst.msk [vmem:[%s170 + $0x30] sm:$0xff] %vm349, %v314
      %357 = vst.msk [vmem:[%s170 + $0x38] sm:$0xff] %vm349, %v315
      %358 = vst.msk [vmem:[%s170 + $0x40] sm:$0xff] %vm349, %v316
      %359 = vst.msk [vmem:[%s170 + $0x48] sm:$0xff] %vm349, %v317
      %360 = vst.msk [vmem:[%s170 + $0x50] sm:$0xff] %vm349, %v318
      %361 = vst.msk [vmem:[%s170 + $0x58] sm:$0xff] %vm349, %v319
      %362 = vst.msk [vmem:[%s170 + $0x60] sm:$0xff] %vm349, %v320
      %363 = vst.msk [vmem:[%s170 + $0x68] sm:$0xff] %vm349, %v321
      %364 = vst.msk [vmem:[%s170 + $0x70] sm:$0xff] %vm349, %v322
      %365 = vst.msk [vmem:[%s170 + $0x78] sm:$0xff] %vm349, %v323
      %366 = vst.msk [vmem:[%s170 + $0x80] sm:$0xff] %vm349, %v324
      %367 = vst.msk [vmem:[%s170 + $0x88] sm:$0xff] %vm349, %v325
      %368 = vst.msk [vmem:[%s170 + $0x90] sm:$0xff] %vm349, %v326
      %369 = vst.msk [vmem:[%s170 + $0x98] sm:$0xff] %vm349, %v327
      %370 = vst.msk [vmem:[%s170 + $0xa0] sm:$0xff] %vm349, %v328
      %371 = vst.msk [vmem:[%s170 + $0xa8] sm:$0xff] %vm349, %v329
      %372 = vst.msk [vmem:[%s170 + $0xb0] sm:$0xff] %vm349, %v330
      %373 = vst.msk [vmem:[%s170 + $0xb8] sm:$0xff] %vm349, %v331
      %374 = vst.msk [vmem:[%s170 + $0xc0] sm:$0xff] %vm349, %v332
      %375 = vst.msk [vmem:[%s170 + $0xc8] sm:$0xff] %vm349, %v333
      %376 = vst.msk [vmem:[%s170 + $0xd0] sm:$0xff] %vm349, %v334
      %377 = vst.msk [vmem:[%s170 + $0xd8] sm:$0xff] %vm349, %v335
      %378 = vst.msk [vmem:[%s170 + $0xe0] sm:$0xff] %vm349, %v336
      %379 = vst.msk [vmem:[%s170 + $0xe8] sm:$0xff] %vm349, %v337
      %380 = vst.msk [vmem:[%s170 + $0xf0] sm:$0xff] %vm349, %v338
      %381 = vst.msk [vmem:[%s170 + $0xf8] sm:$0xff] %vm349, %v339
      %382 = vst.msk [vmem:[%s170 + $0x100] sm:$0xff] %vm349, %v340
      %383 = vst.msk [vmem:[%s170 + $0x108] sm:$0xff] %vm349, %v341
      %384 = vst.msk [vmem:[%s170 + $0x110] sm:$0xff] %vm349, %v342
      %385 = vst.msk [vmem:[%s170 + $0x118] sm:$0xff] %vm349, %v343
      %386 = vst.msk [vmem:[%s170 + $0x120] sm:$0xff] %vm349, %v344
      %387 = vst.msk [vmem:[%s170 + $0x128] sm:$0xff] %vm349, %v345
      %388 = vst.msk [vmem:[%s170 + $0x130] sm:$0xff] %vm349, %v346
      %389 = vst.msk [vmem:[%s170 + $0x138] sm:$0xff] %vm349, %v347
      %vm390 = vcmask 60416
      %391 = vst.msk [vmem:[%s170 + $0x140] sm:$0xf] %vm390, %v348
      %p392 = scmp.lt.s32.totalorder %s14, 1
      %s393 = scalar_select %p392, %s14, 1
      %s394 = smul.addr %s393, 41
      %s395 = smul.addr %s394, 8
      %s396 = scalar_lea.vmem %s3, %s395
      // Predicated region
      $region33: #{conv_block.5} parent=31 // pred_check
        %p397 = pneg %p100
      $region34: #{conv_block.5} parent=31 // pred_check_branch
        %399 = sbr.rel (%p397) target = $region36
      $region35: #{conv_block.5} parent=31 // pred_region
        _
      $region36: #{conv_block.5} parent=31 // pred_fallthru
        _
    $region32: #{conv_block.5} parent=5 // pred_fallthru
      _
    %p400 = scmp.le.s32.totalorder 2, %s9
    // Predicated region
    $region37: #{conv_block.5} parent=5 // pred_check
      %p401 = pneg %p400
    $region38: #{conv_block.5} parent=5 // pred_check_branch
      %403 = sbr.rel (%p401) target = $region40
    $region39: #{conv_block.5} parent=5 // pred_region
      %s404 = ssub.s32 %s9, 2
      // Predicated region
      $region41: #{conv_block.5} parent=39 // pred_check
        %p405 = pneg %p106
      $region42: #{conv_block.5} parent=39 // pred_check_branch
        %407 = sbr.rel (%p405) target = $region44
      $region43: #{conv_block.5} parent=39 // pred_region
        %p408 = scmp.lt.s32.totalorder %s15, 1
        %s409 = scalar_select %p408, %s15, 1
        %s410 = smul.addr %s409, 41
        %s411 = smul.addr %s410, 8
        %s412 = scalar_lea.vmem %s3, %s411
      $region44: #{conv_block.5} parent=39 // pred_fallthru
        _
    $region40: #{conv_block.5} parent=5 // pred_fallthru
      _
  $region6: #{conv_block.5} parent=0 // loop_footer
    %s13 = sadd.s32 1, %s9
  $region7: #{conv_block.5} parent=0 // loop_footer_branch
    %8 = sbr.rel target = $region3
  $region8: #{conv_block.5} parent=0 // loop_exit
    _

// kernel: conv_block.4
$region0: #{conv_block.4}
  #allocation0 [shape = 'u32[]', space=smem, size = 0x4, offset = 0x4, fixed_abs, tag = 'smem constant byte address 0x4 - core index']
  #allocation1 [shape = 'u32[144,128]{1,0:T(1,128)}', space=vmem, size = 0x12000, scoped, tag = 'internal scratch']
  #allocation2 [shape = 'f32[372,8]{1,0:T(8,128)}', space=vmem, size = 0x2f000, scoped, tag = 'scratch operand']
  %s0 = inlined_call_operand.vmem [shape: f32[2,324,8], index: 0, kind: input, shape index: {}]
  %s1 = inlined_call_operand.vmem [shape: f32[1,8], index: 1, kind: input, shape index: {}]
  %s2 = inlined_call_operand.vmem [shape: f32[1,8], index: 2, kind: input, shape index: {}]
  %s3 = inlined_call_operand.vmem [shape: bf16[9,8,8], index: 3, kind: input, shape index: {}]
  %s4 = inlined_call_operand.vmem [shape: f32[324,1], index: 4, kind: input, shape index: {}]
  %s5 = inlined_call_operand.vmem [shape: f32[2,324,8], index: 5, kind: output, shape index: {0}]
  %s6 = inlined_call_operand.vmem [shape: f32[2,1,8], index: 6, kind: output, shape index: {1}]
  %s7 = inlined_call_operand.vmem [shape: f32[2,1,8], index: 7, kind: output, shape index: {2}]
  %8 = xla_tuple %s5, %s6, %s7
  %s9 = sld [smem:[#allocation0]]
  $region69: #{conv_block.4} parent=0
    _
  %s11 = ssub.s32 1, %s9
  %s12 = scalar_select 0, %s11, %s9
  loop: start=0, step=1, limit=4
  $region2: #{conv_block.4} parent=0 // loop_pre_header
    _
  $region3: #{conv_block.4} parent=0 // loop_header
    %s14 = sphi 0, %s18
    %p15 = scmp.ge.s32.totalorder %s14, 4
    %s24 = sphi 0, %s26
    %s27 = sphi 0, %s24
    %s28 = sphi 0, %s27
    %s44 = sphi 0, %s28
    %s48 = sphi 0, %s48
    %s50 = sphi 0, %s48
    %s51 = sphi 0, %s50
    %s65 = sphi 0, %s51
    %s69 = sphi 0, %s69
    %s71 = sphi 0, %s69
    %s72 = sphi 0, %s71
    %s86 = sphi 0, %s72
    %s90 = sphi 0, %s90
    %s92 = sphi 0, %s90
    %s93 = sphi 0, %s92
    %s107 = sphi 0, %s93
    %s111 = sphi 0, %s111
    %s113 = sphi 0, %s111
    %s114 = sphi 0, %s113
    %s128 = sphi 0, %s114
    %s134 = sphi 0, %s136
    %s137 = sphi 0, %s134
    %s138 = sphi 0, %s137
    %s154 = sphi 0, %s138
    %s160 = sphi 0, %s162
    %s163 = sphi 0, %s160
    %s164 = sphi 0, %s163
    %s180 = sphi 0, %s164
    %s186 = sphi 0, %s188
    %s189 = sphi 0, %s186
    %s190 = sphi 0, %s189
    %s206 = sphi 0, %s190
  $region4: #{conv_block.4} parent=0 // loop_header_branch
    %17 = sbr.rel (%p15) target = $region8
  $region5: #{conv_block.4} parent=0 // loop_body
    %s19 = ssub.s32 %s14, 1
    %s20 = ssub.s32 %s14, 2
    %s21 = sadd.s32 %s14, 1
    %s22 = ssub.s32 %s14, %s21
    %p23 = scmp.eq.s32.totalorder %s22, 0
    %s25 = sadd.s32 %s24, 1
    %s26 = scalar_select %p23, %s24, %s25
    %p29 = pneg %p23
    %p30 = scmp.eq.s32.totalorder %s14, 1
    %p31 = por %p29, %p30
    %p32 = scmp.ne.s32.totalorder %s24, %s27
    %p33 = scmp.eq.s32.totalorder %s14, 0
    %p34 = por %p32, %p33
    %p35 = scmp.ne.s32.totalorder %s24, %s27
    %p36 = scmp.eq.s32.totalorder %s19, 1
    %p37 = por %p35, %p36
    %p38 = scmp.ne.s32.totalorder %s27, %s28
    %p39 = scmp.eq.s32.totalorder %s19, 0
    %p40 = por %p38, %p39
    %p41 = scmp.ne.s32.totalorder %s27, %s28
    %p42 = scmp.eq.s32.totalorder %s20, 1
    %p43 = por %p41, %p42
    %p45 = scmp.ne.s32.totalorder %s28, %s44
    %p46 = scmp.eq.s32.totalorder %s20, 0
    %p47 = por %p45, %p46
    %s49 = sadd.s32 %s48, 1
    %p52 = scmp.eq.s32.totalorder %s14, 1
    %p53 = scmp.ne.s32.totalorder %s48, %s50
    %p54 = scmp.eq.s32.totalorder %s14, 0
    %p55 = por %p53, %p54
    %p56 = scmp.ne.s32.totalorder %s48, %s50
    %p57 = scmp.eq.s32.totalorder %s19, 1
    %p58 = por %p56, %p57
    %p59 = scmp.ne.s32.totalorder %s50, %s51
    %p60 = scmp.eq.s32.totalorder %s19, 0
    %p61 = por %p59, %p60
    %p62 = scmp.ne.s32.totalorder %s50, %s51
    %p63 = scmp.eq.s32.totalorder %s20, 1
    %p64 = por %p62, %p63
    %p66 = scmp.ne.s32.totalorder %s51, %s65
    %p67 = scmp.eq.s32.totalorder %s20, 0
    %p68 = por %p66, %p67
    %s70 = sadd.s32 %s69, 1
    %p73 = scmp.eq.s32.totalorder %s14, 1
    %p74 = scmp.ne.s32.totalorder %s69, %s71
    %p75 = scmp.eq.s32.totalorder %s14, 0
    %p76 = por %p74, %p75
    %p77 = scmp.ne.s32.totalorder %s69, %s71
    %p78 = scmp.eq.s32.totalorder %s19, 1
    %p79 = por %p77, %p78
    %p80 = scmp.ne.s32.totalorder %s71, %s72
    %p81 = scmp.eq.s32.totalorder %s19, 0
    %p82 = por %p80, %p81
    %p83 = scmp.ne.s32.totalorder %s71, %s72
    %p84 = scmp.eq.s32.totalorder %s20, 1
    %p85 = por %p83, %p84
    %p87 = scmp.ne.s32.totalorder %s72, %s86
    %p88 = scmp.eq.s32.totalorder %s20, 0
    %p89 = por %p87, %p88
    %s91 = sadd.s32 %s90, 1
    %p94 = scmp.eq.s32.totalorder %s14, 1
    %p95 = scmp.ne.s32.totalorder %s90, %s92
    %p96 = scmp.eq.s32.totalorder %s14, 0
    %p97 = por %p95, %p96
    %p98 = scmp.ne.s32.totalorder %s90, %s92
    %p99 = scmp.eq.s32.totalorder %s19, 1
    %p100 = por %p98, %p99
    %p101 = scmp.ne.s32.totalorder %s92, %s93
    %p102 = scmp.eq.s32.totalorder %s19, 0
    %p103 = por %p101, %p102
    %p104 = scmp.ne.s32.totalorder %s92, %s93
    %p105 = scmp.eq.s32.totalorder %s20, 1
    %p106 = por %p104, %p105
    %p108 = scmp.ne.s32.totalorder %s93, %s107
    %p109 = scmp.eq.s32.totalorder %s20, 0
    %p110 = por %p108, %p109
    %s112 = sadd.s32 %s111, 1
    %p115 = scmp.eq.s32.totalorder %s14, 1
    %p116 = scmp.ne.s32.totalorder %s111, %s113
    %p117 = scmp.eq.s32.totalorder %s14, 0
    %p118 = por %p116, %p117
    %p119 = scmp.ne.s32.totalorder %s111, %s113
    %p120 = scmp.eq.s32.totalorder %s19, 1
    %p121 = por %p119, %p120
    %p122 = scmp.ne.s32.totalorder %s113, %s114
    %p123 = scmp.eq.s32.totalorder %s19, 0
    %p124 = por %p122, %p123
    %p125 = scmp.ne.s32.totalorder %s113, %s114
    %p126 = scmp.eq.s32.totalorder %s20, 1
    %p127 = por %p125, %p126
    %p129 = scmp.ne.s32.totalorder %s114, %s128
    %p130 = scmp.eq.s32.totalorder %s20, 0
    %p131 = por %p129, %p130
    %s132 = ssub.s32 %s14, %s21
    %p133 = scmp.eq.s32.totalorder %s132, 0
    %s135 = sadd.s32 %s134, 1
    %s136 = scalar_select %p133, %s134, %s135
    %p139 = pneg %p133
    %p140 = scmp.eq.s32.totalorder %s14, 1
    %p141 = por %p139, %p140
    %p142 = scmp.ne.s32.totalorder %s134, %s137
    %p143 = scmp.eq.s32.totalorder %s14, 0
    %p144 = por %p142, %p143
    %p145 = scmp.ne.s32.totalorder %s134, %s137
    %p146 = scmp.eq.s32.totalorder %s19, 1
    %p147 = por %p145, %p146
    %p148 = scmp.ne.s32.totalorder %s137, %s138
    %p149 = scmp.eq.s32.totalorder %s19, 0
    %p150 = por %p148, %p149
    %p151 = scmp.ne.s32.totalorder %s137, %s138
    %p152 = scmp.eq.s32.totalorder %s20, 1
    %p153 = por %p151, %p152
    %p155 = scmp.ne.s32.totalorder %s138, %s154
    %p156 = scmp.eq.s32.totalorder %s20, 0
    %p157 = por %p155, %p156
    %s158 = ssub.s32 %s14, %s21
    %p159 = scmp.eq.s32.totalorder %s158, 0
    %s161 = sadd.s32 %s160, 1
    %s162 = scalar_select %p159, %s160, %s161
    %p165 = pneg %p159
    %p166 = scmp.eq.s32.totalorder %s14, 1
    %p167 = por %p165, %p166
    %p168 = scmp.ne.s32.totalorder %s160, %s163
    %p169 = scmp.eq.s32.totalorder %s14, 0
    %p170 = por %p168, %p169
    %p171 = scmp.ne.s32.totalorder %s160, %s163
    %p172 = scmp.eq.s32.totalorder %s19, 1
    %p173 = por %p171, %p172
    %p174 = scmp.ne.s32.totalorder %s163, %s164
    %p175 = scmp.eq.s32.totalorder %s19, 0
    %p176 = por %p174, %p175
    %p177 = scmp.ne.s32.totalorder %s163, %s164
    %p178 = scmp.eq.s32.totalorder %s20, 1
    %p179 = por %p177, %p178
    %p181 = scmp.ne.s32.totalorder %s164, %s180
    %p182 = scmp.eq.s32.totalorder %s20, 0
    %p183 = por %p181, %p182
    %s184 = ssub.s32 %s14, %s21
    %p185 = scmp.eq.s32.totalorder %s184, 0
    %s187 = sadd.s32 %s186, 1
    %s188 = scalar_select %p185, %s186, %s187
    %p191 = pneg %p185
    %p192 = scmp.eq.s32.totalorder %s14, 1
    %p193 = por %p191, %p192
    %p194 = scmp.ne.s32.totalorder %s186, %s189
    %p195 = scmp.eq.s32.totalorder %s14, 0
    %p196 = por %p194, %p195
    %p197 = scmp.ne.s32.totalorder %s186, %s189
    %p198 = scmp.eq.s32.totalorder %s19, 1
    %p199 = por %p197, %p198
    %p200 = scmp.ne.s32.totalorder %s189, %s190
    %p201 = scmp.eq.s32.totalorder %s19, 0
    %p202 = por %p200, %p201
    %p203 = scmp.ne.s32.totalorder %s189, %s190
    %p204 = scmp.eq.s32.totalorder %s20, 1
    %p205 = por %p203, %p204
    %p207 = scmp.ne.s32.totalorder %s190, %s206
    %p208 = scmp.eq.s32.totalorder %s20, 0
    %p209 = por %p207, %p208
    %p210 = scmp.le.s32.totalorder 1, %s14
    %p211 = scmp.lt.s32.totalorder %s14, 3
    %p212 = pnand %p210, %p211
    %p213 = pneg %p212
    // Predicated region
    $region9: #{conv_block.4} parent=5 // pred_check
      _
    $region10: #{conv_block.4} parent=5 // pred_check_branch
      %215 = sbr.rel (%p212) target = $region12
    $region11: #{conv_block.4} parent=5 // pred_region
      %s216 = ssub.s32 %s14, 1
      // Predicated region
      $region13: #{conv_block.4} parent=11 // pred_check
        %p217 = pneg %p61
      $region14: #{conv_block.4} parent=11 // pred_check_branch
        %219 = sbr.rel (%p217) target = $region16
      $region15: #{conv_block.4} parent=11 // pred_region
        _
      $region16: #{conv_block.4} parent=11 // pred_fallthru
        _
      // Predicated region
      $region17: #{conv_block.4} parent=11 // pred_check
        %p220 = pneg %p82
      $region18: #{conv_block.4} parent=11 // pred_check_branch
        %222 = sbr.rel (%p220) target = $region20
      $region19: #{conv_block.4} parent=11 // pred_region
        _
      $region20: #{conv_block.4} parent=11 // pred_fallthru
        _
      // Predicated region
      $region21: #{conv_block.4} parent=11 // pred_check
        %p223 = pneg %p103
      $region22: #{conv_block.4} parent=11 // pred_check_branch
        %225 = sbr.rel (%p223) target = $region24
      $region23: #{conv_block.4} parent=11 // pred_region
        _
      $region24: #{conv_block.4} parent=11 // pred_fallthru
        _
      // Predicated region
      $region25: #{conv_block.4} parent=11 // pred_check
        %p226 = pneg %p124
      $region26: #{conv_block.4} parent=11 // pred_check_branch
        %228 = sbr.rel (%p226) target = $region28
      $region27: #{conv_block.4} parent=11 // pred_region
        _
      $region28: #{conv_block.4} parent=11 // pred_fallthru
        _
    $region12: #{conv_block.4} parent=5 // pred_fallthru
      _
    %p229 = scmp.lt.s32.totalorder %s14, 2
    // Predicated region
    $region29: #{conv_block.4} parent=5 // pred_check
      %p230 = pneg %p229
    $region30: #{conv_block.4} parent=5 // pred_check_branch
      %232 = sbr.rel (%p230) target = $region32
    $region31: #{conv_block.4} parent=5 // pred_region
      // Predicated region
      $region33: #{conv_block.4} parent=31 // pred_check
        %p233 = pneg %p34
      $region34: #{conv_block.4} parent=31 // pred_check_branch
        %235 = sbr.rel (%p233) target = $region36
      $region35: #{conv_block.4} parent=31 // pred_region
        %p236 = scmp.lt.s32.totalorder %s14, 1
        %s237 = scalar_select %p236, %s14, 1
        %s238 = smul.addr %s237, 41
        %s239 = smul.addr %s238, 8
        %s240 = scalar_lea.vmem %s0, %s239
      $region36: #{conv_block.4} parent=31 // pred_fallthru
        _
    $region32: #{conv_block.4} parent=5 // pred_fallthru
      _
    %p241 = scmp.le.s32.totalorder 1, %s14
    %p242 = scmp.lt.s32.totalorder %s14, 3
    %p243 = pnand %p241, %p242
    %p244 = pneg %p243
    // Predicated region
    $region37: #{conv_block.4} parent=5 // pred_check
      _
    $region38: #{conv_block.4} parent=5 // pred_check_branch
      %246 = sbr.rel (%p243) target = $region40
    $region39: #{conv_block.4} parent=5 // pred_region
      %s247 = ssub.s32 %s14, 1
      %p248 = scmp.lt.s32.totalorder %s19, 1
      %s249 = scalar_select %p248, %s19, 1
      %s250 = smul.addr %s249, 41
      %s251 = smul.addr %s250, 8
      %s252 = scalar_lea.vmem %s0, %s251
      %p253 = pneg %p40
      %p254 = pneg %p37
      %p255 = pneg %p61
      %p256 = pneg %p58
      %p257 = pneg %p82
      %p258 = pneg %p79
      %p259 = pneg %p103
      %p260 = pneg %p100
      %p261 = pneg %p124
      %p262 = pneg %p121
      %p263 = pneg %p150
      %p264 = pneg %p147
      %p265 = scmp.lt.s32.totalorder %s19, 1
      %s266 = scalar_select %p265, %s19, 1
      %s267 = smul.addr %s266, 41
      %s268 = smul.addr %s267, 8
      %s269 = scalar_lea.vmem %s5, %s268
      %p270 = pneg %p176
      %p271 = pneg %p173
      %p272 = scmp.lt.s32.totalorder %s19, 1
      %s273 = scalar_select %p272, %s19, 1
      %s274 = scalar_lea.vmem %s6, %s273
      %p275 = pneg %p202
      %p276 = pneg %p199
      %p277 = scmp.lt.s32.totalorder %s19, 1
      %s278 = scalar_select %p277, %s19, 1
      %s279 = scalar_lea.vmem %s7, %s278
      %p280 = scmp.lt.s32.totalorder %s19, 1
      %s281 = scalar_select %p280, %s19, 1
      %s282 = smul.addr %s281, 41
      %s283 = smul.addr %s282, 8
      %s284 = scalar_lea.vmem %s0, %s283
      %p285 = scmp.lt.s32.totalorder %s19, 1
      %s286 = scalar_select %p285, %s19, 1
      %s287 = smul.addr %s286, 41
      %s288 = smul.addr %s287, 8
      %s289 = scalar_lea.vmem %s5, %s288
      %p290 = scmp.lt.s32.totalorder %s19, 1
      %s291 = scalar_select %p290, %s19, 1
      %s292 = scalar_lea.vmem %s6, %s291
      %p293 = scmp.lt.s32.totalorder %s19, 1
      %s294 = scalar_select %p293, %s19, 1
      %s295 = scalar_lea.vmem %s7, %s294
      %v297 = vld [vmem:[%s4] sm:$0xff]
      %v298 = vld [vmem:[%s4 + $0x8] sm:$0xff]
      %v299 = vld [vmem:[%s4 + $0x10] sm:$0xff]
      %v300 = vld [vmem:[%s4 + $0x18] sm:$0xff]
      %v301 = vld [vmem:[%s4 + $0x20] sm:$0xff]
      %v302 = vld [vmem:[%s4 + $0x28] sm:$0xff]
      %v303 = vld [vmem:[%s4 + $0x30] sm:$0xff]
      %v304 = vld [vmem:[%s4 + $0x38] sm:$0xff]
      %v305 = vld [vmem:[%s4 + $0x40] sm:$0xff]
      %v306 = vld [vmem:[%s4 + $0x48] sm:$0xff]
      %v307 = vld [vmem:[%s4 + $0x50] sm:$0xff]
      %v308 = vld [vmem:[%s4 + $0x58] sm:$0xff]
      %v309 = vld [vmem:[%s4 + $0x60] sm:$0xff]
      %v310 = vld [vmem:[%s4 + $0x68] sm:$0xff]
      %v311 = vld [vmem:[%s4 + $0x70] sm:$0xff]
      %v312 = vld [vmem:[%s4 + $0x78] sm:$0xff]
      %v313 = vld [vmem:[%s4 + $0x80] sm:$0xff]
      %v314 = vld [vmem:[%s4 + $0x88] sm:$0xff]
      %v315 = vld [vmem:[%s4 + $0x90] sm:$0xff]
      %v316 = vld [vmem:[%s4 + $0x98] sm:$0xff]
      %v317 = vld [vmem:[%s4 + $0xa0] sm:$0xff]
      %v318 = vld [vmem:[%s4 + $0xa8] sm:$0xff]
      %v319 = vld [vmem:[%s4 + $0xb0] sm:$0xff]
      %v320 = vld [vmem:[%s4 + $0xb8] sm:$0xff]
      %v321 = vld [vmem:[%s4 + $0xc0] sm:$0xff]
      %v322 = vld [vmem:[%s4 + $0xc8] sm:$0xff]
      %v323 = vld [vmem:[%s4 + $0xd0] sm:$0xff]
      %v324 = vld [vmem:[%s4 + $0xd8] sm:$0xff]
      %v325 = vld [vmem:[%s4 + $0xe0] sm:$0xff]
      %v326 = vld [vmem:[%s4 + $0xe8] sm:$0xff]
      %v327 = vld [vmem:[%s4 + $0xf0] sm:$0xff]
      %v328 = vld [vmem:[%s4 + $0xf8] sm:$0xff]
      %v329 = vld [vmem:[%s4 + $0x100] sm:$0xff]
      %v330 = vld [vmem:[%s4 + $0x108] sm:$0xff]
      %v331 = vld [vmem:[%s4 + $0x110] sm:$0xff]
      %v332 = vld [vmem:[%s4 + $0x118] sm:$0xff]
      %v333 = vld [vmem:[%s4 + $0x120] sm:$0xff]
      %v334 = vld [vmem:[%s4 + $0x128] sm:$0xff]
      %v335 = vld [vmem:[%s4 + $0x130] sm:$0xff]
      %v336 = vld [vmem:[%s4 + $0x138] sm:$0xff]
      %v337 = vld [vmem:[%s4 + $0x140] sm:$0xf]
      %v338 = vld [vmem:[%s284] sm:$0xff]
      %v339 = vld [vmem:[%s284 + $0x8] sm:$0xff]
      %v340 = vld [vmem:[%s284 + $0x10] sm:$0xff]
      %v341 = vld [vmem:[%s284 + $0x18] sm:$0xff]
      %v342 = vld [vmem:[%s284 + $0x20] sm:$0xff]
      %v343 = vld [vmem:[%s284 + $0x28] sm:$0xff]
      %v344 = vld [vmem:[%s284 + $0x30] sm:$0xff]
      %v345 = vld [vmem:[%s284 + $0x38] sm:$0xff]
      %v346 = vld [vmem:[%s284 + $0x40] sm:$0xff]
      %v347 = vld [vmem:[%s284 + $0x48] sm:$0xff]
      %v348 = vld [vmem:[%s284 + $0x50] sm:$0xff]
      %v349 = vld [vmem:[%s284 + $0x58] sm:$0xff]
      %v350 = vld [vmem:[%s284 + $0x60] sm:$0xff]
      %v351 = vld [vmem:[%s284 + $0x68] sm:$0xff]
      %v352 = vld [vmem:[%s284 + $0x70] sm:$0xff]
      %v353 = vld [vmem:[%s284 + $0x78] sm:$0xff]
      %v354 = vld [vmem:[%s284 + $0x80] sm:$0xff]
      %v355 = vld [vmem:[%s284 + $0x88] sm:$0xff]
      %v356 = vld [vmem:[%s284 + $0x90] sm:$0xff]
      %v357 = vld [vmem:[%s284 + $0x98] sm:$0xff]
      %v358 = vld [vmem:[%s284 + $0xa0] sm:$0xff]
      %v359 = vld [vmem:[%s284 + $0xa8] sm:$0xff]
      %v360 = vld [vmem:[%s284 + $0xb0] sm:$0xff]
      %v361 = vld [vmem:[%s284 + $0xb8] sm:$0xff]
      %v362 = vld [vmem:[%s284 + $0xc0] sm:$0xff]
      %v363 = vld [vmem:[%s284 + $0xc8] sm:$0xff]
      %v364 = vld [vmem:[%s284 + $0xd0] sm:$0xff]
      %v365 = vld [vmem:[%s284 + $0xd8] sm:$0xff]
      %v366 = vld [vmem:[%s284 + $0xe0] sm:$0xff]
      %v367 = vld [vmem:[%s284 + $0xe8] sm:$0xff]
      %v368 = vld [vmem:[%s284 + $0xf0] sm:$0xff]
      %v369 = vld [vmem:[%s284 + $0xf8] sm:$0xff]
      %v370 = vld [vmem:[%s284 + $0x100] sm:$0xff]
      %v371 = vld [vmem:[%s284 + $0x108] sm:$0xff]
      %v372 = vld [vmem:[%s284 + $0x110] sm:$0xff]
      %v373 = vld [vmem:[%s284 + $0x118] sm:$0xff]
      %v374 = vld [vmem:[%s284 + $0x120] sm:$0xff]
      %v375 = vld [vmem:[%s284 + $0x128] sm:$0xff]
      %v376 = vld [vmem:[%s284 + $0x130] sm:$0xff]
      %v377 = vld [vmem:[%s284 + $0x138] sm:$0xff]
      %v378 = vld [vmem:[%s284 + $0x140] sm:$0xf]
      %v379 = vld [vmem:[%s1] sm:$0x1]
      %v381 = vlaneseq
      %v382 = vshrl.u32 %v381, 7
      %v383 = vsub.s32 0, %v382
      %v384 = vrot.slane %v379, %v383
      %v386 = vmul.f32 %v338, %v384
      %v387 = vmul.f32 %v339, %v384
      %v388 = vmul.f32 %v340, %v384
      %v389 = vmul.f32 %v341, %v384
      %v390 = vmul.f32 %v342, %v384
      %v391 = vmul.f32 %v343, %v384
      %v392 = vmul.f32 %v344, %v384
      %v393 = vmul.f32 %v345, %v384
      %v394 = vmul.f32 %v346, %v384
      %v395 = vmul.f32 %v347, %v384
      %v396 = vmul.f32 %v348, %v384
      %v397 = vmul.f32 %v349, %v384
      %v398 = vmul.f32 %v350, %v384
      %v399 = vmul.f32 %v351, %v384
      %v400 = vmul.f32 %v352, %v384
      %v401 = vmul.f32 %v353, %v384
      %v402 = vmul.f32 %v354, %v384
      %v403 = vmul.f32 %v355, %v384
      %v404 = vmul.f32 %v356, %v384
      %v405 = vmul.f32 %v357, %v384
      %v406 = vmul.f32 %v358, %v384
      %v407 = vmul.f32 %v359, %v384
      %v408 = vmul.f32 %v360, %v384
      %v409 = vmul.f32 %v361, %v384
      %v410 = vmul.f32 %v362, %v384
      %v411 = vmul.f32 %v363, %v384
      %v412 = vmul.f32 %v364, %v384
      %v413 = vmul.f32 %v365, %v384
      %v414 = vmul.f32 %v366, %v384
      %v415 = vmul.f32 %v367, %v384
      %v416 = vmul.f32 %v368, %v384
      %v417 = vmul.f32 %v369, %v384
      %v418 = vmul.f32 %v370, %v384
      %v419 = vmul.f32 %v371, %v384
      %v420 = vmul.f32 %v372, %v384
      %v421 = vmul.f32 %v373, %v384
      %v422 = vmul.f32 %v374, %v384
      %v423 = vmul.f32 %v375, %v384
      %v424 = vmul.f32 %v376, %v384
      %v425 = vmul.f32 %v377, %v384
      %v426 = vmul.f32 %v378, %v384
      %v427 = vld [vmem:[%s2] sm:$0x1]
      %v429 = vlaneseq
      %v430 = vshrl.u32 %v429, 7
      %v431 = vsub.s32 0, %v430
      %v432 = vrot.slane %v427, %v431
      %v434 = vadd.f32 %v386, %v432
      %v435 = vadd.f32 %v387, %v432
      %v436 = vadd.f32 %v388, %v432
      %v437 = vadd.f32 %v389, %v432
      %v438 = vadd.f32 %v390, %v432
      %v439 = vadd.f32 %v391, %v432
      %v440 = vadd.f32 %v392, %v432
      %v441 = vadd.f32 %v393, %v432
      %v442 = vadd.f32 %v394, %v432
      %v443 = vadd.f32 %v395, %v432
      %v444 = vadd.f32 %v396, %v432
      %v445 = vadd.f32 %v397, %v432
      %v446 = vadd.f32 %v398, %v432
      %v447 = vadd.f32 %v399, %v432
      %v448 = vadd.f32 %v400, %v432
      %v449 = vadd.f32 %v401, %v432
      %v450 = vadd.f32 %v402, %v432
      %v451 = vadd.f32 %v403, %v432
      %v452 = vadd.f32 %v404, %v432
      %v453 = vadd.f32 %v405, %v432
      %v454 = vadd.f32 %v406, %v432
      %v455 = vadd.f32 %v407, %v432
      %v456 = vadd.f32 %v408, %v432
      %v457 = vadd.f32 %v409, %v432
      %v458 = vadd.f32 %v410, %v432
      %v459 = vadd.f32 %v411, %v432
      %v460 = vadd.f32 %v412, %v432
      %v461 = vadd.f32 %v413, %v432
      %v462 = vadd.f32 %v414, %v432
      %v463 = vadd.f32 %v415, %v432
      %v464 = vadd.f32 %v416, %v432
      %v465 = vadd.f32 %v417, %v432
      %v466 = vadd.f32 %v418, %v432
      %v467 = vadd.f32 %v419, %v432
      %v468 = vadd.f32 %v420, %v432
      %v469 = vadd.f32 %v421, %v432
      %v470 = vadd.f32 %v422, %v432
      %v471 = vadd.f32 %v423, %v432
      %v472 = vadd.f32 %v424, %v432
      %v473 = vadd.f32 %v425, %v432
      %v474 = vadd.f32 %v426, %v432
      %vm475 = vcmp.gt.f32.partialorder %v297, 0.0
      %vm476 = vcmp.gt.f32.partialorder %v298, 0.0
      %vm477 = vcmp.gt.f32.partialorder %v299, 0.0
      %vm478 = vcmp.gt.f32.partialorder %v300, 0.0
      %vm479 = vcmp.gt.f32.partialorder %v301, 0.0
      %vm480 = vcmp.gt.f32.partialorder %v302, 0.0
      %vm481 = vcmp.gt.f32.partialorder %v303, 0.0
      %vm482 = vcmp.gt.f32.partialorder %v304, 0.0
      %vm483 = vcmp.gt.f32.partialorder %v305, 0.0
      %vm484 = vcmp.gt.f32.partialorder %v306, 0.0
      %vm485 = vcmp.gt.f32.partialorder %v307, 0.0
      %vm486 = vcmp.gt.f32.partialorder %v308, 0.0
      %vm487 = vcmp.gt.f32.partialorder %v309, 0.0
      %vm488 = vcmp.gt.f32.partialorder %v310, 0.0
      %vm489 = vcmp.gt.f32.partialorder %v311, 0.0
      %vm490 = vcmp.gt.f32.partialorder %v312, 0.0
      %vm491 = vcmp.gt.f32.partialorder %v313, 0.0
      %vm492 = vcmp.gt.f32.partialorder %v314, 0.0
      %vm493 = vcmp.gt.f32.partialorder %v315, 0.0
      %vm494 = vcmp.gt.f32.partialorder %v316, 0.0
      %vm495 = vcmp.gt.f32.partialorder %v317, 0.0
      %vm496 = vcmp.gt.f32.partialorder %v318, 0.0
      %vm497 = vcmp.gt.f32.partialorder %v319, 0.0
      %vm498 = vcmp.gt.f32.partialorder %v320, 0.0
      %vm499 = vcmp.gt.f32.partialorder %v321, 0.0
      %vm500 = vcmp.gt.f32.partialorder %v322, 0.0
      %vm501 = vcmp.gt.f32.partialorder %v323, 0.0
      %vm502 = vcmp.gt.f32.partialorder %v324, 0.0
      %vm503 = vcmp.gt.f32.partialorder %v325, 0.0
      %vm504 = vcmp.gt.f32.partialorder %v326, 0.0
      %vm505 = vcmp.gt.f32.partialorder %v327, 0.0
      %vm506 = vcmp.gt.f32.partialorder %v328, 0.0
      %vm507 = vcmp.gt.f32.partialorder %v329, 0.0
      %vm508 = vcmp.gt.f32.partialorder %v330, 0.0
      %vm509 = vcmp.gt.f32.partialorder %v331, 0.0
      %vm510 = vcmp.gt.f32.partialorder %v332, 0.0
      %vm511 = vcmp.gt.f32.partialorder %v333, 0.0
      %vm512 = vcmp.gt.f32.partialorder %v334, 0.0
      %vm513 = vcmp.gt.f32.partialorder %v335, 0.0
      %vm514 = vcmp.gt.f32.partialorder %v336, 0.0
      %vm515 = vcmp.gt.f32.partialorder %v337, 0.0
      %v516 = vsel %vm475, 1, 0
      %v517 = vsel %vm476, 1, 0
      %v518 = vsel %vm477, 1, 0
      %v519 = vsel %vm478, 1, 0
      %v520 = vsel %vm479, 1, 0
      %v521 = vsel %vm480, 1, 0
      %v522 = vsel %vm481, 1, 0
      %v523 = vsel %vm482, 1, 0
      %v524 = vsel %vm483, 1, 0
      %v525 = vsel %vm484, 1, 0
      %v526 = vsel %vm485, 1, 0
      %v527 = vsel %vm486, 1, 0
      %v528 = vsel %vm487, 1, 0
      %v529 = vsel %vm488, 1, 0
      %v530 = vsel %vm489, 1, 0
      %v531 = vsel %vm490, 1, 0
      %v532 = vsel %vm491, 1, 0
      %v533 = vsel %vm492, 1, 0
      %v534 = vsel %vm493, 1, 0
      %v535 = vsel %vm494, 1, 0
      %v536 = vsel %vm495, 1, 0
      %v537 = vsel %vm496, 1, 0
      %v538 = vsel %vm497, 1, 0
      %v539 = vsel %vm498, 1, 0
      %v540 = vsel %vm499, 1, 0
      %v541 = vsel %vm500, 1, 0
      %v542 = vsel %vm501, 1, 0
      %v543 = vsel %vm502, 1, 0
      %v544 = vsel %vm503, 1, 0
      %v545 = vsel %vm504, 1, 0
      %v546 = vsel %vm505, 1, 0
      %v547 = vsel %vm506, 1, 0
      %v548 = vsel %vm507, 1, 0
      %v549 = vsel %vm508, 1, 0
      %v550 = vsel %vm509, 1, 0
      %v551 = vsel %vm510, 1, 0
      %v552 = vsel %vm511, 1, 0
      %v553 = vsel %vm512, 1, 0
      %v554 = vsel %vm513, 1, 0
      %v555 = vsel %vm514, 1, 0
      %v556 = vsel %vm515, 1, 0
      %557 = vset.pattern.permute.xlu0 0
      %558 = vperm.xlu0 %557, %v516
      %v559 = vpop.permute.xlu0 %558
      %560 = vset.pattern.permute.xlu0 0
      %561 = vperm.xlu0 %560, %v517
      %v562 = vpop.permute.xlu0 %561
      %563 = vset.pattern.permute.xlu0 0
      %564 = vperm.xlu0 %563, %v518
      %v565 = vpop.permute.xlu0 %564
      %566 = vset.pattern.permute.xlu0 0
      %567 = vperm.xlu0 %566, %v519
      %v568 = vpop.permute.xlu0 %567
      %569 = vset.pattern.permute.xlu0 0
      %570 = vperm.xlu0 %569, %v520
      %v571 = vpop.permute.xlu0 %570
      %572 = vset.pattern.permute.xlu0 0
      %573 = vperm.xlu0 %572, %v521
      %v574 = vpop.permute.xlu0 %573
      %575 = vset.pattern.permute.xlu0 0
      %576 = vperm.xlu0 %575, %v522
      %v577 = vpop.permute.xlu0 %576
      %578 = vset.pattern.permute.xlu0 0
      %579 = vperm.xlu0 %578, %v523
      %v580 = vpop.permute.xlu0 %579
      %581 = vset.pattern.permute.xlu0 0
      %582 = vperm.xlu0 %581, %v524
      %v583 = vpop.permute.xlu0 %582
      %584 = vset.pattern.permute.xlu0 0
      %585 = vperm.xlu0 %584, %v525
      %v586 = vpop.permute.xlu0 %585
      %587 = vset.pattern.permute.xlu0 0
      %588 = vperm.xlu0 %587, %v526
      %v589 = vpop.permute.xlu0 %588
      %590 = vset.pattern.permute.xlu0 0
      %591 = vperm.xlu0 %590, %v527
      %v592 = vpop.permute.xlu0 %591
      %593 = vset.pattern.permute.xlu0 0
      %594 = vperm.xlu0 %593, %v528
      %v595 = vpop.permute.xlu0 %594
      %596 = vset.pattern.permute.xlu0 0
      %597 = vperm.xlu0 %596, %v529
      %v598 = vpop.permute.xlu0 %597
      %599 = vset.pattern.permute.xlu0 0
      %600 = vperm.xlu0 %599, %v530
      %v601 = vpop.permute.xlu0 %600
      %602 = vset.pattern.permute.xlu0 0
      %603 = vperm.xlu0 %602, %v531
      %v604 = vpop.permute.xlu0 %603
      %605 = vset.pattern.permute.xlu0 0
      %606 = vperm.xlu0 %605, %v532
      %v607 = vpop.permute.xlu0 %606
      %608 = vset.pattern.permute.xlu0 0
      %609 = vperm.xlu0 %608, %v533
      %v610 = vpop.permute.xlu0 %609
      %611 = vset.pattern.permute.xlu0 0
      %612 = vperm.xlu0 %611, %v534
      %v613 = vpop.permute.xlu0 %612
      %614 = vset.pattern.permute.xlu0 0
      %615 = vperm.xlu0 %614, %v535
      %v616 = vpop.permute.xlu0 %615
      %617 = vset.pattern.permute.xlu0 0
      %618 = vperm.xlu0 %617, %v536
      %v619 = vpop.permute.xlu0 %618
      %620 = vset.pattern.permute.xlu0 0
      %621 = vperm.xlu0 %620, %v537
      %v622 = vpop.permute.xlu0 %621
      %623 = vset.pattern.permute.xlu0 0
      %624 = vperm.xlu0 %623, %v538
      %v625 = vpop.permute.xlu0 %624
      %626 = vset.pattern.permute.xlu0 0
      %627 = vperm.xlu0 %626, %v539
      %v628 = vpop.permute.xlu0 %627
      %629 = vset.pattern.permute.xlu0 0
      %630 = vperm.xlu0 %629, %v540
      %v631 = vpop.permute.xlu0 %630
      %632 = vset.pattern.permute.xlu0 0
      %633 = vperm.xlu0 %632, %v541
      %v634 = vpop.permute.xlu0 %633
      %635 = vset.pattern.permute.xlu0 0
      %636 = vperm.xlu0 %635, %v542
      %v637 = vpop.permute.xlu0 %636
      %638 = vset.pattern.permute.xlu0 0
      %639 = vperm.xlu0 %638, %v543
      %v640 = vpop.permute.xlu0 %639
      %641 = vset.pattern.permute.xlu0 0
      %642 = vperm.xlu0 %641, %v544
      %v643 = vpop.permute.xlu0 %642
      %644 = vset.pattern.permute.xlu0 0
      %645 = vperm.xlu0 %644, %v545
      %v646 = vpop.permute.xlu0 %645
      %647 = vset.pattern.permute.xlu0 0
      %648 = vperm.xlu0 %647, %v546
      %v649 = vpop.permute.xlu0 %648
      %650 = vset.pattern.permute.xlu0 0
      %651 = vperm.xlu0 %650, %v547
      %v652 = vpop.permute.xlu0 %651
      %653 = vset.pattern.permute.xlu0 0
      %654 = vperm.xlu0 %653, %v548
      %v655 = vpop.permute.xlu0 %654
      %656 = vset.pattern.permute.xlu0 0
      %657 = vperm.xlu0 %656, %v549
      %v658 = vpop.permute.xlu0 %657
      %659 = vset.pattern.permute.xlu0 0
      %660 = vperm.xlu0 %659, %v550
      %v661 = vpop.permute.xlu0 %660
      %662 = vset.pattern.permute.xlu0 0
      %663 = vperm.xlu0 %662, %v551
      %v664 = vpop.permute.xlu0 %663
      %665 = vset.pattern.permute.xlu0 0
      %666 = vperm.xlu0 %665, %v552
      %v667 = vpop.permute.xlu0 %666
      %668 = vset.pattern.permute.xlu0 0
      %669 = vperm.xlu0 %668, %v553
      %v670 = vpop.permute.xlu0 %669
      %671 = vset.pattern.permute.xlu0 0
      %672 = vperm.xlu0 %671, %v554
      %v673 = vpop.permute.xlu0 %672
      %674 = vset.pattern.permute.xlu0 0
      %675 = vperm.xlu0 %674, %v555
      %v676 = vpop.permute.xlu0 %675
      %677 = vset.pattern.permute.xlu0 0
      %678 = vperm.xlu0 %677, %v556
      %v679 = vpop.permute.xlu0 %678
      %vm680 = vcmp.eq.s32.totalorder %v559, 1
      %vm681 = vcmp.eq.s32.totalorder %v562, 1
      %vm682 = vcmp.eq.s32.totalorder %v565, 1
      %vm683 = vcmp.eq.s32.totalorder %v568, 1
      %vm684 = vcmp.eq.s32.totalorder %v571, 1
      %vm685 = vcmp.eq.s32.totalorder %v574, 1
      %vm686 = vcmp.eq.s32.totalorder %v577, 1
      %vm687 = vcmp.eq.s32.totalorder %v580, 1
      %vm688 = vcmp.eq.s32.totalorder %v583, 1
      %vm689 = vcmp.eq.s32.totalorder %v586, 1
      %vm690 = vcmp.eq.s32.totalorder %v589, 1
      %vm691 = vcmp.eq.s32.totalorder %v592, 1
      %vm692 = vcmp.eq.s32.totalorder %v595, 1
      %vm693 = vcmp.eq.s32.totalorder %v598, 1
      %vm694 = vcmp.eq.s32.totalorder %v601, 1
      %vm695 = vcmp.eq.s32.totalorder %v604, 1
      %vm696 = vcmp.eq.s32.totalorder %v607, 1
      %vm697 = vcmp.eq.s32.totalorder %v610, 1
      %vm698 = vcmp.eq.s32.totalorder %v613, 1
      %vm699 = vcmp.eq.s32.totalorder %v616, 1
      %vm700 = vcmp.eq.s32.totalorder %v619, 1
      %vm701 = vcmp.eq.s32.totalorder %v622, 1
      %vm702 = vcmp.eq.s32.totalorder %v625, 1
      %vm703 = vcmp.eq.s32.totalorder %v628, 1
      %vm704 = vcmp.eq.s32.totalorder %v631, 1
      %vm705 = vcmp.eq.s32.totalorder %v634, 1
      %vm706 = vcmp.eq.s32.totalorder %v637, 1
      %vm707 = vcmp.eq.s32.totalorder %v640, 1
      %vm708 = vcmp.eq.s32.totalorder %v643, 1
      %vm709 = vcmp.eq.s32.totalorder %v646, 1
      %vm710 = vcmp.eq.s32.totalorder %v649, 1
      %vm711 = vcmp.eq.s32.totalorder %v652, 1
      %vm712 = vcmp.eq.s32.totalorder %v655, 1
      %vm713 = vcmp.eq.s32.totalorder %v658, 1
      %vm714 = vcmp.eq.s32.totalorder %v661, 1
      %vm715 = vcmp.eq.s32.totalorder %v664, 1
      %vm716 = vcmp.eq.s32.totalorder %v667, 1
      %vm717 = vcmp.eq.s32.totalorder %v670, 1
      %vm718 = vcmp.eq.s32.totalorder %v673, 1
      %vm719 = vcmp.eq.s32.totalorder %v676, 1
      %vm720 = vcmp.eq.s32.totalorder %v679, 1
      %v721 = vsel %vm680, %v434, 0.0
      %v722 = vsel %vm681, %v435, 0.0
      %v723 = vsel %vm682, %v436, 0.0
      %v724 = vsel %vm683, %v437, 0.0
      %v725 = vsel %vm684, %v438, 0.0
      %v726 = vsel %vm685, %v439, 0.0
      %v727 = vsel %vm686, %v440, 0.0
      %v728 = vsel %vm687, %v441, 0.0
      %v729 = vsel %vm688, %v442, 0.0
      %v730 = vsel %vm689, %v443, 0.0
      %v731 = vsel %vm690, %v444, 0.0
      %v732 = vsel %vm691, %v445, 0.0
      %v733 = vsel %vm692, %v446, 0.0
      %v734 = vsel %vm693, %v447, 0.0
      %v735 = vsel %vm694, %v448, 0.0
      %v736 = vsel %vm695, %v449, 0.0
      %v737 = vsel %vm696, %v450, 0.0
      %v738 = vsel %vm697, %v451, 0.0
      %v739 = vsel %vm698, %v452, 0.0
      %v740 = vsel %vm699, %v453, 0.0
      %v741 = vsel %vm700, %v454, 0.0
      %v742 = vsel %vm701, %v455, 0.0
      %v743 = vsel %vm702, %v456, 0.0
      %v744 = vsel %vm703, %v457, 0.0
      %v745 = vsel %vm704, %v458, 0.0
      %v746 = vsel %vm705, %v459, 0.0
      %v747 = vsel %vm706, %v460, 0.0
      %v748 = vsel %vm707, %v461, 0.0
      %v749 = vsel %vm708, %v462, 0.0
      %v750 = vsel %vm709, %v463, 0.0
      %v751 = vsel %vm710, %v464, 0.0
      %v752 = vsel %vm711, %v465, 0.0
      %v753 = vsel %vm712, %v466, 0.0
      %v754 = vsel %vm713, %v467, 0.0
      %v755 = vsel %vm714, %v468, 0.0
      %v756 = vsel %vm715, %v469, 0.0
      %v757 = vsel %vm716, %v470, 0.0
      %v758 = vsel %vm717, %v471, 0.0
      %v759 = vsel %vm718, %v472, 0.0
      %v760 = vsel %vm719, %v473, 0.0
      %v761 = vsel %vm720, %v474, 0.0
      %vm762 = vcmask 64512
      %763 = vst.msk [vmem:[#allocation2] sm:$0xff] %vm762, 0.0
      %764 = vst.msk [vmem:[#allocation2 + $0x8] sm:$0xff] %vm762, 0.0
      %765 = vst.msk [vmem:[#allocation2 + $0x10] sm:$0xff] %vm762, 0.0
      %766 = vst.msk [vmem:[#allocation2 + $0x15c] sm:$0xff] %vm762, 0.0
      %767 = vst.msk [vmem:[#allocation2 + $0x164] sm:$0xff] %vm762, 0.0
      %768 = vst.msk [vmem:[#allocation2 + $0x16c] sm:$0xff] %vm762, 0.0
      %769 = vst.msk [vmem:[#allocation2 + $0x18] sm:$0xff] %vm762, %v721
      %770 = vst.msk [vmem:[#allocation2 + $0x20] sm:$0xff] %vm762, %v722
      %771 = vst.msk [vmem:[#allocation2 + $0x28] sm:$0xff] %vm762, %v723
      %772 = vst.msk [vmem:[#allocation2 + $0x30] sm:$0xff] %vm762, %v724
      %773 = vst.msk [vmem:[#allocation2 + $0x38] sm:$0xff] %vm762, %v725
      %774 = vst.msk [vmem:[#allocation2 + $0x40] sm:$0xff] %vm762, %v726
      %775 = vst.msk [vmem:[#allocation2 + $0x48] sm:$0xff] %vm762, %v727
      %776 = vst.msk [vmem:[#allocation2 + $0x50] sm:$0xff] %vm762, %v728
      %777 = vst.msk [vmem:[#allocation2 + $0x58] sm:$0xff] %vm762, %v729
      %778 = vst.msk [vmem:[#allocation2 + $0x60] sm:$0xff] %vm762, %v730
      %779 = vst.msk [vmem:[#allocation2 + $0x68] sm:$0xff] %vm762, %v731
      %780 = vst.msk [vmem:[#allocation2 + $0x70] sm:$0xff] %vm762, %v732
      %781 = vst.msk [vmem:[#allocation2 + $0x78] sm:$0xff] %vm762, %v733
      %782 = vst.msk [vmem:[#allocation2 + $0x80] sm:$0xff] %vm762, %v734
      %783 = vst.msk [vmem:[#allocation2 + $0x88] sm:$0xff] %vm762, %v735
      %784 = vst.msk [vmem:[#allocation2 + $0x90] sm:$0xff] %vm762, %v736
      %785 = vst.msk [vmem:[#allocation2 + $0x98] sm:$0xff] %vm762, %v737
      %786 = vst.msk [vmem:[#allocation2 + $0xa0] sm:$0xff] %vm762, %v738
      %787 = vst.msk [vmem:[#allocation2 + $0xa8] sm:$0xff] %vm762, %v739
      %788 = vst.msk [vmem:[#allocation2 + $0xb0] sm:$0xff] %vm762, %v740
      %789 = vst.msk [vmem:[#allocation2 + $0xb8] sm:$0xff] %vm762, %v741
      %790 = vst.msk [vmem:[#allocation2 + $0xc0] sm:$0xff] %vm762, %v742
      %791 = vst.msk [vmem:[#allocation2 + $0xc8] sm:$0xff] %vm762, %v743
      %792 = vst.msk [vmem:[#allocation2 + $0xd0] sm:$0xff] %vm762, %v744
      %793 = vst.msk [vmem:[#allocation2 + $0xd8] sm:$0xff] %vm762, %v745
      %794 = vst.msk [vmem:[#allocation2 + $0xe0] sm:$0xff] %vm762, %v746
      %795 = vst.msk [vmem:[#allocation2 + $0xe8] sm:$0xff] %vm762, %v747
      %796 = vst.msk [vmem:[#allocation2 + $0xf0] sm:$0xff] %vm762, %v748
      %797 = vst.msk [vmem:[#allocation2 + $0xf8] sm:$0xff] %vm762, %v749
      %798 = vst.msk [vmem:[#allocation2 + $0x100] sm:$0xff] %vm762, %v750
      %799 = vst.msk [vmem:[#allocation2 + $0x108] sm:$0xff] %vm762, %v751
      %800 = vst.msk [vmem:[#allocation2 + $0x110] sm:$0xff] %vm762, %v752
      %801 = vst.msk [vmem:[#allocation2 + $0x118] sm:$0xff] %vm762, %v753
      %802 = vst.msk [vmem:[#allocation2 + $0x120] sm:$0xff] %vm762, %v754
      %803 = vst.msk [vmem:[#allocation2 + $0x128] sm:$0xff] %vm762, %v755
      %804 = vst.msk [vmem:[#allocation2 + $0x130] sm:$0xff] %vm762, %v756
      %805 = vst.msk [vmem:[#allocation2 + $0x138] sm:$0xff] %vm762, %v757
      %806 = vst.msk [vmem:[#allocation2 + $0x140] sm:$0xff] %vm762, %v758
      %807 = vst.msk [vmem:[#allocation2 + $0x148] sm:$0xff] %vm762, %v759
      %808 = vst.msk [vmem:[#allocation2 + $0x150] sm:$0xff] %vm762, %v760
      %vm809 = vcmask 60416
      %810 = vst.msk [vmem:[#allocation2 + $0x158] sm:$0xf] %vm809, %v761
      %v811 = vld [vmem:[#allocation2 + $0x5] sm:$0xff]
      %v812 = vld [vmem:[#allocation2 + $0xd] sm:$0xff]
      %v813 = vld [vmem:[#allocation2 + $0x15] sm:$0xff]
      %v814 = vld [vmem:[#allocation2 + $0x1d] sm:$0xff]
      %v815 = vld [vmem:[#allocation2 + $0x25] sm:$0xff]
      %v816 = vld [vmem:[#allocation2 + $0x2d] sm:$0xff]
      %v817 = vld [vmem:[#allocation2 + $0x35] sm:$0xff]
      %v818 = vld [vmem:[#allocation2 + $0x3d] sm:$0xff]
      %v819 = vld [vmem:[#allocation2 + $0x45] sm:$0xff]
      %v820 = vld [vmem:[#allocation2 + $0x4d] sm:$0xff]
      %v821 = vld [vmem:[#allocation2 + $0x55] sm:$0xff]
      %v822 = vld [vmem:[#allocation2 + $0x5d] sm:$0xff]
      %v823 = vld [vmem:[#allocation2 + $0x65] sm:$0xff]
      %v824 = vld [vmem:[#allocation2 + $0x6d] sm:$0xff]
      %v825 = vld [vmem:[#allocation2 + $0x75] sm:$0xff]
      %v826 = vld [vmem:[#allocation2 + $0x7d] sm:$0xff]
      %v827 = vld [vmem:[#allocation2 + $0x85] sm:$0xff]
      %v828 = vld [vmem:[#allocation2 + $0x8d] sm:$0xff]
      %v829 = vld [vmem:[#allocation2 + $0x95] sm:$0xff]
      %v830 = vld [vmem:[#allocation2 + $0x9d] sm:$0xff]
      %v831 = vld [vmem:[#allocation2 + $0xa5] sm:$0xff]
      %v832 = vld [vmem:[#allocation2 + $0xad] sm:$0xff]
      %v833 = vld [vmem:[#allocation2 + $0xb5] sm:$0xff]
      %v834 = vld [vmem:[#allocation2 + $0xbd] sm:$0xff]
      %v835 = vld [vmem:[#allocation2 + $0xc5] sm:$0xff]
      %v836 = vld [vmem:[#allocation2 + $0xcd] sm:$0xff]
      %v837 = vld [vmem:[#allocation2 + $0xd5] sm:$0xff]
      %v838 = vld [vmem:[#allocation2 + $0xdd] sm:$0xff]
      %v839 = vld [vmem:[#allocation2 + $0xe5] sm:$0xff]
      %v840 = vld [vmem:[#allocation2 + $0xed] sm:$0xff]
      %v841 = vld [vmem:[#allocation2 + $0xf5] sm:$0xff]
      %v842 = vld [vmem:[#allocation2 + $0xfd] sm:$0xff]
      %v843 = vld [vmem:[#allocation2 + $0x105] sm:$0xff]
      %v844 = vld [vmem:[#allocation2 + $0x10d] sm:$0xff]
      %v845 = vld [vmem:[#allocation2 + $0x115] sm:$0xff]
      %v846 = vld [vmem:[#allocation2 + $0x11d] sm:$0xff]
      %v847 = vld [vmem:[#allocation2 + $0x125] sm:$0xff]
      %v848 = vld [vmem:[#allocation2 + $0x12d] sm:$0xff]
      %v849 = vld [vmem:[#allocation2 + $0x135] sm:$0xff]
      %v850 = vld [vmem:[#allocation2 + $0x13d] sm:$0xff]
      %v851 = vld [vmem:[#allocation2 + $0x145] sm:$0xf]
      %v852 = vpack.c.bf16 %v812, %v811
      %v853 = vpack.c.bf16 %v814, %v813
      %v854 = vpack.c.bf16 %v816, %v815
      %v855 = vpack.c.bf16 %v818, %v817
      %v856 = vpack.c.bf16 %v820, %v819
      %v857 = vpack.c.bf16 %v822, %v821
      %v858 = vpack.c.bf16 %v824, %v823
      %v859 = vpack.c.bf16 %v826, %v825
      %v860 = vpack.c.bf16 %v828, %v827
      %v861 = vpack.c.bf16 %v830, %v829
      %v862 = vpack.c.bf16 %v832, %v831
      %v863 = vpack.c.bf16 %v834, %v833
      %v864 = vpack.c.bf16 %v836, %v835
      %v865 = vpack.c.bf16 %v838, %v837
      %v866 = vpack.c.bf16 %v840, %v839
      %v867 = vpack.c.bf16 %v842, %v841
      %v868 = vpack.c.bf16 %v844, %v843
      %v869 = vpack.c.bf16 %v846, %v845
      %v870 = vpack.c.bf16 %v848, %v847
      %v871 = vpack.c.bf16 %v850, %v849
      %v872 = vpack.c.bf16 %v851, %v851
      %v873 = vld [vmem:[%s3] sm:$0xf]
      %v874 = vld [vmem:[#allocation2 + $0x6] sm:$0xff]
      %v875 = vld [vmem:[#allocation2 + $0xe] sm:$0xff]
      %v876 = vld [vmem:[#allocation2 + $0x16] sm:$0xff]
      %v877 = vld [vmem:[#allocation2 + $0x1e] sm:$0xff]
      %v878 = vld [vmem:[#allocation2 + $0x26] sm:$0xff]
      %v879 = vld [vmem:[#allocation2 + $0x2e] sm:$0xff]
      %v880 = vld [vmem:[#allocation2 + $0x36] sm:$0xff]
      %v881 = vld [vmem:[#allocation2 + $0x3e] sm:$0xff]
      %v882 = vld [vmem:[#allocation2 + $0x46] sm:$0xff]
      %v883 = vld [vmem:[#allocation2 + $0x4e] sm:$0xff]
      %v884 = vld [vmem:[#allocation2 + $0x56] sm:$0xff]
      %v885 = vld [vmem:[#allocation2 + $0x5e] sm:$0xff]
      %v886 = vld [vmem:[#allocation2 + $0x66] sm:$0xff]
      %v887 = vld [vmem:[#allocation2 + $0x6e] sm:$0xff]
      %v888 = vld [vmem:[#allocation2 + $0x76] sm:$0xff]
      %v889 = vld [vmem:[#allocation2 + $0x7e] sm:$0xff]
      %v890 = vld [vmem:[#allocation2 + $0x86] sm:$0xff]
      %v891 = vld [vmem:[#allocation2 + $0x8e] sm:$0xff]
      %v892 = vld [vmem:[#allocation2 + $0x96] sm:$0xff]
      %v893 = vld [vmem:[#allocation2 + $0x9e] sm:$0xff]
      %v894 = vld [vmem:[#allocation2 + $0xa6] sm:$0xff]
      %v895 = vld [vmem:[#allocation2 + $0xae] sm:$0xff]
      %v896 = vld [vmem:[#allocation2 + $0xb6] sm:$0xff]
      %v897 = vld [vmem:[#allocation2 + $0xbe] sm:$0xff]
      %v898 = vld [vmem:[#allocation2 + $0xc6] sm:$0xff]
      %v899 = vld [vmem:[#allocation2 + $0xce] sm:$0xff]
      %v900 = vld [vmem:[#allocation2 + $0xd6] sm:$0xff]
      %v901 = vld [vmem:[#allocation2 + $0xde] sm:$0xff]
      %v902 = vld [vmem:[#allocation2 + $0xe6] sm:$0xff]
      %v903 = vld [vmem:[#allocation2 + $0xee] sm:$0xff]
      %v904 = vld [vmem:[#allocation2 + $0xf6] sm:$0xff]
      %v905 = vld [vmem:[#allocation2 + $0xfe] sm:$0xff]
      %v906 = vld [vmem:[#allocation2 + $0x106] sm:$0xff]
      %v907 = vld [vmem:[#allocation2 + $0x10e] sm:$0xff]
      %v908 = vld [vmem:[#allocation2 + $0x116] sm:$0xff]
      %v909 = vld [vmem:[#allocation2 + $0x11e] sm:$0xff]
      %v910 = vld [vmem:[#allocation2 + $0x126] sm:$0xff]
      %v911 = vld [vmem:[#allocation2 + $0x12e] sm:$0xff]
      %v912 = vld [vmem:[#allocation2 + $0x136] sm:$0xff]
      %v913 = vld [vmem:[#allocation2 + $0x13e] sm:$0xff]
      %v914 = vld [vmem:[#allocation2 + $0x146] sm:$0xf]
      %v915 = vpack.c.bf16 %v875, %v874
      %v916 = vpack.c.bf16 %v877, %v876
      %v917 = vpack.c.bf16 %v879, %v878
      %v918 = vpack.c.bf16 %v881, %v880
      %v919 = vpack.c.bf16 %v883, %v882
      %v920 = vpack.c.bf16 %v885, %v884
      %v921 = vpack.c.bf16 %v887, %v886
      %v922 = vpack.c.bf16 %v889, %v888
      %v923 = vpack.c.bf16 %v891, %v890
      %v924 = vpack.c.bf16 %v893, %v892
      %v925 = vpack.c.bf16 %v895, %v894
      %v926 = vpack.c.bf16 %v897, %v896
      %v927 = vpack.c.bf16 %v899, %v898
      %v928 = vpack.c.bf16 %v901, %v900
      %v929 = vpack.c.bf16 %v903, %v902
      %v930 = vpack.c.bf16 %v905, %v904
      %v931 = vpack.c.bf16 %v907, %v906
      %v932 = vpack.c.bf16 %v909, %v908
      %v933 = vpack.c.bf16 %v911, %v910
      %v934 = vpack.c.bf16 %v913, %v912
      %v935 = vpack.c.bf16 %v914, %v914
      %s936 = scalar_lea.vmem %s3, 4
      %v937 = vld [vmem:[%s936] sm:$0xf]
      %v939 = vsel %vm762, %v915, 0
      %v942 = vsel %vm762, %v916, 0
      %v945 = vsel %vm762, %v917, 0
      %v948 = vsel %vm762, %v918, 0
      %v951 = vsel %vm762, %v919, 0
      %v954 = vsel %vm762, %v920, 0
      %v957 = vsel %vm762, %v921, 0
      %v960 = vsel %vm762, %v922, 0
      %v963 = vsel %vm762, %v923, 0
      %v966 = vsel %vm762, %v924, 0
      %v969 = vsel %vm762, %v925, 0
      %v972 = vsel %vm762, %v926, 0
      %v975 = vsel %vm762, %v927, 0
      %v978 = vsel %vm762, %v928, 0
      %v981 = vsel %vm762, %v929, 0
      %v984 = vsel %vm762, %v930, 0
      %v987 = vsel %vm762, %v931, 0
      %v990 = vsel %vm762, %v932, 0
      %v993 = vsel %vm762, %v933, 0
      %v996 = vsel %vm762, %v934, 0
      %v999 = vsel %vm762, %v935, 0
      %vm1001 = vcmask 1043456
      %v1003 = vsel %vm1001, %v937, 0
      %1005 = vmatprep.subr.bf16.mxu0 0
      %1006 = vmatpush1.bf16.msra.mxu0 0
      %1007 = vmatprep.subr.bf16.mxu0 0
      %1008 = vmatpush1.bf16.msra.mxu0 0
      %1009 = vmatprep.subr.bf16.mxu0 0
      %1010 = vmatpush1.bf16.msra.mxu0 0
      %1011 = vmatprep.subr.bf16.mxu0 0
      %1012 = vmatpush1.bf16.msra.mxu0 0
      %1013 = vmatprep.subr.bf16.mxu0 0
      %1014 = vmatpush1.bf16.msra.mxu0 0
      %1015 = vmatprep.subr.bf16.mxu0 0
      %1016 = vmatpush1.bf16.msra.mxu0 0
      %1017 = vmatprep.subr.bf16.mxu0 0
      %1018 = vmatpush1.bf16.msra.mxu0 0
      %1019 = vmatprep.subr.bf16.mxu0 0
      %1020 = vmatpush1.bf16.msra.mxu0 %v1003
      %1021 = vmatprep.subr.bf16.mxu0 0
      %1022 = vmatpush2.bf16.msra.mxu0 0
      %1023 = vmatprep.subr.bf16.mxu0 0
      %1024 = vmatpush2.bf16.msra.mxu0 0
      %1025 = vmatprep.subr.bf16.mxu0 0
      %1026 = vmatpush2.bf16.msra.mxu0 0
      %1027 = vmatprep.subr.bf16.mxu0 0
      %1028 = vmatpush2.bf16.msra.mxu0 0
      %1029 = vmatprep.subr.bf16.mxu0 0
      %1030 = vmatpush2.bf16.msra.mxu0 0
      %1031 = vmatprep.subr.bf16.mxu0 0
      %1032 = vmatpush2.bf16.msra.mxu0 0
      %1033 = vmatprep.subr.bf16.mxu0 0
      %1034 = vmatpush2.bf16.msra.mxu0 0
      %1035 = vmatprep.subr.bf16.mxu0 0
      %1036 = vmatpush2.bf16.msra.mxu0 0
      %1037 = vmatprep.mubr.bf16.mxu0 0
      %1038 = vmatmul.mubr.bf16.gmra.mxu0 %v939
      %v1039 = vpop.f32.mrf.mxu0
      %v1040 = vadd.f32 0.0, %v1039
      %v1041 = vpop.f32.mrf.mxu0
      %v1042 = vpop.f32.mrf.mxu0
      %v1043 = vadd.f32 0.0, %v1042
      %v1044 = vpop.f32.mrf.mxu0
      %1045 = vmatprep.mubr.bf16.mxu0 0
      %1046 = vmatmul.mubr.bf16.gmra.mxu0 %v942
      %v1047 = vpop.f32.mrf.mxu0
      %v1048 = vadd.f32 0.0, %v1047
      %v1049 = vpop.f32.mrf.mxu0
      %v1050 = vpop.f32.mrf.mxu0
      %v1051 = vadd.f32 0.0, %v1050
      %v1052 = vpop.f32.mrf.mxu0
      %1053 = vmatprep.mubr.bf16.mxu0 0
      %1054 = vmatmul.mubr.bf16.gmra.mxu0 %v945
      %v1055 = vpop.f32.mrf.mxu0
      %v1056 = vadd.f32 0.0, %v1055
      %v1057 = vpop.f32.mrf.mxu0
      %v1058 = vpop.f32.mrf.mxu0
      %v1059 = vadd.f32 0.0, %v1058
      %v1060 = vpop.f32.mrf.mxu0
      %1061 = vmatprep.mubr.bf16.mxu0 0
      %1062 = vmatmul.mubr.bf16.gmra.mxu0 %v948
      %v1063 = vpop.f32.mrf.mxu0
      %v1064 = vadd.f32 0.0, %v1063
      %v1065 = vpop.f32.mrf.mxu0
      %v1066 = vpop.f32.mrf.mxu0
      %v1067 = vadd.f32 0.0, %v1066
      %v1068 = vpop.f32.mrf.mxu0
      %1069 = vmatprep.mubr.bf16.mxu0 0
      %1070 = vmatmul.mubr.bf16.gmra.mxu0 %v951
      %v1071 = vpop.f32.mrf.mxu0
      %v1072 = vadd.f32 0.0, %v1071
      %v1073 = vpop.f32.mrf.mxu0
      %v1074 = vpop.f32.mrf.mxu0
      %v1075 = vadd.f32 0.0, %v1074
      %v1076 = vpop.f32.mrf.mxu0
      %1077 = vmatprep.mubr.bf16.mxu0 0
      %1078 = vmatmul.mubr.bf16.gmra.mxu0 %v954
      %v1079 = vpop.f32.mrf.mxu0
      %v1080 = vadd.f32 0.0, %v1079
      %v1081 = vpop.f32.mrf.mxu0
      %v1082 = vpop.f32.mrf.mxu0
      %v1083 = vadd.f32 0.0, %v1082
      %v1084 = vpop.f32.mrf.mxu0
      %1085 = vmatprep.mubr.bf16.mxu0 0
      %1086 = vmatmul.mubr.bf16.gmra.mxu0 %v957
      %v1087 = vpop.f32.mrf.mxu0
      %v1088 = vadd.f32 0.0, %v1087
      %v1089 = vpop.f32.mrf.mxu0
      %v1090 = vpop.f32.mrf.mxu0
      %v1091 = vadd.f32 0.0, %v1090
      %v1092 = vpop.f32.mrf.mxu0
      %1093 = vmatprep.mubr.bf16.mxu0 0
      %1094 = vmatmul.mubr.bf16.gmra.mxu0 %v960
      %v1095 = vpop.f32.mrf.mxu0
      %v1096 = vadd.f32 0.0, %v1095
      %v1097 = vpop.f32.mrf.mxu0
      %v1098 = vpop.f32.mrf.mxu0
      %v1099 = vadd.f32 0.0, %v1098
      %v1100 = vpop.f32.mrf.mxu0
      %1101 = vmatprep.mubr.bf16.mxu0 0
      %1102 = vmatmul.mubr.bf16.gmra.mxu0 %v963
      %v1103 = vpop.f32.mrf.mxu0
      %v1104 = vadd.f32 0.0, %v1103
      %v1105 = vpop.f32.mrf.mxu0
      %v1106 = vpop.f32.mrf.mxu0
      %v1107 = vadd.f32 0.0, %v1106
      %v1108 = vpop.f32.mrf.mxu0
      %1109 = vmatprep.mubr.bf16.mxu0 0
      %1110 = vmatmul.mubr.bf16.gmra.mxu0 %v966
      %v1111 = vpop.f32.mrf.mxu0
      %v1112 = vadd.f32 0.0, %v1111
      %v1113 = vpop.f32.mrf.mxu0
      %v1114 = vpop.f32.mrf.mxu0
      %v1115 = vadd.f32 0.0, %v1114
      %v1116 = vpop.f32.mrf.mxu0
      %1117 = vmatprep.mubr.bf16.mxu0 0
      %1118 = vmatmul.mubr.bf16.gmra.mxu0 %v969
      %v1119 = vpop.f32.mrf.mxu0
      %v1120 = vadd.f32 0.0, %v1119
      %v1121 = vpop.f32.mrf.mxu0
      %v1122 = vpop.f32.mrf.mxu0
      %v1123 = vadd.f32 0.0, %v1122
      %v1124 = vpop.f32.mrf.mxu0
      %1125 = vmatprep.mubr.bf16.mxu0 0
      %1126 = vmatmul.mubr.bf16.gmra.mxu0 %v972
      %v1127 = vpop.f32.mrf.mxu0
      %v1128 = vadd.f32 0.0, %v1127
      %v1129 = vpop.f32.mrf.mxu0
      %v1130 = vpop.f32.mrf.mxu0
      %v1131 = vadd.f32 0.0, %v1130
      %v1132 = vpop.f32.mrf.mxu0
      %1133 = vmatprep.mubr.bf16.mxu0 0
      %1134 = vmatmul.mubr.bf16.gmra.mxu0 %v975
      %v1135 = vpop.f32.mrf.mxu0
      %v1136 = vadd.f32 0.0, %v1135
      %v1137 = vpop.f32.mrf.mxu0
      %v1138 = vpop.f32.mrf.mxu0
      %v1139 = vadd.f32 0.0, %v1138
      %v1140 = vpop.f32.mrf.mxu0
      %1141 = vmatprep.mubr.bf16.mxu0 0
      %1142 = vmatmul.mubr.bf16.gmra.mxu0 %v978
      %v1143 = vpop.f32.mrf.mxu0
      %v1144 = vadd.f32 0.0, %v1143
      %v1145 = vpop.f32.mrf.mxu0
      %v1146 = vpop.f32.mrf.mxu0
      %v1147 = vadd.f32 0.0, %v1146
      %v1148 = vpop.f32.mrf.mxu0
      %1149 = vmatprep.mubr.bf16.mxu0 0
      %1150 = vmatmul.mubr.bf16.gmra.mxu0 %v981
      %v1151 = vpop.f32.mrf.mxu0
      %v1152 = vadd.f32 0.0, %v1151
      %v1153 = vpop.f32.mrf.mxu0
      %v1154 = vpop.f32.mrf.mxu0
      %v1155 = vadd.f32 0.0, %v1154
      %v1156 = vpop.f32.mrf.mxu0
      %1157 = vmatprep.mubr.bf16.mxu0 0
      %1158 = vmatmul.mubr.bf16.gmra.mxu0 %v984
      %v1159 = vpop.f32.mrf.mxu0
      %v1160 = vadd.f32 0.0, %v1159
      %v1161 = vpop.f32.mrf.mxu0
      %v1162 = vpop.f32.mrf.mxu0
      %v1163 = vadd.f32 0.0, %v1162
      %v1164 = vpop.f32.mrf.mxu0
      %1165 = vmatprep.mubr.bf16.mxu0 0
      %1166 = vmatmul.mubr.bf16.gmra.mxu0 %v987
      %v1167 = vpop.f32.mrf.mxu0
      %v1168 = vadd.f32 0.0, %v1167
      %v1169 = vpop.f32.mrf.mxu0
      %v1170 = vpop.f32.mrf.mxu0
      %v1171 = vadd.f32 0.0, %v1170
      %v1172 = vpop.f32.mrf.mxu0
      %1173 = vmatprep.mubr.bf16.mxu0 0
      %1174 = vmatmul.mubr.bf16.gmra.mxu0 %v990
      %v1175 = vpop.f32.mrf.mxu0
      %v1176 = vadd.f32 0.0, %v1175
      %v1177 = vpop.f32.mrf.mxu0
      %v1178 = vpop.f32.mrf.mxu0
      %v1179 = vadd.f32 0.0, %v1178
      %v1180 = vpop.f32.mrf.mxu0
      %1181 = vmatprep.mubr.bf16.mxu0 0
      %1182 = vmatmul.mubr.bf16.gmra.mxu0 %v993
      %v1183 = vpop.f32.mrf.mxu0
      %v1184 = vadd.f32 0.0, %v1183
      %v1185 = vpop.f32.mrf.mxu0
      %v1186 = vpop.f32.mrf.mxu0
      %v1187 = vadd.f32 0.0, %v1186
      %v1188 = vpop.f32.mrf.mxu0
      %1189 = vmatprep.mubr.bf16.mxu0 0
      %1190 = vmatmul.mubr.bf16.gmra.mxu0 %v996
      %v1191 = vpop.f32.mrf.mxu0
      %v1192 = vadd.f32 0.0, %v1191
      %v1193 = vpop.f32.mrf.mxu0
      %v1194 = vpop.f32.mrf.mxu0
      %v1195 = vadd.f32 0.0, %v1194
      %v1196 = vpop.f32.mrf.mxu0
      %1197 = vmatprep.mubr.bf16.mxu0 0
      %1198 = vmatmul.mubr.bf16.gmra.mxu0 %v999
      %v1199 = vpop.f32.mrf.mxu0
      %v1200 = vadd.f32 0.0, %v1199
      %v1201 = vpop.f32.mrf.mxu0
      %v1202 = vpop.f32.mrf.mxu0
      %v1203 = vpop.f32.mrf.mxu0
      %1204 = vdwg.mxu0
      %v1206 = vsel %vm762, %v852, 0
      %v1209 = vsel %vm762, %v853, 0
      %v1212 = vsel %vm762, %v854, 0
      %v1215 = vsel %vm762, %v855, 0
      %v1218 = vsel %vm762, %v856, 0
      %v1221 = vsel %vm762, %v857, 0
      %v1224 = vsel %vm762, %v858, 0
      %v1227 = vsel %vm762, %v859, 0
      %v1230 = vsel %vm762, %v860, 0
      %v1233 = vsel %vm762, %v861, 0
      %v1236 = vsel %vm762, %v862, 0
      %v1239 = vsel %vm762, %v863, 0
      %v1242 = vsel %vm762, %v864, 0
      %v1245 = vsel %vm762, %v865, 0
      %v1248 = vsel %vm762, %v866, 0
      %v1251 = vsel %vm762, %v867, 0
      %v1254 = vsel %vm762, %v868, 0
      %v1257 = vsel %vm762, %v869, 0
      %v1260 = vsel %vm762, %v870, 0
      %v1263 = vsel %vm762, %v871, 0
      %v1266 = vsel %vm762, %v872, 0
      %v1269 = vsel %vm1001, %v873, 0
      %1271 = vmatprep.subr.bf16.mxu0 0
      %1272 = vmatpush1.bf16.msra.mxu0 0
      %1273 = vmatprep.subr.bf16.mxu0 0
      %1274 = vmatpush1.bf16.msra.mxu0 0
      %1275 = vmatprep.subr.bf16.mxu0 0
      %1276 = vmatpush1.bf16.msra.mxu0 0
      %1277 = vmatprep.subr.bf16.mxu0 0
      %1278 = vmatpush1.bf16.msra.mxu0 0
      %1279 = vmatprep.subr.bf16.mxu0 0
      %1280 = vmatpush1.bf16.msra.mxu0 0
      %1281 = vmatprep.subr.bf16.mxu0 0
      %1282 = vmatpush1.bf16.msra.mxu0 0
      %1283 = vmatprep.subr.bf16.mxu0 0
      %1284 = vmatpush1.bf16.msra.mxu0 0
      %1285 = vmatprep.subr.bf16.mxu0 0
      %1286 = vmatpush1.bf16.msra.mxu0 %v1269
      %1287 = vmatprep.subr.bf16.mxu0 0
      %1288 = vmatpush2.bf16.msra.mxu0 0
      %1289 = vmatprep.subr.bf16.mxu0 0
      %1290 = vmatpush2.bf16.msra.mxu0 0
      %1291 = vmatprep.subr.bf16.mxu0 0
      %1292 = vmatpush2.bf16.msra.mxu0 0
      %1293 = vmatprep.subr.bf16.mxu0 0
      %1294 = vmatpush2.bf16.msra.mxu0 0
      %1295 = vmatprep.subr.bf16.mxu0 0
      %1296 = vmatpush2.bf16.msra.mxu0 0
      %1297 = vmatprep.subr.bf16.mxu0 0
      %1298 = vmatpush2.bf16.msra.mxu0 0
      %1299 = vmatprep.subr.bf16.mxu0 0
      %1300 = vmatpush2.bf16.msra.mxu0 0
      %1301 = vmatprep.subr.bf16.mxu0 0
      %1302 = vmatpush2.bf16.msra.mxu0 0
      %1303 = vmatprep.mubr.bf16.mxu0 0
      %1304 = vmatmul.mubr.bf16.gmra.mxu0 %v1206
      %v1305 = vpop.f32.mrf.mxu0
      %v1306 = vadd.f32 %v1040, %v1305
      %v1307 = vpop.f32.mrf.mxu0
      %v1308 = vpop.f32.mrf.mxu0
      %v1309 = vadd.f32 %v1043, %v1308
      %v1310 = vpop.f32.mrf.mxu0
      %1311 = vmatprep.mubr.bf16.mxu0 0
      %1312 = vmatmul.mubr.bf16.gmra.mxu0 %v1209
      %v1313 = vpop.f32.mrf.mxu0
      %v1314 = vadd.f32 %v1048, %v1313
      %v1315 = vpop.f32.mrf.mxu0
      %v1316 = vpop.f32.mrf.mxu0
      %v1317 = vadd.f32 %v1051, %v1316
      %v1318 = vpop.f32.mrf.mxu0
      %1319 = vmatprep.mubr.bf16.mxu0 0
      %1320 = vmatmul.mubr.bf16.gmra.mxu0 %v1212
      %v1321 = vpop.f32.mrf.mxu0
      %v1322 = vadd.f32 %v1056, %v1321
      %v1323 = vpop.f32.mrf.mxu0
      %v1324 = vpop.f32.mrf.mxu0
      %v1325 = vadd.f32 %v1059, %v1324
      %v1326 = vpop.f32.mrf.mxu0
      %1327 = vmatprep.mubr.bf16.mxu0 0
      %1328 = vmatmul.mubr.bf16.gmra.mxu0 %v1215
      %v1329 = vpop.f32.mrf.mxu0
      %v1330 = vadd.f32 %v1064, %v1329
      %v1331 = vpop.f32.mrf.mxu0
      %v1332 = vpop.f32.mrf.mxu0
      %v1333 = vadd.f32 %v1067, %v1332
      %v1334 = vpop.f32.mrf.mxu0
      %1335 = vmatprep.mubr.bf16.mxu0 0
      %1336 = vmatmul.mubr.bf16.gmra.mxu0 %v1218
      %v1337 = vpop.f32.mrf.mxu0
      %v1338 = vadd.f32 %v1072, %v1337
      %v1339 = vpop.f32.mrf.mxu0
      %v1340 = vpop.f32.mrf.mxu0
      %v1341 = vadd.f32 %v1075, %v1340
      %v1342 = vpop.f32.mrf.mxu0
      %1343 = vmatprep.mubr.bf16.mxu0 0
      %1344 = vmatmul.mubr.bf16.gmra.mxu0 %v1221
      %v1345 = vpop.f32.mrf.mxu0
      %v1346 = vadd.f32 %v1080, %v1345
      %v1347 = vpop.f32.mrf.mxu0
      %v1348 = vpop.f32.mrf.mxu0
      %v1349 = vadd.f32 %v1083, %v1348
      %v1350 = vpop.f32.mrf.mxu0
      %1351 = vmatprep.mubr.bf16.mxu0 0
      %1352 = vmatmul.mubr.bf16.gmra.mxu0 %v1224
      %v1353 = vpop.f32.mrf.mxu0
      %v1354 = vadd.f32 %v1088, %v1353
      %v1355 = vpop.f32.mrf.mxu0
      %v1356 = vpop.f32.mrf.mxu0
      %v1357 = vadd.f32 %v1091, %v1356
      %v1358 = vpop.f32.mrf.mxu0
      %1359 = vmatprep.mubr.bf16.mxu0 0
      %1360 = vmatmul.mubr.bf16.gmra.mxu0 %v1227
      %v1361 = vpop.f32.mrf.mxu0
      %v1362 = vadd.f32 %v1096, %v1361
      %v1363 = vpop.f32.mrf.mxu0
      %v1364 = vpop.f32.mrf.mxu0
      %v1365 = vadd.f32 %v1099, %v1364
      %v1366 = vpop.f32.mrf.mxu0
      %1367 = vmatprep.mubr.bf16.mxu0 0
      %1368 = vmatmul.mubr.bf16.gmra.mxu0 %v1230
      %v1369 = vpop.f32.mrf.mxu0
      %v1370 = vadd.f32 %v1104, %v1369
      %v1371 = vpop.f32.mrf.mxu0
      %v1372 = vpop.f32.mrf.mxu0
      %v1373 = vadd.f32 %v1107, %v1372
      %v1374 = vpop.f32.mrf.mxu0
      %1375 = vmatprep.mubr.bf16.mxu0 0
      %1376 = vmatmul.mubr.bf16.gmra.mxu0 %v1233
      %v1377 = vpop.f32.mrf.mxu0
      %v1378 = vadd.f32 %v1112, %v1377
      %v1379 = vpop.f32.mrf.mxu0
      %v1380 = vpop.f32.mrf.mxu0
      %v1381 = vadd.f32 %v1115, %v1380
      %v1382 = vpop.f32.mrf.mxu0
      %1383 = vmatprep.mubr.bf16.mxu0 0
      %1384 = vmatmul.mubr.bf16.gmra.mxu0 %v1236
      %v1385 = vpop.f32.mrf.mxu0
      %v1386 = vadd.f32 %v1120, %v1385
      %v1387 = vpop.f32.mrf.mxu0
      %v1388 = vpop.f32.mrf.mxu0
      %v1389 = vadd.f32 %v1123, %v1388
      %v1390 = vpop.f32.mrf.mxu0
      %1391 = vmatprep.mubr.bf16.mxu0 0
      %1392 = vmatmul.mubr.bf16.gmra.mxu0 %v1239
      %v1393 = vpop.f32.mrf.mxu0
      %v1394 = vadd.f32 %v1128, %v1393
      %v1395 = vpop.f32.mrf.mxu0
      %v1396 = vpop.f32.mrf.mxu0
      %v1397 = vadd.f32 %v1131, %v1396
      %v1398 = vpop.f32.mrf.mxu0
      %1399 = vmatprep.mubr.bf16.mxu0 0
      %1400 = vmatmul.mubr.bf16.gmra.mxu0 %v1242
      %v1401 = vpop.f32.mrf.mxu0
      %v1402 = vadd.f32 %v1136, %v1401
      %v1403 = vpop.f32.mrf.mxu0
      %v1404 = vpop.f32.mrf.mxu0
      %v1405 = vadd.f32 %v1139, %v1404
      %v1406 = vpop.f32.mrf.mxu0
      %1407 = vmatprep.mubr.bf16.mxu0 0
      %1408 = vmatmul.mubr.bf16.gmra.mxu0 %v1245
      %v1409 = vpop.f32.mrf.mxu0
      %v1410 = vadd.f32 %v1144, %v1409
      %v1411 = vpop.f32.mrf.mxu0
      %v1412 = vpop.f32.mrf.mxu0
      %v1413 = vadd.f32 %v1147, %v1412
      %v1414 = vpop.f32.mrf.mxu0
      %1415 = vmatprep.mubr.bf16.mxu0 0
      %1416 = vmatmul.mubr.bf16.gmra.mxu0 %v1248
      %v1417 = vpop.f32.mrf.mxu0
      %v1418 = vadd.f32 %v1152, %v1417
      %v1419 = vpop.f32.mrf.mxu0
      %v1420 = vpop.f32.mrf.mxu0
      %v1421 = vadd.f32 %v1155, %v1420
      %v1422 = vpop.f32.mrf.mxu0
      %1423 = vmatprep.mubr.bf16.mxu0 0
      %1424 = vmatmul.mubr.bf16.gmra.mxu0 %v1251
      %v1425 = vpop.f32.mrf.mxu0
      %v1426 = vadd.f32 %v1160, %v1425
      %v1427 = vpop.f32.mrf.mxu0
      %v1428 = vpop.f32.mrf.mxu0
      %v1429 = vadd.f32 %v1163, %v1428
      %v1430 = vpop.f32.mrf.mxu0
      %1431 = vmatprep.mubr.bf16.mxu0 0
      %1432 = vmatmul.mubr.bf16.gmra.mxu0 %v1254
      %v1433 = vpop.f32.mrf.mxu0
      %v1434 = vadd.f32 %v1168, %v1433
      %v1435 = vpop.f32.mrf.mxu0
      %v1436 = vpop.f32.mrf.mxu0
      %v1437 = vadd.f32 %v1171, %v1436
      %v1438 = vpop.f32.mrf.mxu0
      %1439 = vmatprep.mubr.bf16.mxu0 0
      %1440 = vmatmul.mubr.bf16.gmra.mxu0 %v1257
      %v1441 = vpop.f32.mrf.mxu0
      %v1442 = vadd.f32 %v1176, %v1441
      %v1443 = vpop.f32.mrf.mxu0
      %v1444 = vpop.f32.mrf.mxu0
      %v1445 = vadd.f32 %v1179, %v1444
      %v1446 = vpop.f32.mrf.mxu0
      %1447 = vmatprep.mubr.bf16.mxu0 0
      %1448 = vmatmul.mubr.bf16.gmra.mxu0 %v1260
      %v1449 = vpop.f32.mrf.mxu0
      %v1450 = vadd.f32 %v1184, %v1449
      %v1451 = vpop.f32.mrf.mxu0
      %v1452 = vpop.f32.mrf.mxu0
      %v1453 = vadd.f32 %v1187, %v1452
      %v1454 = vpop.f32.mrf.mxu0
      %1455 = vmatprep.mubr.bf16.mxu0 0
      %1456 = vmatmul.mubr.bf16.gmra.mxu0 %v1263
      %v1457 = vpop.f32.mrf.mxu0
      %v1458 = vadd.f32 %v1192, %v1457
      %v1459 = vpop.f32.mrf.mxu0
      %v1460 = vpop.f32.mrf.mxu0
      %v1461 = vadd.f32 %v1195, %v1460
      %v1462 = vpop.f32.mrf.mxu0
      %1463 = vmatprep.mubr.bf16.mxu0 0
      %1464 = vmatmul.mubr.bf16.gmra.mxu0 %v1266
      %v1465 = vpop.f32.mrf.mxu0
      %v1466 = vadd.f32 %v1200, %v1465
      %v1467 = vpop.f32.mrf.mxu0
      %v1468 = vpop.f32.mrf.mxu0
      %v1469 = vpop.f32.mrf.mxu0
      %1470 = vdwg.mxu0
      %v1471 = vld [vmem:[#allocation2 + $0x7] sm:$0xff]
      %v1472 = vld [vmem:[#allocation2 + $0xf] sm:$0xff]
      %v1473 = vld [vmem:[#allocation2 + $0x17] sm:$0xff]
      %v1474 = vld [vmem:[#allocation2 + $0x1f] sm:$0xff]
      %v1475 = vld [vmem:[#allocation2 + $0x27] sm:$0xff]
      %v1476 = vld [vmem:[#allocation2 + $0x2f] sm:$0xff]
      %v1477 = vld [vmem:[#allocation2 + $0x37] sm:$0xff]
      %v1478 = vld [vmem:[#allocation2 + $0x3f] sm:$0xff]
      %v1479 = vld [vmem:[#allocation2 + $0x47] sm:$0xff]
      %v1480 = vld [vmem:[#allocation2 + $0x4f] sm:$0xff]
      %v1481 = vld [vmem:[#allocation2 + $0x57] sm:$0xff]
      %v1482 = vld [vmem:[#allocation2 + $0x5f] sm:$0xff]
      %v1483 = vld [vmem:[#allocation2 + $0x67] sm:$0xff]
      %v1484 = vld [vmem:[#allocation2 + $0x6f] sm:$0xff]
      %v1485 = vld [vmem:[#allocation2 + $0x77] sm:$0xff]
      %v1486 = vld [vmem:[#allocation2 + $0x7f] sm:$0xff]
      %v1487 = vld [vmem:[#allocation2 + $0x87] sm:$0xff]
      %v1488 = vld [vmem:[#allocation2 + $0x8f] sm:$0xff]
      %v1489 = vld [vmem:[#allocation2 + $0x97] sm:$0xff]
      %v1490 = vld [vmem:[#allocation2 + $0x9f] sm:$0xff]
      %v1491 = vld [vmem:[#allocation2 + $0xa7] sm:$0xff]
      %v1492 = vld [vmem:[#allocation2 + $0xaf] sm:$0xff]
      %v1493 = vld [vmem:[#allocation2 + $0xb7] sm:$0xff]
      %v1494 = vld [vmem:[#allocation2 + $0xbf] sm:$0xff]
      %v1495 = vld [vmem:[#allocation2 + $0xc7] sm:$0xff]
      %v1496 = vld [vmem:[#allocation2 + $0xcf] sm:$0xff]
      %v1497 = vld [vmem:[#allocation2 + $0xd7] sm:$0xff]
      %v1498 = vld [vmem:[#allocation2 + $0xdf] sm:$0xff]
      %v1499 = vld [vmem:[#allocation2 + $0xe7] sm:$0xff]
      %v1500 = vld [vmem:[#allocation2 + $0xef] sm:$0xff]
      %v1501 = vld [vmem:[#allocation2 + $0xf7] sm:$0xff]
      %v1502 = vld [vmem:[#allocation2 + $0xff] sm:$0xff]
      %v1503 = vld [vmem:[#allocation2 + $0x107] sm:$0xff]
      %v1504 = vld [vmem:[#allocation2 + $0x10f] sm:$0xff]
      %v1505 = vld [vmem:[#allocation2 + $0x117] sm:$0xff]
      %v1506 = vld [vmem:[#allocation2 + $0x11f] sm:$0xff]
      %v1507 = vld [vmem:[#allocation2 + $0x127] sm:$0xff]
      %v1508 = vld [vmem:[#allocation2 + $0x12f] sm:$0xff]
      %v1509 = vld [vmem:[#allocation2 + $0x137] sm:$0xff]
      %v1510 = vld [vmem:[#allocation2 + $0x13f] sm:$0xff]
      %v1511 = vld [vmem:[#allocation2 + $0x147] sm:$0xf]
      %v1512 = vpack.c.bf16 %v1472, %v1471
      %v1513 = vpack.c.bf16 %v1474, %v1473
      %v1514 = vpack.c.bf16 %v1476, %v1475
      %v1515 = vpack.c.bf16 %v1478, %v1477
      %v1516 = vpack.c.bf16 %v1480, %v1479
      %v1517 = vpack.c.bf16 %v1482, %v1481
      %v1518 = vpack.c.bf16 %v1484, %v1483
      %v1519 = vpack.c.bf16 %v1486, %v1485
      %v1520 = vpack.c.bf16 %v1488, %v1487
      %v1521 = vpack.c.bf16 %v1490, %v1489
      %v1522 = vpack.c.bf16 %v1492, %v1491
      %v1523 = vpack.c.bf16 %v1494, %v1493
      %v1524 = vpack.c.bf16 %v1496, %v1495
      %v1525 = vpack.c.bf16 %v1498, %v1497
      %v1526 = vpack.c.bf16 %v1500, %v1499
      %v1527 = vpack.c.bf16 %v1502, %v1501
      %v1528 = vpack.c.bf16 %v1504, %v1503
      %v1529 = vpack.c.bf16 %v1506, %v1505
      %v1530 = vpack.c.bf16 %v1508, %v1507
      %v1531 = vpack.c.bf16 %v1510, %v1509
      %v1532 = vpack.c.bf16 %v1511, %v1511
      %s1533 = scalar_lea.vmem %s3, 8
      %v1534 = vld [vmem:[%s1533] sm:$0xf]
      %v1536 = vsel %vm762, %v1512, 0
      %v1539 = vsel %vm762, %v1513, 0
      %v1542 = vsel %vm762, %v1514, 0
      %v1545 = vsel %vm762, %v1515, 0
      %v1548 = vsel %vm762, %v1516, 0
      %v1551 = vsel %vm762, %v1517, 0
      %v1554 = vsel %vm762, %v1518, 0
      %v1557 = vsel %vm762, %v1519, 0
      %v1560 = vsel %vm762, %v1520, 0
      %v1563 = vsel %vm762, %v1521, 0
      %v1566 = vsel %vm762, %v1522, 0
      %v1569 = vsel %vm762, %v1523, 0
      %v1572 = vsel %vm762, %v1524, 0
      %v1575 = vsel %vm762, %v1525, 0
      %v1578 = vsel %vm762, %v1526, 0
      %v1581 = vsel %vm762, %v1527, 0
      %v1584 = vsel %vm762, %v1528, 0
      %v1587 = vsel %vm762, %v1529, 0
      %v1590 = vsel %vm762, %v1530, 0
      %v1593 = vsel %vm762, %v1531, 0
      %v1596 = vsel %vm762, %v1532, 0
      %v1599 = vsel %vm1001, %v1534, 0
      %1601 = vmatprep.subr.bf16.mxu0 0
      %1602 = vmatpush1.bf16.msra.mxu0 0
      %1603 = vmatprep.subr.bf16.mxu0 0
      %1604 = vmatpush1.bf16.msra.mxu0 0
      %1605 = vmatprep.subr.bf16.mxu0 0
      %1606 = vmatpush1.bf16.msra.mxu0 0
      %1607 = vmatprep.subr.bf16.mxu0 0
      %1608 = vmatpush1.bf16.msra.mxu0 0
      %1609 = vmatprep.subr.bf16.mxu0 0
      %1610 = vmatpush1.bf16.msra.mxu0 0
      %1611 = vmatprep.subr.bf16.mxu0 0
      %1612 = vmatpush1.bf16.msra.mxu0 0
      %1613 = vmatprep.subr.bf16.mxu0 0
      %1614 = vmatpush1.bf16.msra.mxu0 0
      %1615 = vmatprep.subr.bf16.mxu0 0
      %1616 = vmatpush1.bf16.msra.mxu0 %v1599
      %1617 = vmatprep.subr.bf16.mxu0 0
      %1618 = vmatpush2.bf16.msra.mxu0 0
      %1619 = vmatprep.subr.bf16.mxu0 0
      %1620 = vmatpush2.bf16.msra.mxu0 0
      %1621 = vmatprep.subr.bf16.mxu0 0
      %1622 = vmatpush2.bf16.msra.mxu0 0
      %1623 = vmatprep.subr.bf16.mxu0 0
      %1624 = vmatpush2.bf16.msra.mxu0 0
      %1625 = vmatprep.subr.bf16.mxu0 0
      %1626 = vmatpush2.bf16.msra.mxu0 0
      %1627 = vmatprep.subr.bf16.mxu0 0
      %1628 = vmatpush2.bf16.msra.mxu0 0
      %1629 = vmatprep.subr.bf16.mxu0 0
      %1630 = vmatpush2.bf16.msra.mxu0 0
      %1631 = vmatprep.subr.bf16.mxu0 0
      %1632 = vmatpush2.bf16.msra.mxu0 0
      %1633 = vmatprep.mubr.bf16.mxu0 0
      %1634 = vmatmul.mubr.bf16.gmra.mxu0 %v1536
      %v1635 = vpop.f32.mrf.mxu0
      %v1636 = vadd.f32 0.0, %v1635
      %v1637 = vpop.f32.mrf.mxu0
      %v1638 = vpop.f32.mrf.mxu0
      %v1639 = vadd.f32 0.0, %v1638
      %v1640 = vpop.f32.mrf.mxu0
      %1641 = vmatprep.mubr.bf16.mxu0 0
      %1642 = vmatmul.mubr.bf16.gmra.mxu0 %v1539
      %v1643 = vpop.f32.mrf.mxu0
      %v1644 = vadd.f32 0.0, %v1643
      %v1645 = vpop.f32.mrf.mxu0
      %v1646 = vpop.f32.mrf.mxu0
      %v1647 = vadd.f32 0.0, %v1646
      %v1648 = vpop.f32.mrf.mxu0
      %1649 = vmatprep.mubr.bf16.mxu0 0
      %1650 = vmatmul.mubr.bf16.gmra.mxu0 %v1542
      %v1651 = vpop.f32.mrf.mxu0
      %v1652 = vadd.f32 0.0, %v1651
      %v1653 = vpop.f32.mrf.mxu0
      %v1654 = vpop.f32.mrf.mxu0
      %v1655 = vadd.f32 0.0, %v1654
      %v1656 = vpop.f32.mrf.mxu0
      %1657 = vmatprep.mubr.bf16.mxu0 0
      %1658 = vmatmul.mubr.bf16.gmra.mxu0 %v1545
      %v1659 = vpop.f32.mrf.mxu0
      %v1660 = vadd.f32 0.0, %v1659
      %v1661 = vpop.f32.mrf.mxu0
      %v1662 = vpop.f32.mrf.mxu0
      %v1663 = vadd.f32 0.0, %v1662
      %v1664 = vpop.f32.mrf.mxu0
      %1665 = vmatprep.mubr.bf16.mxu0 0
      %1666 = vmatmul.mubr.bf16.gmra.mxu0 %v1548
      %v1667 = vpop.f32.mrf.mxu0
      %v1668 = vadd.f32 0.0, %v1667
      %v1669 = vpop.f32.mrf.mxu0
      %v1670 = vpop.f32.mrf.mxu0
      %v1671 = vadd.f32 0.0, %v1670
      %v1672 = vpop.f32.mrf.mxu0
      %1673 = vmatprep.mubr.bf16.mxu0 0
      %1674 = vmatmul.mubr.bf16.gmra.mxu0 %v1551
      %v1675 = vpop.f32.mrf.mxu0
      %v1676 = vadd.f32 0.0, %v1675
      %v1677 = vpop.f32.mrf.mxu0
      %v1678 = vpop.f32.mrf.mxu0
      %v1679 = vadd.f32 0.0, %v1678
      %v1680 = vpop.f32.mrf.mxu0
      %1681 = vmatprep.mubr.bf16.mxu0 0
      %1682 = vmatmul.mubr.bf16.gmra.mxu0 %v1554
      %v1683 = vpop.f32.mrf.mxu0
      %v1684 = vadd.f32 0.0, %v1683
      %v1685 = vpop.f32.mrf.mxu0
      %v1686 = vpop.f32.mrf.mxu0
      %v1687 = vadd.f32 0.0, %v1686
      %v1688 = vpop.f32.mrf.mxu0
      %1689 = vmatprep.mubr.bf16.mxu0 0
      %1690 = vmatmul.mubr.bf16.gmra.mxu0 %v1557
      %v1691 = vpop.f32.mrf.mxu0
      %v1692 = vadd.f32 0.0, %v1691
      %v1693 = vpop.f32.mrf.mxu0
      %v1694 = vpop.f32.mrf.mxu0
      %v1695 = vadd.f32 0.0, %v1694
      %v1696 = vpop.f32.mrf.mxu0
      %1697 = vmatprep.mubr.bf16.mxu0 0
      %1698 = vmatmul.mubr.bf16.gmra.mxu0 %v1560
      %v1699 = vpop.f32.mrf.mxu0
      %v1700 = vadd.f32 0.0, %v1699
      %v1701 = vpop.f32.mrf.mxu0
      %v1702 = vpop.f32.mrf.mxu0
      %v1703 = vadd.f32 0.0, %v1702
      %v1704 = vpop.f32.mrf.mxu0
      %1705 = vmatprep.mubr.bf16.mxu0 0
      %1706 = vmatmul.mubr.bf16.gmra.mxu0 %v1563
      %v1707 = vpop.f32.mrf.mxu0
      %v1708 = vadd.f32 0.0, %v1707
      %v1709 = vpop.f32.mrf.mxu0
      %v1710 = vpop.f32.mrf.mxu0
      %v1711 = vadd.f32 0.0, %v1710
      %v1712 = vpop.f32.mrf.mxu0
      %1713 = vmatprep.mubr.bf16.mxu0 0
      %1714 = vmatmul.mubr.bf16.gmra.mxu0 %v1566
      %v1715 = vpop.f32.mrf.mxu0
      %v1716 = vadd.f32 0.0, %v1715
      %v1717 = vpop.f32.mrf.mxu0
      %v1718 = vpop.f32.mrf.mxu0
      %v1719 = vadd.f32 0.0, %v1718
      %v1720 = vpop.f32.mrf.mxu0
      %1721 = vmatprep.mubr.bf16.mxu0 0
      %1722 = vmatmul.mubr.bf16.gmra.mxu0 %v1569
      %v1723 = vpop.f32.mrf.mxu0
      %v1724 = vadd.f32 0.0, %v1723
      %v1725 = vpop.f32.mrf.mxu0
      %v1726 = vpop.f32.mrf.mxu0
      %v1727 = vadd.f32 0.0, %v1726
      %v1728 = vpop.f32.mrf.mxu0
      %1729 = vmatprep.mubr.bf16.mxu0 0
      %1730 = vmatmul.mubr.bf16.gmra.mxu0 %v1572
      %v1731 = vpop.f32.mrf.mxu0
      %v1732 = vadd.f32 0.0, %v1731
      %v1733 = vpop.f32.mrf.mxu0
      %v1734 = vpop.f32.mrf.mxu0
      %v1735 = vadd.f32 0.0, %v1734
      %v1736 = vpop.f32.mrf.mxu0
      %1737 = vmatprep.mubr.bf16.mxu0 0
      %1738 = vmatmul.mubr.bf16.gmra.mxu0 %v1575
      %v1739 = vpop.f32.mrf.mxu0
      %v1740 = vadd.f32 0.0, %v1739
      %v1741 = vpop.f32.mrf.mxu0
      %v1742 = vpop.f32.mrf.mxu0
      %v1743 = vadd.f32 0.0, %v1742
      %v1744 = vpop.f32.mrf.mxu0
      %1745 = vmatprep.mubr.bf16.mxu0 0
      %1746 = vmatmul.mubr.bf16.gmra.mxu0 %v1578
      %v1747 = vpop.f32.mrf.mxu0
      %v1748 = vadd.f32 0.0, %v1747
      %v1749 = vpop.f32.mrf.mxu0
      %v1750 = vpop.f32.mrf.mxu0
      %v1751 = vadd.f32 0.0, %v1750
      %v1752 = vpop.f32.mrf.mxu0
      %1753 = vmatprep.mubr.bf16.mxu0 0
      %1754 = vmatmul.mubr.bf16.gmra.mxu0 %v1581
      %v1755 = vpop.f32.mrf.mxu0
      %v1756 = vadd.f32 0.0, %v1755
      %v1757 = vpop.f32.mrf.mxu0
      %v1758 = vpop.f32.mrf.mxu0
      %v1759 = vadd.f32 0.0, %v1758
      %v1760 = vpop.f32.mrf.mxu0
      %1761 = vmatprep.mubr.bf16.mxu0 0
      %1762 = vmatmul.mubr.bf16.gmra.mxu0 %v1584
      %v1763 = vpop.f32.mrf.mxu0
      %v1764 = vadd.f32 0.0, %v1763
      %v1765 = vpop.f32.mrf.mxu0
      %v1766 = vpop.f32.mrf.mxu0
      %v1767 = vadd.f32 0.0, %v1766
      %v1768 = vpop.f32.mrf.mxu0
      %1769 = vmatprep.mubr.bf16.mxu0 0
      %1770 = vmatmul.mubr.bf16.gmra.mxu0 %v1587
      %v1771 = vpop.f32.mrf.mxu0
      %v1772 = vadd.f32 0.0, %v1771
      %v1773 = vpop.f32.mrf.mxu0
      %v1774 = vpop.f32.mrf.mxu0
      %v1775 = vadd.f32 0.0, %v1774
      %v1776 = vpop.f32.mrf.mxu0
      %1777 = vmatprep.mubr.bf16.mxu0 0
      %1778 = vmatmul.mubr.bf16.gmra.mxu0 %v1590
      %v1779 = vpop.f32.mrf.mxu0
      %v1780 = vadd.f32 0.0, %v1779
      %v1781 = vpop.f32.mrf.mxu0
      %v1782 = vpop.f32.mrf.mxu0
      %v1783 = vadd.f32 0.0, %v1782
      %v1784 = vpop.f32.mrf.mxu0
      %1785 = vmatprep.mubr.bf16.mxu0 0
      %1786 = vmatmul.mubr.bf16.gmra.mxu0 %v1593
      %v1787 = vpop.f32.mrf.mxu0
      %v1788 = vadd.f32 0.0, %v1787
      %v1789 = vpop.f32.mrf.mxu0
      %v1790 = vpop.f32.mrf.mxu0
      %v1791 = vadd.f32 0.0, %v1790
      %v1792 = vpop.f32.mrf.mxu0
      %1793 = vmatprep.mubr.bf16.mxu0 0
      %1794 = vmatmul.mubr.bf16.gmra.mxu0 %v1596
      %v1795 = vpop.f32.mrf.mxu0
      %v1796 = vadd.f32 0.0, %v1795
      %v1797 = vpop.f32.mrf.mxu0
      %v1798 = vpop.f32.mrf.mxu0
      %v1799 = vpop.f32.mrf.mxu0
      %1800 = vdwg.mxu0
      %v1801 = vadd.f32 %v1306, %v1636
      %v1802 = vadd.f32 %v1309, %v1639
      %v1803 = vadd.f32 %v1314, %v1644
      %v1804 = vadd.f32 %v1317, %v1647
      %v1805 = vadd.f32 %v1322, %v1652
      %v1806 = vadd.f32 %v1325, %v1655
      %v1807 = vadd.f32 %v1330, %v1660
      %v1808 = vadd.f32 %v1333, %v1663
      %v1809 = vadd.f32 %v1338, %v1668
      %v1810 = vadd.f32 %v1341, %v1671
      %v1811 = vadd.f32 %v1346, %v1676
      %v1812 = vadd.f32 %v1349, %v1679
      %v1813 = vadd.f32 %v1354, %v1684
      %v1814 = vadd.f32 %v1357, %v1687
      %v1815 = vadd.f32 %v1362, %v1692
      %v1816 = vadd.f32 %v1365, %v1695
      %v1817 = vadd.f32 %v1370, %v1700
      %v1818 = vadd.f32 %v1373, %v1703
      %v1819 = vadd.f32 %v1378, %v1708
      %v1820 = vadd.f32 %v1381, %v1711
      %v1821 = vadd.f32 %v1386, %v1716
      %v1822 = vadd.f32 %v1389, %v1719
      %v1823 = vadd.f32 %v1394, %v1724
      %v1824 = vadd.f32 %v1397, %v1727
      %v1825 = vadd.f32 %v1402, %v1732
      %v1826 = vadd.f32 %v1405, %v1735
      %v1827 = vadd.f32 %v1410, %v1740
      %v1828 = vadd.f32 %v1413, %v1743
      %v1829 = vadd.f32 %v1418, %v1748
      %v1830 = vadd.f32 %v1421, %v1751
      %v1831 = vadd.f32 %v1426, %v1756
      %v1832 = vadd.f32 %v1429, %v1759
      %v1833 = vadd.f32 %v1434, %v1764
      %v1834 = vadd.f32 %v1437, %v1767
      %v1835 = vadd.f32 %v1442, %v1772
      %v1836 = vadd.f32 %v1445, %v1775
      %v1837 = vadd.f32 %v1450, %v1780
      %v1838 = vadd.f32 %v1453, %v1783
      %v1839 = vadd.f32 %v1458, %v1788
      %v1840 = vadd.f32 %v1461, %v1791
      %v1841 = vadd.f32 %v1466, %v1796
      %v1842 = vld [vmem:[#allocation2 + $0x17] sm:$0xff]
      %v1843 = vld [vmem:[#allocation2 + $0x1f] sm:$0xff]
      %v1844 = vld [vmem:[#allocation2 + $0x27] sm:$0xff]
      %v1845 = vld [vmem:[#allocation2 + $0x2f] sm:$0xff]
      %v1846 = vld [vmem:[#allocation2 + $0x37] sm:$0xff]
      %v1847 = vld [vmem:[#allocation2 + $0x3f] sm:$0xff]
      %v1848 = vld [vmem:[#allocation2 + $0x47] sm:$0xff]
      %v1849 = vld [vmem:[#allocation2 + $0x4f] sm:$0xff]
      %v1850 = vld [vmem:[#allocation2 + $0x57] sm:$0xff]
      %v1851 = vld [vmem:[#allocation2 + $0x5f] sm:$0xff]
      %v1852 = vld [vmem:[#allocation2 + $0x67] sm:$0xff]
      %v1853 = vld [vmem:[#allocation2 + $0x6f] sm:$0xff]
      %v1854 = vld [vmem:[#allocation2 + $0x77] sm:$0xff]
      %v1855 = vld [vmem:[#allocation2 + $0x7f] sm:$0xff]
      %v1856 = vld [vmem:[#allocation2 + $0x87] sm:$0xff]
      %v1857 = vld [vmem:[#allocation2 + $0x8f] sm:$0xff]
      %v1858 = vld [vmem:[#allocation2 + $0x97] sm:$0xff]
      %v1859 = vld [vmem:[#allocation2 + $0x9f] sm:$0xff]
      %v1860 = vld [vmem:[#allocation2 + $0xa7] sm:$0xff]
      %v1861 = vld [vmem:[#allocation2 + $0xaf] sm:$0xff]
      %v1862 = vld [vmem:[#allocation2 + $0xb7] sm:$0xff]
      %v1863 = vld [vmem:[#allocation2 + $0xbf] sm:$0xff]
      %v1864 = vld [vmem:[#allocation2 + $0xc7] sm:$0xff]
      %v1865 = vld [vmem:[#allocation2 + $0xcf] sm:$0xff]
      %v1866 = vld [vmem:[#allocation2 + $0xd7] sm:$0xff]
      %v1867 = vld [vmem:[#allocation2 + $0xdf] sm:$0xff]
      %v1868 = vld [vmem:[#allocation2 + $0xe7] sm:$0xff]
      %v1869 = vld [vmem:[#allocation2 + $0xef] sm:$0xff]
      %v1870 = vld [vmem:[#allocation2 + $0xf7] sm:$0xff]
      %v1871 = vld [vmem:[#allocation2 + $0xff] sm:$0xff]
      %v1872 = vld [vmem:[#allocation2 + $0x107] sm:$0xff]
      %v1873 = vld [vmem:[#allocation2 + $0x10f] sm:$0xff]
      %v1874 = vld [vmem:[#allocation2 + $0x117] sm:$0xff]
      %v1875 = vld [vmem:[#allocation2 + $0x11f] sm:$0xff]
      %v1876 = vld [vmem:[#allocation2 + $0x127] sm:$0xff]
      %v1877 = vld [vmem:[#allocation2 + $0x12f] sm:$0xff]
      %v1878 = vld [vmem:[#allocation2 + $0x137] sm:$0xff]
      %v1879 = vld [vmem:[#allocation2 + $0x13f] sm:$0xff]
      %v1880 = vld [vmem:[#allocation2 + $0x147] sm:$0xff]
      %v1881 = vld [vmem:[#allocation2 + $0x14f] sm:$0xff]
      %v1882 = vld [vmem:[#allocation2 + $0x157] sm:$0xf]
      %v1883 = vpack.c.bf16 %v1843, %v1842
      %v1884 = vpack.c.bf16 %v1845, %v1844
      %v1885 = vpack.c.bf16 %v1847, %v1846
      %v1886 = vpack.c.bf16 %v1849, %v1848
      %v1887 = vpack.c.bf16 %v1851, %v1850
      %v1888 = vpack.c.bf16 %v1853, %v1852
      %v1889 = vpack.c.bf16 %v1855, %v1854
      %v1890 = vpack.c.bf16 %v1857, %v1856
      %v1891 = vpack.c.bf16 %v1859, %v1858
      %v1892 = vpack.c.bf16 %v1861, %v1860
      %v1893 = vpack.c.bf16 %v1863, %v1862
      %v1894 = vpack.c.bf16 %v1865, %v1864
      %v1895 = vpack.c.bf16 %v1867, %v1866
      %v1896 = vpack.c.bf16 %v1869, %v1868
      %v1897 = vpack.c.bf16 %v1871, %v1870
      %v1898 = vpack.c.bf16 %v1873, %v1872
      %v1899 = vpack.c.bf16 %v1875, %v1874
      %v1900 = vpack.c.bf16 %v1877, %v1876
      %v1901 = vpack.c.bf16 %v1879, %v1878
      %v1902 = vpack.c.bf16 %v1881, %v1880
      %v1903 = vpack.c.bf16 %v1882, %v1882
      %s1904 = scalar_lea.vmem %s3, 12
      %v1905 = vld [vmem:[%s1904] sm:$0xf]
      %v1907 = vsel %vm762, %v1883, 0
      %v1910 = vsel %vm762, %v1884, 0
      %v1913 = vsel %vm762, %v1885, 0
      %v1916 = vsel %vm762, %v1886, 0
      %v1919 = vsel %vm762, %v1887, 0
      %v1922 = vsel %vm762, %v1888, 0
      %v1925 = vsel %vm762, %v1889, 0
      %v1928 = vsel %vm762, %v1890, 0
      %v1931 = vsel %vm762, %v1891, 0
      %v1934 = vsel %vm762, %v1892, 0
      %v1937 = vsel %vm762, %v1893, 0
      %v1940 = vsel %vm762, %v1894, 0
      %v1943 = vsel %vm762, %v1895, 0
      %v1946 = vsel %vm762, %v1896, 0
      %v1949 = vsel %vm762, %v1897, 0
      %v1952 = vsel %vm762, %v1898, 0
      %v1955 = vsel %vm762, %v1899, 0
      %v1958 = vsel %vm762, %v1900, 0
      %v1961 = vsel %vm762, %v1901, 0
      %v1964 = vsel %vm762, %v1902, 0
      %v1967 = vsel %vm762, %v1903, 0
      %v1970 = vsel %vm1001, %v1905, 0
      %1972 = vmatprep.subr.bf16.mxu0 0
      %1973 = vmatpush1.bf16.msra.mxu0 0
      %1974 = vmatprep.subr.bf16.mxu0 0
      %1975 = vmatpush1.bf16.msra.mxu0 0
      %1976 = vmatprep.subr.bf16.mxu0 0
      %1977 = vmatpush1.bf16.msra.mxu0 0
      %1978 = vmatprep.subr.bf16.mxu0 0
      %1979 = vmatpush1.bf16.msra.mxu0 0
      %1980 = vmatprep.subr.bf16.mxu0 0
      %1981 = vmatpush1.bf16.msra.mxu0 0
      %1982 = vmatprep.subr.bf16.mxu0 0
      %1983 = vmatpush1.bf16.msra.mxu0 0
      %1984 = vmatprep.subr.bf16.mxu0 0
      %1985 = vmatpush1.bf16.msra.mxu0 0
      %1986 = vmatprep.subr.bf16.mxu0 0
      %1987 = vmatpush1.bf16.msra.mxu0 %v1970
      %1988 = vmatprep.subr.bf16.mxu0 0
      %1989 = vmatpush2.bf16.msra.mxu0 0
      %1990 = vmatprep.subr.bf16.mxu0 0
      %1991 = vmatpush2.bf16.msra.mxu0 0
      %1992 = vmatprep.subr.bf16.mxu0 0
      %1993 = vmatpush2.bf16.msra.mxu0 0
      %1994 = vmatprep.subr.bf16.mxu0 0
      %1995 = vmatpush2.bf16.msra.mxu0 0
      %1996 = vmatprep.subr.bf16.mxu0 0
      %1997 = vmatpush2.bf16.msra.mxu0 0
      %1998 = vmatprep.subr.bf16.mxu0 0
      %1999 = vmatpush2.bf16.msra.mxu0 0
      %2000 = vmatprep.subr.bf16.mxu0 0
      %2001 = vmatpush2.bf16.msra.mxu0 0
      %2002 = vmatprep.subr.bf16.mxu0 0
      %2003 = vmatpush2.bf16.msra.mxu0 0
      %2004 = vmatprep.mubr.bf16.mxu0 0
      %2005 = vmatmul.mubr.bf16.gmra.mxu0 %v1907
      %v2006 = vpop.f32.mrf.mxu0
      %v2007 = vadd.f32 0.0, %v2006
      %v2008 = vpop.f32.mrf.mxu0
      %v2009 = vpop.f32.mrf.mxu0
      %v2010 = vadd.f32 0.0, %v2009
      %v2011 = vpop.f32.mrf.mxu0
      %2012 = vmatprep.mubr.bf16.mxu0 0
      %2013 = vmatmul.mubr.bf16.gmra.mxu0 %v1910
      %v2014 = vpop.f32.mrf.mxu0
      %v2015 = vadd.f32 0.0, %v2014
      %v2016 = vpop.f32.mrf.mxu0
      %v2017 = vpop.f32.mrf.mxu0
      %v2018 = vadd.f32 0.0, %v2017
      %v2019 = vpop.f32.mrf.mxu0
      %2020 = vmatprep.mubr.bf16.mxu0 0
      %2021 = vmatmul.mubr.bf16.gmra.mxu0 %v1913
      %v2022 = vpop.f32.mrf.mxu0
      %v2023 = vadd.f32 0.0, %v2022
      %v2024 = vpop.f32.mrf.mxu0
      %v2025 = vpop.f32.mrf.mxu0
      %v2026 = vadd.f32 0.0, %v2025
      %v2027 = vpop.f32.mrf.mxu0
      %2028 = vmatprep.mubr.bf16.mxu0 0
      %2029 = vmatmul.mubr.bf16.gmra.mxu0 %v1916
      %v2030 = vpop.f32.mrf.mxu0
      %v2031 = vadd.f32 0.0, %v2030
      %v2032 = vpop.f32.mrf.mxu0
      %v2033 = vpop.f32.mrf.mxu0
      %v2034 = vadd.f32 0.0, %v2033
      %v2035 = vpop.f32.mrf.mxu0
      %2036 = vmatprep.mubr.bf16.mxu0 0
      %2037 = vmatmul.mubr.bf16.gmra.mxu0 %v1919
      %v2038 = vpop.f32.mrf.mxu0
      %v2039 = vadd.f32 0.0, %v2038
      %v2040 = vpop.f32.mrf.mxu0
      %v2041 = vpop.f32.mrf.mxu0
      %v2042 = vadd.f32 0.0, %v2041
      %v2043 = vpop.f32.mrf.mxu0
      %2044 = vmatprep.mubr.bf16.mxu0 0
      %2045 = vmatmul.mubr.bf16.gmra.mxu0 %v1922
      %v2046 = vpop.f32.mrf.mxu0
      %v2047 = vadd.f32 0.0, %v2046
      %v2048 = vpop.f32.mrf.mxu0
      %v2049 = vpop.f32.mrf.mxu0
      %v2050 = vadd.f32 0.0, %v2049
      %v2051 = vpop.f32.mrf.mxu0
      %2052 = vmatprep.mubr.bf16.mxu0 0
      %2053 = vmatmul.mubr.bf16.gmra.mxu0 %v1925
      %v2054 = vpop.f32.mrf.mxu0
      %v2055 = vadd.f32 0.0, %v2054
      %v2056 = vpop.f32.mrf.mxu0
      %v2057 = vpop.f32.mrf.mxu0
      %v2058 = vadd.f32 0.0, %v2057
      %v2059 = vpop.f32.mrf.mxu0
      %2060 = vmatprep.mubr.bf16.mxu0 0
      %2061 = vmatmul.mubr.bf16.gmra.mxu0 %v1928
      %v2062 = vpop.f32.mrf.mxu0
      %v2063 = vadd.f32 0.0, %v2062
      %v2064 = vpop.f32.mrf.mxu0
      %v2065 = vpop.f32.mrf.mxu0
      %v2066 = vadd.f32 0.0, %v2065
      %v2067 = vpop.f32.mrf.mxu0
      %2068 = vmatprep.mubr.bf16.mxu0 0
      %2069 = vmatmul.mubr.bf16.gmra.mxu0 %v1931
      %v2070 = vpop.f32.mrf.mxu0
      %v2071 = vadd.f32 0.0, %v2070
      %v2072 = vpop.f32.mrf.mxu0
      %v2073 = vpop.f32.mrf.mxu0
      %v2074 = vadd.f32 0.0, %v2073
      %v2075 = vpop.f32.mrf.mxu0
      %2076 = vmatprep.mubr.bf16.mxu0 0
      %2077 = vmatmul.mubr.bf16.gmra.mxu0 %v1934
      %v2078 = vpop.f32.mrf.mxu0
      %v2079 = vadd.f32 0.0, %v2078
      %v2080 = vpop.f32.mrf.mxu0
      %v2081 = vpop.f32.mrf.mxu0
      %v2082 = vadd.f32 0.0, %v2081
      %v2083 = vpop.f32.mrf.mxu0
      %2084 = vmatprep.mubr.bf16.mxu0 0
      %2085 = vmatmul.mubr.bf16.gmra.mxu0 %v1937
      %v2086 = vpop.f32.mrf.mxu0
      %v2087 = vadd.f32 0.0, %v2086
      %v2088 = vpop.f32.mrf.mxu0
      %v2089 = vpop.f32.mrf.mxu0
      %v2090 = vadd.f32 0.0, %v2089
      %v2091 = vpop.f32.mrf.mxu0
      %2092 = vmatprep.mubr.bf16.mxu0 0
      %2093 = vmatmul.mubr.bf16.gmra.mxu0 %v1940
      %v2094 = vpop.f32.mrf.mxu0
      %v2095 = vadd.f32 0.0, %v2094
      %v2096 = vpop.f32.mrf.mxu0
      %v2097 = vpop.f32.mrf.mxu0
      %v2098 = vadd.f32 0.0, %v2097
      %v2099 = vpop.f32.mrf.mxu0
      %2100 = vmatprep.mubr.bf16.mxu0 0
      %2101 = vmatmul.mubr.bf16.gmra.mxu0 %v1943
      %v2102 = vpop.f32.mrf.mxu0
      %v2103 = vadd.f32 0.0, %v2102
      %v2104 = vpop.f32.mrf.mxu0
      %v2105 = vpop.f32.mrf.mxu0
      %v2106 = vadd.f32 0.0, %v2105
      %v2107 = vpop.f32.mrf.mxu0
      %2108 = vmatprep.mubr.bf16.mxu0 0
      %2109 = vmatmul.mubr.bf16.gmra.mxu0 %v1946
      %v2110 = vpop.f32.mrf.mxu0
      %v2111 = vadd.f32 0.0, %v2110
      %v2112 = vpop.f32.mrf.mxu0
      %v2113 = vpop.f32.mrf.mxu0
      %v2114 = vadd.f32 0.0, %v2113
      %v2115 = vpop.f32.mrf.mxu0
      %2116 = vmatprep.mubr.bf16.mxu0 0
      %2117 = vmatmul.mubr.bf16.gmra.mxu0 %v1949
      %v2118 = vpop.f32.mrf.mxu0
      %v2119 = vadd.f32 0.0, %v2118
      %v2120 = vpop.f32.mrf.mxu0
      %v2121 = vpop.f32.mrf.mxu0
      %v2122 = vadd.f32 0.0, %v2121
      %v2123 = vpop.f32.mrf.mxu0
      %2124 = vmatprep.mubr.bf16.mxu0 0
      %2125 = vmatmul.mubr.bf16.gmra.mxu0 %v1952
      %v2126 = vpop.f32.mrf.mxu0
      %v2127 = vadd.f32 0.0, %v2126
      %v2128 = vpop.f32.mrf.mxu0
      %v2129 = vpop.f32.mrf.mxu0
      %v2130 = vadd.f32 0.0, %v2129
      %v2131 = vpop.f32.mrf.mxu0
      %2132 = vmatprep.mubr.bf16.mxu0 0
      %2133 = vmatmul.mubr.bf16.gmra.mxu0 %v1955
      %v2134 = vpop.f32.mrf.mxu0
      %v2135 = vadd.f32 0.0, %v2134
      %v2136 = vpop.f32.mrf.mxu0
      %v2137 = vpop.f32.mrf.mxu0
      %v2138 = vadd.f32 0.0, %v2137
      %v2139 = vpop.f32.mrf.mxu0
      %2140 = vmatprep.mubr.bf16.mxu0 0
      %2141 = vmatmul.mubr.bf16.gmra.mxu0 %v1958
      %v2142 = vpop.f32.mrf.mxu0
      %v2143 = vadd.f32 0.0, %v2142
      %v2144 = vpop.f32.mrf.mxu0
      %v2145 = vpop.f32.mrf.mxu0
      %v2146 = vadd.f32 0.0, %v2145
      %v2147 = vpop.f32.mrf.mxu0
      %2148 = vmatprep.mubr.bf16.mxu0 0
      %2149 = vmatmul.mubr.bf16.gmra.mxu0 %v1961
      %v2150 = vpop.f32.mrf.mxu0
      %v2151 = vadd.f32 0.0, %v2150
      %v2152 = vpop.f32.mrf.mxu0
      %v2153 = vpop.f32.mrf.mxu0
      %v2154 = vadd.f32 0.0, %v2153
      %v2155 = vpop.f32.mrf.mxu0
      %2156 = vmatprep.mubr.bf16.mxu0 0
      %2157 = vmatmul.mubr.bf16.gmra.mxu0 %v1964
      %v2158 = vpop.f32.mrf.mxu0
      %v2159 = vadd.f32 0.0, %v2158
      %v2160 = vpop.f32.mrf.mxu0
      %v2161 = vpop.f32.mrf.mxu0
      %v2162 = vadd.f32 0.0, %v2161
      %v2163 = vpop.f32.mrf.mxu0
      %2164 = vmatprep.mubr.bf16.mxu0 0
      %2165 = vmatmul.mubr.bf16.gmra.mxu0 %v1967
      %v2166 = vpop.f32.mrf.mxu0
      %v2167 = vadd.f32 0.0, %v2166
      %v2168 = vpop.f32.mrf.mxu0
      %v2169 = vpop.f32.mrf.mxu0
      %v2170 = vpop.f32.mrf.mxu0
      %2171 = vdwg.mxu0
      %v2172 = vadd.f32 %v1801, %v2007
      %v2173 = vadd.f32 %v1802, %v2010
      %v2174 = vadd.f32 %v1803, %v2015
      %v2175 = vadd.f32 %v1804, %v2018
      %v2176 = vadd.f32 %v1805, %v2023
      %v2177 = vadd.f32 %v1806, %v2026
      %v2178 = vadd.f32 %v1807, %v2031
      %v2179 = vadd.f32 %v1808, %v2034
      %v2180 = vadd.f32 %v1809, %v2039
      %v2181 = vadd.f32 %v1810, %v2042
      %v2182 = vadd.f32 %v1811, %v2047
      %v2183 = vadd.f32 %v1812, %v2050
      %v2184 = vadd.f32 %v1813, %v2055
      %v2185 = vadd.f32 %v1814, %v2058
      %v2186 = vadd.f32 %v1815, %v2063
      %v2187 = vadd.f32 %v1816, %v2066
      %v2188 = vadd.f32 %v1817, %v2071
      %v2189 = vadd.f32 %v1818, %v2074
      %v2190 = vadd.f32 %v1819, %v2079
      %v2191 = vadd.f32 %v1820, %v2082
      %v2192 = vadd.f32 %v1821, %v2087
      %v2193 = vadd.f32 %v1822, %v2090
      %v2194 = vadd.f32 %v1823, %v2095
      %v2195 = vadd.f32 %v1824, %v2098
      %v2196 = vadd.f32 %v1825, %v2103
      %v2197 = vadd.f32 %v1826, %v2106
      %v2198 = vadd.f32 %v1827, %v2111
      %v2199 = vadd.f32 %v1828, %v2114
      %v2200 = vadd.f32 %v1829, %v2119
      %v2201 = vadd.f32 %v1830, %v2122
      %v2202 = vadd.f32 %v1831, %v2127
      %v2203 = vadd.f32 %v1832, %v2130
      %v2204 = vadd.f32 %v1833, %v2135
      %v2205 = vadd.f32 %v1834, %v2138
      %v2206 = vadd.f32 %v1835, %v2143
      %v2207 = vadd.f32 %v1836, %v2146
      %v2208 = vadd.f32 %v1837, %v2151
      %v2209 = vadd.f32 %v1838, %v2154
      %v2210 = vadd.f32 %v1839, %v2159
      %v2211 = vadd.f32 %v1840, %v2162
      %v2212 = vadd.f32 %v1841, %v2167
      %v2213 = vld [vmem:[#allocation2 + $0x18] sm:$0xff]
      %v2214 = vld [vmem:[#allocation2 + $0x20] sm:$0xff]
      %v2215 = vld [vmem:[#allocation2 + $0x28] sm:$0xff]
      %v2216 = vld [vmem:[#allocation2 + $0x30] sm:$0xff]
      %v2217 = vld [vmem:[#allocation2 + $0x38] sm:$0xff]
      %v2218 = vld [vmem:[#allocation2 + $0x40] sm:$0xff]
      %v2219 = vld [vmem:[#allocation2 + $0x48] sm:$0xff]
      %v2220 = vld [vmem:[#allocation2 + $0x50] sm:$0xff]
      %v2221 = vld [vmem:[#allocation2 + $0x58] sm:$0xff]
      %v2222 = vld [vmem:[#allocation2 + $0x60] sm:$0xff]
      %v2223 = vld [vmem:[#allocation2 + $0x68] sm:$0xff]
      %v2224 = vld [vmem:[#allocation2 + $0x70] sm:$0xff]
      %v2225 = vld [vmem:[#allocation2 + $0x78] sm:$0xff]
      %v2226 = vld [vmem:[#allocation2 + $0x80] sm:$0xff]
      %v2227 = vld [vmem:[#allocation2 + $0x88] sm:$0xff]
      %v2228 = vld [vmem:[#allocation2 + $0x90] sm:$0xff]
      %v2229 = vld [vmem:[#allocation2 + $0x98] sm:$0xff]
      %v2230 = vld [vmem:[#allocation2 + $0xa0] sm:$0xff]
      %v2231 = vld [vmem:[#allocation2 + $0xa8] sm:$0xff]
      %v2232 = vld [vmem:[#allocation2 + $0xb0] sm:$0xff]
      %v2233 = vld [vmem:[#allocation2 + $0xb8] sm:$0xff]
      %v2234 = vld [vmem:[#allocation2 + $0xc0] sm:$0xff]
      %v2235 = vld [vmem:[#allocation2 + $0xc8] sm:$0xff]
      %v2236 = vld [vmem:[#allocation2 + $0xd0] sm:$0xff]
      %v2237 = vld [vmem:[#allocation2 + $0xd8] sm:$0xff]
      %v2238 = vld [vmem:[#allocation2 + $0xe0] sm:$0xff]
      %v2239 = vld [vmem:[#allocation2 + $0xe8] sm:$0xff]
      %v2240 = vld [vmem:[#allocation2 + $0xf0] sm:$0xff]
      %v2241 = vld [vmem:[#allocation2 + $0xf8] sm:$0xff]
      %v2242 = vld [vmem:[#allocation2 + $0x100] sm:$0xff]
      %v2243 = vld [vmem:[#allocation2 + $0x108] sm:$0xff]
      %v2244 = vld [vmem:[#allocation2 + $0x110] sm:$0xff]
      %v2245 = vld [vmem:[#allocation2 + $0x118] sm:$0xff]
      %v2246 = vld [vmem:[#allocation2 + $0x120] sm:$0xff]
      %v2247 = vld [vmem:[#allocation2 + $0x128] sm:$0xff]
      %v2248 = vld [vmem:[#allocation2 + $0x130] sm:$0xff]
      %v2249 = vld [vmem:[#allocation2 + $0x138] sm:$0xff]
      %v2250 = vld [vmem:[#allocation2 + $0x140] sm:$0xff]
      %v2251 = vld [vmem:[#allocation2 + $0x148] sm:$0xff]
      %v2252 = vld [vmem:[#allocation2 + $0x150] sm:$0xff]
      %v2253 = vld [vmem:[#allocation2 + $0x158] sm:$0xf]
      %v2254 = vpack.c.bf16 %v2214, %v2213
      %v2255 = vpack.c.bf16 %v2216, %v2215
      %v2256 = vpack.c.bf16 %v2218, %v2217
      %v2257 = vpack.c.bf16 %v2220, %v2219
      %v2258 = vpack.c.bf16 %v2222, %v2221
      %v2259 = vpack.c.bf16 %v2224, %v2223
      %v2260 = vpack.c.bf16 %v2226, %v2225
      %v2261 = vpack.c.bf16 %v2228, %v2227
      %v2262 = vpack.c.bf16 %v2230, %v2229
      %v2263 = vpack.c.bf16 %v2232, %v2231
      %v2264 = vpack.c.bf16 %v2234, %v2233
      %v2265 = vpack.c.bf16 %v2236, %v2235
      %v2266 = vpack.c.bf16 %v2238, %v2237
      %v2267 = vpack.c.bf16 %v2240, %v2239
      %v2268 = vpack.c.bf16 %v2242, %v2241
      %v2269 = vpack.c.bf16 %v2244, %v2243
      %v2270 = vpack.c.bf16 %v2246, %v2245
      %v2271 = vpack.c.bf16 %v2248, %v2247
      %v2272 = vpack.c.bf16 %v2250, %v2249
      %v2273 = vpack.c.bf16 %v2252, %v2251
      %v2274 = vpack.c.bf16 %v2253, %v2253
      %s2275 = scalar_lea.vmem %s3, 16
      %v2276 = vld [vmem:[%s2275] sm:$0xf]
      %v2278 = vsel %vm762, %v2254, 0
      %v2281 = vsel %vm762, %v2255, 0
      %v2284 = vsel %vm762, %v2256, 0
      %v2287 = vsel %vm762, %v2257, 0
      %v2290 = vsel %vm762, %v2258, 0
      %v2293 = vsel %vm762, %v2259, 0
      %v2296 = vsel %vm762, %v2260, 0
      %v2299 = vsel %vm762, %v2261, 0
      %v2302 = vsel %vm762, %v2262, 0
      %v2305 = vsel %vm762, %v2263, 0
      %v2308 = vsel %vm762, %v2264, 0
      %v2311 = vsel %vm762, %v2265, 0
      %v2314 = vsel %vm762, %v2266, 0
      %v2317 = vsel %vm762, %v2267, 0
      %v2320 = vsel %vm762, %v2268, 0
      %v2323 = vsel %vm762, %v2269, 0
      %v2326 = vsel %vm762, %v2270, 0
      %v2329 = vsel %vm762, %v2271, 0
      %v2332 = vsel %vm762, %v2272, 0
      %v2335 = vsel %vm762, %v2273, 0
      %v2338 = vsel %vm762, %v2274, 0
      %v2341 = vsel %vm1001, %v2276, 0
      %2343 = vmatprep.subr.bf16.mxu0 0
      %2344 = vmatpush1.bf16.msra.mxu0 0
      %2345 = vmatprep.subr.bf16.mxu0 0
      %2346 = vmatpush1.bf16.msra.mxu0 0
      %2347 = vmatprep.subr.bf16.mxu0 0
      %2348 = vmatpush1.bf16.msra.mxu0 0
      %2349 = vmatprep.subr.bf16.mxu0 0
      %2350 = vmatpush1.bf16.msra.mxu0 0
      %2351 = vmatprep.subr.bf16.mxu0 0
      %2352 = vmatpush1.bf16.msra.mxu0 0
      %2353 = vmatprep.subr.bf16.mxu0 0
      %2354 = vmatpush1.bf16.msra.mxu0 0
      %2355 = vmatprep.subr.bf16.mxu0 0
      %2356 = vmatpush1.bf16.msra.mxu0 0
      %2357 = vmatprep.subr.bf16.mxu0 0
      %2358 = vmatpush1.bf16.msra.mxu0 %v2341
      %2359 = vmatprep.subr.bf16.mxu0 0
      %2360 = vmatpush2.bf16.msra.mxu0 0
      %2361 = vmatprep.subr.bf16.mxu0 0
      %2362 = vmatpush2.bf16.msra.mxu0 0
      %2363 = vmatprep.subr.bf16.mxu0 0
      %2364 = vmatpush2.bf16.msra.mxu0 0
      %2365 = vmatprep.subr.bf16.mxu0 0
      %2366 = vmatpush2.bf16.msra.mxu0 0
      %2367 = vmatprep.subr.bf16.mxu0 0
      %2368 = vmatpush2.bf16.msra.mxu0 0
      %2369 = vmatprep.subr.bf16.mxu0 0
      %2370 = vmatpush2.bf16.msra.mxu0 0
      %2371 = vmatprep.subr.bf16.mxu0 0
      %2372 = vmatpush2.bf16.msra.mxu0 0
      %2373 = vmatprep.subr.bf16.mxu0 0
      %2374 = vmatpush2.bf16.msra.mxu0 0
      %2375 = vmatprep.mubr.bf16.mxu0 0
      %2376 = vmatmul.mubr.bf16.gmra.mxu0 %v2278
      %v2377 = vpop.f32.mrf.mxu0
      %v2378 = vadd.f32 0.0, %v2377
      %v2379 = vpop.f32.mrf.mxu0
      %v2380 = vpop.f32.mrf.mxu0
      %v2381 = vadd.f32 0.0, %v2380
      %v2382 = vpop.f32.mrf.mxu0
      %2383 = vmatprep.mubr.bf16.mxu0 0
      %2384 = vmatmul.mubr.bf16.gmra.mxu0 %v2281
      %v2385 = vpop.f32.mrf.mxu0
      %v2386 = vadd.f32 0.0, %v2385
      %v2387 = vpop.f32.mrf.mxu0
      %v2388 = vpop.f32.mrf.mxu0
      %v2389 = vadd.f32 0.0, %v2388
      %v2390 = vpop.f32.mrf.mxu0
      %2391 = vmatprep.mubr.bf16.mxu0 0
      %2392 = vmatmul.mubr.bf16.gmra.mxu0 %v2284
      %v2393 = vpop.f32.mrf.mxu0
      %v2394 = vadd.f32 0.0, %v2393
      %v2395 = vpop.f32.mrf.mxu0
      %v2396 = vpop.f32.mrf.mxu0
      %v2397 = vadd.f32 0.0, %v2396
      %v2398 = vpop.f32.mrf.mxu0
      %2399 = vmatprep.mubr.bf16.mxu0 0
      %2400 = vmatmul.mubr.bf16.gmra.mxu0 %v2287
      %v2401 = vpop.f32.mrf.mxu0
      %v2402 = vadd.f32 0.0, %v2401
      %v2403 = vpop.f32.mrf.mxu0
      %v2404 = vpop.f32.mrf.mxu0
      %v2405 = vadd.f32 0.0, %v2404
      %v2406 = vpop.f32.mrf.mxu0
      %2407 = vmatprep.mubr.bf16.mxu0 0
      %2408 = vmatmul.mubr.bf16.gmra.mxu0 %v2290
      %v2409 = vpop.f32.mrf.mxu0
      %v2410 = vadd.f32 0.0, %v2409
      %v2411 = vpop.f32.mrf.mxu0
      %v2412 = vpop.f32.mrf.mxu0
      %v2413 = vadd.f32 0.0, %v2412
      %v2414 = vpop.f32.mrf.mxu0
      %2415 = vmatprep.mubr.bf16.mxu0 0
      %2416 = vmatmul.mubr.bf16.gmra.mxu0 %v2293
      %v2417 = vpop.f32.mrf.mxu0
      %v2418 = vadd.f32 0.0, %v2417
      %v2419 = vpop.f32.mrf.mxu0
      %v2420 = vpop.f32.mrf.mxu0
      %v2421 = vadd.f32 0.0, %v2420
      %v2422 = vpop.f32.mrf.mxu0
      %2423 = vmatprep.mubr.bf16.mxu0 0
      %2424 = vmatmul.mubr.bf16.gmra.mxu0 %v2296
      %v2425 = vpop.f32.mrf.mxu0
      %v2426 = vadd.f32 0.0, %v2425
      %v2427 = vpop.f32.mrf.mxu0
      %v2428 = vpop.f32.mrf.mxu0
      %v2429 = vadd.f32 0.0, %v2428
      %v2430 = vpop.f32.mrf.mxu0
      %2431 = vmatprep.mubr.bf16.mxu0 0
      %2432 = vmatmul.mubr.bf16.gmra.mxu0 %v2299
      %v2433 = vpop.f32.mrf.mxu0
      %v2434 = vadd.f32 0.0, %v2433
      %v2435 = vpop.f32.mrf.mxu0
      %v2436 = vpop.f32.mrf.mxu0
      %v2437 = vadd.f32 0.0, %v2436
      %v2438 = vpop.f32.mrf.mxu0
      %2439 = vmatprep.mubr.bf16.mxu0 0
      %2440 = vmatmul.mubr.bf16.gmra.mxu0 %v2302
      %v2441 = vpop.f32.mrf.mxu0
      %v2442 = vadd.f32 0.0, %v2441
      %v2443 = vpop.f32.mrf.mxu0
      %v2444 = vpop.f32.mrf.mxu0
      %v2445 = vadd.f32 0.0, %v2444
      %v2446 = vpop.f32.mrf.mxu0
      %2447 = vmatprep.mubr.bf16.mxu0 0
      %2448 = vmatmul.mubr.bf16.gmra.mxu0 %v2305
      %v2449 = vpop.f32.mrf.mxu0
      %v2450 = vadd.f32 0.0, %v2449
      %v2451 = vpop.f32.mrf.mxu0
      %v2452 = vpop.f32.mrf.mxu0
      %v2453 = vadd.f32 0.0, %v2452
      %v2454 = vpop.f32.mrf.mxu0
      %2455 = vmatprep.mubr.bf16.mxu0 0
      %2456 = vmatmul.mubr.bf16.gmra.mxu0 %v2308
      %v2457 = vpop.f32.mrf.mxu0
      %v2458 = vadd.f32 0.0, %v2457
      %v2459 = vpop.f32.mrf.mxu0
      %v2460 = vpop.f32.mrf.mxu0
      %v2461 = vadd.f32 0.0, %v2460
      %v2462 = vpop.f32.mrf.mxu0
      %2463 = vmatprep.mubr.bf16.mxu0 0
      %2464 = vmatmul.mubr.bf16.gmra.mxu0 %v2311
      %v2465 = vpop.f32.mrf.mxu0
      %v2466 = vadd.f32 0.0, %v2465
      %v2467 = vpop.f32.mrf.mxu0
      %v2468 = vpop.f32.mrf.mxu0
      %v2469 = vadd.f32 0.0, %v2468
      %v2470 = vpop.f32.mrf.mxu0
      %2471 = vmatprep.mubr.bf16.mxu0 0
      %2472 = vmatmul.mubr.bf16.gmra.mxu0 %v2314
      %v2473 = vpop.f32.mrf.mxu0
      %v2474 = vadd.f32 0.0, %v2473
      %v2475 = vpop.f32.mrf.mxu0
      %v2476 = vpop.f32.mrf.mxu0
      %v2477 = vadd.f32 0.0, %v2476
      %v2478 = vpop.f32.mrf.mxu0
      %2479 = vmatprep.mubr.bf16.mxu0 0
      %2480 = vmatmul.mubr.bf16.gmra.mxu0 %v2317
      %v2481 = vpop.f32.mrf.mxu0
      %v2482 = vadd.f32 0.0, %v2481
      %v2483 = vpop.f32.mrf.mxu0
      %v2484 = vpop.f32.mrf.mxu0
      %v2485 = vadd.f32 0.0, %v2484
      %v2486 = vpop.f32.mrf.mxu0
      %2487 = vmatprep.mubr.bf16.mxu0 0
      %2488 = vmatmul.mubr.bf16.gmra.mxu0 %v2320
      %v2489 = vpop.f32.mrf.mxu0
      %v2490 = vadd.f32 0.0, %v2489
      %v2491 = vpop.f32.mrf.mxu0
      %v2492 = vpop.f32.mrf.mxu0
      %v2493 = vadd.f32 0.0, %v2492
      %v2494 = vpop.f32.mrf.mxu0
      %2495 = vmatprep.mubr.bf16.mxu0 0
      %2496 = vmatmul.mubr.bf16.gmra.mxu0 %v2323
      %v2497 = vpop.f32.mrf.mxu0
      %v2498 = vadd.f32 0.0, %v2497
      %v2499 = vpop.f32.mrf.mxu0
      %v2500 = vpop.f32.mrf.mxu0
      %v2501 = vadd.f32 0.0, %v2500
      %v2502 = vpop.f32.mrf.mxu0
      %2503 = vmatprep.mubr.bf16.mxu0 0
      %2504 = vmatmul.mubr.bf16.gmra.mxu0 %v2326
      %v2505 = vpop.f32.mrf.mxu0
      %v2506 = vadd.f32 0.0, %v2505
      %v2507 = vpop.f32.mrf.mxu0
      %v2508 = vpop.f32.mrf.mxu0
      %v2509 = vadd.f32 0.0, %v2508
      %v2510 = vpop.f32.mrf.mxu0
      %2511 = vmatprep.mubr.bf16.mxu0 0
      %2512 = vmatmul.mubr.bf16.gmra.mxu0 %v2329
      %v2513 = vpop.f32.mrf.mxu0
      %v2514 = vadd.f32 0.0, %v2513
      %v2515 = vpop.f32.mrf.mxu0
      %v2516 = vpop.f32.mrf.mxu0
      %v2517 = vadd.f32 0.0, %v2516
      %v2518 = vpop.f32.mrf.mxu0
      %2519 = vmatprep.mubr.bf16.mxu0 0
      %2520 = vmatmul.mubr.bf16.gmra.mxu0 %v2332
      %v2521 = vpop.f32.mrf.mxu0
      %v2522 = vadd.f32 0.0, %v2521
      %v2523 = vpop.f32.mrf.mxu0
      %v2524 = vpop.f32.mrf.mxu0
      %v2525 = vadd.f32 0.0, %v2524
      %v2526 = vpop.f32.mrf.mxu0
      %2527 = vmatprep.mubr.bf16.mxu0 0
      %2528 = vmatmul.mubr.bf16.gmra.mxu0 %v2335
      %v2529 = vpop.f32.mrf.mxu0
      %v2530 = vadd.f32 0.0, %v2529
      %v2531 = vpop.f32.mrf.mxu0
      %v2532 = vpop.f32.mrf.mxu0
      %v2533 = vadd.f32 0.0, %v2532
      %v2534 = vpop.f32.mrf.mxu0
      %2535 = vmatprep.mubr.bf16.mxu0 0
      %2536 = vmatmul.mubr.bf16.gmra.mxu0 %v2338
      %v2537 = vpop.f32.mrf.mxu0
      %v2538 = vadd.f32 0.0, %v2537
      %v2539 = vpop.f32.mrf.mxu0
      %v2540 = vpop.f32.mrf.mxu0
      %v2541 = vpop.f32.mrf.mxu0
      %2542 = vdwg.mxu0
      %v2543 = vadd.f32 %v2172, %v2378
      %v2544 = vadd.f32 %v2173, %v2381
      %v2545 = vadd.f32 %v2174, %v2386
      %v2546 = vadd.f32 %v2175, %v2389
      %v2547 = vadd.f32 %v2176, %v2394
      %v2548 = vadd.f32 %v2177, %v2397
      %v2549 = vadd.f32 %v2178, %v2402
      %v2550 = vadd.f32 %v2179, %v2405
      %v2551 = vadd.f32 %v2180, %v2410
      %v2552 = vadd.f32 %v2181, %v2413
      %v2553 = vadd.f32 %v2182, %v2418
      %v2554 = vadd.f32 %v2183, %v2421
      %v2555 = vadd.f32 %v2184, %v2426
      %v2556 = vadd.f32 %v2185, %v2429
      %v2557 = vadd.f32 %v2186, %v2434
      %v2558 = vadd.f32 %v2187, %v2437
      %v2559 = vadd.f32 %v2188, %v2442
      %v2560 = vadd.f32 %v2189, %v2445
      %v2561 = vadd.f32 %v2190, %v2450
      %v2562 = vadd.f32 %v2191, %v2453
      %v2563 = vadd.f32 %v2192, %v2458
      %v2564 = vadd.f32 %v2193, %v2461
      %v2565 = vadd.f32 %v2194, %v2466
      %v2566 = vadd.f32 %v2195, %v2469
      %v2567 = vadd.f32 %v2196, %v2474
      %v2568 = vadd.f32 %v2197, %v2477
      %v2569 = vadd.f32 %v2198, %v2482
      %v2570 = vadd.f32 %v2199, %v2485
      %v2571 = vadd.f32 %v2200, %v2490
      %v2572 = vadd.f32 %v2201, %v2493
      %v2573 = vadd.f32 %v2202, %v2498
      %v2574 = vadd.f32 %v2203, %v2501
      %v2575 = vadd.f32 %v2204, %v2506
      %v2576 = vadd.f32 %v2205, %v2509
      %v2577 = vadd.f32 %v2206, %v2514
      %v2578 = vadd.f32 %v2207, %v2517
      %v2579 = vadd.f32 %v2208, %v2522
      %v2580 = vadd.f32 %v2209, %v2525
      %v2581 = vadd.f32 %v2210, %v2530
      %v2582 = vadd.f32 %v2211, %v2533
      %v2583 = vadd.f32 %v2212, %v2538
      %v2584 = vld [vmem:[#allocation2 + $0x19] sm:$0xff]
      %v2585 = vld [vmem:[#allocation2 + $0x21] sm:$0xff]
      %v2586 = vld [vmem:[#allocation2 + $0x29] sm:$0xff]
      %v2587 = vld [vmem:[#allocation2 + $0x31] sm:$0xff]
      %v2588 = vld [vmem:[#allocation2 + $0x39] sm:$0xff]
      %v2589 = vld [vmem:[#allocation2 + $0x41] sm:$0xff]
      %v2590 = vld [vmem:[#allocation2 + $0x49] sm:$0xff]
      %v2591 = vld [vmem:[#allocation2 + $0x51] sm:$0xff]
      %v2592 = vld [vmem:[#allocation2 + $0x59] sm:$0xff]
      %v2593 = vld [vmem:[#allocation2 + $0x61] sm:$0xff]
      %v2594 = vld [vmem:[#allocation2 + $0x69] sm:$0xff]
      %v2595 = vld [vmem:[#allocation2 + $0x71] sm:$0xff]
      %v2596 = vld [vmem:[#allocation2 + $0x79] sm:$0xff]
      %v2597 = vld [vmem:[#allocation2 + $0x81] sm:$0xff]
      %v2598 = vld [vmem:[#allocation2 + $0x89] sm:$0xff]
      %v2599 = vld [vmem:[#allocation2 + $0x91] sm:$0xff]
      %v2600 = vld [vmem:[#allocation2 + $0x99] sm:$0xff]
      %v2601 = vld [vmem:[#allocation2 + $0xa1] sm:$0xff]
      %v2602 = vld [vmem:[#allocation2 + $0xa9] sm:$0xff]
      %v2603 = vld [vmem:[#allocation2 + $0xb1] sm:$0xff]
      %v2604 = vld [vmem:[#allocation2 + $0xb9] sm:$0xff]
      %v2605 = vld [vmem:[#allocation2 + $0xc1] sm:$0xff]
      %v2606 = vld [vmem:[#allocation2 + $0xc9] sm:$0xff]
      %v2607 = vld [vmem:[#allocation2 + $0xd1] sm:$0xff]
      %v2608 = vld [vmem:[#allocation2 + $0xd9] sm:$0xff]
      %v2609 = vld [vmem:[#allocation2 + $0xe1] sm:$0xff]
      %v2610 = vld [vmem:[#allocation2 + $0xe9] sm:$0xff]
      %v2611 = vld [vmem:[#allocation2 + $0xf1] sm:$0xff]
      %v2612 = vld [vmem:[#allocation2 + $0xf9] sm:$0xff]
      %v2613 = vld [vmem:[#allocation2 + $0x101] sm:$0xff]
      %v2614 = vld [vmem:[#allocation2 + $0x109] sm:$0xff]
      %v2615 = vld [vmem:[#allocation2 + $0x111] sm:$0xff]
      %v2616 = vld [vmem:[#allocation2 + $0x119] sm:$0xff]
      %v2617 = vld [vmem:[#allocation2 + $0x121] sm:$0xff]
      %v2618 = vld [vmem:[#allocation2 + $0x129] sm:$0xff]
      %v2619 = vld [vmem:[#allocation2 + $0x131] sm:$0xff]
      %v2620 = vld [vmem:[#allocation2 + $0x139] sm:$0xff]
      %v2621 = vld [vmem:[#allocation2 + $0x141] sm:$0xff]
      %v2622 = vld [vmem:[#allocation2 + $0x149] sm:$0xff]
      %v2623 = vld [vmem:[#allocation2 + $0x151] sm:$0xff]
      %v2624 = vld [vmem:[#allocation2 + $0x159] sm:$0xf]
      %v2625 = vpack.c.bf16 %v2585, %v2584
      %v2626 = vpack.c.bf16 %v2587, %v2586
      %v2627 = vpack.c.bf16 %v2589, %v2588
      %v2628 = vpack.c.bf16 %v2591, %v2590
      %v2629 = vpack.c.bf16 %v2593, %v2592
      %v2630 = vpack.c.bf16 %v2595, %v2594
      %v2631 = vpack.c.bf16 %v2597, %v2596
      %v2632 = vpack.c.bf16 %v2599, %v2598
      %v2633 = vpack.c.bf16 %v2601, %v2600
      %v2634 = vpack.c.bf16 %v2603, %v2602
      %v2635 = vpack.c.bf16 %v2605, %v2604
      %v2636 = vpack.c.bf16 %v2607, %v2606
      %v2637 = vpack.c.bf16 %v2609, %v2608
      %v2638 = vpack.c.bf16 %v2611, %v2610
      %v2639 = vpack.c.bf16 %v2613, %v2612
      %v2640 = vpack.c.bf16 %v2615, %v2614
      %v2641 = vpack.c.bf16 %v2617, %v2616
      %v2642 = vpack.c.bf16 %v2619, %v2618
      %v2643 = vpack.c.bf16 %v2621, %v2620
      %v2644 = vpack.c.bf16 %v2623, %v2622
      %v2645 = vpack.c.bf16 %v2624, %v2624
      %s2646 = scalar_lea.vmem %s3, 20
      %v2647 = vld [vmem:[%s2646] sm:$0xf]
      %v2649 = vsel %vm762, %v2625, 0
      %v2652 = vsel %vm762, %v2626, 0
      %v2655 = vsel %vm762, %v2627, 0
      %v2658 = vsel %vm762, %v2628, 0
      %v2661 = vsel %vm762, %v2629, 0
      %v2664 = vsel %vm762, %v2630, 0
      %v2667 = vsel %vm762, %v2631, 0
      %v2670 = vsel %vm762, %v2632, 0
      %v2673 = vsel %vm762, %v2633, 0
      %v2676 = vsel %vm762, %v2634, 0
      %v2679 = vsel %vm762, %v2635, 0
      %v2682 = vsel %vm762, %v2636, 0
      %v2685 = vsel %vm762, %v2637, 0
      %v2688 = vsel %vm762, %v2638, 0
      %v2691 = vsel %vm762, %v2639, 0
      %v2694 = vsel %vm762, %v2640, 0
      %v2697 = vsel %vm762, %v2641, 0
      %v2700 = vsel %vm762, %v2642, 0
      %v2703 = vsel %vm762, %v2643, 0
      %v2706 = vsel %vm762, %v2644, 0
      %v2709 = vsel %vm762, %v2645, 0
      %v2712 = vsel %vm1001, %v2647, 0
      %2714 = vmatprep.subr.bf16.mxu0 0
      %2715 = vmatpush1.bf16.msra.mxu0 0
      %2716 = vmatprep.subr.bf16.mxu0 0
      %2717 = vmatpush1.bf16.msra.mxu0 0
      %2718 = vmatprep.subr.bf16.mxu0 0
      %2719 = vmatpush1.bf16.msra.mxu0 0
      %2720 = vmatprep.subr.bf16.mxu0 0
      %2721 = vmatpush1.bf16.msra.mxu0 0
      %2722 = vmatprep.subr.bf16.mxu0 0
      %2723 = vmatpush1.bf16.msra.mxu0 0
      %2724 = vmatprep.subr.bf16.mxu0 0
      %2725 = vmatpush1.bf16.msra.mxu0 0
      %2726 = vmatprep.subr.bf16.mxu0 0
      %2727 = vmatpush1.bf16.msra.mxu0 0
      %2728 = vmatprep.subr.bf16.mxu0 0
      %2729 = vmatpush1.bf16.msra.mxu0 %v2712
      %2730 = vmatprep.subr.bf16.mxu0 0
      %2731 = vmatpush2.bf16.msra.mxu0 0
      %2732 = vmatprep.subr.bf16.mxu0 0
      %2733 = vmatpush2.bf16.msra.mxu0 0
      %2734 = vmatprep.subr.bf16.mxu0 0
      %2735 = vmatpush2.bf16.msra.mxu0 0
      %2736 = vmatprep.subr.bf16.mxu0 0
      %2737 = vmatpush2.bf16.msra.mxu0 0
      %2738 = vmatprep.subr.bf16.mxu0 0
      %2739 = vmatpush2.bf16.msra.mxu0 0
      %2740 = vmatprep.subr.bf16.mxu0 0
      %2741 = vmatpush2.bf16.msra.mxu0 0
      %2742 = vmatprep.subr.bf16.mxu0 0
      %2743 = vmatpush2.bf16.msra.mxu0 0
      %2744 = vmatprep.subr.bf16.mxu0 0
      %2745 = vmatpush2.bf16.msra.mxu0 0
      %2746 = vmatprep.mubr.bf16.mxu0 0
      %2747 = vmatmul.mubr.bf16.gmra.mxu0 %v2649
      %v2748 = vpop.f32.mrf.mxu0
      %v2749 = vadd.f32 0.0, %v2748
      %v2750 = vpop.f32.mrf.mxu0
      %v2751 = vpop.f32.mrf.mxu0
      %v2752 = vadd.f32 0.0, %v2751
      %v2753 = vpop.f32.mrf.mxu0
      %2754 = vmatprep.mubr.bf16.mxu0 0
      %2755 = vmatmul.mubr.bf16.gmra.mxu0 %v2652
      %v2756 = vpop.f32.mrf.mxu0
      %v2757 = vadd.f32 0.0, %v2756
      %v2758 = vpop.f32.mrf.mxu0
      %v2759 = vpop.f32.mrf.mxu0
      %v2760 = vadd.f32 0.0, %v2759
      %v2761 = vpop.f32.mrf.mxu0
      %2762 = vmatprep.mubr.bf16.mxu0 0
      %2763 = vmatmul.mubr.bf16.gmra.mxu0 %v2655
      %v2764 = vpop.f32.mrf.mxu0
      %v2765 = vadd.f32 0.0, %v2764
      %v2766 = vpop.f32.mrf.mxu0
      %v2767 = vpop.f32.mrf.mxu0
      %v2768 = vadd.f32 0.0, %v2767
      %v2769 = vpop.f32.mrf.mxu0
      %2770 = vmatprep.mubr.bf16.mxu0 0
      %2771 = vmatmul.mubr.bf16.gmra.mxu0 %v2658
      %v2772 = vpop.f32.mrf.mxu0
      %v2773 = vadd.f32 0.0, %v2772
      %v2774 = vpop.f32.mrf.mxu0
      %v2775 = vpop.f32.mrf.mxu0
      %v2776 = vadd.f32 0.0, %v2775
      %v2777 = vpop.f32.mrf.mxu0
      %2778 = vmatprep.mubr.bf16.mxu0 0
      %2779 = vmatmul.mubr.bf16.gmra.mxu0 %v2661
      %v2780 = vpop.f32.mrf.mxu0
      %v2781 = vadd.f32 0.0, %v2780
      %v2782 = vpop.f32.mrf.mxu0
      %v2783 = vpop.f32.mrf.mxu0
      %v2784 = vadd.f32 0.0, %v2783
      %v2785 = vpop.f32.mrf.mxu0
      %2786 = vmatprep.mubr.bf16.mxu0 0
      %2787 = vmatmul.mubr.bf16.gmra.mxu0 %v2664
      %v2788 = vpop.f32.mrf.mxu0
      %v2789 = vadd.f32 0.0, %v2788
      %v2790 = vpop.f32.mrf.mxu0
      %v2791 = vpop.f32.mrf.mxu0
      %v2792 = vadd.f32 0.0, %v2791
      %v2793 = vpop.f32.mrf.mxu0
      %2794 = vmatprep.mubr.bf16.mxu0 0
      %2795 = vmatmul.mubr.bf16.gmra.mxu0 %v2667
      %v2796 = vpop.f32.mrf.mxu0
      %v2797 = vadd.f32 0.0, %v2796
      %v2798 = vpop.f32.mrf.mxu0
      %v2799 = vpop.f32.mrf.mxu0
      %v2800 = vadd.f32 0.0, %v2799
      %v2801 = vpop.f32.mrf.mxu0
      %2802 = vmatprep.mubr.bf16.mxu0 0
      %2803 = vmatmul.mubr.bf16.gmra.mxu0 %v2670
      %v2804 = vpop.f32.mrf.mxu0
      %v2805 = vadd.f32 0.0, %v2804
      %v2806 = vpop.f32.mrf.mxu0
      %v2807 = vpop.f32.mrf.mxu0
      %v2808 = vadd.f32 0.0, %v2807
      %v2809 = vpop.f32.mrf.mxu0
      %2810 = vmatprep.mubr.bf16.mxu0 0
      %2811 = vmatmul.mubr.bf16.gmra.mxu0 %v2673
      %v2812 = vpop.f32.mrf.mxu0
      %v2813 = vadd.f32 0.0, %v2812
      %v2814 = vpop.f32.mrf.mxu0
      %v2815 = vpop.f32.mrf.mxu0
      %v2816 = vadd.f32 0.0, %v2815
      %v2817 = vpop.f32.mrf.mxu0
      %2818 = vmatprep.mubr.bf16.mxu0 0
      %2819 = vmatmul.mubr.bf16.gmra.mxu0 %v2676
      %v2820 = vpop.f32.mrf.mxu0
      %v2821 = vadd.f32 0.0, %v2820
      %v2822 = vpop.f32.mrf.mxu0
      %v2823 = vpop.f32.mrf.mxu0
      %v2824 = vadd.f32 0.0, %v2823
      %v2825 = vpop.f32.mrf.mxu0
      %2826 = vmatprep.mubr.bf16.mxu0 0
      %2827 = vmatmul.mubr.bf16.gmra.mxu0 %v2679
      %v2828 = vpop.f32.mrf.mxu0
      %v2829 = vadd.f32 0.0, %v2828
      %v2830 = vpop.f32.mrf.mxu0
      %v2831 = vpop.f32.mrf.mxu0
      %v2832 = vadd.f32 0.0, %v2831
      %v2833 = vpop.f32.mrf.mxu0
      %2834 = vmatprep.mubr.bf16.mxu0 0
      %2835 = vmatmul.mubr.bf16.gmra.mxu0 %v2682
      %v2836 = vpop.f32.mrf.mxu0
      %v2837 = vadd.f32 0.0, %v2836
      %v2838 = vpop.f32.mrf.mxu0
      %v2839 = vpop.f32.mrf.mxu0
      %v2840 = vadd.f32 0.0, %v2839
      %v2841 = vpop.f32.mrf.mxu0
      %2842 = vmatprep.mubr.bf16.mxu0 0
      %2843 = vmatmul.mubr.bf16.gmra.mxu0 %v2685
      %v2844 = vpop.f32.mrf.mxu0
      %v2845 = vadd.f32 0.0, %v2844
      %v2846 = vpop.f32.mrf.mxu0
      %v2847 = vpop.f32.mrf.mxu0
      %v2848 = vadd.f32 0.0, %v2847
      %v2849 = vpop.f32.mrf.mxu0
      %2850 = vmatprep.mubr.bf16.mxu0 0
      %2851 = vmatmul.mubr.bf16.gmra.mxu0 %v2688
      %v2852 = vpop.f32.mrf.mxu0
      %v2853 = vadd.f32 0.0, %v2852
      %v2854 = vpop.f32.mrf.mxu0
      %v2855 = vpop.f32.mrf.mxu0
      %v2856 = vadd.f32 0.0, %v2855
      %v2857 = vpop.f32.mrf.mxu0
      %2858 = vmatprep.mubr.bf16.mxu0 0
      %2859 = vmatmul.mubr.bf16.gmra.mxu0 %v2691
      %v2860 = vpop.f32.mrf.mxu0
      %v2861 = vadd.f32 0.0, %v2860
      %v2862 = vpop.f32.mrf.mxu0
      %v2863 = vpop.f32.mrf.mxu0
      %v2864 = vadd.f32 0.0, %v2863
      %v2865 = vpop.f32.mrf.mxu0
      %2866 = vmatprep.mubr.bf16.mxu0 0
      %2867 = vmatmul.mubr.bf16.gmra.mxu0 %v2694
      %v2868 = vpop.f32.mrf.mxu0
      %v2869 = vadd.f32 0.0, %v2868
      %v2870 = vpop.f32.mrf.mxu0
      %v2871 = vpop.f32.mrf.mxu0
      %v2872 = vadd.f32 0.0, %v2871
      %v2873 = vpop.f32.mrf.mxu0
      %2874 = vmatprep.mubr.bf16.mxu0 0
      %2875 = vmatmul.mubr.bf16.gmra.mxu0 %v2697
      %v2876 = vpop.f32.mrf.mxu0
      %v2877 = vadd.f32 0.0, %v2876
      %v2878 = vpop.f32.mrf.mxu0
      %v2879 = vpop.f32.mrf.mxu0
      %v2880 = vadd.f32 0.0, %v2879
      %v2881 = vpop.f32.mrf.mxu0
      %2882 = vmatprep.mubr.bf16.mxu0 0
      %2883 = vmatmul.mubr.bf16.gmra.mxu0 %v2700
      %v2884 = vpop.f32.mrf.mxu0
      %v2885 = vadd.f32 0.0, %v2884
      %v2886 = vpop.f32.mrf.mxu0
      %v2887 = vpop.f32.mrf.mxu0
      %v2888 = vadd.f32 0.0, %v2887
      %v2889 = vpop.f32.mrf.mxu0
      %2890 = vmatprep.mubr.bf16.mxu0 0
      %2891 = vmatmul.mubr.bf16.gmra.mxu0 %v2703
      %v2892 = vpop.f32.mrf.mxu0
      %v2893 = vadd.f32 0.0, %v2892
      %v2894 = vpop.f32.mrf.mxu0
      %v2895 = vpop.f32.mrf.mxu0
      %v2896 = vadd.f32 0.0, %v2895
      %v2897 = vpop.f32.mrf.mxu0
      %2898 = vmatprep.mubr.bf16.mxu0 0
      %2899 = vmatmul.mubr.bf16.gmra.mxu0 %v2706
      %v2900 = vpop.f32.mrf.mxu0
      %v2901 = vadd.f32 0.0, %v2900
      %v2902 = vpop.f32.mrf.mxu0
      %v2903 = vpop.f32.mrf.mxu0
      %v2904 = vadd.f32 0.0, %v2903
      %v2905 = vpop.f32.mrf.mxu0
      %2906 = vmatprep.mubr.bf16.mxu0 0
      %2907 = vmatmul.mubr.bf16.gmra.mxu0 %v2709
      %v2908 = vpop.f32.mrf.mxu0
      %v2909 = vadd.f32 0.0, %v2908
      %v2910 = vpop.f32.mrf.mxu0
      %v2911 = vpop.f32.mrf.mxu0
      %v2912 = vpop.f32.mrf.mxu0
      %2913 = vdwg.mxu0
      %v2914 = vadd.f32 %v2543, %v2749
      %v2915 = vadd.f32 %v2544, %v2752
      %v2916 = vadd.f32 %v2545, %v2757
      %v2917 = vadd.f32 %v2546, %v2760
      %v2918 = vadd.f32 %v2547, %v2765
      %v2919 = vadd.f32 %v2548, %v2768
      %v2920 = vadd.f32 %v2549, %v2773
      %v2921 = vadd.f32 %v2550, %v2776
      %v2922 = vadd.f32 %v2551, %v2781
      %v2923 = vadd.f32 %v2552, %v2784
      %v2924 = vadd.f32 %v2553, %v2789
      %v2925 = vadd.f32 %v2554, %v2792
      %v2926 = vadd.f32 %v2555, %v2797
      %v2927 = vadd.f32 %v2556, %v2800
      %v2928 = vadd.f32 %v2557, %v2805
      %v2929 = vadd.f32 %v2558, %v2808
      %v2930 = vadd.f32 %v2559, %v2813
      %v2931 = vadd.f32 %v2560, %v2816
      %v2932 = vadd.f32 %v2561, %v2821
      %v2933 = vadd.f32 %v2562, %v2824
      %v2934 = vadd.f32 %v2563, %v2829
      %v2935 = vadd.f32 %v2564, %v2832
      %v2936 = vadd.f32 %v2565, %v2837
      %v2937 = vadd.f32 %v2566, %v2840
      %v2938 = vadd.f32 %v2567, %v2845
      %v2939 = vadd.f32 %v2568, %v2848
      %v2940 = vadd.f32 %v2569, %v2853
      %v2941 = vadd.f32 %v2570, %v2856
      %v2942 = vadd.f32 %v2571, %v2861
      %v2943 = vadd.f32 %v2572, %v2864
      %v2944 = vadd.f32 %v2573, %v2869
      %v2945 = vadd.f32 %v2574, %v2872
      %v2946 = vadd.f32 %v2575, %v2877
      %v2947 = vadd.f32 %v2576, %v2880
      %v2948 = vadd.f32 %v2577, %v2885
      %v2949 = vadd.f32 %v2578, %v2888
      %v2950 = vadd.f32 %v2579, %v2893
      %v2951 = vadd.f32 %v2580, %v2896
      %v2952 = vadd.f32 %v2581, %v2901
      %v2953 = vadd.f32 %v2582, %v2904
      %v2954 = vadd.f32 %v2583, %v2909
      %v2955 = vld [vmem:[#allocation2 + $0x29] sm:$0xff]
      %v2956 = vld [vmem:[#allocation2 + $0x31] sm:$0xff]
      %v2957 = vld [vmem:[#allocation2 + $0x39] sm:$0xff]
      %v2958 = vld [vmem:[#allocation2 + $0x41] sm:$0xff]
      %v2959 = vld [vmem:[#allocation2 + $0x49] sm:$0xff]
      %v2960 = vld [vmem:[#allocation2 + $0x51] sm:$0xff]
      %v2961 = vld [vmem:[#allocation2 + $0x59] sm:$0xff]
      %v2962 = vld [vmem:[#allocation2 + $0x61] sm:$0xff]
      %v2963 = vld [vmem:[#allocation2 + $0x69] sm:$0xff]
      %v2964 = vld [vmem:[#allocation2 + $0x71] sm:$0xff]
      %v2965 = vld [vmem:[#allocation2 + $0x79] sm:$0xff]
      %v2966 = vld [vmem:[#allocation2 + $0x81] sm:$0xff]
      %v2967 = vld [vmem:[#allocation2 + $0x89] sm:$0xff]
      %v2968 = vld [vmem:[#allocation2 + $0x91] sm:$0xff]
      %v2969 = vld [vmem:[#allocation2 + $0x99] sm:$0xff]
      %v2970 = vld [vmem:[#allocation2 + $0xa1] sm:$0xff]
      %v2971 = vld [vmem:[#allocation2 + $0xa9] sm:$0xff]
      %v2972 = vld [vmem:[#allocation2 + $0xb1] sm:$0xff]
      %v2973 = vld [vmem:[#allocation2 + $0xb9] sm:$0xff]
      %v2974 = vld [vmem:[#allocation2 + $0xc1] sm:$0xff]
      %v2975 = vld [vmem:[#allocation2 + $0xc9] sm:$0xff]
      %v2976 = vld [vmem:[#allocation2 + $0xd1] sm:$0xff]
      %v2977 = vld [vmem:[#allocation2 + $0xd9] sm:$0xff]
      %v2978 = vld [vmem:[#allocation2 + $0xe1] sm:$0xff]
      %v2979 = vld [vmem:[#allocation2 + $0xe9] sm:$0xff]
      %v2980 = vld [vmem:[#allocation2 + $0xf1] sm:$0xff]
      %v2981 = vld [vmem:[#allocation2 + $0xf9] sm:$0xff]
      %v2982 = vld [vmem:[#allocation2 + $0x101] sm:$0xff]
      %v2983 = vld [vmem:[#allocation2 + $0x109] sm:$0xff]
      %v2984 = vld [vmem:[#allocation2 + $0x111] sm:$0xff]
      %v2985 = vld [vmem:[#allocation2 + $0x119] sm:$0xff]
      %v2986 = vld [vmem:[#allocation2 + $0x121] sm:$0xff]
      %v2987 = vld [vmem:[#allocation2 + $0x129] sm:$0xff]
      %v2988 = vld [vmem:[#allocation2 + $0x131] sm:$0xff]
      %v2989 = vld [vmem:[#allocation2 + $0x139] sm:$0xff]
      %v2990 = vld [vmem:[#allocation2 + $0x141] sm:$0xff]
      %v2991 = vld [vmem:[#allocation2 + $0x149] sm:$0xff]
      %v2992 = vld [vmem:[#allocation2 + $0x151] sm:$0xff]
      %v2993 = vld [vmem:[#allocation2 + $0x159] sm:$0xff]
      %v2994 = vld [vmem:[#allocation2 + $0x161] sm:$0xff]
      %v2995 = vld [vmem:[#allocation2 + $0x169] sm:$0xf]
      %v2996 = vpack.c.bf16 %v2956, %v2955
      %v2997 = vpack.c.bf16 %v2958, %v2957
      %v2998 = vpack.c.bf16 %v2960, %v2959
      %v2999 = vpack.c.bf16 %v2962, %v2961
      %v3000 = vpack.c.bf16 %v2964, %v2963
      %v3001 = vpack.c.bf16 %v2966, %v2965
      %v3002 = vpack.c.bf16 %v2968, %v2967
      %v3003 = vpack.c.bf16 %v2970, %v2969
      %v3004 = vpack.c.bf16 %v2972, %v2971
      %v3005 = vpack.c.bf16 %v2974, %v2973
      %v3006 = vpack.c.bf16 %v2976, %v2975
      %v3007 = vpack.c.bf16 %v2978, %v2977
      %v3008 = vpack.c.bf16 %v2980, %v2979
      %v3009 = vpack.c.bf16 %v2982, %v2981
      %v3010 = vpack.c.bf16 %v2984, %v2983
      %v3011 = vpack.c.bf16 %v2986, %v2985
      %v3012 = vpack.c.bf16 %v2988, %v2987
      %v3013 = vpack.c.bf16 %v2990, %v2989
      %v3014 = vpack.c.bf16 %v2992, %v2991
      %v3015 = vpack.c.bf16 %v2994, %v2993
      %v3016 = vpack.c.bf16 %v2995, %v2995
      %s3017 = scalar_lea.vmem %s3, 24
      %v3018 = vld [vmem:[%s3017] sm:$0xf]
      %v3020 = vsel %vm762, %v2996, 0
      %v3023 = vsel %vm762, %v2997, 0
      %v3026 = vsel %vm762, %v2998, 0
      %v3029 = vsel %vm762, %v2999, 0
      %v3032 = vsel %vm762, %v3000, 0
      %v3035 = vsel %vm762, %v3001, 0
      %v3038 = vsel %vm762, %v3002, 0
      %v3041 = vsel %vm762, %v3003, 0
      %v3044 = vsel %vm762, %v3004, 0
      %v3047 = vsel %vm762, %v3005, 0
      %v3050 = vsel %vm762, %v3006, 0
      %v3053 = vsel %vm762, %v3007, 0
      %v3056 = vsel %vm762, %v3008, 0
      %v3059 = vsel %vm762, %v3009, 0
      %v3062 = vsel %vm762, %v3010, 0
      %v3065 = vsel %vm762, %v3011, 0
      %v3068 = vsel %vm762, %v3012, 0
      %v3071 = vsel %vm762, %v3013, 0
      %v3074 = vsel %vm762, %v3014, 0
      %v3077 = vsel %vm762, %v3015, 0
      %v3080 = vsel %vm762, %v3016, 0
      %v3083 = vsel %vm1001, %v3018, 0
      %3085 = vmatprep.subr.bf16.mxu0 0
      %3086 = vmatpush1.bf16.msra.mxu0 0
      %3087 = vmatprep.subr.bf16.mxu0 0
      %3088 = vmatpush1.bf16.msra.mxu0 0
      %3089 = vmatprep.subr.bf16.mxu0 0
      %3090 = vmatpush1.bf16.msra.mxu0 0
      %3091 = vmatprep.subr.bf16.mxu0 0
      %3092 = vmatpush1.bf16.msra.mxu0 0
      %3093 = vmatprep.subr.bf16.mxu0 0
      %3094 = vmatpush1.bf16.msra.mxu0 0
      %3095 = vmatprep.subr.bf16.mxu0 0
      %3096 = vmatpush1.bf16.msra.mxu0 0
      %3097 = vmatprep.subr.bf16.mxu0 0
      %3098 = vmatpush1.bf16.msra.mxu0 0
      %3099 = vmatprep.subr.bf16.mxu0 0
      %3100 = vmatpush1.bf16.msra.mxu0 %v3083
      %3101 = vmatprep.subr.bf16.mxu0 0
      %3102 = vmatpush2.bf16.msra.mxu0 0
      %3103 = vmatprep.subr.bf16.mxu0 0
      %3104 = vmatpush2.bf16.msra.mxu0 0
      %3105 = vmatprep.subr.bf16.mxu0 0
      %3106 = vmatpush2.bf16.msra.mxu0 0
      %3107 = vmatprep.subr.bf16.mxu0 0
      %3108 = vmatpush2.bf16.msra.mxu0 0
      %3109 = vmatprep.subr.bf16.mxu0 0
      %3110 = vmatpush2.bf16.msra.mxu0 0
      %3111 = vmatprep.subr.bf16.mxu0 0
      %3112 = vmatpush2.bf16.msra.mxu0 0
      %3113 = vmatprep.subr.bf16.mxu0 0
      %3114 = vmatpush2.bf16.msra.mxu0 0
      %3115 = vmatprep.subr.bf16.mxu0 0
      %3116 = vmatpush2.bf16.msra.mxu0 0
      %3117 = vmatprep.mubr.bf16.mxu0 0
      %3118 = vmatmul.mubr.bf16.gmra.mxu0 %v3020
      %v3119 = vpop.f32.mrf.mxu0
      %v3120 = vadd.f32 0.0, %v3119
      %v3121 = vpop.f32.mrf.mxu0
      %v3122 = vpop.f32.mrf.mxu0
      %v3123 = vadd.f32 0.0, %v3122
      %v3124 = vpop.f32.mrf.mxu0
      %3125 = vmatprep.mubr.bf16.mxu0 0
      %3126 = vmatmul.mubr.bf16.gmra.mxu0 %v3023
      %v3127 = vpop.f32.mrf.mxu0
      %v3128 = vadd.f32 0.0, %v3127
      %v3129 = vpop.f32.mrf.mxu0
      %v3130 = vpop.f32.mrf.mxu0
      %v3131 = vadd.f32 0.0, %v3130
      %v3132 = vpop.f32.mrf.mxu0
      %3133 = vmatprep.mubr.bf16.mxu0 0
      %3134 = vmatmul.mubr.bf16.gmra.mxu0 %v3026
      %v3135 = vpop.f32.mrf.mxu0
      %v3136 = vadd.f32 0.0, %v3135
      %v3137 = vpop.f32.mrf.mxu0
      %v3138 = vpop.f32.mrf.mxu0
      %v3139 = vadd.f32 0.0, %v3138
      %v3140 = vpop.f32.mrf.mxu0
      %3141 = vmatprep.mubr.bf16.mxu0 0
      %3142 = vmatmul.mubr.bf16.gmra.mxu0 %v3029
      %v3143 = vpop.f32.mrf.mxu0
      %v3144 = vadd.f32 0.0, %v3143
      %v3145 = vpop.f32.mrf.mxu0
      %v3146 = vpop.f32.mrf.mxu0
      %v3147 = vadd.f32 0.0, %v3146
      %v3148 = vpop.f32.mrf.mxu0
      %3149 = vmatprep.mubr.bf16.mxu0 0
      %3150 = vmatmul.mubr.bf16.gmra.mxu0 %v3032
      %v3151 = vpop.f32.mrf.mxu0
      %v3152 = vadd.f32 0.0, %v3151
      %v3153 = vpop.f32.mrf.mxu0
      %v3154 = vpop.f32.mrf.mxu0
      %v3155 = vadd.f32 0.0, %v3154
      %v3156 = vpop.f32.mrf.mxu0
      %3157 = vmatprep.mubr.bf16.mxu0 0
      %3158 = vmatmul.mubr.bf16.gmra.mxu0 %v3035
      %v3159 = vpop.f32.mrf.mxu0
      %v3160 = vadd.f32 0.0, %v3159
      %v3161 = vpop.f32.mrf.mxu0
      %v3162 = vpop.f32.mrf.mxu0
      %v3163 = vadd.f32 0.0, %v3162
      %v3164 = vpop.f32.mrf.mxu0
      %3165 = vmatprep.mubr.bf16.mxu0 0
      %3166 = vmatmul.mubr.bf16.gmra.mxu0 %v3038
      %v3167 = vpop.f32.mrf.mxu0
      %v3168 = vadd.f32 0.0, %v3167
      %v3169 = vpop.f32.mrf.mxu0
      %v3170 = vpop.f32.mrf.mxu0
      %v3171 = vadd.f32 0.0, %v3170
      %v3172 = vpop.f32.mrf.mxu0
      %3173 = vmatprep.mubr.bf16.mxu0 0
      %3174 = vmatmul.mubr.bf16.gmra.mxu0 %v3041
      %v3175 = vpop.f32.mrf.mxu0
      %v3176 = vadd.f32 0.0, %v3175
      %v3177 = vpop.f32.mrf.mxu0
      %v3178 = vpop.f32.mrf.mxu0
      %v3179 = vadd.f32 0.0, %v3178
      %v3180 = vpop.f32.mrf.mxu0
      %3181 = vmatprep.mubr.bf16.mxu0 0
      %3182 = vmatmul.mubr.bf16.gmra.mxu0 %v3044
      %v3183 = vpop.f32.mrf.mxu0
      %v3184 = vadd.f32 0.0, %v3183
      %v3185 = vpop.f32.mrf.mxu0
      %v3186 = vpop.f32.mrf.mxu0
      %v3187 = vadd.f32 0.0, %v3186
      %v3188 = vpop.f32.mrf.mxu0
      %3189 = vmatprep.mubr.bf16.mxu0 0
      %3190 = vmatmul.mubr.bf16.gmra.mxu0 %v3047
      %v3191 = vpop.f32.mrf.mxu0
      %v3192 = vadd.f32 0.0, %v3191
      %v3193 = vpop.f32.mrf.mxu0
      %v3194 = vpop.f32.mrf.mxu0
      %v3195 = vadd.f32 0.0, %v3194
      %v3196 = vpop.f32.mrf.mxu0
      %3197 = vmatprep.mubr.bf16.mxu0 0
      %3198 = vmatmul.mubr.bf16.gmra.mxu0 %v3050
      %v3199 = vpop.f32.mrf.mxu0
      %v3200 = vadd.f32 0.0, %v3199
      %v3201 = vpop.f32.mrf.mxu0
      %v3202 = vpop.f32.mrf.mxu0
      %v3203 = vadd.f32 0.0, %v3202
      %v3204 = vpop.f32.mrf.mxu0
      %3205 = vmatprep.mubr.bf16.mxu0 0
      %3206 = vmatmul.mubr.bf16.gmra.mxu0 %v3053
      %v3207 = vpop.f32.mrf.mxu0
      %v3208 = vadd.f32 0.0, %v3207
      %v3209 = vpop.f32.mrf.mxu0
      %v3210 = vpop.f32.mrf.mxu0
      %v3211 = vadd.f32 0.0, %v3210
      %v3212 = vpop.f32.mrf.mxu0
      %3213 = vmatprep.mubr.bf16.mxu0 0
      %3214 = vmatmul.mubr.bf16.gmra.mxu0 %v3056
      %v3215 = vpop.f32.mrf.mxu0
      %v3216 = vadd.f32 0.0, %v3215
      %v3217 = vpop.f32.mrf.mxu0
      %v3218 = vpop.f32.mrf.mxu0
      %v3219 = vadd.f32 0.0, %v3218
      %v3220 = vpop.f32.mrf.mxu0
      %3221 = vmatprep.mubr.bf16.mxu0 0
      %3222 = vmatmul.mubr.bf16.gmra.mxu0 %v3059
      %v3223 = vpop.f32.mrf.mxu0
      %v3224 = vadd.f32 0.0, %v3223
      %v3225 = vpop.f32.mrf.mxu0
      %v3226 = vpop.f32.mrf.mxu0
      %v3227 = vadd.f32 0.0, %v3226
      %v3228 = vpop.f32.mrf.mxu0
      %3229 = vmatprep.mubr.bf16.mxu0 0
      %3230 = vmatmul.mubr.bf16.gmra.mxu0 %v3062
      %v3231 = vpop.f32.mrf.mxu0
      %v3232 = vadd.f32 0.0, %v3231
      %v3233 = vpop.f32.mrf.mxu0
      %v3234 = vpop.f32.mrf.mxu0
      %v3235 = vadd.f32 0.0, %v3234
      %v3236 = vpop.f32.mrf.mxu0
      %3237 = vmatprep.mubr.bf16.mxu0 0
      %3238 = vmatmul.mubr.bf16.gmra.mxu0 %v3065
      %v3239 = vpop.f32.mrf.mxu0
      %v3240 = vadd.f32 0.0, %v3239
      %v3241 = vpop.f32.mrf.mxu0
      %v3242 = vpop.f32.mrf.mxu0
      %v3243 = vadd.f32 0.0, %v3242
      %v3244 = vpop.f32.mrf.mxu0
      %3245 = vmatprep.mubr.bf16.mxu0 0
      %3246 = vmatmul.mubr.bf16.gmra.mxu0 %v3068
      %v3247 = vpop.f32.mrf.mxu0
      %v3248 = vadd.f32 0.0, %v3247
      %v3249 = vpop.f32.mrf.mxu0
      %v3250 = vpop.f32.mrf.mxu0
      %v3251 = vadd.f32 0.0, %v3250
      %v3252 = vpop.f32.mrf.mxu0
      %3253 = vmatprep.mubr.bf16.mxu0 0
      %3254 = vmatmul.mubr.bf16.gmra.mxu0 %v3071
      %v3255 = vpop.f32.mrf.mxu0
      %v3256 = vadd.f32 0.0, %v3255
      %v3257 = vpop.f32.mrf.mxu0
      %v3258 = vpop.f32.mrf.mxu0
      %v3259 = vadd.f32 0.0, %v3258
      %v3260 = vpop.f32.mrf.mxu0
      %3261 = vmatprep.mubr.bf16.mxu0 0
      %3262 = vmatmul.mubr.bf16.gmra.mxu0 %v3074
      %v3263 = vpop.f32.mrf.mxu0
      %v3264 = vadd.f32 0.0, %v3263
      %v3265 = vpop.f32.mrf.mxu0
      %v3266 = vpop.f32.mrf.mxu0
      %v3267 = vadd.f32 0.0, %v3266
      %v3268 = vpop.f32.mrf.mxu0
      %3269 = vmatprep.mubr.bf16.mxu0 0
      %3270 = vmatmul.mubr.bf16.gmra.mxu0 %v3077
      %v3271 = vpop.f32.mrf.mxu0
      %v3272 = vadd.f32 0.0, %v3271
      %v3273 = vpop.f32.mrf.mxu0
      %v3274 = vpop.f32.mrf.mxu0
      %v3275 = vadd.f32 0.0, %v3274
      %v3276 = vpop.f32.mrf.mxu0
      %3277 = vmatprep.mubr.bf16.mxu0 0
      %3278 = vmatmul.mubr.bf16.gmra.mxu0 %v3080
      %v3279 = vpop.f32.mrf.mxu0
      %v3280 = vadd.f32 0.0, %v3279
      %v3281 = vpop.f32.mrf.mxu0
      %v3282 = vpop.f32.mrf.mxu0
      %v3283 = vpop.f32.mrf.mxu0
      %3284 = vdwg.mxu0
      %v3285 = vadd.f32 %v2914, %v3120
      %v3286 = vadd.f32 %v2915, %v3123
      %v3287 = vadd.f32 %v2916, %v3128
      %v3288 = vadd.f32 %v2917, %v3131
      %v3289 = vadd.f32 %v2918, %v3136
      %v3290 = vadd.f32 %v2919, %v3139
      %v3291 = vadd.f32 %v2920, %v3144
      %v3292 = vadd.f32 %v2921, %v3147
      %v3293 = vadd.f32 %v2922, %v3152
      %v3294 = vadd.f32 %v2923, %v3155
      %v3295 = vadd.f32 %v2924, %v3160
      %v3296 = vadd.f32 %v2925, %v3163
      %v3297 = vadd.f32 %v2926, %v3168
      %v3298 = vadd.f32 %v2927, %v3171
      %v3299 = vadd.f32 %v2928, %v3176
      %v3300 = vadd.f32 %v2929, %v3179
      %v3301 = vadd.f32 %v2930, %v3184
      %v3302 = vadd.f32 %v2931, %v3187
      %v3303 = vadd.f32 %v2932, %v3192
      %v3304 = vadd.f32 %v2933, %v3195
      %v3305 = vadd.f32 %v2934, %v3200
      %v3306 = vadd.f32 %v2935, %v3203
      %v3307 = vadd.f32 %v2936, %v3208
      %v3308 = vadd.f32 %v2937, %v3211
      %v3309 = vadd.f32 %v2938, %v3216
      %v3310 = vadd.f32 %v2939, %v3219
      %v3311 = vadd.f32 %v2940, %v3224
      %v3312 = vadd.f32 %v2941, %v3227
      %v3313 = vadd.f32 %v2942, %v3232
      %v3314 = vadd.f32 %v2943, %v3235
      %v3315 = vadd.f32 %v2944, %v3240
      %v3316 = vadd.f32 %v2945, %v3243
      %v3317 = vadd.f32 %v2946, %v3248
      %v3318 = vadd.f32 %v2947, %v3251
      %v3319 = vadd.f32 %v2948, %v3256
      %v3320 = vadd.f32 %v2949, %v3259
      %v3321 = vadd.f32 %v2950, %v3264
      %v3322 = vadd.f32 %v2951, %v3267
      %v3323 = vadd.f32 %v2952, %v3272
      %v3324 = vadd.f32 %v2953, %v3275
      %v3325 = vadd.f32 %v2954, %v3280
      %v3326 = vld [vmem:[#allocation2 + $0x2a] sm:$0xff]
      %v3327 = vld [vmem:[#allocation2 + $0x32] sm:$0xff]
      %v3328 = vld [vmem:[#allocation2 + $0x3a] sm:$0xff]
      %v3329 = vld [vmem:[#allocation2 + $0x42] sm:$0xff]
      %v3330 = vld [vmem:[#allocation2 + $0x4a] sm:$0xff]
      %v3331 = vld [vmem:[#allocation2 + $0x52] sm:$0xff]
      %v3332 = vld [vmem:[#allocation2 + $0x5a] sm:$0xff]
      %v3333 = vld [vmem:[#allocation2 + $0x62] sm:$0xff]
      %v3334 = vld [vmem:[#allocation2 + $0x6a] sm:$0xff]
      %v3335 = vld [vmem:[#allocation2 + $0x72] sm:$0xff]
      %v3336 = vld [vmem:[#allocation2 + $0x7a] sm:$0xff]
      %v3337 = vld [vmem:[#allocation2 + $0x82] sm:$0xff]
      %v3338 = vld [vmem:[#allocation2 + $0x8a] sm:$0xff]
      %v3339 = vld [vmem:[#allocation2 + $0x92] sm:$0xff]
      %v3340 = vld [vmem:[#allocation2 + $0x9a] sm:$0xff]
      %v3341 = vld [vmem:[#allocation2 + $0xa2] sm:$0xff]
      %v3342 = vld [vmem:[#allocation2 + $0xaa] sm:$0xff]
      %v3343 = vld [vmem:[#allocation2 + $0xb2] sm:$0xff]
      %v3344 = vld [vmem:[#allocation2 + $0xba] sm:$0xff]
      %v3345 = vld [vmem:[#allocation2 + $0xc2] sm:$0xff]
      %v3346 = vld [vmem:[#allocation2 + $0xca] sm:$0xff]
      %v3347 = vld [vmem:[#allocation2 + $0xd2] sm:$0xff]
      %v3348 = vld [vmem:[#allocation2 + $0xda] sm:$0xff]
      %v3349 = vld [vmem:[#allocation2 + $0xe2] sm:$0xff]
      %v3350 = vld [vmem:[#allocation2 + $0xea] sm:$0xff]
      %v3351 = vld [vmem:[#allocation2 + $0xf2] sm:$0xff]
      %v3352 = vld [vmem:[#allocation2 + $0xfa] sm:$0xff]
      %v3353 = vld [vmem:[#allocation2 + $0x102] sm:$0xff]
      %v3354 = vld [vmem:[#allocation2 + $0x10a] sm:$0xff]
      %v3355 = vld [vmem:[#allocation2 + $0x112] sm:$0xff]
      %v3356 = vld [vmem:[#allocation2 + $0x11a] sm:$0xff]
      %v3357 = vld [vmem:[#allocation2 + $0x122] sm:$0xff]
      %v3358 = vld [vmem:[#allocation2 + $0x12a] sm:$0xff]
      %v3359 = vld [vmem:[#allocation2 + $0x132] sm:$0xff]
      %v3360 = vld [vmem:[#allocation2 + $0x13a] sm:$0xff]
      %v3361 = vld [vmem:[#allocation2 + $0x142] sm:$0xff]
      %v3362 = vld [vmem:[#allocation2 + $0x14a] sm:$0xff]
      %v3363 = vld [vmem:[#allocation2 + $0x152] sm:$0xff]
      %v3364 = vld [vmem:[#allocation2 + $0x15a] sm:$0xff]
      %v3365 = vld [vmem:[#allocation2 + $0x162] sm:$0xff]
      %v3366 = vld [vmem:[#allocation2 + $0x16a] sm:$0xf]
      %v3367 = vpack.c.bf16 %v3327, %v3326
      %v3368 = vpack.c.bf16 %v3329, %v3328
      %v3369 = vpack.c.bf16 %v3331, %v3330
      %v3370 = vpack.c.bf16 %v3333, %v3332
      %v3371 = vpack.c.bf16 %v3335, %v3334
      %v3372 = vpack.c.bf16 %v3337, %v3336
      %v3373 = vpack.c.bf16 %v3339, %v3338
      %v3374 = vpack.c.bf16 %v3341, %v3340
      %v3375 = vpack.c.bf16 %v3343, %v3342
      %v3376 = vpack.c.bf16 %v3345, %v3344
      %v3377 = vpack.c.bf16 %v3347, %v3346
      %v3378 = vpack.c.bf16 %v3349, %v3348
      %v3379 = vpack.c.bf16 %v3351, %v3350
      %v3380 = vpack.c.bf16 %v3353, %v3352
      %v3381 = vpack.c.bf16 %v3355, %v3354
      %v3382 = vpack.c.bf16 %v3357, %v3356
      %v3383 = vpack.c.bf16 %v3359, %v3358
      %v3384 = vpack.c.bf16 %v3361, %v3360
      %v3385 = vpack.c.bf16 %v3363, %v3362
      %v3386 = vpack.c.bf16 %v3365, %v3364
      %v3387 = vpack.c.bf16 %v3366, %v3366
      %s3388 = scalar_lea.vmem %s3, 28
      %v3389 = vld [vmem:[%s3388] sm:$0xf]
      %v3391 = vsel %vm762, %v3367, 0
      %v3394 = vsel %vm762, %v3368, 0
      %v3397 = vsel %vm762, %v3369, 0
      %v3400 = vsel %vm762, %v3370, 0
      %v3403 = vsel %vm762, %v3371, 0
      %v3406 = vsel %vm762, %v3372, 0
      %v3409 = vsel %vm762, %v3373, 0
      %v3412 = vsel %vm762, %v3374, 0
      %v3415 = vsel %vm762, %v3375, 0
      %v3418 = vsel %vm762, %v3376, 0
      %v3421 = vsel %vm762, %v3377, 0
      %v3424 = vsel %vm762, %v3378, 0
      %v3427 = vsel %vm762, %v3379, 0
      %v3430 = vsel %vm762, %v3380, 0
      %v3433 = vsel %vm762, %v3381, 0
      %v3436 = vsel %vm762, %v3382, 0
      %v3439 = vsel %vm762, %v3383, 0
      %v3442 = vsel %vm762, %v3384, 0
      %v3445 = vsel %vm762, %v3385, 0
      %v3448 = vsel %vm762, %v3386, 0
      %v3451 = vsel %vm762, %v3387, 0
      %v3454 = vsel %vm1001, %v3389, 0
      %3456 = vmatprep.subr.bf16.mxu0 0
      %3457 = vmatpush1.bf16.msra.mxu0 0
      %3458 = vmatprep.subr.bf16.mxu0 0
      %3459 = vmatpush1.bf16.msra.mxu0 0
      %3460 = vmatprep.subr.bf16.mxu0 0
      %3461 = vmatpush1.bf16.msra.mxu0 0
      %3462 = vmatprep.subr.bf16.mxu0 0
      %3463 = vmatpush1.bf16.msra.mxu0 0
      %3464 = vmatprep.subr.bf16.mxu0 0
      %3465 = vmatpush1.bf16.msra.mxu0 0
      %3466 = vmatprep.subr.bf16.mxu0 0
      %3467 = vmatpush1.bf16.msra.mxu0 0
      %3468 = vmatprep.subr.bf16.mxu0 0
      %3469 = vmatpush1.bf16.msra.mxu0 0
      %3470 = vmatprep.subr.bf16.mxu0 0
      %3471 = vmatpush1.bf16.msra.mxu0 %v3454
      %3472 = vmatprep.subr.bf16.mxu0 0
      %3473 = vmatpush2.bf16.msra.mxu0 0
      %3474 = vmatprep.subr.bf16.mxu0 0
      %3475 = vmatpush2.bf16.msra.mxu0 0
      %3476 = vmatprep.subr.bf16.mxu0 0
      %3477 = vmatpush2.bf16.msra.mxu0 0
      %3478 = vmatprep.subr.bf16.mxu0 0
      %3479 = vmatpush2.bf16.msra.mxu0 0
      %3480 = vmatprep.subr.bf16.mxu0 0
      %3481 = vmatpush2.bf16.msra.mxu0 0
      %3482 = vmatprep.subr.bf16.mxu0 0
      %3483 = vmatpush2.bf16.msra.mxu0 0
      %3484 = vmatprep.subr.bf16.mxu0 0
      %3485 = vmatpush2.bf16.msra.mxu0 0
      %3486 = vmatprep.subr.bf16.mxu0 0
      %3487 = vmatpush2.bf16.msra.mxu0 0
      %3488 = vmatprep.mubr.bf16.mxu0 0
      %3489 = vmatmul.mubr.bf16.gmra.mxu0 %v3391
      %v3490 = vpop.f32.mrf.mxu0
      %v3491 = vadd.f32 0.0, %v3490
      %v3492 = vpop.f32.mrf.mxu0
      %v3493 = vpop.f32.mrf.mxu0
      %v3494 = vadd.f32 0.0, %v3493
      %v3495 = vpop.f32.mrf.mxu0
      %3496 = vmatprep.mubr.bf16.mxu0 0
      %3497 = vmatmul.mubr.bf16.gmra.mxu0 %v3394
      %v3498 = vpop.f32.mrf.mxu0
      %v3499 = vadd.f32 0.0, %v3498
      %v3500 = vpop.f32.mrf.mxu0
      %v3501 = vpop.f32.mrf.mxu0
      %v3502 = vadd.f32 0.0, %v3501
      %v3503 = vpop.f32.mrf.mxu0
      %3504 = vmatprep.mubr.bf16.mxu0 0
      %3505 = vmatmul.mubr.bf16.gmra.mxu0 %v3397
      %v3506 = vpop.f32.mrf.mxu0
      %v3507 = vadd.f32 0.0, %v3506
      %v3508 = vpop.f32.mrf.mxu0
      %v3509 = vpop.f32.mrf.mxu0
      %v3510 = vadd.f32 0.0, %v3509
      %v3511 = vpop.f32.mrf.mxu0
      %3512 = vmatprep.mubr.bf16.mxu0 0
      %3513 = vmatmul.mubr.bf16.gmra.mxu0 %v3400
      %v3514 = vpop.f32.mrf.mxu0
      %v3515 = vadd.f32 0.0, %v3514
      %v3516 = vpop.f32.mrf.mxu0
      %v3517 = vpop.f32.mrf.mxu0
      %v3518 = vadd.f32 0.0, %v3517
      %v3519 = vpop.f32.mrf.mxu0
      %3520 = vmatprep.mubr.bf16.mxu0 0
      %3521 = vmatmul.mubr.bf16.gmra.mxu0 %v3403
      %v3522 = vpop.f32.mrf.mxu0
      %v3523 = vadd.f32 0.0, %v3522
      %v3524 = vpop.f32.mrf.mxu0
      %v3525 = vpop.f32.mrf.mxu0
      %v3526 = vadd.f32 0.0, %v3525
      %v3527 = vpop.f32.mrf.mxu0
      %3528 = vmatprep.mubr.bf16.mxu0 0
      %3529 = vmatmul.mubr.bf16.gmra.mxu0 %v3406
      %v3530 = vpop.f32.mrf.mxu0
      %v3531 = vadd.f32 0.0, %v3530
      %v3532 = vpop.f32.mrf.mxu0
      %v3533 = vpop.f32.mrf.mxu0
      %v3534 = vadd.f32 0.0, %v3533
      %v3535 = vpop.f32.mrf.mxu0
      %3536 = vmatprep.mubr.bf16.mxu0 0
      %3537 = vmatmul.mubr.bf16.gmra.mxu0 %v3409
      %v3538 = vpop.f32.mrf.mxu0
      %v3539 = vadd.f32 0.0, %v3538
      %v3540 = vpop.f32.mrf.mxu0
      %v3541 = vpop.f32.mrf.mxu0
      %v3542 = vadd.f32 0.0, %v3541
      %v3543 = vpop.f32.mrf.mxu0
      %3544 = vmatprep.mubr.bf16.mxu0 0
      %3545 = vmatmul.mubr.bf16.gmra.mxu0 %v3412
      %v3546 = vpop.f32.mrf.mxu0
      %v3547 = vadd.f32 0.0, %v3546
      %v3548 = vpop.f32.mrf.mxu0
      %v3549 = vpop.f32.mrf.mxu0
      %v3550 = vadd.f32 0.0, %v3549
      %v3551 = vpop.f32.mrf.mxu0
      %3552 = vmatprep.mubr.bf16.mxu0 0
      %3553 = vmatmul.mubr.bf16.gmra.mxu0 %v3415
      %v3554 = vpop.f32.mrf.mxu0
      %v3555 = vadd.f32 0.0, %v3554
      %v3556 = vpop.f32.mrf.mxu0
      %v3557 = vpop.f32.mrf.mxu0
      %v3558 = vadd.f32 0.0, %v3557
      %v3559 = vpop.f32.mrf.mxu0
      %3560 = vmatprep.mubr.bf16.mxu0 0
      %3561 = vmatmul.mubr.bf16.gmra.mxu0 %v3418
      %v3562 = vpop.f32.mrf.mxu0
      %v3563 = vadd.f32 0.0, %v3562
      %v3564 = vpop.f32.mrf.mxu0
      %v3565 = vpop.f32.mrf.mxu0
      %v3566 = vadd.f32 0.0, %v3565
      %v3567 = vpop.f32.mrf.mxu0
      %3568 = vmatprep.mubr.bf16.mxu0 0
      %3569 = vmatmul.mubr.bf16.gmra.mxu0 %v3421
      %v3570 = vpop.f32.mrf.mxu0
      %v3571 = vadd.f32 0.0, %v3570
      %v3572 = vpop.f32.mrf.mxu0
      %v3573 = vpop.f32.mrf.mxu0
      %v3574 = vadd.f32 0.0, %v3573
      %v3575 = vpop.f32.mrf.mxu0
      %3576 = vmatprep.mubr.bf16.mxu0 0
      %3577 = vmatmul.mubr.bf16.gmra.mxu0 %v3424
      %v3578 = vpop.f32.mrf.mxu0
      %v3579 = vadd.f32 0.0, %v3578
      %v3580 = vpop.f32.mrf.mxu0
      %v3581 = vpop.f32.mrf.mxu0
      %v3582 = vadd.f32 0.0, %v3581
      %v3583 = vpop.f32.mrf.mxu0
      %3584 = vmatprep.mubr.bf16.mxu0 0
      %3585 = vmatmul.mubr.bf16.gmra.mxu0 %v3427
      %v3586 = vpop.f32.mrf.mxu0
      %v3587 = vadd.f32 0.0, %v3586
      %v3588 = vpop.f32.mrf.mxu0
      %v3589 = vpop.f32.mrf.mxu0
      %v3590 = vadd.f32 0.0, %v3589
      %v3591 = vpop.f32.mrf.mxu0
      %3592 = vmatprep.mubr.bf16.mxu0 0
      %3593 = vmatmul.mubr.bf16.gmra.mxu0 %v3430
      %v3594 = vpop.f32.mrf.mxu0
      %v3595 = vadd.f32 0.0, %v3594
      %v3596 = vpop.f32.mrf.mxu0
      %v3597 = vpop.f32.mrf.mxu0
      %v3598 = vadd.f32 0.0, %v3597
      %v3599 = vpop.f32.mrf.mxu0
      %3600 = vmatprep.mubr.bf16.mxu0 0
      %3601 = vmatmul.mubr.bf16.gmra.mxu0 %v3433
      %v3602 = vpop.f32.mrf.mxu0
      %v3603 = vadd.f32 0.0, %v3602
      %v3604 = vpop.f32.mrf.mxu0
      %v3605 = vpop.f32.mrf.mxu0
      %v3606 = vadd.f32 0.0, %v3605
      %v3607 = vpop.f32.mrf.mxu0
      %3608 = vmatprep.mubr.bf16.mxu0 0
      %3609 = vmatmul.mubr.bf16.gmra.mxu0 %v3436
      %v3610 = vpop.f32.mrf.mxu0
      %v3611 = vadd.f32 0.0, %v3610
      %v3612 = vpop.f32.mrf.mxu0
      %v3613 = vpop.f32.mrf.mxu0
      %v3614 = vadd.f32 0.0, %v3613
      %v3615 = vpop.f32.mrf.mxu0
      %3616 = vmatprep.mubr.bf16.mxu0 0
      %3617 = vmatmul.mubr.bf16.gmra.mxu0 %v3439
      %v3618 = vpop.f32.mrf.mxu0
      %v3619 = vadd.f32 0.0, %v3618
      %v3620 = vpop.f32.mrf.mxu0
      %v3621 = vpop.f32.mrf.mxu0
      %v3622 = vadd.f32 0.0, %v3621
      %v3623 = vpop.f32.mrf.mxu0
      %3624 = vmatprep.mubr.bf16.mxu0 0
      %3625 = vmatmul.mubr.bf16.gmra.mxu0 %v3442
      %v3626 = vpop.f32.mrf.mxu0
      %v3627 = vadd.f32 0.0, %v3626
      %v3628 = vpop.f32.mrf.mxu0
      %v3629 = vpop.f32.mrf.mxu0
      %v3630 = vadd.f32 0.0, %v3629
      %v3631 = vpop.f32.mrf.mxu0
      %3632 = vmatprep.mubr.bf16.mxu0 0
      %3633 = vmatmul.mubr.bf16.gmra.mxu0 %v3445
      %v3634 = vpop.f32.mrf.mxu0
      %v3635 = vadd.f32 0.0, %v3634
      %v3636 = vpop.f32.mrf.mxu0
      %v3637 = vpop.f32.mrf.mxu0
      %v3638 = vadd.f32 0.0, %v3637
      %v3639 = vpop.f32.mrf.mxu0
      %3640 = vmatprep.mubr.bf16.mxu0 0
      %3641 = vmatmul.mubr.bf16.gmra.mxu0 %v3448
      %v3642 = vpop.f32.mrf.mxu0
      %v3643 = vadd.f32 0.0, %v3642
      %v3644 = vpop.f32.mrf.mxu0
      %v3645 = vpop.f32.mrf.mxu0
      %v3646 = vadd.f32 0.0, %v3645
      %v3647 = vpop.f32.mrf.mxu0
      %3648 = vmatprep.mubr.bf16.mxu0 0
      %3649 = vmatmul.mubr.bf16.gmra.mxu0 %v3451
      %v3650 = vpop.f32.mrf.mxu0
      %v3651 = vadd.f32 0.0, %v3650
      %v3652 = vpop.f32.mrf.mxu0
      %v3653 = vpop.f32.mrf.mxu0
      %v3654 = vpop.f32.mrf.mxu0
      %3655 = vdwg.mxu0
      %v3656 = vadd.f32 %v3285, %v3491
      %v3657 = vadd.f32 %v3286, %v3494
      %v3658 = vadd.f32 %v3287, %v3499
      %v3659 = vadd.f32 %v3288, %v3502
      %v3660 = vadd.f32 %v3289, %v3507
      %v3661 = vadd.f32 %v3290, %v3510
      %v3662 = vadd.f32 %v3291, %v3515
      %v3663 = vadd.f32 %v3292, %v3518
      %v3664 = vadd.f32 %v3293, %v3523
      %v3665 = vadd.f32 %v3294, %v3526
      %v3666 = vadd.f32 %v3295, %v3531
      %v3667 = vadd.f32 %v3296, %v3534
      %v3668 = vadd.f32 %v3297, %v3539
      %v3669 = vadd.f32 %v3298, %v3542
      %v3670 = vadd.f32 %v3299, %v3547
      %v3671 = vadd.f32 %v3300, %v3550
      %v3672 = vadd.f32 %v3301, %v3555
      %v3673 = vadd.f32 %v3302, %v3558
      %v3674 = vadd.f32 %v3303, %v3563
      %v3675 = vadd.f32 %v3304, %v3566
      %v3676 = vadd.f32 %v3305, %v3571
      %v3677 = vadd.f32 %v3306, %v3574
      %v3678 = vadd.f32 %v3307, %v3579
      %v3679 = vadd.f32 %v3308, %v3582
      %v3680 = vadd.f32 %v3309, %v3587
      %v3681 = vadd.f32 %v3310, %v3590
      %v3682 = vadd.f32 %v3311, %v3595
      %v3683 = vadd.f32 %v3312, %v3598
      %v3684 = vadd.f32 %v3313, %v3603
      %v3685 = vadd.f32 %v3314, %v3606
      %v3686 = vadd.f32 %v3315, %v3611
      %v3687 = vadd.f32 %v3316, %v3614
      %v3688 = vadd.f32 %v3317, %v3619
      %v3689 = vadd.f32 %v3318, %v3622
      %v3690 = vadd.f32 %v3319, %v3627
      %v3691 = vadd.f32 %v3320, %v3630
      %v3692 = vadd.f32 %v3321, %v3635
      %v3693 = vadd.f32 %v3322, %v3638
      %v3694 = vadd.f32 %v3323, %v3643
      %v3695 = vadd.f32 %v3324, %v3646
      %v3696 = vadd.f32 %v3325, %v3651
      %v3697 = vld [vmem:[#allocation2 + $0x2b] sm:$0xff]
      %v3698 = vld [vmem:[#allocation2 + $0x33] sm:$0xff]
      %v3699 = vld [vmem:[#allocation2 + $0x3b] sm:$0xff]
      %v3700 = vld [vmem:[#allocation2 + $0x43] sm:$0xff]
      %v3701 = vld [vmem:[#allocation2 + $0x4b] sm:$0xff]
      %v3702 = vld [vmem:[#allocation2 + $0x53] sm:$0xff]
      %v3703 = vld [vmem:[#allocation2 + $0x5b] sm:$0xff]
      %v3704 = vld [vmem:[#allocation2 + $0x63] sm:$0xff]
      %v3705 = vld [vmem:[#allocation2 + $0x6b] sm:$0xff]
      %v3706 = vld [vmem:[#allocation2 + $0x73] sm:$0xff]
      %v3707 = vld [vmem:[#allocation2 + $0x7b] sm:$0xff]
      %v3708 = vld [vmem:[#allocation2 + $0x83] sm:$0xff]
      %v3709 = vld [vmem:[#allocation2 + $0x8b] sm:$0xff]
      %v3710 = vld [vmem:[#allocation2 + $0x93] sm:$0xff]
      %v3711 = vld [vmem:[#allocation2 + $0x9b] sm:$0xff]
      %v3712 = vld [vmem:[#allocation2 + $0xa3] sm:$0xff]
      %v3713 = vld [vmem:[#allocation2 + $0xab] sm:$0xff]
      %v3714 = vld [vmem:[#allocation2 + $0xb3] sm:$0xff]
      %v3715 = vld [vmem:[#allocation2 + $0xbb] sm:$0xff]
      %v3716 = vld [vmem:[#allocation2 + $0xc3] sm:$0xff]
      %v3717 = vld [vmem:[#allocation2 + $0xcb] sm:$0xff]
      %v3718 = vld [vmem:[#allocation2 + $0xd3] sm:$0xff]
      %v3719 = vld [vmem:[#allocation2 + $0xdb] sm:$0xff]
      %v3720 = vld [vmem:[#allocation2 + $0xe3] sm:$0xff]
      %v3721 = vld [vmem:[#allocation2 + $0xeb] sm:$0xff]
      %v3722 = vld [vmem:[#allocation2 + $0xf3] sm:$0xff]
      %v3723 = vld [vmem:[#allocation2 + $0xfb] sm:$0xff]
      %v3724 = vld [vmem:[#allocation2 + $0x103] sm:$0xff]
      %v3725 = vld [vmem:[#allocation2 + $0x10b] sm:$0xff]
      %v3726 = vld [vmem:[#allocation2 + $0x113] sm:$0xff]
      %v3727 = vld [vmem:[#allocation2 + $0x11b] sm:$0xff]
      %v3728 = vld [vmem:[#allocation2 + $0x123] sm:$0xff]
      %v3729 = vld [vmem:[#allocation2 + $0x12b] sm:$0xff]
      %v3730 = vld [vmem:[#allocation2 + $0x133] sm:$0xff]
      %v3731 = vld [vmem:[#allocation2 + $0x13b] sm:$0xff]
      %v3732 = vld [vmem:[#allocation2 + $0x143] sm:$0xff]
      %v3733 = vld [vmem:[#allocation2 + $0x14b] sm:$0xff]
      %v3734 = vld [vmem:[#allocation2 + $0x153] sm:$0xff]
      %v3735 = vld [vmem:[#allocation2 + $0x15b] sm:$0xff]
      %v3736 = vld [vmem:[#allocation2 + $0x163] sm:$0xff]
      %v3737 = vld [vmem:[#allocation2 + $0x16b] sm:$0xf]
      %v3738 = vpack.c.bf16 %v3698, %v3697
      %v3739 = vpack.c.bf16 %v3700, %v3699
      %v3740 = vpack.c.bf16 %v3702, %v3701
      %v3741 = vpack.c.bf16 %v3704, %v3703
      %v3742 = vpack.c.bf16 %v3706, %v3705
      %v3743 = vpack.c.bf16 %v3708, %v3707
      %v3744 = vpack.c.bf16 %v3710, %v3709
      %v3745 = vpack.c.bf16 %v3712, %v3711
      %v3746 = vpack.c.bf16 %v3714, %v3713
      %v3747 = vpack.c.bf16 %v3716, %v3715
      %v3748 = vpack.c.bf16 %v3718, %v3717
      %v3749 = vpack.c.bf16 %v3720, %v3719
      %v3750 = vpack.c.bf16 %v3722, %v3721
      %v3751 = vpack.c.bf16 %v3724, %v3723
      %v3752 = vpack.c.bf16 %v3726, %v3725
      %v3753 = vpack.c.bf16 %v3728, %v3727
      %v3754 = vpack.c.bf16 %v3730, %v3729
      %v3755 = vpack.c.bf16 %v3732, %v3731
      %v3756 = vpack.c.bf16 %v3734, %v3733
      %v3757 = vpack.c.bf16 %v3736, %v3735
      %v3758 = vpack.c.bf16 %v3737, %v3737
      %s3759 = scalar_lea.vmem %s3, 32
      %v3760 = vld [vmem:[%s3759] sm:$0xf]
      %v3762 = vsel %vm762, %v3738, 0
      %v3765 = vsel %vm762, %v3739, 0
      %v3768 = vsel %vm762, %v3740, 0
      %v3771 = vsel %vm762, %v3741, 0
      %v3774 = vsel %vm762, %v3742, 0
      %v3777 = vsel %vm762, %v3743, 0
      %v3780 = vsel %vm762, %v3744, 0
      %v3783 = vsel %vm762, %v3745, 0
      %v3786 = vsel %vm762, %v3746, 0
      %v3789 = vsel %vm762, %v3747, 0
      %v3792 = vsel %vm762, %v3748, 0
      %v3795 = vsel %vm762, %v3749, 0
      %v3798 = vsel %vm762, %v3750, 0
      %v3801 = vsel %vm762, %v3751, 0
      %v3804 = vsel %vm762, %v3752, 0
      %v3807 = vsel %vm762, %v3753, 0
      %v3810 = vsel %vm762, %v3754, 0
      %v3813 = vsel %vm762, %v3755, 0
      %v3816 = vsel %vm762, %v3756, 0
      %v3819 = vsel %vm762, %v3757, 0
      %v3822 = vsel %vm762, %v3758, 0
      %v3825 = vsel %vm1001, %v3760, 0
      %3827 = vmatprep.subr.bf16.mxu0 0
      %3828 = vmatpush1.bf16.msra.mxu0 0
      %3829 = vmatprep.subr.bf16.mxu0 0
      %3830 = vmatpush1.bf16.msra.mxu0 0
      %3831 = vmatprep.subr.bf16.mxu0 0
      %3832 = vmatpush1.bf16.msra.mxu0 0
      %3833 = vmatprep.subr.bf16.mxu0 0
      %3834 = vmatpush1.bf16.msra.mxu0 0
      %3835 = vmatprep.subr.bf16.mxu0 0
      %3836 = vmatpush1.bf16.msra.mxu0 0
      %3837 = vmatprep.subr.bf16.mxu0 0
      %3838 = vmatpush1.bf16.msra.mxu0 0
      %3839 = vmatprep.subr.bf16.mxu0 0
      %3840 = vmatpush1.bf16.msra.mxu0 0
      %3841 = vmatprep.subr.bf16.mxu0 0
      %3842 = vmatpush1.bf16.msra.mxu0 %v3825
      %3843 = vmatprep.subr.bf16.mxu0 0
      %3844 = vmatpush2.bf16.msra.mxu0 0
      %3845 = vmatprep.subr.bf16.mxu0 0
      %3846 = vmatpush2.bf16.msra.mxu0 0
      %3847 = vmatprep.subr.bf16.mxu0 0
      %3848 = vmatpush2.bf16.msra.mxu0 0
      %3849 = vmatprep.subr.bf16.mxu0 0
      %3850 = vmatpush2.bf16.msra.mxu0 0
      %3851 = vmatprep.subr.bf16.mxu0 0
      %3852 = vmatpush2.bf16.msra.mxu0 0
      %3853 = vmatprep.subr.bf16.mxu0 0
      %3854 = vmatpush2.bf16.msra.mxu0 0
      %3855 = vmatprep.subr.bf16.mxu0 0
      %3856 = vmatpush2.bf16.msra.mxu0 0
      %3857 = vmatprep.subr.bf16.mxu0 0
      %3858 = vmatpush2.bf16.msra.mxu0 0
      %3859 = vmatprep.mubr.bf16.mxu0 0
      %3860 = vmatmul.mubr.bf16.gmra.mxu0 %v3762
      %v3861 = vpop.f32.mrf.mxu0
      %v3862 = vadd.f32 0.0, %v3861
      %v3863 = vpop.f32.mrf.mxu0
      %v3864 = vpop.f32.mrf.mxu0
      %v3865 = vadd.f32 0.0, %v3864
      %v3866 = vpop.f32.mrf.mxu0
      %3867 = vmatprep.mubr.bf16.mxu0 0
      %3868 = vmatmul.mubr.bf16.gmra.mxu0 %v3765
      %v3869 = vpop.f32.mrf.mxu0
      %v3870 = vadd.f32 0.0, %v3869
      %v3871 = vpop.f32.mrf.mxu0
      %v3872 = vpop.f32.mrf.mxu0
      %v3873 = vadd.f32 0.0, %v3872
      %v3874 = vpop.f32.mrf.mxu0
      %3875 = vmatprep.mubr.bf16.mxu0 0
      %3876 = vmatmul.mubr.bf16.gmra.mxu0 %v3768
      %v3877 = vpop.f32.mrf.mxu0
      %v3878 = vadd.f32 0.0, %v3877
      %v3879 = vpop.f32.mrf.mxu0
      %v3880 = vpop.f32.mrf.mxu0
      %v3881 = vadd.f32 0.0, %v3880
      %v3882 = vpop.f32.mrf.mxu0
      %3883 = vmatprep.mubr.bf16.mxu0 0
      %3884 = vmatmul.mubr.bf16.gmra.mxu0 %v3771
      %v3885 = vpop.f32.mrf.mxu0
      %v3886 = vadd.f32 0.0, %v3885
      %v3887 = vpop.f32.mrf.mxu0
      %v3888 = vpop.f32.mrf.mxu0
      %v3889 = vadd.f32 0.0, %v3888
      %v3890 = vpop.f32.mrf.mxu0
      %3891 = vmatprep.mubr.bf16.mxu0 0
      %3892 = vmatmul.mubr.bf16.gmra.mxu0 %v3774
      %v3893 = vpop.f32.mrf.mxu0
      %v3894 = vadd.f32 0.0, %v3893
      %v3895 = vpop.f32.mrf.mxu0
      %v3896 = vpop.f32.mrf.mxu0
      %v3897 = vadd.f32 0.0, %v3896
      %v3898 = vpop.f32.mrf.mxu0
      %3899 = vmatprep.mubr.bf16.mxu0 0
      %3900 = vmatmul.mubr.bf16.gmra.mxu0 %v3777
      %v3901 = vpop.f32.mrf.mxu0
      %v3902 = vadd.f32 0.0, %v3901
      %v3903 = vpop.f32.mrf.mxu0
      %v3904 = vpop.f32.mrf.mxu0
      %v3905 = vadd.f32 0.0, %v3904
      %v3906 = vpop.f32.mrf.mxu0
      %3907 = vmatprep.mubr.bf16.mxu0 0
      %3908 = vmatmul.mubr.bf16.gmra.mxu0 %v3780
      %v3909 = vpop.f32.mrf.mxu0
      %v3910 = vadd.f32 0.0, %v3909
      %v3911 = vpop.f32.mrf.mxu0
      %v3912 = vpop.f32.mrf.mxu0
      %v3913 = vadd.f32 0.0, %v3912
      %v3914 = vpop.f32.mrf.mxu0
      %3915 = vmatprep.mubr.bf16.mxu0 0
      %3916 = vmatmul.mubr.bf16.gmra.mxu0 %v3783
      %v3917 = vpop.f32.mrf.mxu0
      %v3918 = vadd.f32 0.0, %v3917
      %v3919 = vpop.f32.mrf.mxu0
      %v3920 = vpop.f32.mrf.mxu0
      %v3921 = vadd.f32 0.0, %v3920
      %v3922 = vpop.f32.mrf.mxu0
      %3923 = vmatprep.mubr.bf16.mxu0 0
      %3924 = vmatmul.mubr.bf16.gmra.mxu0 %v3786
      %v3925 = vpop.f32.mrf.mxu0
      %v3926 = vadd.f32 0.0, %v3925
      %v3927 = vpop.f32.mrf.mxu0
      %v3928 = vpop.f32.mrf.mxu0
      %v3929 = vadd.f32 0.0, %v3928
      %v3930 = vpop.f32.mrf.mxu0
      %3931 = vmatprep.mubr.bf16.mxu0 0
      %3932 = vmatmul.mubr.bf16.gmra.mxu0 %v3789
      %v3933 = vpop.f32.mrf.mxu0
      %v3934 = vadd.f32 0.0, %v3933
      %v3935 = vpop.f32.mrf.mxu0
      %v3936 = vpop.f32.mrf.mxu0
      %v3937 = vadd.f32 0.0, %v3936
      %v3938 = vpop.f32.mrf.mxu0
      %3939 = vmatprep.mubr.bf16.mxu0 0
      %3940 = vmatmul.mubr.bf16.gmra.mxu0 %v3792
      %v3941 = vpop.f32.mrf.mxu0
      %v3942 = vadd.f32 0.0, %v3941
      %v3943 = vpop.f32.mrf.mxu0
      %v3944 = vpop.f32.mrf.mxu0
      %v3945 = vadd.f32 0.0, %v3944
      %v3946 = vpop.f32.mrf.mxu0
      %3947 = vmatprep.mubr.bf16.mxu0 0
      %3948 = vmatmul.mubr.bf16.gmra.mxu0 %v3795
      %v3949 = vpop.f32.mrf.mxu0
      %v3950 = vadd.f32 0.0, %v3949
      %v3951 = vpop.f32.mrf.mxu0
      %v3952 = vpop.f32.mrf.mxu0
      %v3953 = vadd.f32 0.0, %v3952
      %v3954 = vpop.f32.mrf.mxu0
      %3955 = vmatprep.mubr.bf16.mxu0 0
      %3956 = vmatmul.mubr.bf16.gmra.mxu0 %v3798
      %v3957 = vpop.f32.mrf.mxu0
      %v3958 = vadd.f32 0.0, %v3957
      %v3959 = vpop.f32.mrf.mxu0
      %v3960 = vpop.f32.mrf.mxu0
      %v3961 = vadd.f32 0.0, %v3960
      %v3962 = vpop.f32.mrf.mxu0
      %3963 = vmatprep.mubr.bf16.mxu0 0
      %3964 = vmatmul.mubr.bf16.gmra.mxu0 %v3801
      %v3965 = vpop.f32.mrf.mxu0
      %v3966 = vadd.f32 0.0, %v3965
      %v3967 = vpop.f32.mrf.mxu0
      %v3968 = vpop.f32.mrf.mxu0
      %v3969 = vadd.f32 0.0, %v3968
      %v3970 = vpop.f32.mrf.mxu0
      %3971 = vmatprep.mubr.bf16.mxu0 0
      %3972 = vmatmul.mubr.bf16.gmra.mxu0 %v3804
      %v3973 = vpop.f32.mrf.mxu0
      %v3974 = vadd.f32 0.0, %v3973
      %v3975 = vpop.f32.mrf.mxu0
      %v3976 = vpop.f32.mrf.mxu0
      %v3977 = vadd.f32 0.0, %v3976
      %v3978 = vpop.f32.mrf.mxu0
      %3979 = vmatprep.mubr.bf16.mxu0 0
      %3980 = vmatmul.mubr.bf16.gmra.mxu0 %v3807
      %v3981 = vpop.f32.mrf.mxu0
      %v3982 = vadd.f32 0.0, %v3981
      %v3983 = vpop.f32.mrf.mxu0
      %v3984 = vpop.f32.mrf.mxu0
      %v3985 = vadd.f32 0.0, %v3984
      %v3986 = vpop.f32.mrf.mxu0
      %3987 = vmatprep.mubr.bf16.mxu0 0
      %3988 = vmatmul.mubr.bf16.gmra.mxu0 %v3810
      %v3989 = vpop.f32.mrf.mxu0
      %v3990 = vadd.f32 0.0, %v3989
      %v3991 = vpop.f32.mrf.mxu0
      %v3992 = vpop.f32.mrf.mxu0
      %v3993 = vadd.f32 0.0, %v3992
      %v3994 = vpop.f32.mrf.mxu0
      %3995 = vmatprep.mubr.bf16.mxu0 0
      %3996 = vmatmul.mubr.bf16.gmra.mxu0 %v3813
      %v3997 = vpop.f32.mrf.mxu0
      %v3998 = vadd.f32 0.0, %v3997
      %v3999 = vpop.f32.mrf.mxu0
      %v4000 = vpop.f32.mrf.mxu0
      %v4001 = vadd.f32 0.0, %v4000
      %v4002 = vpop.f32.mrf.mxu0
      %4003 = vmatprep.mubr.bf16.mxu0 0
      %4004 = vmatmul.mubr.bf16.gmra.mxu0 %v3816
      %v4005 = vpop.f32.mrf.mxu0
      %v4006 = vadd.f32 0.0, %v4005
      %v4007 = vpop.f32.mrf.mxu0
      %v4008 = vpop.f32.mrf.mxu0
      %v4009 = vadd.f32 0.0, %v4008
      %v4010 = vpop.f32.mrf.mxu0
      %4011 = vmatprep.mubr.bf16.mxu0 0
      %4012 = vmatmul.mubr.bf16.gmra.mxu0 %v3819
      %v4013 = vpop.f32.mrf.mxu0
      %v4014 = vadd.f32 0.0, %v4013
      %v4015 = vpop.f32.mrf.mxu0
      %v4016 = vpop.f32.mrf.mxu0
      %v4017 = vadd.f32 0.0, %v4016
      %v4018 = vpop.f32.mrf.mxu0
      %4019 = vmatprep.mubr.bf16.mxu0 0
      %4020 = vmatmul.mubr.bf16.gmra.mxu0 %v3822
      %v4021 = vpop.f32.mrf.mxu0
      %v4022 = vadd.f32 0.0, %v4021
      %v4023 = vpop.f32.mrf.mxu0
      %v4024 = vpop.f32.mrf.mxu0
      %v4025 = vpop.f32.mrf.mxu0
      %4026 = vdwg.mxu0
      %v4027 = vadd.f32 %v3656, %v3862
      %v4028 = vadd.f32 %v3657, %v3865
      %v4029 = vadd.f32 %v3658, %v3870
      %v4030 = vadd.f32 %v3659, %v3873
      %v4031 = vadd.f32 %v3660, %v3878
      %v4032 = vadd.f32 %v3661, %v3881
      %v4033 = vadd.f32 %v3662, %v3886
      %v4034 = vadd.f32 %v3663, %v3889
      %v4035 = vadd.f32 %v3664, %v3894
      %v4036 = vadd.f32 %v3665, %v3897
      %v4037 = vadd.f32 %v3666, %v3902
      %v4038 = vadd.f32 %v3667, %v3905
      %v4039 = vadd.f32 %v3668, %v3910
      %v4040 = vadd.f32 %v3669, %v3913
      %v4041 = vadd.f32 %v3670, %v3918
      %v4042 = vadd.f32 %v3671, %v3921
      %v4043 = vadd.f32 %v3672, %v3926
      %v4044 = vadd.f32 %v3673, %v3929
      %v4045 = vadd.f32 %v3674, %v3934
      %v4046 = vadd.f32 %v3675, %v3937
      %v4047 = vadd.f32 %v3676, %v3942
      %v4048 = vadd.f32 %v3677, %v3945
      %v4049 = vadd.f32 %v3678, %v3950
      %v4050 = vadd.f32 %v3679, %v3953
      %v4051 = vadd.f32 %v3680, %v3958
      %v4052 = vadd.f32 %v3681, %v3961
      %v4053 = vadd.f32 %v3682, %v3966
      %v4054 = vadd.f32 %v3683, %v3969
      %v4055 = vadd.f32 %v3684, %v3974
      %v4056 = vadd.f32 %v3685, %v3977
      %v4057 = vadd.f32 %v3686, %v3982
      %v4058 = vadd.f32 %v3687, %v3985
      %v4059 = vadd.f32 %v3688, %v3990
      %v4060 = vadd.f32 %v3689, %v3993
      %v4061 = vadd.f32 %v3690, %v3998
      %v4062 = vadd.f32 %v3691, %v4001
      %v4063 = vadd.f32 %v3692, %v4006
      %v4064 = vadd.f32 %v3693, %v4009
      %v4065 = vadd.f32 %v3694, %v4014
      %v4066 = vadd.f32 %v3695, %v4017
      %v4067 = vadd.f32 %v3696, %v4022
      %4068 = vst.msk [vmem:[%s289] sm:$0xff] %vm762, %v4027
      %4069 = vst.msk [vmem:[%s289 + $0x8] sm:$0xff] %vm762, %v4028
      %4070 = vst.msk [vmem:[%s289 + $0x10] sm:$0xff] %vm762, %v4029
      %4071 = vst.msk [vmem:[%s289 + $0x18] sm:$0xff] %vm762, %v4030
      %4072 = vst.msk [vmem:[%s289 + $0x20] sm:$0xff] %vm762, %v4031
      %4073 = vst.msk [vmem:[%s289 + $0x28] sm:$0xff] %vm762, %v4032
      %4074 = vst.msk [vmem:[%s289 + $0x30] sm:$0xff] %vm762, %v4033
      %4075 = vst.msk [vmem:[%s289 + $0x38] sm:$0xff] %vm762, %v4034
      %4076 = vst.msk [vmem:[%s289 + $0x40] sm:$0xff] %vm762, %v4035
      %4077 = vst.msk [vmem:[%s289 + $0x48] sm:$0xff] %vm762, %v4036
      %4078 = vst.msk [vmem:[%s289 + $0x50] sm:$0xff] %vm762, %v4037
      %4079 = vst.msk [vmem:[%s289 + $0x58] sm:$0xff] %vm762, %v4038
      %4080 = vst.msk [vmem:[%s289 + $0x60] sm:$0xff] %vm762, %v4039
      %4081 = vst.msk [vmem:[%s289 + $0x68] sm:$0xff] %vm762, %v4040
      %4082 = vst.msk [vmem:[%s289 + $0x70] sm:$0xff] %vm762, %v4041
      %4083 = vst.msk [vmem:[%s289 + $0x78] sm:$0xff] %vm762, %v4042
      %4084 = vst.msk [vmem:[%s289 + $0x80] sm:$0xff] %vm762, %v4043
      %4085 = vst.msk [vmem:[%s289 + $0x88] sm:$0xff] %vm762, %v4044
      %4086 = vst.msk [vmem:[%s289 + $0x90] sm:$0xff] %vm762, %v4045
      %4087 = vst.msk [vmem:[%s289 + $0x98] sm:$0xff] %vm762, %v4046
      %4088 = vst.msk [vmem:[%s289 + $0xa0] sm:$0xff] %vm762, %v4047
      %4089 = vst.msk [vmem:[%s289 + $0xa8] sm:$0xff] %vm762, %v4048
      %4090 = vst.msk [vmem:[%s289 + $0xb0] sm:$0xff] %vm762, %v4049
      %4091 = vst.msk [vmem:[%s289 + $0xb8] sm:$0xff] %vm762, %v4050
      %4092 = vst.msk [vmem:[%s289 + $0xc0] sm:$0xff] %vm762, %v4051
      %4093 = vst.msk [vmem:[%s289 + $0xc8] sm:$0xff] %vm762, %v4052
      %4094 = vst.msk [vmem:[%s289 + $0xd0] sm:$0xff] %vm762, %v4053
      %4095 = vst.msk [vmem:[%s289 + $0xd8] sm:$0xff] %vm762, %v4054
      %4096 = vst.msk [vmem:[%s289 + $0xe0] sm:$0xff] %vm762, %v4055
      %4097 = vst.msk [vmem:[%s289 + $0xe8] sm:$0xff] %vm762, %v4056
      %4098 = vst.msk [vmem:[%s289 + $0xf0] sm:$0xff] %vm762, %v4057
      %4099 = vst.msk [vmem:[%s289 + $0xf8] sm:$0xff] %vm762, %v4058
      %4100 = vst.msk [vmem:[%s289 + $0x100] sm:$0xff] %vm762, %v4059
      %4101 = vst.msk [vmem:[%s289 + $0x108] sm:$0xff] %vm762, %v4060
      %4102 = vst.msk [vmem:[%s289 + $0x110] sm:$0xff] %vm762, %v4061
      %4103 = vst.msk [vmem:[%s289 + $0x118] sm:$0xff] %vm762, %v4062
      %4104 = vst.msk [vmem:[%s289 + $0x120] sm:$0xff] %vm762, %v4063
      %4105 = vst.msk [vmem:[%s289 + $0x128] sm:$0xff] %vm762, %v4064
      %4106 = vst.msk [vmem:[%s289 + $0x130] sm:$0xff] %vm762, %v4065
      %4107 = vst.msk [vmem:[%s289 + $0x138] sm:$0xff] %vm762, %v4066
      %4108 = vst.msk [vmem:[%s289 + $0x140] sm:$0xf] %vm809, %v4067
      %v4109 = vsel %vm680, %v4027, 0.0
      %v4110 = vsel %vm681, %v4028, 0.0
      %v4111 = vsel %vm682, %v4029, 0.0
      %v4112 = vsel %vm683, %v4030, 0.0
      %v4113 = vsel %vm684, %v4031, 0.0
      %v4114 = vsel %vm685, %v4032, 0.0
      %v4115 = vsel %vm686, %v4033, 0.0
      %v4116 = vsel %vm687, %v4034, 0.0
      %v4117 = vsel %vm688, %v4035, 0.0
      %v4118 = vsel %vm689, %v4036, 0.0
      %v4119 = vsel %vm690, %v4037, 0.0
      %v4120 = vsel %vm691, %v4038, 0.0
      %v4121 = vsel %vm692, %v4039, 0.0
      %v4122 = vsel %vm693, %v4040, 0.0
      %v4123 = vsel %vm694, %v4041, 0.0
      %v4124 = vsel %vm695, %v4042, 0.0
      %v4125 = vsel %vm696, %v4043, 0.0
      %v4126 = vsel %vm697, %v4044, 0.0
      %v4127 = vsel %vm698, %v4045, 0.0
      %v4128 = vsel %vm699, %v4046, 0.0
      %v4129 = vsel %vm700, %v4047, 0.0
      %v4130 = vsel %vm701, %v4048, 0.0
      %v4131 = vsel %vm702, %v4049, 0.0
      %v4132 = vsel %vm703, %v4050, 0.0
      %v4133 = vsel %vm704, %v4051, 0.0
      %v4134 = vsel %vm705, %v4052, 0.0
      %v4135 = vsel %vm706, %v4053, 0.0
      %v4136 = vsel %vm707, %v4054, 0.0
      %v4137 = vsel %vm708, %v4055, 0.0
      %v4138 = vsel %vm709, %v4056, 0.0
      %v4139 = vsel %vm710, %v4057, 0.0
      %v4140 = vsel %vm711, %v4058, 0.0
      %v4141 = vsel %vm712, %v4059, 0.0
      %v4142 = vsel %vm713, %v4060, 0.0
      %v4143 = vsel %vm714, %v4061, 0.0
      %v4144 = vsel %vm715, %v4062, 0.0
      %v4145 = vsel %vm716, %v4063, 0.0
      %v4146 = vsel %vm717, %v4064, 0.0
      %v4147 = vsel %vm718, %v4065, 0.0
      %v4148 = vsel %vm719, %v4066, 0.0
      %v4149 = vsel %vm720, %v4067, 0.0
      %v4150 = vsel %vm762, %v4109, 0.0
      %v4151 = vsel %vm762, %v4110, 0.0
      %v4152 = vadd.f32 %v4150, %v4151
      %v4153 = vsel %vm762, %v4111, 0.0
      %v4154 = vadd.f32 %v4152, %v4153
      %v4155 = vsel %vm762, %v4112, 0.0
      %v4156 = vadd.f32 %v4154, %v4155
      %v4157 = vsel %vm762, %v4113, 0.0
      %v4158 = vadd.f32 %v4156, %v4157
      %v4159 = vsel %vm762, %v4114, 0.0
      %v4160 = vadd.f32 %v4158, %v4159
      %v4161 = vsel %vm762, %v4115, 0.0
      %v4162 = vadd.f32 %v4160, %v4161
      %v4163 = vsel %vm762, %v4116, 0.0
      %v4164 = vadd.f32 %v4162, %v4163
      %v4165 = vsel %vm762, %v4117, 0.0
      %v4166 = vadd.f32 %v4164, %v4165
      %v4167 = vsel %vm762, %v4118, 0.0
      %v4168 = vadd.f32 %v4166, %v4167
      %v4169 = vsel %vm762, %v4119, 0.0
      %v4170 = vadd.f32 %v4168, %v4169
      %v4171 = vsel %vm762, %v4120, 0.0
      %v4172 = vadd.f32 %v4170, %v4171
      %v4173 = vsel %vm762, %v4121, 0.0
      %v4174 = vadd.f32 %v4172, %v4173
      %v4175 = vsel %vm762, %v4122, 0.0
      %v4176 = vadd.f32 %v4174, %v4175
      %v4177 = vsel %vm762, %v4123, 0.0
      %v4178 = vadd.f32 %v4176, %v4177
      %v4179 = vsel %vm762, %v4124, 0.0
      %v4180 = vadd.f32 %v4178, %v4179
      %v4181 = vsel %vm762, %v4125, 0.0
      %v4182 = vadd.f32 %v4180, %v4181
      %v4183 = vsel %vm762, %v4126, 0.0
      %v4184 = vadd.f32 %v4182, %v4183
      %v4185 = vsel %vm762, %v4127, 0.0
      %v4186 = vadd.f32 %v4184, %v4185
      %v4187 = vsel %vm762, %v4128, 0.0
      %v4188 = vadd.f32 %v4186, %v4187
      %v4189 = vsel %vm762, %v4129, 0.0
      %v4190 = vadd.f32 %v4188, %v4189
      %v4191 = vsel %vm762, %v4130, 0.0
      %v4192 = vadd.f32 %v4190, %v4191
      %v4193 = vsel %vm762, %v4131, 0.0
      %v4194 = vadd.f32 %v4192, %v4193
      %v4195 = vsel %vm762, %v4132, 0.0
      %v4196 = vadd.f32 %v4194, %v4195
      %v4197 = vsel %vm762, %v4133, 0.0
      %v4198 = vadd.f32 %v4196, %v4197
      %v4199 = vsel %vm762, %v4134, 0.0
      %v4200 = vadd.f32 %v4198, %v4199
      %v4201 = vsel %vm762, %v4135, 0.0
      %v4202 = vadd.f32 %v4200, %v4201
      %v4203 = vsel %vm762, %v4136, 0.0
      %v4204 = vadd.f32 %v4202, %v4203
      %v4205 = vsel %vm762, %v4137, 0.0
      %v4206 = vadd.f32 %v4204, %v4205
      %v4207 = vsel %vm762, %v4138, 0.0
      %v4208 = vadd.f32 %v4206, %v4207
      %v4209 = vsel %vm762, %v4139, 0.0
      %v4210 = vadd.f32 %v4208, %v4209
      %v4211 = vsel %vm762, %v4140, 0.0
      %v4212 = vadd.f32 %v4210, %v4211
      %v4213 = vsel %vm762, %v4141, 0.0
      %v4214 = vadd.f32 %v4212, %v4213
      %v4215 = vsel %vm762, %v4142, 0.0
      %v4216 = vadd.f32 %v4214, %v4215
      %v4217 = vsel %vm762, %v4143, 0.0
      %v4218 = vadd.f32 %v4216, %v4217
      %v4219 = vsel %vm762, %v4144, 0.0
      %v4220 = vadd.f32 %v4218, %v4219
      %v4221 = vsel %vm762, %v4145, 0.0
      %v4222 = vadd.f32 %v4220, %v4221
      %v4223 = vsel %vm762, %v4146, 0.0
      %v4224 = vadd.f32 %v4222, %v4223
      %v4225 = vsel %vm762, %v4147, 0.0
      %v4226 = vadd.f32 %v4224, %v4225
      %v4227 = vsel %vm762, %v4148, 0.0
      %v4228 = vadd.f32 %v4226, %v4227
      %v4229 = vsel %vm809, %v4149, 0.0
      %v4230 = vadd.f32 %v4228, %v4229
      %v4231 = vrot.slane %v4230, 4
      %v4232 = vadd.f32 %v4230, %v4231
      %v4233 = vrot.slane %v4232, 2
      %v4234 = vadd.f32 %v4232, %v4233
      %v4235 = vrot.slane %v4234, 1
      %v4236 = vadd.f32 %v4234, %v4235
      %vm4237 = vcmask 57344
      %4238 = vst.msk [vmem:[%s292] sm:$0x1] %vm4237, %v4236
      %v4239 = vmul.f32 %v4109, %v4109
      %v4240 = vmul.f32 %v4110, %v4110
      %v4241 = vmul.f32 %v4111, %v4111
      %v4242 = vmul.f32 %v4112, %v4112
      %v4243 = vmul.f32 %v4113, %v4113
      %v4244 = vmul.f32 %v4114, %v4114
      %v4245 = vmul.f32 %v4115, %v4115
      %v4246 = vmul.f32 %v4116, %v4116
      %v4247 = vmul.f32 %v4117, %v4117
      %v4248 = vmul.f32 %v4118, %v4118
      %v4249 = vmul.f32 %v4119, %v4119
      %v4250 = vmul.f32 %v4120, %v4120
      %v4251 = vmul.f32 %v4121, %v4121
      %v4252 = vmul.f32 %v4122, %v4122
      %v4253 = vmul.f32 %v4123, %v4123
      %v4254 = vmul.f32 %v4124, %v4124
      %v4255 = vmul.f32 %v4125, %v4125
      %v4256 = vmul.f32 %v4126, %v4126
      %v4257 = vmul.f32 %v4127, %v4127
      %v4258 = vmul.f32 %v4128, %v4128
      %v4259 = vmul.f32 %v4129, %v4129
      %v4260 = vmul.f32 %v4130, %v4130
      %v4261 = vmul.f32 %v4131, %v4131
      %v4262 = vmul.f32 %v4132, %v4132
      %v4263 = vmul.f32 %v4133, %v4133
      %v4264 = vmul.f32 %v4134, %v4134
      %v4265 = vmul.f32 %v4135, %v4135
      %v4266 = vmul.f32 %v4136, %v4136
      %v4267 = vmul.f32 %v4137, %v4137
      %v4268 = vmul.f32 %v4138, %v4138
      %v4269 = vmul.f32 %v4139, %v4139
      %v4270 = vmul.f32 %v4140, %v4140
      %v4271 = vmul.f32 %v4141, %v4141
      %v4272 = vmul.f32 %v4142, %v4142
      %v4273 = vmul.f32 %v4143, %v4143
      %v4274 = vmul.f32 %v4144, %v4144
      %v4275 = vmul.f32 %v4145, %v4145
      %v4276 = vmul.f32 %v4146, %v4146
      %v4277 = vmul.f32 %v4147, %v4147
      %v4278 = vmul.f32 %v4148, %v4148
      %v4279 = vmul.f32 %v4149, %v4149
      %v4280 = vsel %vm762, %v4239, 0.0
      %v4281 = vsel %vm762, %v4240, 0.0
      %v4282 = vadd.f32 %v4280, %v4281
      %v4283 = vsel %vm762, %v4241, 0.0
      %v4284 = vadd.f32 %v4282, %v4283
      %v4285 = vsel %vm762, %v4242, 0.0
      %v4286 = vadd.f32 %v4284, %v4285
      %v4287 = vsel %vm762, %v4243, 0.0
      %v4288 = vadd.f32 %v4286, %v4287
      %v4289 = vsel %vm762, %v4244, 0.0
      %v4290 = vadd.f32 %v4288, %v4289
      %v4291 = vsel %vm762, %v4245, 0.0
      %v4292 = vadd.f32 %v4290, %v4291
      %v4293 = vsel %vm762, %v4246, 0.0
      %v4294 = vadd.f32 %v4292, %v4293
      %v4295 = vsel %vm762, %v4247, 0.0
      %v4296 = vadd.f32 %v4294, %v4295
      %v4297 = vsel %vm762, %v4248, 0.0
      %v4298 = vadd.f32 %v4296, %v4297
      %v4299 = vsel %vm762, %v4249, 0.0
      %v4300 = vadd.f32 %v4298, %v4299
      %v4301 = vsel %vm762, %v4250, 0.0
      %v4302 = vadd.f32 %v4300, %v4301
      %v4303 = vsel %vm762, %v4251, 0.0
      %v4304 = vadd.f32 %v4302, %v4303
      %v4305 = vsel %vm762, %v4252, 0.0
      %v4306 = vadd.f32 %v4304, %v4305
      %v4307 = vsel %vm762, %v4253, 0.0
      %v4308 = vadd.f32 %v4306, %v4307
      %v4309 = vsel %vm762, %v4254, 0.0
      %v4310 = vadd.f32 %v4308, %v4309
      %v4311 = vsel %vm762, %v4255, 0.0
      %v4312 = vadd.f32 %v4310, %v4311
      %v4313 = vsel %vm762, %v4256, 0.0
      %v4314 = vadd.f32 %v4312, %v4313
      %v4315 = vsel %vm762, %v4257, 0.0
      %v4316 = vadd.f32 %v4314, %v4315
      %v4317 = vsel %vm762, %v4258, 0.0
      %v4318 = vadd.f32 %v4316, %v4317
      %v4319 = vsel %vm762, %v4259, 0.0
      %v4320 = vadd.f32 %v4318, %v4319
      %v4321 = vsel %vm762, %v4260, 0.0
      %v4322 = vadd.f32 %v4320, %v4321
      %v4323 = vsel %vm762, %v4261, 0.0
      %v4324 = vadd.f32 %v4322, %v4323
      %v4325 = vsel %vm762, %v4262, 0.0
      %v4326 = vadd.f32 %v4324, %v4325
      %v4327 = vsel %vm762, %v4263, 0.0
      %v4328 = vadd.f32 %v4326, %v4327
      %v4329 = vsel %vm762, %v4264, 0.0
      %v4330 = vadd.f32 %v4328, %v4329
      %v4331 = vsel %vm762, %v4265, 0.0
      %v4332 = vadd.f32 %v4330, %v4331
      %v4333 = vsel %vm762, %v4266, 0.0
      %v4334 = vadd.f32 %v4332, %v4333
      %v4335 = vsel %vm762, %v4267, 0.0
      %v4336 = vadd.f32 %v4334, %v4335
      %v4337 = vsel %vm762, %v4268, 0.0
      %v4338 = vadd.f32 %v4336, %v4337
      %v4339 = vsel %vm762, %v4269, 0.0
      %v4340 = vadd.f32 %v4338, %v4339
      %v4341 = vsel %vm762, %v4270, 0.0
      %v4342 = vadd.f32 %v4340, %v4341
      %v4343 = vsel %vm762, %v4271, 0.0
      %v4344 = vadd.f32 %v4342, %v4343
      %v4345 = vsel %vm762, %v4272, 0.0
      %v4346 = vadd.f32 %v4344, %v4345
      %v4347 = vsel %vm762, %v4273, 0.0
      %v4348 = vadd.f32 %v4346, %v4347
      %v4349 = vsel %vm762, %v4274, 0.0
      %v4350 = vadd.f32 %v4348, %v4349
      %v4351 = vsel %vm762, %v4275, 0.0
      %v4352 = vadd.f32 %v4350, %v4351
      %v4353 = vsel %vm762, %v4276, 0.0
      %v4354 = vadd.f32 %v4352, %v4353
      %v4355 = vsel %vm762, %v4277, 0.0
      %v4356 = vadd.f32 %v4354, %v4355
      %v4357 = vsel %vm762, %v4278, 0.0
      %v4358 = vadd.f32 %v4356, %v4357
      %v4359 = vsel %vm809, %v4279, 0.0
      %v4360 = vadd.f32 %v4358, %v4359
      %v4361 = vrot.slane %v4360, 4
      %v4362 = vadd.f32 %v4360, %v4361
      %v4363 = vrot.slane %v4362, 2
      %v4364 = vadd.f32 %v4362, %v4363
      %v4365 = vrot.slane %v4364, 1
      %v4366 = vadd.f32 %v4364, %v4365
      %4367 = vst.msk [vmem:[%s295] sm:$0x1] %vm4237, %v4366
      %p4368 = scmp.lt.s32.totalorder %s19, 1
      %s4369 = scalar_select %p4368, %s19, 1
      %s4370 = smul.addr %s4369, 41
      %s4371 = smul.addr %s4370, 8
      %s4372 = scalar_lea.vmem %s5, %s4371
      %p4373 = scmp.lt.s32.totalorder %s19, 1
      %s4374 = scalar_select %p4373, %s19, 1
      %s4375 = scalar_lea.vmem %s6, %s4374
      %p4376 = scmp.lt.s32.totalorder %s19, 1
      %s4377 = scalar_select %p4376, %s19, 1
      %s4378 = scalar_lea.vmem %s7, %s4377
      // Predicated region
      $region41: #{conv_block.4} parent=39 // pred_check
        %p4379 = pneg %p147
      $region42: #{conv_block.4} parent=39 // pred_check_branch
        %4381 = sbr.rel (%p4379) target = $region44
      $region43: #{conv_block.4} parent=39 // pred_region
        _
      $region44: #{conv_block.4} parent=39 // pred_fallthru
        _
      // Predicated region
      $region45: #{conv_block.4} parent=39 // pred_check
        %p4382 = pneg %p173
      $region46: #{conv_block.4} parent=39 // pred_check_branch
        %4384 = sbr.rel (%p4382) target = $region48
      $region47: #{conv_block.4} parent=39 // pred_region
        _
      $region48: #{conv_block.4} parent=39 // pred_fallthru
        _
      // Predicated region
      $region49: #{conv_block.4} parent=39 // pred_check
        %p4385 = pneg %p199
      $region50: #{conv_block.4} parent=39 // pred_check_branch
        %4387 = sbr.rel (%p4385) target = $region52
      $region51: #{conv_block.4} parent=39 // pred_region
        _
      $region52: #{conv_block.4} parent=39 // pred_fallthru
        _
    $region40: #{conv_block.4} parent=5 // pred_fallthru
      _
    %p4388 = scmp.le.s32.totalorder 2, %s14
    // Predicated region
    $region53: #{conv_block.4} parent=5 // pred_check
      %p4389 = pneg %p4388
    $region54: #{conv_block.4} parent=5 // pred_check_branch
      %4391 = sbr.rel (%p4389) target = $region56
    $region55: #{conv_block.4} parent=5 // pred_region
      %s4392 = ssub.s32 %s14, 2
      // Predicated region
      $region57: #{conv_block.4} parent=55 // pred_check
        %p4393 = pneg %p153
      $region58: #{conv_block.4} parent=55 // pred_check_branch
        %4395 = sbr.rel (%p4393) target = $region60
      $region59: #{conv_block.4} parent=55 // pred_region
        %p4396 = scmp.lt.s32.totalorder %s20, 1
        %s4397 = scalar_select %p4396, %s20, 1
        %s4398 = smul.addr %s4397, 41
        %s4399 = smul.addr %s4398, 8
        %s4400 = scalar_lea.vmem %s5, %s4399
      $region60: #{conv_block.4} parent=55 // pred_fallthru
        _
      // Predicated region
      $region61: #{conv_block.4} parent=55 // pred_check
        %p4401 = pneg %p179
      $region62: #{conv_block.4} parent=55 // pred_check_branch
        %4403 = sbr.rel (%p4401) target = $region64
      $region63: #{conv_block.4} parent=55 // pred_region
        %p4404 = scmp.lt.s32.totalorder %s20, 1
        %s4405 = scalar_select %p4404, %s20, 1
        %s4406 = scalar_lea.vmem %s6, %s4405
      $region64: #{conv_block.4} parent=55 // pred_fallthru
        _
      // Predicated region
      $region65: #{conv_block.4} parent=55 // pred_check
        %p4407 = pneg %p205
      $region66: #{conv_block.4} parent=55 // pred_check_branch
        %4409 = sbr.rel (%p4407) target = $region68
      $region67: #{conv_block.4} parent=55 // pred_region
        %p4410 = scmp.lt.s32.totalorder %s20, 1
        %s4411 = scalar_select %p4410, %s20, 1
        %s4412 = scalar_lea.vmem %s7, %s4411
      $region68: #{conv_block.4} parent=55 // pred_fallthru
        _
    $region56: #{conv_block.4} parent=5 // pred_fallthru
      _
  $region6: #{conv_block.4} parent=0 // loop_footer
    %s18 = sadd.s32 1, %s14
  $region7: #{conv_block.4} parent=0 // loop_footer_branch
    %13 = sbr.rel target = $region3
  $region8: #{conv_block.4} parent=0 // loop_exit
    _

// kernel: conv_block.3
$region0: #{conv_block.3}
  #allocation0 [shape = 'u32[]', space=smem, size = 0x4, offset = 0x4, fixed_abs, tag = 'smem constant byte address 0x4 - core index']
  #allocation1 [shape = 'u32[144,128]{1,0:T(1,128)}', space=vmem, size = 0x12000, scoped, tag = 'internal scratch']
  %s0 = inlined_call_operand.vmem [shape: f32[2,372,4], index: 0, kind: input, shape index: {}]
  %s1 = inlined_call_operand.vmem [shape: bf16[9,4,8], index: 1, kind: input, shape index: {}]
  %s2 = inlined_call_operand.vmem [shape: f32[324,1], index: 2, kind: input, shape index: {}]
  %s3 = inlined_call_operand.vmem [shape: f32[2,324,8], index: 3, kind: output, shape index: {0}]
  %s4 = inlined_call_operand.vmem [shape: f32[2,1,8], index: 4, kind: output, shape index: {1}]
  %s5 = inlined_call_operand.vmem [shape: f32[2,1,8], index: 5, kind: output, shape index: {2}]
  %6 = xla_tuple %s3, %s4, %s5
  %s7 = sld [smem:[#allocation0]]
  $region61: #{conv_block.3} parent=0
    _
  %s9 = ssub.s32 1, %s7
  %s10 = scalar_select 0, %s9, %s7
  loop: start=0, step=1, limit=4
  $region2: #{conv_block.3} parent=0 // loop_pre_header
    _
  $region3: #{conv_block.3} parent=0 // loop_header
    %s12 = sphi 0, %s16
    %p13 = scmp.ge.s32.totalorder %s12, 4
    %s22 = sphi 0, %s24
    %s25 = sphi 0, %s22
    %s26 = sphi 0, %s25
    %s42 = sphi 0, %s26
    %s46 = sphi 0, %s46
    %s48 = sphi 0, %s46
    %s49 = sphi 0, %s48
    %s63 = sphi 0, %s49
    %s67 = sphi 0, %s67
    %s69 = sphi 0, %s67
    %s70 = sphi 0, %s69
    %s84 = sphi 0, %s70
    %s90 = sphi 0, %s92
    %s93 = sphi 0, %s90
    %s94 = sphi 0, %s93
    %s110 = sphi 0, %s94
    %s116 = sphi 0, %s118
    %s119 = sphi 0, %s116
    %s120 = sphi 0, %s119
    %s136 = sphi 0, %s120
    %s142 = sphi 0, %s144
    %s145 = sphi 0, %s142
    %s146 = sphi 0, %s145
    %s162 = sphi 0, %s146
  $region4: #{conv_block.3} parent=0 // loop_header_branch
    %15 = sbr.rel (%p13) target = $region8
  $region5: #{conv_block.3} parent=0 // loop_body
    %s17 = ssub.s32 %s12, 1
    %s18 = ssub.s32 %s12, 2
    %s19 = sadd.s32 %s12, 1
    %s20 = ssub.s32 %s12, %s19
    %p21 = scmp.eq.s32.totalorder %s20, 0
    %s23 = sadd.s32 %s22, 1
    %s24 = scalar_select %p21, %s22, %s23
    %p27 = pneg %p21
    %p28 = scmp.eq.s32.totalorder %s12, 1
    %p29 = por %p27, %p28
    %p30 = scmp.ne.s32.totalorder %s22, %s25
    %p31 = scmp.eq.s32.totalorder %s12, 0
    %p32 = por %p30, %p31
    %p33 = scmp.ne.s32.totalorder %s22, %s25
    %p34 = scmp.eq.s32.totalorder %s17, 1
    %p35 = por %p33, %p34
    %p36 = scmp.ne.s32.totalorder %s25, %s26
    %p37 = scmp.eq.s32.totalorder %s17, 0
    %p38 = por %p36, %p37
    %p39 = scmp.ne.s32.totalorder %s25, %s26
    %p40 = scmp.eq.s32.totalorder %s18, 1
    %p41 = por %p39, %p40
    %p43 = scmp.ne.s32.totalorder %s26, %s42
    %p44 = scmp.eq.s32.totalorder %s18, 0
    %p45 = por %p43, %p44
    %s47 = sadd.s32 %s46, 1
    %p50 = scmp.eq.s32.totalorder %s12, 1
    %p51 = scmp.ne.s32.totalorder %s46, %s48
    %p52 = scmp.eq.s32.totalorder %s12, 0
    %p53 = por %p51, %p52
    %p54 = scmp.ne.s32.totalorder %s46, %s48
    %p55 = scmp.eq.s32.totalorder %s17, 1
    %p56 = por %p54, %p55
    %p57 = scmp.ne.s32.totalorder %s48, %s49
    %p58 = scmp.eq.s32.totalorder %s17, 0
    %p59 = por %p57, %p58
    %p60 = scmp.ne.s32.totalorder %s48, %s49
    %p61 = scmp.eq.s32.totalorder %s18, 1
    %p62 = por %p60, %p61
    %p64 = scmp.ne.s32.totalorder %s49, %s63
    %p65 = scmp.eq.s32.totalorder %s18, 0
    %p66 = por %p64, %p65
    %s68 = sadd.s32 %s67, 1
    %p71 = scmp.eq.s32.totalorder %s12, 1
    %p72 = scmp.ne.s32.totalorder %s67, %s69
    %p73 = scmp.eq.s32.totalorder %s12, 0
    %p74 = por %p72, %p73
    %p75 = scmp.ne.s32.totalorder %s67, %s69
    %p76 = scmp.eq.s32.totalorder %s17, 1
    %p77 = por %p75, %p76
    %p78 = scmp.ne.s32.totalorder %s69, %s70
    %p79 = scmp.eq.s32.totalorder %s17, 0
    %p80 = por %p78, %p79
    %p81 = scmp.ne.s32.totalorder %s69, %s70
    %p82 = scmp.eq.s32.totalorder %s18, 1
    %p83 = por %p81, %p82
    %p85 = scmp.ne.s32.totalorder %s70, %s84
    %p86 = scmp.eq.s32.totalorder %s18, 0
    %p87 = por %p85, %p86
    %s88 = ssub.s32 %s12, %s19
    %p89 = scmp.eq.s32.totalorder %s88, 0
    %s91 = sadd.s32 %s90, 1
    %s92 = scalar_select %p89, %s90, %s91
    %p95 = pneg %p89
    %p96 = scmp.eq.s32.totalorder %s12, 1
    %p97 = por %p95, %p96
    %p98 = scmp.ne.s32.totalorder %s90, %s93
    %p99 = scmp.eq.s32.totalorder %s12, 0
    %p100 = por %p98, %p99
    %p101 = scmp.ne.s32.totalorder %s90, %s93
    %p102 = scmp.eq.s32.totalorder %s17, 1
    %p103 = por %p101, %p102
    %p104 = scmp.ne.s32.totalorder %s93, %s94
    %p105 = scmp.eq.s32.totalorder %s17, 0
    %p106 = por %p104, %p105
    %p107 = scmp.ne.s32.totalorder %s93, %s94
    %p108 = scmp.eq.s32.totalorder %s18, 1
    %p109 = por %p107, %p108
    %p111 = scmp.ne.s32.totalorder %s94, %s110
    %p112 = scmp.eq.s32.totalorder %s18, 0
    %p113 = por %p111, %p112
    %s114 = ssub.s32 %s12, %s19
    %p115 = scmp.eq.s32.totalorder %s114, 0
    %s117 = sadd.s32 %s116, 1
    %s118 = scalar_select %p115, %s116, %s117
    %p121 = pneg %p115
    %p122 = scmp.eq.s32.totalorder %s12, 1
    %p123 = por %p121, %p122
    %p124 = scmp.ne.s32.totalorder %s116, %s119
    %p125 = scmp.eq.s32.totalorder %s12, 0
    %p126 = por %p124, %p125
    %p127 = scmp.ne.s32.totalorder %s116, %s119
    %p128 = scmp.eq.s32.totalorder %s17, 1
    %p129 = por %p127, %p128
    %p130 = scmp.ne.s32.totalorder %s119, %s120
    %p131 = scmp.eq.s32.totalorder %s17, 0
    %p132 = por %p130, %p131
    %p133 = scmp.ne.s32.totalorder %s119, %s120
    %p134 = scmp.eq.s32.totalorder %s18, 1
    %p135 = por %p133, %p134
    %p137 = scmp.ne.s32.totalorder %s120, %s136
    %p138 = scmp.eq.s32.totalorder %s18, 0
    %p139 = por %p137, %p138
    %s140 = ssub.s32 %s12, %s19
    %p141 = scmp.eq.s32.totalorder %s140, 0
    %s143 = sadd.s32 %s142, 1
    %s144 = scalar_select %p141, %s142, %s143
    %p147 = pneg %p141
    %p148 = scmp.eq.s32.totalorder %s12, 1
    %p149 = por %p147, %p148
    %p150 = scmp.ne.s32.totalorder %s142, %s145
    %p151 = scmp.eq.s32.totalorder %s12, 0
    %p152 = por %p150, %p151
    %p153 = scmp.ne.s32.totalorder %s142, %s145
    %p154 = scmp.eq.s32.totalorder %s17, 1
    %p155 = por %p153, %p154
    %p156 = scmp.ne.s32.totalorder %s145, %s146
    %p157 = scmp.eq.s32.totalorder %s17, 0
    %p158 = por %p156, %p157
    %p159 = scmp.ne.s32.totalorder %s145, %s146
    %p160 = scmp.eq.s32.totalorder %s18, 1
    %p161 = por %p159, %p160
    %p163 = scmp.ne.s32.totalorder %s146, %s162
    %p164 = scmp.eq.s32.totalorder %s18, 0
    %p165 = por %p163, %p164
    %p166 = scmp.le.s32.totalorder 1, %s12
    %p167 = scmp.lt.s32.totalorder %s12, 3
    %p168 = pnand %p166, %p167
    %p169 = pneg %p168
    // Predicated region
    $region9: #{conv_block.3} parent=5 // pred_check
      _
    $region10: #{conv_block.3} parent=5 // pred_check_branch
      %171 = sbr.rel (%p168) target = $region12
    $region11: #{conv_block.3} parent=5 // pred_region
      %s172 = ssub.s32 %s12, 1
      // Predicated region
      $region13: #{conv_block.3} parent=11 // pred_check
        %p173 = pneg %p59
      $region14: #{conv_block.3} parent=11 // pred_check_branch
        %175 = sbr.rel (%p173) target = $region16
      $region15: #{conv_block.3} parent=11 // pred_region
        _
      $region16: #{conv_block.3} parent=11 // pred_fallthru
        _
      // Predicated region
      $region17: #{conv_block.3} parent=11 // pred_check
        %p176 = pneg %p80
      $region18: #{conv_block.3} parent=11 // pred_check_branch
        %178 = sbr.rel (%p176) target = $region20
      $region19: #{conv_block.3} parent=11 // pred_region
        _
      $region20: #{conv_block.3} parent=11 // pred_fallthru
        _
    $region12: #{conv_block.3} parent=5 // pred_fallthru
      _
    %p179 = scmp.lt.s32.totalorder %s12, 2
    // Predicated region
    $region21: #{conv_block.3} parent=5 // pred_check
      %p180 = pneg %p179
    $region22: #{conv_block.3} parent=5 // pred_check_branch
      %182 = sbr.rel (%p180) target = $region24
    $region23: #{conv_block.3} parent=5 // pred_region
      // Predicated region
      $region25: #{conv_block.3} parent=23 // pred_check
        %p183 = pneg %p32
      $region26: #{conv_block.3} parent=23 // pred_check_branch
        %185 = sbr.rel (%p183) target = $region28
      $region27: #{conv_block.3} parent=23 // pred_region
        %p186 = scmp.lt.s32.totalorder %s12, 1
        %s187 = scalar_select %p186, %s12, 1
        %s188 = smul.addr %s187, 47
        %s189 = smul.addr %s188, 8
        %s190 = scalar_lea.vmem %s0, %s189
      $region28: #{conv_block.3} parent=23 // pred_fallthru
        _
    $region24: #{conv_block.3} parent=5 // pred_fallthru
      _
    %p191 = scmp.le.s32.totalorder 1, %s12
    %p192 = scmp.lt.s32.totalorder %s12, 3
    %p193 = pnand %p191, %p192
    %p194 = pneg %p193
    // Predicated region
    $region29: #{conv_block.3} parent=5 // pred_check
      _
    $region30: #{conv_block.3} parent=5 // pred_check_branch
      %196 = sbr.rel (%p193) target = $region32
    $region31: #{conv_block.3} parent=5 // pred_region
      %s197 = ssub.s32 %s12, 1
      %p198 = scmp.lt.s32.totalorder %s17, 1
      %s199 = scalar_select %p198, %s17, 1
      %s200 = smul.addr %s199, 47
      %s201 = smul.addr %s200, 8
      %s202 = scalar_lea.vmem %s0, %s201
      %p203 = pneg %p38
      %p204 = pneg %p35
      %p205 = pneg %p59
      %p206 = pneg %p56
      %p207 = pneg %p80
      %p208 = pneg %p77
      %p209 = pneg %p106
      %p210 = pneg %p103
      %p211 = scmp.lt.s32.totalorder %s17, 1
      %s212 = scalar_select %p211, %s17, 1
      %s213 = smul.addr %s212, 41
      %s214 = smul.addr %s213, 8
      %s215 = scalar_lea.vmem %s3, %s214
      %p216 = pneg %p132
      %p217 = pneg %p129
      %p218 = scmp.lt.s32.totalorder %s17, 1
      %s219 = scalar_select %p218, %s17, 1
      %s220 = scalar_lea.vmem %s4, %s219
      %p221 = pneg %p158
      %p222 = pneg %p155
      %p223 = scmp.lt.s32.totalorder %s17, 1
      %s224 = scalar_select %p223, %s17, 1
      %s225 = scalar_lea.vmem %s5, %s224
      %p226 = scmp.lt.s32.totalorder %s17, 1
      %s227 = scalar_select %p226, %s17, 1
      %s228 = smul.addr %s227, 47
      %s229 = smul.addr %s228, 8
      %s230 = scalar_lea.vmem %s0, %s229
      %p231 = scmp.lt.s32.totalorder %s17, 1
      %s232 = scalar_select %p231, %s17, 1
      %s233 = smul.addr %s232, 41
      %s234 = smul.addr %s233, 8
      %s235 = scalar_lea.vmem %s3, %s234
      %p236 = scmp.lt.s32.totalorder %s17, 1
      %s237 = scalar_select %p236, %s17, 1
      %s238 = scalar_lea.vmem %s4, %s237
      %p239 = scmp.lt.s32.totalorder %s17, 1
      %s240 = scalar_select %p239, %s17, 1
      %s241 = scalar_lea.vmem %s5, %s240
      %v243 = vld [vmem:[%s230 + $0x5] sm:$0xff]
      %v244 = vld [vmem:[%s230 + $0xd] sm:$0xff]
      %v245 = vld [vmem:[%s230 + $0x15] sm:$0xff]
      %v246 = vld [vmem:[%s230 + $0x1d] sm:$0xff]
      %v247 = vld [vmem:[%s230 + $0x25] sm:$0xff]
      %v248 = vld [vmem:[%s230 + $0x2d] sm:$0xff]
      %v249 = vld [vmem:[%s230 + $0x35] sm:$0xff]
      %v250 = vld [vmem:[%s230 + $0x3d] sm:$0xff]
      %v251 = vld [vmem:[%s230 + $0x45] sm:$0xff]
      %v252 = vld [vmem:[%s230 + $0x4d] sm:$0xff]
      %v253 = vld [vmem:[%s230 + $0x55] sm:$0xff]
      %v254 = vld [vmem:[%s230 + $0x5d] sm:$0xff]
      %v255 = vld [vmem:[%s230 + $0x65] sm:$0xff]
      %v256 = vld [vmem:[%s230 + $0x6d] sm:$0xff]
      %v257 = vld [vmem:[%s230 + $0x75] sm:$0xff]
      %v258 = vld [vmem:[%s230 + $0x7d] sm:$0xff]
      %v259 = vld [vmem:[%s230 + $0x85] sm:$0xff]
      %v260 = vld [vmem:[%s230 + $0x8d] sm:$0xff]
      %v261 = vld [vmem:[%s230 + $0x95] sm:$0xff]
      %v262 = vld [vmem:[%s230 + $0x9d] sm:$0xff]
      %v263 = vld [vmem:[%s230 + $0xa5] sm:$0xff]
      %v264 = vld [vmem:[%s230 + $0xad] sm:$0xff]
      %v265 = vld [vmem:[%s230 + $0xb5] sm:$0xff]
      %v266 = vld [vmem:[%s230 + $0xbd] sm:$0xff]
      %v267 = vld [vmem:[%s230 + $0xc5] sm:$0xff]
      %v268 = vld [vmem:[%s230 + $0xcd] sm:$0xff]
      %v269 = vld [vmem:[%s230 + $0xd5] sm:$0xff]
      %v270 = vld [vmem:[%s230 + $0xdd] sm:$0xff]
      %v271 = vld [vmem:[%s230 + $0xe5] sm:$0xff]
      %v272 = vld [vmem:[%s230 + $0xed] sm:$0xff]
      %v273 = vld [vmem:[%s230 + $0xf5] sm:$0xff]
      %v274 = vld [vmem:[%s230 + $0xfd] sm:$0xff]
      %v275 = vld [vmem:[%s230 + $0x105] sm:$0xff]
      %v276 = vld [vmem:[%s230 + $0x10d] sm:$0xff]
      %v277 = vld [vmem:[%s230 + $0x115] sm:$0xff]
      %v278 = vld [vmem:[%s230 + $0x11d] sm:$0xff]
      %v279 = vld [vmem:[%s230 + $0x125] sm:$0xff]
      %v280 = vld [vmem:[%s230 + $0x12d] sm:$0xff]
      %v281 = vld [vmem:[%s230 + $0x135] sm:$0xff]
      %v282 = vld [vmem:[%s230 + $0x13d] sm:$0xff]
      %v283 = vld [vmem:[%s230 + $0x145] sm:$0xf]
      %v284 = vpack.c.bf16 %v244, %v243
      %v285 = vpack.c.bf16 %v246, %v245
      %v286 = vpack.c.bf16 %v248, %v247
      %v287 = vpack.c.bf16 %v250, %v249
      %v288 = vpack.c.bf16 %v252, %v251
      %v289 = vpack.c.bf16 %v254, %v253
      %v290 = vpack.c.bf16 %v256, %v255
      %v291 = vpack.c.bf16 %v258, %v257
      %v292 = vpack.c.bf16 %v260, %v259
      %v293 = vpack.c.bf16 %v262, %v261
      %v294 = vpack.c.bf16 %v264, %v263
      %v295 = vpack.c.bf16 %v266, %v265
      %v296 = vpack.c.bf16 %v268, %v267
      %v297 = vpack.c.bf16 %v270, %v269
      %v298 = vpack.c.bf16 %v272, %v271
      %v299 = vpack.c.bf16 %v274, %v273
      %v300 = vpack.c.bf16 %v276, %v275
      %v301 = vpack.c.bf16 %v278, %v277
      %v302 = vpack.c.bf16 %v280, %v279
      %v303 = vpack.c.bf16 %v282, %v281
      %v304 = vpack.c.bf16 %v283, %v283
      %v305 = vld [vmem:[%s1] sm:$0x3]
      %v306 = vld [vmem:[%s230 + $0x6] sm:$0xff]
      %v307 = vld [vmem:[%s230 + $0xe] sm:$0xff]
      %v308 = vld [vmem:[%s230 + $0x16] sm:$0xff]
      %v309 = vld [vmem:[%s230 + $0x1e] sm:$0xff]
      %v310 = vld [vmem:[%s230 + $0x26] sm:$0xff]
      %v311 = vld [vmem:[%s230 + $0x2e] sm:$0xff]
      %v312 = vld [vmem:[%s230 + $0x36] sm:$0xff]
      %v313 = vld [vmem:[%s230 + $0x3e] sm:$0xff]
      %v314 = vld [vmem:[%s230 + $0x46] sm:$0xff]
      %v315 = vld [vmem:[%s230 + $0x4e] sm:$0xff]
      %v316 = vld [vmem:[%s230 + $0x56] sm:$0xff]
      %v317 = vld [vmem:[%s230 + $0x5e] sm:$0xff]
      %v318 = vld [vmem:[%s230 + $0x66] sm:$0xff]
      %v319 = vld [vmem:[%s230 + $0x6e] sm:$0xff]
      %v320 = vld [vmem:[%s230 + $0x76] sm:$0xff]
      %v321 = vld [vmem:[%s230 + $0x7e] sm:$0xff]
      %v322 = vld [vmem:[%s230 + $0x86] sm:$0xff]
      %v323 = vld [vmem:[%s230 + $0x8e] sm:$0xff]
      %v324 = vld [vmem:[%s230 + $0x96] sm:$0xff]
      %v325 = vld [vmem:[%s230 + $0x9e] sm:$0xff]
      %v326 = vld [vmem:[%s230 + $0xa6] sm:$0xff]
      %v327 = vld [vmem:[%s230 + $0xae] sm:$0xff]
      %v328 = vld [vmem:[%s230 + $0xb6] sm:$0xff]
      %v329 = vld [vmem:[%s230 + $0xbe] sm:$0xff]
      %v330 = vld [vmem:[%s230 + $0xc6] sm:$0xff]
      %v331 = vld [vmem:[%s230 + $0xce] sm:$0xff]
      %v332 = vld [vmem:[%s230 + $0xd6] sm:$0xff]
      %v333 = vld [vmem:[%s230 + $0xde] sm:$0xff]
      %v334 = vld [vmem:[%s230 + $0xe6] sm:$0xff]
      %v335 = vld [vmem:[%s230 + $0xee] sm:$0xff]
      %v336 = vld [vmem:[%s230 + $0xf6] sm:$0xff]
      %v337 = vld [vmem:[%s230 + $0xfe] sm:$0xff]
      %v338 = vld [vmem:[%s230 + $0x106] sm:$0xff]
      %v339 = vld [vmem:[%s230 + $0x10e] sm:$0xff]
      %v340 = vld [vmem:[%s230 + $0x116] sm:$0xff]
      %v341 = vld [vmem:[%s230 + $0x11e] sm:$0xff]
      %v342 = vld [vmem:[%s230 + $0x126] sm:$0xff]
      %v343 = vld [vmem:[%s230 + $0x12e] sm:$0xff]
      %v344 = vld [vmem:[%s230 + $0x136] sm:$0xff]
      %v345 = vld [vmem:[%s230 + $0x13e] sm:$0xff]
      %v346 = vld [vmem:[%s230 + $0x146] sm:$0xf]
      %v347 = vpack.c.bf16 %v307, %v306
      %v348 = vpack.c.bf16 %v309, %v308
      %v349 = vpack.c.bf16 %v311, %v310
      %v350 = vpack.c.bf16 %v313, %v312
      %v351 = vpack.c.bf16 %v315, %v314
      %v352 = vpack.c.bf16 %v317, %v316
      %v353 = vpack.c.bf16 %v319, %v318
      %v354 = vpack.c.bf16 %v321, %v320
      %v355 = vpack.c.bf16 %v323, %v322
      %v356 = vpack.c.bf16 %v325, %v324
      %v357 = vpack.c.bf16 %v327, %v326
      %v358 = vpack.c.bf16 %v329, %v328
      %v359 = vpack.c.bf16 %v331, %v330
      %v360 = vpack.c.bf16 %v333, %v332
      %v361 = vpack.c.bf16 %v335, %v334
      %v362 = vpack.c.bf16 %v337, %v336
      %v363 = vpack.c.bf16 %v339, %v338
      %v364 = vpack.c.bf16 %v341, %v340
      %v365 = vpack.c.bf16 %v343, %v342
      %v366 = vpack.c.bf16 %v345, %v344
      %v367 = vpack.c.bf16 %v346, %v346
      %s368 = scalar_lea.vmem %s1, 2
      %v369 = vld [vmem:[%s368] sm:$0x3]
      %vm370 = vcmask 31744
      %v372 = vsel %vm370, %v347, 0
      %v375 = vsel %vm370, %v348, 0
      %v378 = vsel %vm370, %v349, 0
      %v381 = vsel %vm370, %v350, 0
      %v384 = vsel %vm370, %v351, 0
      %v387 = vsel %vm370, %v352, 0
      %v390 = vsel %vm370, %v353, 0
      %v393 = vsel %vm370, %v354, 0
      %v396 = vsel %vm370, %v355, 0
      %v399 = vsel %vm370, %v356, 0
      %v402 = vsel %vm370, %v357, 0
      %v405 = vsel %vm370, %v358, 0
      %v408 = vsel %vm370, %v359, 0
      %v411 = vsel %vm370, %v360, 0
      %v414 = vsel %vm370, %v361, 0
      %v417 = vsel %vm370, %v362, 0
      %v420 = vsel %vm370, %v363, 0
      %v423 = vsel %vm370, %v364, 0
      %v426 = vsel %vm370, %v365, 0
      %v429 = vsel %vm370, %v366, 0
      %v432 = vsel %vm370, %v367, 0
      %vm434 = vcmask 1041408
      %v436 = vsel %vm434, %v369, 0
      %438 = vmatprep.subr.bf16.mxu0 0
      %439 = vmatpush1.bf16.msra.mxu0 0
      %440 = vmatprep.subr.bf16.mxu0 0
      %441 = vmatpush1.bf16.msra.mxu0 0
      %442 = vmatprep.subr.bf16.mxu0 0
      %443 = vmatpush1.bf16.msra.mxu0 0
      %444 = vmatprep.subr.bf16.mxu0 0
      %445 = vmatpush1.bf16.msra.mxu0 0
      %446 = vmatprep.subr.bf16.mxu0 0
      %447 = vmatpush1.bf16.msra.mxu0 0
      %448 = vmatprep.subr.bf16.mxu0 0
      %449 = vmatpush1.bf16.msra.mxu0 0
      %450 = vmatprep.subr.bf16.mxu0 0
      %451 = vmatpush1.bf16.msra.mxu0 0
      %452 = vmatprep.subr.bf16.mxu0 0
      %453 = vmatpush1.bf16.msra.mxu0 %v436
      %454 = vmatprep.subr.bf16.mxu0 0
      %455 = vmatpush2.bf16.msra.mxu0 0
      %456 = vmatprep.subr.bf16.mxu0 0
      %457 = vmatpush2.bf16.msra.mxu0 0
      %458 = vmatprep.subr.bf16.mxu0 0
      %459 = vmatpush2.bf16.msra.mxu0 0
      %460 = vmatprep.subr.bf16.mxu0 0
      %461 = vmatpush2.bf16.msra.mxu0 0
      %462 = vmatprep.subr.bf16.mxu0 0
      %463 = vmatpush2.bf16.msra.mxu0 0
      %464 = vmatprep.subr.bf16.mxu0 0
      %465 = vmatpush2.bf16.msra.mxu0 0
      %466 = vmatprep.subr.bf16.mxu0 0
      %467 = vmatpush2.bf16.msra.mxu0 0
      %468 = vmatprep.subr.bf16.mxu0 0
      %469 = vmatpush2.bf16.msra.mxu0 0
      %470 = vmatprep.mubr.bf16.mxu0 0
      %471 = vmatmul.mubr.bf16.gmra.mxu0 %v372
      %v472 = vpop.f32.mrf.mxu0
      %v473 = vadd.f32 0.0, %v472
      %v474 = vpop.f32.mrf.mxu0
      %v475 = vpop.f32.mrf.mxu0
      %v476 = vadd.f32 0.0, %v475
      %v477 = vpop.f32.mrf.mxu0
      %478 = vmatprep.mubr.bf16.mxu0 0
      %479 = vmatmul.mubr.bf16.gmra.mxu0 %v375
      %v480 = vpop.f32.mrf.mxu0
      %v481 = vadd.f32 0.0, %v480
      %v482 = vpop.f32.mrf.mxu0
      %v483 = vpop.f32.mrf.mxu0
      %v484 = vadd.f32 0.0, %v483
      %v485 = vpop.f32.mrf.mxu0
      %486 = vmatprep.mubr.bf16.mxu0 0
      %487 = vmatmul.mubr.bf16.gmra.mxu0 %v378
      %v488 = vpop.f32.mrf.mxu0
      %v489 = vadd.f32 0.0, %v488
      %v490 = vpop.f32.mrf.mxu0
      %v491 = vpop.f32.mrf.mxu0
      %v492 = vadd.f32 0.0, %v491
      %v493 = vpop.f32.mrf.mxu0
      %494 = vmatprep.mubr.bf16.mxu0 0
      %495 = vmatmul.mubr.bf16.gmra.mxu0 %v381
      %v496 = vpop.f32.mrf.mxu0
      %v497 = vadd.f32 0.0, %v496
      %v498 = vpop.f32.mrf.mxu0
      %v499 = vpop.f32.mrf.mxu0
      %v500 = vadd.f32 0.0, %v499
      %v501 = vpop.f32.mrf.mxu0
      %502 = vmatprep.mubr.bf16.mxu0 0
      %503 = vmatmul.mubr.bf16.gmra.mxu0 %v384
      %v504 = vpop.f32.mrf.mxu0
      %v505 = vadd.f32 0.0, %v504
      %v506 = vpop.f32.mrf.mxu0
      %v507 = vpop.f32.mrf.mxu0
      %v508 = vadd.f32 0.0, %v507
      %v509 = vpop.f32.mrf.mxu0
      %510 = vmatprep.mubr.bf16.mxu0 0
      %511 = vmatmul.mubr.bf16.gmra.mxu0 %v387
      %v512 = vpop.f32.mrf.mxu0
      %v513 = vadd.f32 0.0, %v512
      %v514 = vpop.f32.mrf.mxu0
      %v515 = vpop.f32.mrf.mxu0
      %v516 = vadd.f32 0.0, %v515
      %v517 = vpop.f32.mrf.mxu0
      %518 = vmatprep.mubr.bf16.mxu0 0
      %519 = vmatmul.mubr.bf16.gmra.mxu0 %v390
      %v520 = vpop.f32.mrf.mxu0
      %v521 = vadd.f32 0.0, %v520
      %v522 = vpop.f32.mrf.mxu0
      %v523 = vpop.f32.mrf.mxu0
      %v524 = vadd.f32 0.0, %v523
      %v525 = vpop.f32.mrf.mxu0
      %526 = vmatprep.mubr.bf16.mxu0 0
      %527 = vmatmul.mubr.bf16.gmra.mxu0 %v393
      %v528 = vpop.f32.mrf.mxu0
      %v529 = vadd.f32 0.0, %v528
      %v530 = vpop.f32.mrf.mxu0
      %v531 = vpop.f32.mrf.mxu0
      %v532 = vadd.f32 0.0, %v531
      %v533 = vpop.f32.mrf.mxu0
      %534 = vmatprep.mubr.bf16.mxu0 0
      %535 = vmatmul.mubr.bf16.gmra.mxu0 %v396
      %v536 = vpop.f32.mrf.mxu0
      %v537 = vadd.f32 0.0, %v536
      %v538 = vpop.f32.mrf.mxu0
      %v539 = vpop.f32.mrf.mxu0
      %v540 = vadd.f32 0.0, %v539
      %v541 = vpop.f32.mrf.mxu0
      %542 = vmatprep.mubr.bf16.mxu0 0
      %543 = vmatmul.mubr.bf16.gmra.mxu0 %v399
      %v544 = vpop.f32.mrf.mxu0
      %v545 = vadd.f32 0.0, %v544
      %v546 = vpop.f32.mrf.mxu0
      %v547 = vpop.f32.mrf.mxu0
      %v548 = vadd.f32 0.0, %v547
      %v549 = vpop.f32.mrf.mxu0
      %550 = vmatprep.mubr.bf16.mxu0 0
      %551 = vmatmul.mubr.bf16.gmra.mxu0 %v402
      %v552 = vpop.f32.mrf.mxu0
      %v553 = vadd.f32 0.0, %v552
      %v554 = vpop.f32.mrf.mxu0
      %v555 = vpop.f32.mrf.mxu0
      %v556 = vadd.f32 0.0, %v555
      %v557 = vpop.f32.mrf.mxu0
      %558 = vmatprep.mubr.bf16.mxu0 0
      %559 = vmatmul.mubr.bf16.gmra.mxu0 %v405
      %v560 = vpop.f32.mrf.mxu0
      %v561 = vadd.f32 0.0, %v560
      %v562 = vpop.f32.mrf.mxu0
      %v563 = vpop.f32.mrf.mxu0
      %v564 = vadd.f32 0.0, %v563
      %v565 = vpop.f32.mrf.mxu0
      %566 = vmatprep.mubr.bf16.mxu0 0
      %567 = vmatmul.mubr.bf16.gmra.mxu0 %v408
      %v568 = vpop.f32.mrf.mxu0
      %v569 = vadd.f32 0.0, %v568
      %v570 = vpop.f32.mrf.mxu0
      %v571 = vpop.f32.mrf.mxu0
      %v572 = vadd.f32 0.0, %v571
      %v573 = vpop.f32.mrf.mxu0
      %574 = vmatprep.mubr.bf16.mxu0 0
      %575 = vmatmul.mubr.bf16.gmra.mxu0 %v411
      %v576 = vpop.f32.mrf.mxu0
      %v577 = vadd.f32 0.0, %v576
      %v578 = vpop.f32.mrf.mxu0
      %v579 = vpop.f32.mrf.mxu0
      %v580 = vadd.f32 0.0, %v579
      %v581 = vpop.f32.mrf.mxu0
      %582 = vmatprep.mubr.bf16.mxu0 0
      %583 = vmatmul.mubr.bf16.gmra.mxu0 %v414
      %v584 = vpop.f32.mrf.mxu0
      %v585 = vadd.f32 0.0, %v584
      %v586 = vpop.f32.mrf.mxu0
      %v587 = vpop.f32.mrf.mxu0
      %v588 = vadd.f32 0.0, %v587
      %v589 = vpop.f32.mrf.mxu0
      %590 = vmatprep.mubr.bf16.mxu0 0
      %591 = vmatmul.mubr.bf16.gmra.mxu0 %v417
      %v592 = vpop.f32.mrf.mxu0
      %v593 = vadd.f32 0.0, %v592
      %v594 = vpop.f32.mrf.mxu0
      %v595 = vpop.f32.mrf.mxu0
      %v596 = vadd.f32 0.0, %v595
      %v597 = vpop.f32.mrf.mxu0
      %598 = vmatprep.mubr.bf16.mxu0 0
      %599 = vmatmul.mubr.bf16.gmra.mxu0 %v420
      %v600 = vpop.f32.mrf.mxu0
      %v601 = vadd.f32 0.0, %v600
      %v602 = vpop.f32.mrf.mxu0
      %v603 = vpop.f32.mrf.mxu0
      %v604 = vadd.f32 0.0, %v603
      %v605 = vpop.f32.mrf.mxu0
      %606 = vmatprep.mubr.bf16.mxu0 0
      %607 = vmatmul.mubr.bf16.gmra.mxu0 %v423
      %v608 = vpop.f32.mrf.mxu0
      %v609 = vadd.f32 0.0, %v608
      %v610 = vpop.f32.mrf.mxu0
      %v611 = vpop.f32.mrf.mxu0
      %v612 = vadd.f32 0.0, %v611
      %v613 = vpop.f32.mrf.mxu0
      %614 = vmatprep.mubr.bf16.mxu0 0
      %615 = vmatmul.mubr.bf16.gmra.mxu0 %v426
      %v616 = vpop.f32.mrf.mxu0
      %v617 = vadd.f32 0.0, %v616
      %v618 = vpop.f32.mrf.mxu0
      %v619 = vpop.f32.mrf.mxu0
      %v620 = vadd.f32 0.0, %v619
      %v621 = vpop.f32.mrf.mxu0
      %622 = vmatprep.mubr.bf16.mxu0 0
      %623 = vmatmul.mubr.bf16.gmra.mxu0 %v429
      %v624 = vpop.f32.mrf.mxu0
      %v625 = vadd.f32 0.0, %v624
      %v626 = vpop.f32.mrf.mxu0
      %v627 = vpop.f32.mrf.mxu0
      %v628 = vadd.f32 0.0, %v627
      %v629 = vpop.f32.mrf.mxu0
      %630 = vmatprep.mubr.bf16.mxu0 0
      %631 = vmatmul.mubr.bf16.gmra.mxu0 %v432
      %v632 = vpop.f32.mrf.mxu0
      %v633 = vadd.f32 0.0, %v632
      %v634 = vpop.f32.mrf.mxu0
      %v635 = vpop.f32.mrf.mxu0
      %v636 = vpop.f32.mrf.mxu0
      %637 = vdwg.mxu0
      %v639 = vsel %vm370, %v284, 0
      %v642 = vsel %vm370, %v285, 0
      %v645 = vsel %vm370, %v286, 0
      %v648 = vsel %vm370, %v287, 0
      %v651 = vsel %vm370, %v288, 0
      %v654 = vsel %vm370, %v289, 0
      %v657 = vsel %vm370, %v290, 0
      %v660 = vsel %vm370, %v291, 0
      %v663 = vsel %vm370, %v292, 0
      %v666 = vsel %vm370, %v293, 0
      %v669 = vsel %vm370, %v294, 0
      %v672 = vsel %vm370, %v295, 0
      %v675 = vsel %vm370, %v296, 0
      %v678 = vsel %vm370, %v297, 0
      %v681 = vsel %vm370, %v298, 0
      %v684 = vsel %vm370, %v299, 0
      %v687 = vsel %vm370, %v300, 0
      %v690 = vsel %vm370, %v301, 0
      %v693 = vsel %vm370, %v302, 0
      %v696 = vsel %vm370, %v303, 0
      %v699 = vsel %vm370, %v304, 0
      %v702 = vsel %vm434, %v305, 0
      %704 = vmatprep.subr.bf16.mxu0 0
      %705 = vmatpush1.bf16.msra.mxu0 0
      %706 = vmatprep.subr.bf16.mxu0 0
      %707 = vmatpush1.bf16.msra.mxu0 0
      %708 = vmatprep.subr.bf16.mxu0 0
      %709 = vmatpush1.bf16.msra.mxu0 0
      %710 = vmatprep.subr.bf16.mxu0 0
      %711 = vmatpush1.bf16.msra.mxu0 0
      %712 = vmatprep.subr.bf16.mxu0 0
      %713 = vmatpush1.bf16.msra.mxu0 0
      %714 = vmatprep.subr.bf16.mxu0 0
      %715 = vmatpush1.bf16.msra.mxu0 0
      %716 = vmatprep.subr.bf16.mxu0 0
      %717 = vmatpush1.bf16.msra.mxu0 0
      %718 = vmatprep.subr.bf16.mxu0 0
      %719 = vmatpush1.bf16.msra.mxu0 %v702
      %720 = vmatprep.subr.bf16.mxu0 0
      %721 = vmatpush2.bf16.msra.mxu0 0
      %722 = vmatprep.subr.bf16.mxu0 0
      %723 = vmatpush2.bf16.msra.mxu0 0
      %724 = vmatprep.subr.bf16.mxu0 0
      %725 = vmatpush2.bf16.msra.mxu0 0
      %726 = vmatprep.subr.bf16.mxu0 0
      %727 = vmatpush2.bf16.msra.mxu0 0
      %728 = vmatprep.subr.bf16.mxu0 0
      %729 = vmatpush2.bf16.msra.mxu0 0
      %730 = vmatprep.subr.bf16.mxu0 0
      %731 = vmatpush2.bf16.msra.mxu0 0
      %732 = vmatprep.subr.bf16.mxu0 0
      %733 = vmatpush2.bf16.msra.mxu0 0
      %734 = vmatprep.subr.bf16.mxu0 0
      %735 = vmatpush2.bf16.msra.mxu0 0
      %736 = vmatprep.mubr.bf16.mxu0 0
      %737 = vmatmul.mubr.bf16.gmra.mxu0 %v639
      %v738 = vpop.f32.mrf.mxu0
      %v739 = vadd.f32 %v473, %v738
      %v740 = vpop.f32.mrf.mxu0
      %v741 = vpop.f32.mrf.mxu0
      %v742 = vadd.f32 %v476, %v741
      %v743 = vpop.f32.mrf.mxu0
      %744 = vmatprep.mubr.bf16.mxu0 0
      %745 = vmatmul.mubr.bf16.gmra.mxu0 %v642
      %v746 = vpop.f32.mrf.mxu0
      %v747 = vadd.f32 %v481, %v746
      %v748 = vpop.f32.mrf.mxu0
      %v749 = vpop.f32.mrf.mxu0
      %v750 = vadd.f32 %v484, %v749
      %v751 = vpop.f32.mrf.mxu0
      %752 = vmatprep.mubr.bf16.mxu0 0
      %753 = vmatmul.mubr.bf16.gmra.mxu0 %v645
      %v754 = vpop.f32.mrf.mxu0
      %v755 = vadd.f32 %v489, %v754
      %v756 = vpop.f32.mrf.mxu0
      %v757 = vpop.f32.mrf.mxu0
      %v758 = vadd.f32 %v492, %v757
      %v759 = vpop.f32.mrf.mxu0
      %760 = vmatprep.mubr.bf16.mxu0 0
      %761 = vmatmul.mubr.bf16.gmra.mxu0 %v648
      %v762 = vpop.f32.mrf.mxu0
      %v763 = vadd.f32 %v497, %v762
      %v764 = vpop.f32.mrf.mxu0
      %v765 = vpop.f32.mrf.mxu0
      %v766 = vadd.f32 %v500, %v765
      %v767 = vpop.f32.mrf.mxu0
      %768 = vmatprep.mubr.bf16.mxu0 0
      %769 = vmatmul.mubr.bf16.gmra.mxu0 %v651
      %v770 = vpop.f32.mrf.mxu0
      %v771 = vadd.f32 %v505, %v770
      %v772 = vpop.f32.mrf.mxu0
      %v773 = vpop.f32.mrf.mxu0
      %v774 = vadd.f32 %v508, %v773
      %v775 = vpop.f32.mrf.mxu0
      %776 = vmatprep.mubr.bf16.mxu0 0
      %777 = vmatmul.mubr.bf16.gmra.mxu0 %v654
      %v778 = vpop.f32.mrf.mxu0
      %v779 = vadd.f32 %v513, %v778
      %v780 = vpop.f32.mrf.mxu0
      %v781 = vpop.f32.mrf.mxu0
      %v782 = vadd.f32 %v516, %v781
      %v783 = vpop.f32.mrf.mxu0
      %784 = vmatprep.mubr.bf16.mxu0 0
      %785 = vmatmul.mubr.bf16.gmra.mxu0 %v657
      %v786 = vpop.f32.mrf.mxu0
      %v787 = vadd.f32 %v521, %v786
      %v788 = vpop.f32.mrf.mxu0
      %v789 = vpop.f32.mrf.mxu0
      %v790 = vadd.f32 %v524, %v789
      %v791 = vpop.f32.mrf.mxu0
      %792 = vmatprep.mubr.bf16.mxu0 0
      %793 = vmatmul.mubr.bf16.gmra.mxu0 %v660
      %v794 = vpop.f32.mrf.mxu0
      %v795 = vadd.f32 %v529, %v794
      %v796 = vpop.f32.mrf.mxu0
      %v797 = vpop.f32.mrf.mxu0
      %v798 = vadd.f32 %v532, %v797
      %v799 = vpop.f32.mrf.mxu0
      %800 = vmatprep.mubr.bf16.mxu0 0
      %801 = vmatmul.mubr.bf16.gmra.mxu0 %v663
      %v802 = vpop.f32.mrf.mxu0
      %v803 = vadd.f32 %v537, %v802
      %v804 = vpop.f32.mrf.mxu0
      %v805 = vpop.f32.mrf.mxu0
      %v806 = vadd.f32 %v540, %v805
      %v807 = vpop.f32.mrf.mxu0
      %808 = vmatprep.mubr.bf16.mxu0 0
      %809 = vmatmul.mubr.bf16.gmra.mxu0 %v666
      %v810 = vpop.f32.mrf.mxu0
      %v811 = vadd.f32 %v545, %v810
      %v812 = vpop.f32.mrf.mxu0
      %v813 = vpop.f32.mrf.mxu0
      %v814 = vadd.f32 %v548, %v813
      %v815 = vpop.f32.mrf.mxu0
      %816 = vmatprep.mubr.bf16.mxu0 0
      %817 = vmatmul.mubr.bf16.gmra.mxu0 %v669
      %v818 = vpop.f32.mrf.mxu0
      %v819 = vadd.f32 %v553, %v818
      %v820 = vpop.f32.mrf.mxu0
      %v821 = vpop.f32.mrf.mxu0
      %v822 = vadd.f32 %v556, %v821
      %v823 = vpop.f32.mrf.mxu0
      %824 = vmatprep.mubr.bf16.mxu0 0
      %825 = vmatmul.mubr.bf16.gmra.mxu0 %v672
      %v826 = vpop.f32.mrf.mxu0
      %v827 = vadd.f32 %v561, %v826
      %v828 = vpop.f32.mrf.mxu0
      %v829 = vpop.f32.mrf.mxu0
      %v830 = vadd.f32 %v564, %v829
      %v831 = vpop.f32.mrf.mxu0
      %832 = vmatprep.mubr.bf16.mxu0 0
      %833 = vmatmul.mubr.bf16.gmra.mxu0 %v675
      %v834 = vpop.f32.mrf.mxu0
      %v835 = vadd.f32 %v569, %v834
      %v836 = vpop.f32.mrf.mxu0
      %v837 = vpop.f32.mrf.mxu0
      %v838 = vadd.f32 %v572, %v837
      %v839 = vpop.f32.mrf.mxu0
      %840 = vmatprep.mubr.bf16.mxu0 0
      %841 = vmatmul.mubr.bf16.gmra.mxu0 %v678
      %v842 = vpop.f32.mrf.mxu0
      %v843 = vadd.f32 %v577, %v842
      %v844 = vpop.f32.mrf.mxu0
      %v845 = vpop.f32.mrf.mxu0
      %v846 = vadd.f32 %v580, %v845
      %v847 = vpop.f32.mrf.mxu0
      %848 = vmatprep.mubr.bf16.mxu0 0
      %849 = vmatmul.mubr.bf16.gmra.mxu0 %v681
      %v850 = vpop.f32.mrf.mxu0
      %v851 = vadd.f32 %v585, %v850
      %v852 = vpop.f32.mrf.mxu0
      %v853 = vpop.f32.mrf.mxu0
      %v854 = vadd.f32 %v588, %v853
      %v855 = vpop.f32.mrf.mxu0
      %856 = vmatprep.mubr.bf16.mxu0 0
      %857 = vmatmul.mubr.bf16.gmra.mxu0 %v684
      %v858 = vpop.f32.mrf.mxu0
      %v859 = vadd.f32 %v593, %v858
      %v860 = vpop.f32.mrf.mxu0
      %v861 = vpop.f32.mrf.mxu0
      %v862 = vadd.f32 %v596, %v861
      %v863 = vpop.f32.mrf.mxu0
      %864 = vmatprep.mubr.bf16.mxu0 0
      %865 = vmatmul.mubr.bf16.gmra.mxu0 %v687
      %v866 = vpop.f32.mrf.mxu0
      %v867 = vadd.f32 %v601, %v866
      %v868 = vpop.f32.mrf.mxu0
      %v869 = vpop.f32.mrf.mxu0
      %v870 = vadd.f32 %v604, %v869
      %v871 = vpop.f32.mrf.mxu0
      %872 = vmatprep.mubr.bf16.mxu0 0
      %873 = vmatmul.mubr.bf16.gmra.mxu0 %v690
      %v874 = vpop.f32.mrf.mxu0
      %v875 = vadd.f32 %v609, %v874
      %v876 = vpop.f32.mrf.mxu0
      %v877 = vpop.f32.mrf.mxu0
      %v878 = vadd.f32 %v612, %v877
      %v879 = vpop.f32.mrf.mxu0
      %880 = vmatprep.mubr.bf16.mxu0 0
      %881 = vmatmul.mubr.bf16.gmra.mxu0 %v693
      %v882 = vpop.f32.mrf.mxu0
      %v883 = vadd.f32 %v617, %v882
      %v884 = vpop.f32.mrf.mxu0
      %v885 = vpop.f32.mrf.mxu0
      %v886 = vadd.f32 %v620, %v885
      %v887 = vpop.f32.mrf.mxu0
      %888 = vmatprep.mubr.bf16.mxu0 0
      %889 = vmatmul.mubr.bf16.gmra.mxu0 %v696
      %v890 = vpop.f32.mrf.mxu0
      %v891 = vadd.f32 %v625, %v890
      %v892 = vpop.f32.mrf.mxu0
      %v893 = vpop.f32.mrf.mxu0
      %v894 = vadd.f32 %v628, %v893
      %v895 = vpop.f32.mrf.mxu0
      %896 = vmatprep.mubr.bf16.mxu0 0
      %897 = vmatmul.mubr.bf16.gmra.mxu0 %v699
      %v898 = vpop.f32.mrf.mxu0
      %v899 = vadd.f32 %v633, %v898
      %v900 = vpop.f32.mrf.mxu0
      %v901 = vpop.f32.mrf.mxu0
      %v902 = vpop.f32.mrf.mxu0
      %903 = vdwg.mxu0
      %v904 = vld [vmem:[%s230 + $0x7] sm:$0xff]
      %v905 = vld [vmem:[%s230 + $0xf] sm:$0xff]
      %v906 = vld [vmem:[%s230 + $0x17] sm:$0xff]
      %v907 = vld [vmem:[%s230 + $0x1f] sm:$0xff]
      %v908 = vld [vmem:[%s230 + $0x27] sm:$0xff]
      %v909 = vld [vmem:[%s230 + $0x2f] sm:$0xff]
      %v910 = vld [vmem:[%s230 + $0x37] sm:$0xff]
      %v911 = vld [vmem:[%s230 + $0x3f] sm:$0xff]
      %v912 = vld [vmem:[%s230 + $0x47] sm:$0xff]
      %v913 = vld [vmem:[%s230 + $0x4f] sm:$0xff]
      %v914 = vld [vmem:[%s230 + $0x57] sm:$0xff]
      %v915 = vld [vmem:[%s230 + $0x5f] sm:$0xff]
      %v916 = vld [vmem:[%s230 + $0x67] sm:$0xff]
      %v917 = vld [vmem:[%s230 + $0x6f] sm:$0xff]
      %v918 = vld [vmem:[%s230 + $0x77] sm:$0xff]
      %v919 = vld [vmem:[%s230 + $0x7f] sm:$0xff]
      %v920 = vld [vmem:[%s230 + $0x87] sm:$0xff]
      %v921 = vld [vmem:[%s230 + $0x8f] sm:$0xff]
      %v922 = vld [vmem:[%s230 + $0x97] sm:$0xff]
      %v923 = vld [vmem:[%s230 + $0x9f] sm:$0xff]
      %v924 = vld [vmem:[%s230 + $0xa7] sm:$0xff]
      %v925 = vld [vmem:[%s230 + $0xaf] sm:$0xff]
      %v926 = vld [vmem:[%s230 + $0xb7] sm:$0xff]
      %v927 = vld [vmem:[%s230 + $0xbf] sm:$0xff]
      %v928 = vld [vmem:[%s230 + $0xc7] sm:$0xff]
      %v929 = vld [vmem:[%s230 + $0xcf] sm:$0xff]
      %v930 = vld [vmem:[%s230 + $0xd7] sm:$0xff]
      %v931 = vld [vmem:[%s230 + $0xdf] sm:$0xff]
      %v932 = vld [vmem:[%s230 + $0xe7] sm:$0xff]
      %v933 = vld [vmem:[%s230 + $0xef] sm:$0xff]
      %v934 = vld [vmem:[%s230 + $0xf7] sm:$0xff]
      %v935 = vld [vmem:[%s230 + $0xff] sm:$0xff]
      %v936 = vld [vmem:[%s230 + $0x107] sm:$0xff]
      %v937 = vld [vmem:[%s230 + $0x10f] sm:$0xff]
      %v938 = vld [vmem:[%s230 + $0x117] sm:$0xff]
      %v939 = vld [vmem:[%s230 + $0x11f] sm:$0xff]
      %v940 = vld [vmem:[%s230 + $0x127] sm:$0xff]
      %v941 = vld [vmem:[%s230 + $0x12f] sm:$0xff]
      %v942 = vld [vmem:[%s230 + $0x137] sm:$0xff]
      %v943 = vld [vmem:[%s230 + $0x13f] sm:$0xff]
      %v944 = vld [vmem:[%s230 + $0x147] sm:$0xf]
      %v945 = vpack.c.bf16 %v905, %v904
      %v946 = vpack.c.bf16 %v907, %v906
      %v947 = vpack.c.bf16 %v909, %v908
      %v948 = vpack.c.bf16 %v911, %v910
      %v949 = vpack.c.bf16 %v913, %v912
      %v950 = vpack.c.bf16 %v915, %v914
      %v951 = vpack.c.bf16 %v917, %v916
      %v952 = vpack.c.bf16 %v919, %v918
      %v953 = vpack.c.bf16 %v921, %v920
      %v954 = vpack.c.bf16 %v923, %v922
      %v955 = vpack.c.bf16 %v925, %v924
      %v956 = vpack.c.bf16 %v927, %v926
      %v957 = vpack.c.bf16 %v929, %v928
      %v958 = vpack.c.bf16 %v931, %v930
      %v959 = vpack.c.bf16 %v933, %v932
      %v960 = vpack.c.bf16 %v935, %v934
      %v961 = vpack.c.bf16 %v937, %v936
      %v962 = vpack.c.bf16 %v939, %v938
      %v963 = vpack.c.bf16 %v941, %v940
      %v964 = vpack.c.bf16 %v943, %v942
      %v965 = vpack.c.bf16 %v944, %v944
      %s966 = scalar_lea.vmem %s1, 4
      %v967 = vld [vmem:[%s966] sm:$0x3]
      %v969 = vsel %vm370, %v945, 0
      %v972 = vsel %vm370, %v946, 0
      %v975 = vsel %vm370, %v947, 0
      %v978 = vsel %vm370, %v948, 0
      %v981 = vsel %vm370, %v949, 0
      %v984 = vsel %vm370, %v950, 0
      %v987 = vsel %vm370, %v951, 0
      %v990 = vsel %vm370, %v952, 0
      %v993 = vsel %vm370, %v953, 0
      %v996 = vsel %vm370, %v954, 0
      %v999 = vsel %vm370, %v955, 0
      %v1002 = vsel %vm370, %v956, 0
      %v1005 = vsel %vm370, %v957, 0
      %v1008 = vsel %vm370, %v958, 0
      %v1011 = vsel %vm370, %v959, 0
      %v1014 = vsel %vm370, %v960, 0
      %v1017 = vsel %vm370, %v961, 0
      %v1020 = vsel %vm370, %v962, 0
      %v1023 = vsel %vm370, %v963, 0
      %v1026 = vsel %vm370, %v964, 0
      %v1029 = vsel %vm370, %v965, 0
      %v1032 = vsel %vm434, %v967, 0
      %1034 = vmatprep.subr.bf16.mxu0 0
      %1035 = vmatpush1.bf16.msra.mxu0 0
      %1036 = vmatprep.subr.bf16.mxu0 0
      %1037 = vmatpush1.bf16.msra.mxu0 0
      %1038 = vmatprep.subr.bf16.mxu0 0
      %1039 = vmatpush1.bf16.msra.mxu0 0
      %1040 = vmatprep.subr.bf16.mxu0 0
      %1041 = vmatpush1.bf16.msra.mxu0 0
      %1042 = vmatprep.subr.bf16.mxu0 0
      %1043 = vmatpush1.bf16.msra.mxu0 0
      %1044 = vmatprep.subr.bf16.mxu0 0
      %1045 = vmatpush1.bf16.msra.mxu0 0
      %1046 = vmatprep.subr.bf16.mxu0 0
      %1047 = vmatpush1.bf16.msra.mxu0 0
      %1048 = vmatprep.subr.bf16.mxu0 0
      %1049 = vmatpush1.bf16.msra.mxu0 %v1032
      %1050 = vmatprep.subr.bf16.mxu0 0
      %1051 = vmatpush2.bf16.msra.mxu0 0
      %1052 = vmatprep.subr.bf16.mxu0 0
      %1053 = vmatpush2.bf16.msra.mxu0 0
      %1054 = vmatprep.subr.bf16.mxu0 0
      %1055 = vmatpush2.bf16.msra.mxu0 0
      %1056 = vmatprep.subr.bf16.mxu0 0
      %1057 = vmatpush2.bf16.msra.mxu0 0
      %1058 = vmatprep.subr.bf16.mxu0 0
      %1059 = vmatpush2.bf16.msra.mxu0 0
      %1060 = vmatprep.subr.bf16.mxu0 0
      %1061 = vmatpush2.bf16.msra.mxu0 0
      %1062 = vmatprep.subr.bf16.mxu0 0
      %1063 = vmatpush2.bf16.msra.mxu0 0
      %1064 = vmatprep.subr.bf16.mxu0 0
      %1065 = vmatpush2.bf16.msra.mxu0 0
      %1066 = vmatprep.mubr.bf16.mxu0 0
      %1067 = vmatmul.mubr.bf16.gmra.mxu0 %v969
      %v1068 = vpop.f32.mrf.mxu0
      %v1069 = vadd.f32 0.0, %v1068
      %v1070 = vpop.f32.mrf.mxu0
      %v1071 = vpop.f32.mrf.mxu0
      %v1072 = vadd.f32 0.0, %v1071
      %v1073 = vpop.f32.mrf.mxu0
      %1074 = vmatprep.mubr.bf16.mxu0 0
      %1075 = vmatmul.mubr.bf16.gmra.mxu0 %v972
      %v1076 = vpop.f32.mrf.mxu0
      %v1077 = vadd.f32 0.0, %v1076
      %v1078 = vpop.f32.mrf.mxu0
      %v1079 = vpop.f32.mrf.mxu0
      %v1080 = vadd.f32 0.0, %v1079
      %v1081 = vpop.f32.mrf.mxu0
      %1082 = vmatprep.mubr.bf16.mxu0 0
      %1083 = vmatmul.mubr.bf16.gmra.mxu0 %v975
      %v1084 = vpop.f32.mrf.mxu0
      %v1085 = vadd.f32 0.0, %v1084
      %v1086 = vpop.f32.mrf.mxu0
      %v1087 = vpop.f32.mrf.mxu0
      %v1088 = vadd.f32 0.0, %v1087
      %v1089 = vpop.f32.mrf.mxu0
      %1090 = vmatprep.mubr.bf16.mxu0 0
      %1091 = vmatmul.mubr.bf16.gmra.mxu0 %v978
      %v1092 = vpop.f32.mrf.mxu0
      %v1093 = vadd.f32 0.0, %v1092
      %v1094 = vpop.f32.mrf.mxu0
      %v1095 = vpop.f32.mrf.mxu0
      %v1096 = vadd.f32 0.0, %v1095
      %v1097 = vpop.f32.mrf.mxu0
      %1098 = vmatprep.mubr.bf16.mxu0 0
      %1099 = vmatmul.mubr.bf16.gmra.mxu0 %v981
      %v1100 = vpop.f32.mrf.mxu0
      %v1101 = vadd.f32 0.0, %v1100
      %v1102 = vpop.f32.mrf.mxu0
      %v1103 = vpop.f32.mrf.mxu0
      %v1104 = vadd.f32 0.0, %v1103
      %v1105 = vpop.f32.mrf.mxu0
      %1106 = vmatprep.mubr.bf16.mxu0 0
      %1107 = vmatmul.mubr.bf16.gmra.mxu0 %v984
      %v1108 = vpop.f32.mrf.mxu0
      %v1109 = vadd.f32 0.0, %v1108
      %v1110 = vpop.f32.mrf.mxu0
      %v1111 = vpop.f32.mrf.mxu0
      %v1112 = vadd.f32 0.0, %v1111
      %v1113 = vpop.f32.mrf.mxu0
      %1114 = vmatprep.mubr.bf16.mxu0 0
      %1115 = vmatmul.mubr.bf16.gmra.mxu0 %v987
      %v1116 = vpop.f32.mrf.mxu0
      %v1117 = vadd.f32 0.0, %v1116
      %v1118 = vpop.f32.mrf.mxu0
      %v1119 = vpop.f32.mrf.mxu0
      %v1120 = vadd.f32 0.0, %v1119
      %v1121 = vpop.f32.mrf.mxu0
      %1122 = vmatprep.mubr.bf16.mxu0 0
      %1123 = vmatmul.mubr.bf16.gmra.mxu0 %v990
      %v1124 = vpop.f32.mrf.mxu0
      %v1125 = vadd.f32 0.0, %v1124
      %v1126 = vpop.f32.mrf.mxu0
      %v1127 = vpop.f32.mrf.mxu0
      %v1128 = vadd.f32 0.0, %v1127
      %v1129 = vpop.f32.mrf.mxu0
      %1130 = vmatprep.mubr.bf16.mxu0 0
      %1131 = vmatmul.mubr.bf16.gmra.mxu0 %v993
      %v1132 = vpop.f32.mrf.mxu0
      %v1133 = vadd.f32 0.0, %v1132
      %v1134 = vpop.f32.mrf.mxu0
      %v1135 = vpop.f32.mrf.mxu0
      %v1136 = vadd.f32 0.0, %v1135
      %v1137 = vpop.f32.mrf.mxu0
      %1138 = vmatprep.mubr.bf16.mxu0 0
      %1139 = vmatmul.mubr.bf16.gmra.mxu0 %v996
      %v1140 = vpop.f32.mrf.mxu0
      %v1141 = vadd.f32 0.0, %v1140
      %v1142 = vpop.f32.mrf.mxu0
      %v1143 = vpop.f32.mrf.mxu0
      %v1144 = vadd.f32 0.0, %v1143
      %v1145 = vpop.f32.mrf.mxu0
      %1146 = vmatprep.mubr.bf16.mxu0 0
      %1147 = vmatmul.mubr.bf16.gmra.mxu0 %v999
      %v1148 = vpop.f32.mrf.mxu0
      %v1149 = vadd.f32 0.0, %v1148
      %v1150 = vpop.f32.mrf.mxu0
      %v1151 = vpop.f32.mrf.mxu0
      %v1152 = vadd.f32 0.0, %v1151
      %v1153 = vpop.f32.mrf.mxu0
      %1154 = vmatprep.mubr.bf16.mxu0 0
      %1155 = vmatmul.mubr.bf16.gmra.mxu0 %v1002
      %v1156 = vpop.f32.mrf.mxu0
      %v1157 = vadd.f32 0.0, %v1156
      %v1158 = vpop.f32.mrf.mxu0
      %v1159 = vpop.f32.mrf.mxu0
      %v1160 = vadd.f32 0.0, %v1159
      %v1161 = vpop.f32.mrf.mxu0
      %1162 = vmatprep.mubr.bf16.mxu0 0
      %1163 = vmatmul.mubr.bf16.gmra.mxu0 %v1005
      %v1164 = vpop.f32.mrf.mxu0
      %v1165 = vadd.f32 0.0, %v1164
      %v1166 = vpop.f32.mrf.mxu0
      %v1167 = vpop.f32.mrf.mxu0
      %v1168 = vadd.f32 0.0, %v1167
      %v1169 = vpop.f32.mrf.mxu0
      %1170 = vmatprep.mubr.bf16.mxu0 0
      %1171 = vmatmul.mubr.bf16.gmra.mxu0 %v1008
      %v1172 = vpop.f32.mrf.mxu0
      %v1173 = vadd.f32 0.0, %v1172
      %v1174 = vpop.f32.mrf.mxu0
      %v1175 = vpop.f32.mrf.mxu0
      %v1176 = vadd.f32 0.0, %v1175
      %v1177 = vpop.f32.mrf.mxu0
      %1178 = vmatprep.mubr.bf16.mxu0 0
      %1179 = vmatmul.mubr.bf16.gmra.mxu0 %v1011
      %v1180 = vpop.f32.mrf.mxu0
      %v1181 = vadd.f32 0.0, %v1180
      %v1182 = vpop.f32.mrf.mxu0
      %v1183 = vpop.f32.mrf.mxu0
      %v1184 = vadd.f32 0.0, %v1183
      %v1185 = vpop.f32.mrf.mxu0
      %1186 = vmatprep.mubr.bf16.mxu0 0
      %1187 = vmatmul.mubr.bf16.gmra.mxu0 %v1014
      %v1188 = vpop.f32.mrf.mxu0
      %v1189 = vadd.f32 0.0, %v1188
      %v1190 = vpop.f32.mrf.mxu0
      %v1191 = vpop.f32.mrf.mxu0
      %v1192 = vadd.f32 0.0, %v1191
      %v1193 = vpop.f32.mrf.mxu0
      %1194 = vmatprep.mubr.bf16.mxu0 0
      %1195 = vmatmul.mubr.bf16.gmra.mxu0 %v1017
      %v1196 = vpop.f32.mrf.mxu0
      %v1197 = vadd.f32 0.0, %v1196
      %v1198 = vpop.f32.mrf.mxu0
      %v1199 = vpop.f32.mrf.mxu0
      %v1200 = vadd.f32 0.0, %v1199
      %v1201 = vpop.f32.mrf.mxu0
      %1202 = vmatprep.mubr.bf16.mxu0 0
      %1203 = vmatmul.mubr.bf16.gmra.mxu0 %v1020
      %v1204 = vpop.f32.mrf.mxu0
      %v1205 = vadd.f32 0.0, %v1204
      %v1206 = vpop.f32.mrf.mxu0
      %v1207 = vpop.f32.mrf.mxu0
      %v1208 = vadd.f32 0.0, %v1207
      %v1209 = vpop.f32.mrf.mxu0
      %1210 = vmatprep.mubr.bf16.mxu0 0
      %1211 = vmatmul.mubr.bf16.gmra.mxu0 %v1023
      %v1212 = vpop.f32.mrf.mxu0
      %v1213 = vadd.f32 0.0, %v1212
      %v1214 = vpop.f32.mrf.mxu0
      %v1215 = vpop.f32.mrf.mxu0
      %v1216 = vadd.f32 0.0, %v1215
      %v1217 = vpop.f32.mrf.mxu0
      %1218 = vmatprep.mubr.bf16.mxu0 0
      %1219 = vmatmul.mubr.bf16.gmra.mxu0 %v1026
      %v1220 = vpop.f32.mrf.mxu0
      %v1221 = vadd.f32 0.0, %v1220
      %v1222 = vpop.f32.mrf.mxu0
      %v1223 = vpop.f32.mrf.mxu0
      %v1224 = vadd.f32 0.0, %v1223
      %v1225 = vpop.f32.mrf.mxu0
      %1226 = vmatprep.mubr.bf16.mxu0 0
      %1227 = vmatmul.mubr.bf16.gmra.mxu0 %v1029
      %v1228 = vpop.f32.mrf.mxu0
      %v1229 = vadd.f32 0.0, %v1228
      %v1230 = vpop.f32.mrf.mxu0
      %v1231 = vpop.f32.mrf.mxu0
      %v1232 = vpop.f32.mrf.mxu0
      %1233 = vdwg.mxu0
      %v1234 = vadd.f32 %v739, %v1069
      %v1235 = vadd.f32 %v742, %v1072
      %v1236 = vadd.f32 %v747, %v1077
      %v1237 = vadd.f32 %v750, %v1080
      %v1238 = vadd.f32 %v755, %v1085
      %v1239 = vadd.f32 %v758, %v1088
      %v1240 = vadd.f32 %v763, %v1093
      %v1241 = vadd.f32 %v766, %v1096
      %v1242 = vadd.f32 %v771, %v1101
      %v1243 = vadd.f32 %v774, %v1104
      %v1244 = vadd.f32 %v779, %v1109
      %v1245 = vadd.f32 %v782, %v1112
      %v1246 = vadd.f32 %v787, %v1117
      %v1247 = vadd.f32 %v790, %v1120
      %v1248 = vadd.f32 %v795, %v1125
      %v1249 = vadd.f32 %v798, %v1128
      %v1250 = vadd.f32 %v803, %v1133
      %v1251 = vadd.f32 %v806, %v1136
      %v1252 = vadd.f32 %v811, %v1141
      %v1253 = vadd.f32 %v814, %v1144
      %v1254 = vadd.f32 %v819, %v1149
      %v1255 = vadd.f32 %v822, %v1152
      %v1256 = vadd.f32 %v827, %v1157
      %v1257 = vadd.f32 %v830, %v1160
      %v1258 = vadd.f32 %v835, %v1165
      %v1259 = vadd.f32 %v838, %v1168
      %v1260 = vadd.f32 %v843, %v1173
      %v1261 = vadd.f32 %v846, %v1176
      %v1262 = vadd.f32 %v851, %v1181
      %v1263 = vadd.f32 %v854, %v1184
      %v1264 = vadd.f32 %v859, %v1189
      %v1265 = vadd.f32 %v862, %v1192
      %v1266 = vadd.f32 %v867, %v1197
      %v1267 = vadd.f32 %v870, %v1200
      %v1268 = vadd.f32 %v875, %v1205
      %v1269 = vadd.f32 %v878, %v1208
      %v1270 = vadd.f32 %v883, %v1213
      %v1271 = vadd.f32 %v886, %v1216
      %v1272 = vadd.f32 %v891, %v1221
      %v1273 = vadd.f32 %v894, %v1224
      %v1274 = vadd.f32 %v899, %v1229
      %v1275 = vld [vmem:[%s230 + $0x17] sm:$0xff]
      %v1276 = vld [vmem:[%s230 + $0x1f] sm:$0xff]
      %v1277 = vld [vmem:[%s230 + $0x27] sm:$0xff]
      %v1278 = vld [vmem:[%s230 + $0x2f] sm:$0xff]
      %v1279 = vld [vmem:[%s230 + $0x37] sm:$0xff]
      %v1280 = vld [vmem:[%s230 + $0x3f] sm:$0xff]
      %v1281 = vld [vmem:[%s230 + $0x47] sm:$0xff]
      %v1282 = vld [vmem:[%s230 + $0x4f] sm:$0xff]
      %v1283 = vld [vmem:[%s230 + $0x57] sm:$0xff]
      %v1284 = vld [vmem:[%s230 + $0x5f] sm:$0xff]
      %v1285 = vld [vmem:[%s230 + $0x67] sm:$0xff]
      %v1286 = vld [vmem:[%s230 + $0x6f] sm:$0xff]
      %v1287 = vld [vmem:[%s230 + $0x77] sm:$0xff]
      %v1288 = vld [vmem:[%s230 + $0x7f] sm:$0xff]
      %v1289 = vld [vmem:[%s230 + $0x87] sm:$0xff]
      %v1290 = vld [vmem:[%s230 + $0x8f] sm:$0xff]
      %v1291 = vld [vmem:[%s230 + $0x97] sm:$0xff]
      %v1292 = vld [vmem:[%s230 + $0x9f] sm:$0xff]
      %v1293 = vld [vmem:[%s230 + $0xa7] sm:$0xff]
      %v1294 = vld [vmem:[%s230 + $0xaf] sm:$0xff]
      %v1295 = vld [vmem:[%s230 + $0xb7] sm:$0xff]
      %v1296 = vld [vmem:[%s230 + $0xbf] sm:$0xff]
      %v1297 = vld [vmem:[%s230 + $0xc7] sm:$0xff]
      %v1298 = vld [vmem:[%s230 + $0xcf] sm:$0xff]
      %v1299 = vld [vmem:[%s230 + $0xd7] sm:$0xff]
      %v1300 = vld [vmem:[%s230 + $0xdf] sm:$0xff]
      %v1301 = vld [vmem:[%s230 + $0xe7] sm:$0xff]
      %v1302 = vld [vmem:[%s230 + $0xef] sm:$0xff]
      %v1303 = vld [vmem:[%s230 + $0xf7] sm:$0xff]
      %v1304 = vld [vmem:[%s230 + $0xff] sm:$0xff]
      %v1305 = vld [vmem:[%s230 + $0x107] sm:$0xff]
      %v1306 = vld [vmem:[%s230 + $0x10f] sm:$0xff]
      %v1307 = vld [vmem:[%s230 + $0x117] sm:$0xff]
      %v1308 = vld [vmem:[%s230 + $0x11f] sm:$0xff]
      %v1309 = vld [vmem:[%s230 + $0x127] sm:$0xff]
      %v1310 = vld [vmem:[%s230 + $0x12f] sm:$0xff]
      %v1311 = vld [vmem:[%s230 + $0x137] sm:$0xff]
      %v1312 = vld [vmem:[%s230 + $0x13f] sm:$0xff]
      %v1313 = vld [vmem:[%s230 + $0x147] sm:$0xff]
      %v1314 = vld [vmem:[%s230 + $0x14f] sm:$0xff]
      %v1315 = vld [vmem:[%s230 + $0x157] sm:$0xf]
      %v1316 = vpack.c.bf16 %v1276, %v1275
      %v1317 = vpack.c.bf16 %v1278, %v1277
      %v1318 = vpack.c.bf16 %v1280, %v1279
      %v1319 = vpack.c.bf16 %v1282, %v1281
      %v1320 = vpack.c.bf16 %v1284, %v1283
      %v1321 = vpack.c.bf16 %v1286, %v1285
      %v1322 = vpack.c.bf16 %v1288, %v1287
      %v1323 = vpack.c.bf16 %v1290, %v1289
      %v1324 = vpack.c.bf16 %v1292, %v1291
      %v1325 = vpack.c.bf16 %v1294, %v1293
      %v1326 = vpack.c.bf16 %v1296, %v1295
      %v1327 = vpack.c.bf16 %v1298, %v1297
      %v1328 = vpack.c.bf16 %v1300, %v1299
      %v1329 = vpack.c.bf16 %v1302, %v1301
      %v1330 = vpack.c.bf16 %v1304, %v1303
      %v1331 = vpack.c.bf16 %v1306, %v1305
      %v1332 = vpack.c.bf16 %v1308, %v1307
      %v1333 = vpack.c.bf16 %v1310, %v1309
      %v1334 = vpack.c.bf16 %v1312, %v1311
      %v1335 = vpack.c.bf16 %v1314, %v1313
      %v1336 = vpack.c.bf16 %v1315, %v1315
      %s1337 = scalar_lea.vmem %s1, 6
      %v1338 = vld [vmem:[%s1337] sm:$0x3]
      %v1340 = vsel %vm370, %v1316, 0
      %v1343 = vsel %vm370, %v1317, 0
      %v1346 = vsel %vm370, %v1318, 0
      %v1349 = vsel %vm370, %v1319, 0
      %v1352 = vsel %vm370, %v1320, 0
      %v1355 = vsel %vm370, %v1321, 0
      %v1358 = vsel %vm370, %v1322, 0
      %v1361 = vsel %vm370, %v1323, 0
      %v1364 = vsel %vm370, %v1324, 0
      %v1367 = vsel %vm370, %v1325, 0
      %v1370 = vsel %vm370, %v1326, 0
      %v1373 = vsel %vm370, %v1327, 0
      %v1376 = vsel %vm370, %v1328, 0
      %v1379 = vsel %vm370, %v1329, 0
      %v1382 = vsel %vm370, %v1330, 0
      %v1385 = vsel %vm370, %v1331, 0
      %v1388 = vsel %vm370, %v1332, 0
      %v1391 = vsel %vm370, %v1333, 0
      %v1394 = vsel %vm370, %v1334, 0
      %v1397 = vsel %vm370, %v1335, 0
      %v1400 = vsel %vm370, %v1336, 0
      %v1403 = vsel %vm434, %v1338, 0
      %1405 = vmatprep.subr.bf16.mxu0 0
      %1406 = vmatpush1.bf16.msra.mxu0 0
      %1407 = vmatprep.subr.bf16.mxu0 0
      %1408 = vmatpush1.bf16.msra.mxu0 0
      %1409 = vmatprep.subr.bf16.mxu0 0
      %1410 = vmatpush1.bf16.msra.mxu0 0
      %1411 = vmatprep.subr.bf16.mxu0 0
      %1412 = vmatpush1.bf16.msra.mxu0 0
      %1413 = vmatprep.subr.bf16.mxu0 0
      %1414 = vmatpush1.bf16.msra.mxu0 0
      %1415 = vmatprep.subr.bf16.mxu0 0
      %1416 = vmatpush1.bf16.msra.mxu0 0
      %1417 = vmatprep.subr.bf16.mxu0 0
      %1418 = vmatpush1.bf16.msra.mxu0 0
      %1419 = vmatprep.subr.bf16.mxu0 0
      %1420 = vmatpush1.bf16.msra.mxu0 %v1403
      %1421 = vmatprep.subr.bf16.mxu0 0
      %1422 = vmatpush2.bf16.msra.mxu0 0
      %1423 = vmatprep.subr.bf16.mxu0 0
      %1424 = vmatpush2.bf16.msra.mxu0 0
      %1425 = vmatprep.subr.bf16.mxu0 0
      %1426 = vmatpush2.bf16.msra.mxu0 0
      %1427 = vmatprep.subr.bf16.mxu0 0
      %1428 = vmatpush2.bf16.msra.mxu0 0
      %1429 = vmatprep.subr.bf16.mxu0 0
      %1430 = vmatpush2.bf16.msra.mxu0 0
      %1431 = vmatprep.subr.bf16.mxu0 0
      %1432 = vmatpush2.bf16.msra.mxu0 0
      %1433 = vmatprep.subr.bf16.mxu0 0
      %1434 = vmatpush2.bf16.msra.mxu0 0
      %1435 = vmatprep.subr.bf16.mxu0 0
      %1436 = vmatpush2.bf16.msra.mxu0 0
      %1437 = vmatprep.mubr.bf16.mxu0 0
      %1438 = vmatmul.mubr.bf16.gmra.mxu0 %v1340
      %v1439 = vpop.f32.mrf.mxu0
      %v1440 = vadd.f32 0.0, %v1439
      %v1441 = vpop.f32.mrf.mxu0
      %v1442 = vpop.f32.mrf.mxu0
      %v1443 = vadd.f32 0.0, %v1442
      %v1444 = vpop.f32.mrf.mxu0
      %1445 = vmatprep.mubr.bf16.mxu0 0
      %1446 = vmatmul.mubr.bf16.gmra.mxu0 %v1343
      %v1447 = vpop.f32.mrf.mxu0
      %v1448 = vadd.f32 0.0, %v1447
      %v1449 = vpop.f32.mrf.mxu0
      %v1450 = vpop.f32.mrf.mxu0
      %v1451 = vadd.f32 0.0, %v1450
      %v1452 = vpop.f32.mrf.mxu0
      %1453 = vmatprep.mubr.bf16.mxu0 0
      %1454 = vmatmul.mubr.bf16.gmra.mxu0 %v1346
      %v1455 = vpop.f32.mrf.mxu0
      %v1456 = vadd.f32 0.0, %v1455
      %v1457 = vpop.f32.mrf.mxu0
      %v1458 = vpop.f32.mrf.mxu0
      %v1459 = vadd.f32 0.0, %v1458
      %v1460 = vpop.f32.mrf.mxu0
      %1461 = vmatprep.mubr.bf16.mxu0 0
      %1462 = vmatmul.mubr.bf16.gmra.mxu0 %v1349
      %v1463 = vpop.f32.mrf.mxu0
      %v1464 = vadd.f32 0.0, %v1463
      %v1465 = vpop.f32.mrf.mxu0
      %v1466 = vpop.f32.mrf.mxu0
      %v1467 = vadd.f32 0.0, %v1466
      %v1468 = vpop.f32.mrf.mxu0
      %1469 = vmatprep.mubr.bf16.mxu0 0
      %1470 = vmatmul.mubr.bf16.gmra.mxu0 %v1352
      %v1471 = vpop.f32.mrf.mxu0
      %v1472 = vadd.f32 0.0, %v1471
      %v1473 = vpop.f32.mrf.mxu0
      %v1474 = vpop.f32.mrf.mxu0
      %v1475 = vadd.f32 0.0, %v1474
      %v1476 = vpop.f32.mrf.mxu0
      %1477 = vmatprep.mubr.bf16.mxu0 0
      %1478 = vmatmul.mubr.bf16.gmra.mxu0 %v1355
      %v1479 = vpop.f32.mrf.mxu0
      %v1480 = vadd.f32 0.0, %v1479
      %v1481 = vpop.f32.mrf.mxu0
      %v1482 = vpop.f32.mrf.mxu0
      %v1483 = vadd.f32 0.0, %v1482
      %v1484 = vpop.f32.mrf.mxu0
      %1485 = vmatprep.mubr.bf16.mxu0 0
      %1486 = vmatmul.mubr.bf16.gmra.mxu0 %v1358
      %v1487 = vpop.f32.mrf.mxu0
      %v1488 = vadd.f32 0.0, %v1487
      %v1489 = vpop.f32.mrf.mxu0
      %v1490 = vpop.f32.mrf.mxu0
      %v1491 = vadd.f32 0.0, %v1490
      %v1492 = vpop.f32.mrf.mxu0
      %1493 = vmatprep.mubr.bf16.mxu0 0
      %1494 = vmatmul.mubr.bf16.gmra.mxu0 %v1361
      %v1495 = vpop.f32.mrf.mxu0
      %v1496 = vadd.f32 0.0, %v1495
      %v1497 = vpop.f32.mrf.mxu0
      %v1498 = vpop.f32.mrf.mxu0
      %v1499 = vadd.f32 0.0, %v1498
      %v1500 = vpop.f32.mrf.mxu0
      %1501 = vmatprep.mubr.bf16.mxu0 0
      %1502 = vmatmul.mubr.bf16.gmra.mxu0 %v1364
      %v1503 = vpop.f32.mrf.mxu0
      %v1504 = vadd.f32 0.0, %v1503
      %v1505 = vpop.f32.mrf.mxu0
      %v1506 = vpop.f32.mrf.mxu0
      %v1507 = vadd.f32 0.0, %v1506
      %v1508 = vpop.f32.mrf.mxu0
      %1509 = vmatprep.mubr.bf16.mxu0 0
      %1510 = vmatmul.mubr.bf16.gmra.mxu0 %v1367
      %v1511 = vpop.f32.mrf.mxu0
      %v1512 = vadd.f32 0.0, %v1511
      %v1513 = vpop.f32.mrf.mxu0
      %v1514 = vpop.f32.mrf.mxu0
      %v1515 = vadd.f32 0.0, %v1514
      %v1516 = vpop.f32.mrf.mxu0
      %1517 = vmatprep.mubr.bf16.mxu0 0
      %1518 = vmatmul.mubr.bf16.gmra.mxu0 %v1370
      %v1519 = vpop.f32.mrf.mxu0
      %v1520 = vadd.f32 0.0, %v1519
      %v1521 = vpop.f32.mrf.mxu0
      %v1522 = vpop.f32.mrf.mxu0
      %v1523 = vadd.f32 0.0, %v1522
      %v1524 = vpop.f32.mrf.mxu0
      %1525 = vmatprep.mubr.bf16.mxu0 0
      %1526 = vmatmul.mubr.bf16.gmra.mxu0 %v1373
      %v1527 = vpop.f32.mrf.mxu0
      %v1528 = vadd.f32 0.0, %v1527
      %v1529 = vpop.f32.mrf.mxu0
      %v1530 = vpop.f32.mrf.mxu0
      %v1531 = vadd.f32 0.0, %v1530
      %v1532 = vpop.f32.mrf.mxu0
      %1533 = vmatprep.mubr.bf16.mxu0 0
      %1534 = vmatmul.mubr.bf16.gmra.mxu0 %v1376
      %v1535 = vpop.f32.mrf.mxu0
      %v1536 = vadd.f32 0.0, %v1535
      %v1537 = vpop.f32.mrf.mxu0
      %v1538 = vpop.f32.mrf.mxu0
      %v1539 = vadd.f32 0.0, %v1538
      %v1540 = vpop.f32.mrf.mxu0
      %1541 = vmatprep.mubr.bf16.mxu0 0
      %1542 = vmatmul.mubr.bf16.gmra.mxu0 %v1379
      %v1543 = vpop.f32.mrf.mxu0
      %v1544 = vadd.f32 0.0, %v1543
      %v1545 = vpop.f32.mrf.mxu0
      %v1546 = vpop.f32.mrf.mxu0
      %v1547 = vadd.f32 0.0, %v1546
      %v1548 = vpop.f32.mrf.mxu0
      %1549 = vmatprep.mubr.bf16.mxu0 0
      %1550 = vmatmul.mubr.bf16.gmra.mxu0 %v1382
      %v1551 = vpop.f32.mrf.mxu0
      %v1552 = vadd.f32 0.0, %v1551
      %v1553 = vpop.f32.mrf.mxu0
      %v1554 = vpop.f32.mrf.mxu0
      %v1555 = vadd.f32 0.0, %v1554
      %v1556 = vpop.f32.mrf.mxu0
      %1557 = vmatprep.mubr.bf16.mxu0 0
      %1558 = vmatmul.mubr.bf16.gmra.mxu0 %v1385
      %v1559 = vpop.f32.mrf.mxu0
      %v1560 = vadd.f32 0.0, %v1559
      %v1561 = vpop.f32.mrf.mxu0
      %v1562 = vpop.f32.mrf.mxu0
      %v1563 = vadd.f32 0.0, %v1562
      %v1564 = vpop.f32.mrf.mxu0
      %1565 = vmatprep.mubr.bf16.mxu0 0
      %1566 = vmatmul.mubr.bf16.gmra.mxu0 %v1388
      %v1567 = vpop.f32.mrf.mxu0
      %v1568 = vadd.f32 0.0, %v1567
      %v1569 = vpop.f32.mrf.mxu0
      %v1570 = vpop.f32.mrf.mxu0
      %v1571 = vadd.f32 0.0, %v1570
      %v1572 = vpop.f32.mrf.mxu0
      %1573 = vmatprep.mubr.bf16.mxu0 0
      %1574 = vmatmul.mubr.bf16.gmra.mxu0 %v1391
      %v1575 = vpop.f32.mrf.mxu0
      %v1576 = vadd.f32 0.0, %v1575
      %v1577 = vpop.f32.mrf.mxu0
      %v1578 = vpop.f32.mrf.mxu0
      %v1579 = vadd.f32 0.0, %v1578
      %v1580 = vpop.f32.mrf.mxu0
      %1581 = vmatprep.mubr.bf16.mxu0 0
      %1582 = vmatmul.mubr.bf16.gmra.mxu0 %v1394
      %v1583 = vpop.f32.mrf.mxu0
      %v1584 = vadd.f32 0.0, %v1583
      %v1585 = vpop.f32.mrf.mxu0
      %v1586 = vpop.f32.mrf.mxu0
      %v1587 = vadd.f32 0.0, %v1586
      %v1588 = vpop.f32.mrf.mxu0
      %1589 = vmatprep.mubr.bf16.mxu0 0
      %1590 = vmatmul.mubr.bf16.gmra.mxu0 %v1397
      %v1591 = vpop.f32.mrf.mxu0
      %v1592 = vadd.f32 0.0, %v1591
      %v1593 = vpop.f32.mrf.mxu0
      %v1594 = vpop.f32.mrf.mxu0
      %v1595 = vadd.f32 0.0, %v1594
      %v1596 = vpop.f32.mrf.mxu0
      %1597 = vmatprep.mubr.bf16.mxu0 0
      %1598 = vmatmul.mubr.bf16.gmra.mxu0 %v1400
      %v1599 = vpop.f32.mrf.mxu0
      %v1600 = vadd.f32 0.0, %v1599
      %v1601 = vpop.f32.mrf.mxu0
      %v1602 = vpop.f32.mrf.mxu0
      %v1603 = vpop.f32.mrf.mxu0
      %1604 = vdwg.mxu0
      %v1605 = vadd.f32 %v1234, %v1440
      %v1606 = vadd.f32 %v1235, %v1443
      %v1607 = vadd.f32 %v1236, %v1448
      %v1608 = vadd.f32 %v1237, %v1451
      %v1609 = vadd.f32 %v1238, %v1456
      %v1610 = vadd.f32 %v1239, %v1459
      %v1611 = vadd.f32 %v1240, %v1464
      %v1612 = vadd.f32 %v1241, %v1467
      %v1613 = vadd.f32 %v1242, %v1472
      %v1614 = vadd.f32 %v1243, %v1475
      %v1615 = vadd.f32 %v1244, %v1480
      %v1616 = vadd.f32 %v1245, %v1483
      %v1617 = vadd.f32 %v1246, %v1488
      %v1618 = vadd.f32 %v1247, %v1491
      %v1619 = vadd.f32 %v1248, %v1496
      %v1620 = vadd.f32 %v1249, %v1499
      %v1621 = vadd.f32 %v1250, %v1504
      %v1622 = vadd.f32 %v1251, %v1507
      %v1623 = vadd.f32 %v1252, %v1512
      %v1624 = vadd.f32 %v1253, %v1515
      %v1625 = vadd.f32 %v1254, %v1520
      %v1626 = vadd.f32 %v1255, %v1523
      %v1627 = vadd.f32 %v1256, %v1528
      %v1628 = vadd.f32 %v1257, %v1531
      %v1629 = vadd.f32 %v1258, %v1536
      %v1630 = vadd.f32 %v1259, %v1539
      %v1631 = vadd.f32 %v1260, %v1544
      %v1632 = vadd.f32 %v1261, %v1547
      %v1633 = vadd.f32 %v1262, %v1552
      %v1634 = vadd.f32 %v1263, %v1555
      %v1635 = vadd.f32 %v1264, %v1560
      %v1636 = vadd.f32 %v1265, %v1563
      %v1637 = vadd.f32 %v1266, %v1568
      %v1638 = vadd.f32 %v1267, %v1571
      %v1639 = vadd.f32 %v1268, %v1576
      %v1640 = vadd.f32 %v1269, %v1579
      %v1641 = vadd.f32 %v1270, %v1584
      %v1642 = vadd.f32 %v1271, %v1587
      %v1643 = vadd.f32 %v1272, %v1592
      %v1644 = vadd.f32 %v1273, %v1595
      %v1645 = vadd.f32 %v1274, %v1600
      %v1646 = vld [vmem:[%s230 + $0x18] sm:$0xff]
      %v1647 = vld [vmem:[%s230 + $0x20] sm:$0xff]
      %v1648 = vld [vmem:[%s230 + $0x28] sm:$0xff]
      %v1649 = vld [vmem:[%s230 + $0x30] sm:$0xff]
      %v1650 = vld [vmem:[%s230 + $0x38] sm:$0xff]
      %v1651 = vld [vmem:[%s230 + $0x40] sm:$0xff]
      %v1652 = vld [vmem:[%s230 + $0x48] sm:$0xff]
      %v1653 = vld [vmem:[%s230 + $0x50] sm:$0xff]
      %v1654 = vld [vmem:[%s230 + $0x58] sm:$0xff]
      %v1655 = vld [vmem:[%s230 + $0x60] sm:$0xff]
      %v1656 = vld [vmem:[%s230 + $0x68] sm:$0xff]
      %v1657 = vld [vmem:[%s230 + $0x70] sm:$0xff]
      %v1658 = vld [vmem:[%s230 + $0x78] sm:$0xff]
      %v1659 = vld [vmem:[%s230 + $0x80] sm:$0xff]
      %v1660 = vld [vmem:[%s230 + $0x88] sm:$0xff]
      %v1661 = vld [vmem:[%s230 + $0x90] sm:$0xff]
      %v1662 = vld [vmem:[%s230 + $0x98] sm:$0xff]
      %v1663 = vld [vmem:[%s230 + $0xa0] sm:$0xff]
      %v1664 = vld [vmem:[%s230 + $0xa8] sm:$0xff]
      %v1665 = vld [vmem:[%s230 + $0xb0] sm:$0xff]
      %v1666 = vld [vmem:[%s230 + $0xb8] sm:$0xff]
      %v1667 = vld [vmem:[%s230 + $0xc0] sm:$0xff]
      %v1668 = vld [vmem:[%s230 + $0xc8] sm:$0xff]
      %v1669 = vld [vmem:[%s230 + $0xd0] sm:$0xff]
      %v1670 = vld [vmem:[%s230 + $0xd8] sm:$0xff]
      %v1671 = vld [vmem:[%s230 + $0xe0] sm:$0xff]
      %v1672 = vld [vmem:[%s230 + $0xe8] sm:$0xff]
      %v1673 = vld [vmem:[%s230 + $0xf0] sm:$0xff]
      %v1674 = vld [vmem:[%s230 + $0xf8] sm:$0xff]
      %v1675 = vld [vmem:[%s230 + $0x100] sm:$0xff]
      %v1676 = vld [vmem:[%s230 + $0x108] sm:$0xff]
      %v1677 = vld [vmem:[%s230 + $0x110] sm:$0xff]
      %v1678 = vld [vmem:[%s230 + $0x118] sm:$0xff]
      %v1679 = vld [vmem:[%s230 + $0x120] sm:$0xff]
      %v1680 = vld [vmem:[%s230 + $0x128] sm:$0xff]
      %v1681 = vld [vmem:[%s230 + $0x130] sm:$0xff]
      %v1682 = vld [vmem:[%s230 + $0x138] sm:$0xff]
      %v1683 = vld [vmem:[%s230 + $0x140] sm:$0xff]
      %v1684 = vld [vmem:[%s230 + $0x148] sm:$0xff]
      %v1685 = vld [vmem:[%s230 + $0x150] sm:$0xff]
      %v1686 = vld [vmem:[%s230 + $0x158] sm:$0xf]
      %v1687 = vpack.c.bf16 %v1647, %v1646
      %v1688 = vpack.c.bf16 %v1649, %v1648
      %v1689 = vpack.c.bf16 %v1651, %v1650
      %v1690 = vpack.c.bf16 %v1653, %v1652
      %v1691 = vpack.c.bf16 %v1655, %v1654
      %v1692 = vpack.c.bf16 %v1657, %v1656
      %v1693 = vpack.c.bf16 %v1659, %v1658
      %v1694 = vpack.c.bf16 %v1661, %v1660
      %v1695 = vpack.c.bf16 %v1663, %v1662
      %v1696 = vpack.c.bf16 %v1665, %v1664
      %v1697 = vpack.c.bf16 %v1667, %v1666
      %v1698 = vpack.c.bf16 %v1669, %v1668
      %v1699 = vpack.c.bf16 %v1671, %v1670
      %v1700 = vpack.c.bf16 %v1673, %v1672
      %v1701 = vpack.c.bf16 %v1675, %v1674
      %v1702 = vpack.c.bf16 %v1677, %v1676
      %v1703 = vpack.c.bf16 %v1679, %v1678
      %v1704 = vpack.c.bf16 %v1681, %v1680
      %v1705 = vpack.c.bf16 %v1683, %v1682
      %v1706 = vpack.c.bf16 %v1685, %v1684
      %v1707 = vpack.c.bf16 %v1686, %v1686
      %s1708 = scalar_lea.vmem %s1, 8
      %v1709 = vld [vmem:[%s1708] sm:$0x3]
      %v1711 = vsel %vm370, %v1687, 0
      %v1714 = vsel %vm370, %v1688, 0
      %v1717 = vsel %vm370, %v1689, 0
      %v1720 = vsel %vm370, %v1690, 0
      %v1723 = vsel %vm370, %v1691, 0
      %v1726 = vsel %vm370, %v1692, 0
      %v1729 = vsel %vm370, %v1693, 0
      %v1732 = vsel %vm370, %v1694, 0
      %v1735 = vsel %vm370, %v1695, 0
      %v1738 = vsel %vm370, %v1696, 0
      %v1741 = vsel %vm370, %v1697, 0
      %v1744 = vsel %vm370, %v1698, 0
      %v1747 = vsel %vm370, %v1699, 0
      %v1750 = vsel %vm370, %v1700, 0
      %v1753 = vsel %vm370, %v1701, 0
      %v1756 = vsel %vm370, %v1702, 0
      %v1759 = vsel %vm370, %v1703, 0
      %v1762 = vsel %vm370, %v1704, 0
      %v1765 = vsel %vm370, %v1705, 0
      %v1768 = vsel %vm370, %v1706, 0
      %v1771 = vsel %vm370, %v1707, 0
      %v1774 = vsel %vm434, %v1709, 0
      %1776 = vmatprep.subr.bf16.mxu0 0
      %1777 = vmatpush1.bf16.msra.mxu0 0
      %1778 = vmatprep.subr.bf16.mxu0 0
      %1779 = vmatpush1.bf16.msra.mxu0 0
      %1780 = vmatprep.subr.bf16.mxu0 0
      %1781 = vmatpush1.bf16.msra.mxu0 0
      %1782 = vmatprep.subr.bf16.mxu0 0
      %1783 = vmatpush1.bf16.msra.mxu0 0
      %1784 = vmatprep.subr.bf16.mxu0 0
      %1785 = vmatpush1.bf16.msra.mxu0 0
      %1786 = vmatprep.subr.bf16.mxu0 0
      %1787 = vmatpush1.bf16.msra.mxu0 0
      %1788 = vmatprep.subr.bf16.mxu0 0
      %1789 = vmatpush1.bf16.msra.mxu0 0
      %1790 = vmatprep.subr.bf16.mxu0 0
      %1791 = vmatpush1.bf16.msra.mxu0 %v1774
      %1792 = vmatprep.subr.bf16.mxu0 0
      %1793 = vmatpush2.bf16.msra.mxu0 0
      %1794 = vmatprep.subr.bf16.mxu0 0
      %1795 = vmatpush2.bf16.msra.mxu0 0
      %1796 = vmatprep.subr.bf16.mxu0 0
      %1797 = vmatpush2.bf16.msra.mxu0 0
      %1798 = vmatprep.subr.bf16.mxu0 0
      %1799 = vmatpush2.bf16.msra.mxu0 0
      %1800 = vmatprep.subr.bf16.mxu0 0
      %1801 = vmatpush2.bf16.msra.mxu0 0
      %1802 = vmatprep.subr.bf16.mxu0 0
      %1803 = vmatpush2.bf16.msra.mxu0 0
      %1804 = vmatprep.subr.bf16.mxu0 0
      %1805 = vmatpush2.bf16.msra.mxu0 0
      %1806 = vmatprep.subr.bf16.mxu0 0
      %1807 = vmatpush2.bf16.msra.mxu0 0
      %1808 = vmatprep.mubr.bf16.mxu0 0
      %1809 = vmatmul.mubr.bf16.gmra.mxu0 %v1711
      %v1810 = vpop.f32.mrf.mxu0
      %v1811 = vadd.f32 0.0, %v1810
      %v1812 = vpop.f32.mrf.mxu0
      %v1813 = vpop.f32.mrf.mxu0
      %v1814 = vadd.f32 0.0, %v1813
      %v1815 = vpop.f32.mrf.mxu0
      %1816 = vmatprep.mubr.bf16.mxu0 0
      %1817 = vmatmul.mubr.bf16.gmra.mxu0 %v1714
      %v1818 = vpop.f32.mrf.mxu0
      %v1819 = vadd.f32 0.0, %v1818
      %v1820 = vpop.f32.mrf.mxu0
      %v1821 = vpop.f32.mrf.mxu0
      %v1822 = vadd.f32 0.0, %v1821
      %v1823 = vpop.f32.mrf.mxu0
      %1824 = vmatprep.mubr.bf16.mxu0 0
      %1825 = vmatmul.mubr.bf16.gmra.mxu0 %v1717
      %v1826 = vpop.f32.mrf.mxu0
      %v1827 = vadd.f32 0.0, %v1826
      %v1828 = vpop.f32.mrf.mxu0
      %v1829 = vpop.f32.mrf.mxu0
      %v1830 = vadd.f32 0.0, %v1829
      %v1831 = vpop.f32.mrf.mxu0
      %1832 = vmatprep.mubr.bf16.mxu0 0
      %1833 = vmatmul.mubr.bf16.gmra.mxu0 %v1720
      %v1834 = vpop.f32.mrf.mxu0
      %v1835 = vadd.f32 0.0, %v1834
      %v1836 = vpop.f32.mrf.mxu0
      %v1837 = vpop.f32.mrf.mxu0
      %v1838 = vadd.f32 0.0, %v1837
      %v1839 = vpop.f32.mrf.mxu0
      %1840 = vmatprep.mubr.bf16.mxu0 0
      %1841 = vmatmul.mubr.bf16.gmra.mxu0 %v1723
      %v1842 = vpop.f32.mrf.mxu0
      %v1843 = vadd.f32 0.0, %v1842
      %v1844 = vpop.f32.mrf.mxu0
      %v1845 = vpop.f32.mrf.mxu0
      %v1846 = vadd.f32 0.0, %v1845
      %v1847 = vpop.f32.mrf.mxu0
      %1848 = vmatprep.mubr.bf16.mxu0 0
      %1849 = vmatmul.mubr.bf16.gmra.mxu0 %v1726
      %v1850 = vpop.f32.mrf.mxu0
      %v1851 = vadd.f32 0.0, %v1850
      %v1852 = vpop.f32.mrf.mxu0
      %v1853 = vpop.f32.mrf.mxu0
      %v1854 = vadd.f32 0.0, %v1853
      %v1855 = vpop.f32.mrf.mxu0
      %1856 = vmatprep.mubr.bf16.mxu0 0
      %1857 = vmatmul.mubr.bf16.gmra.mxu0 %v1729
      %v1858 = vpop.f32.mrf.mxu0
      %v1859 = vadd.f32 0.0, %v1858
      %v1860 = vpop.f32.mrf.mxu0
      %v1861 = vpop.f32.mrf.mxu0
      %v1862 = vadd.f32 0.0, %v1861
      %v1863 = vpop.f32.mrf.mxu0
      %1864 = vmatprep.mubr.bf16.mxu0 0
      %1865 = vmatmul.mubr.bf16.gmra.mxu0 %v1732
      %v1866 = vpop.f32.mrf.mxu0
      %v1867 = vadd.f32 0.0, %v1866
      %v1868 = vpop.f32.mrf.mxu0
      %v1869 = vpop.f32.mrf.mxu0
      %v1870 = vadd.f32 0.0, %v1869
      %v1871 = vpop.f32.mrf.mxu0
      %1872 = vmatprep.mubr.bf16.mxu0 0
      %1873 = vmatmul.mubr.bf16.gmra.mxu0 %v1735
      %v1874 = vpop.f32.mrf.mxu0
      %v1875 = vadd.f32 0.0, %v1874
      %v1876 = vpop.f32.mrf.mxu0
      %v1877 = vpop.f32.mrf.mxu0
      %v1878 = vadd.f32 0.0, %v1877
      %v1879 = vpop.f32.mrf.mxu0
      %1880 = vmatprep.mubr.bf16.mxu0 0
      %1881 = vmatmul.mubr.bf16.gmra.mxu0 %v1738
      %v1882 = vpop.f32.mrf.mxu0
      %v1883 = vadd.f32 0.0, %v1882
      %v1884 = vpop.f32.mrf.mxu0
      %v1885 = vpop.f32.mrf.mxu0
      %v1886 = vadd.f32 0.0, %v1885
      %v1887 = vpop.f32.mrf.mxu0
      %1888 = vmatprep.mubr.bf16.mxu0 0
      %1889 = vmatmul.mubr.bf16.gmra.mxu0 %v1741
      %v1890 = vpop.f32.mrf.mxu0
      %v1891 = vadd.f32 0.0, %v1890
      %v1892 = vpop.f32.mrf.mxu0
      %v1893 = vpop.f32.mrf.mxu0
      %v1894 = vadd.f32 0.0, %v1893
      %v1895 = vpop.f32.mrf.mxu0
      %1896 = vmatprep.mubr.bf16.mxu0 0
      %1897 = vmatmul.mubr.bf16.gmra.mxu0 %v1744
      %v1898 = vpop.f32.mrf.mxu0
      %v1899 = vadd.f32 0.0, %v1898
      %v1900 = vpop.f32.mrf.mxu0
      %v1901 = vpop.f32.mrf.mxu0
      %v1902 = vadd.f32 0.0, %v1901
      %v1903 = vpop.f32.mrf.mxu0
      %1904 = vmatprep.mubr.bf16.mxu0 0
      %1905 = vmatmul.mubr.bf16.gmra.mxu0 %v1747
      %v1906 = vpop.f32.mrf.mxu0
      %v1907 = vadd.f32 0.0, %v1906
      %v1908 = vpop.f32.mrf.mxu0
      %v1909 = vpop.f32.mrf.mxu0
      %v1910 = vadd.f32 0.0, %v1909
      %v1911 = vpop.f32.mrf.mxu0
      %1912 = vmatprep.mubr.bf16.mxu0 0
      %1913 = vmatmul.mubr.bf16.gmra.mxu0 %v1750
      %v1914 = vpop.f32.mrf.mxu0
      %v1915 = vadd.f32 0.0, %v1914
      %v1916 = vpop.f32.mrf.mxu0
      %v1917 = vpop.f32.mrf.mxu0
      %v1918 = vadd.f32 0.0, %v1917
      %v1919 = vpop.f32.mrf.mxu0
      %1920 = vmatprep.mubr.bf16.mxu0 0
      %1921 = vmatmul.mubr.bf16.gmra.mxu0 %v1753
      %v1922 = vpop.f32.mrf.mxu0
      %v1923 = vadd.f32 0.0, %v1922
      %v1924 = vpop.f32.mrf.mxu0
      %v1925 = vpop.f32.mrf.mxu0
      %v1926 = vadd.f32 0.0, %v1925
      %v1927 = vpop.f32.mrf.mxu0
      %1928 = vmatprep.mubr.bf16.mxu0 0
      %1929 = vmatmul.mubr.bf16.gmra.mxu0 %v1756
      %v1930 = vpop.f32.mrf.mxu0
      %v1931 = vadd.f32 0.0, %v1930
      %v1932 = vpop.f32.mrf.mxu0
      %v1933 = vpop.f32.mrf.mxu0
      %v1934 = vadd.f32 0.0, %v1933
      %v1935 = vpop.f32.mrf.mxu0
      %1936 = vmatprep.mubr.bf16.mxu0 0
      %1937 = vmatmul.mubr.bf16.gmra.mxu0 %v1759
      %v1938 = vpop.f32.mrf.mxu0
      %v1939 = vadd.f32 0.0, %v1938
      %v1940 = vpop.f32.mrf.mxu0
      %v1941 = vpop.f32.mrf.mxu0
      %v1942 = vadd.f32 0.0, %v1941
      %v1943 = vpop.f32.mrf.mxu0
      %1944 = vmatprep.mubr.bf16.mxu0 0
      %1945 = vmatmul.mubr.bf16.gmra.mxu0 %v1762
      %v1946 = vpop.f32.mrf.mxu0
      %v1947 = vadd.f32 0.0, %v1946
      %v1948 = vpop.f32.mrf.mxu0
      %v1949 = vpop.f32.mrf.mxu0
      %v1950 = vadd.f32 0.0, %v1949
      %v1951 = vpop.f32.mrf.mxu0
      %1952 = vmatprep.mubr.bf16.mxu0 0
      %1953 = vmatmul.mubr.bf16.gmra.mxu0 %v1765
      %v1954 = vpop.f32.mrf.mxu0
      %v1955 = vadd.f32 0.0, %v1954
      %v1956 = vpop.f32.mrf.mxu0
      %v1957 = vpop.f32.mrf.mxu0
      %v1958 = vadd.f32 0.0, %v1957
      %v1959 = vpop.f32.mrf.mxu0
      %1960 = vmatprep.mubr.bf16.mxu0 0
      %1961 = vmatmul.mubr.bf16.gmra.mxu0 %v1768
      %v1962 = vpop.f32.mrf.mxu0
      %v1963 = vadd.f32 0.0, %v1962
      %v1964 = vpop.f32.mrf.mxu0
      %v1965 = vpop.f32.mrf.mxu0
      %v1966 = vadd.f32 0.0, %v1965
      %v1967 = vpop.f32.mrf.mxu0
      %1968 = vmatprep.mubr.bf16.mxu0 0
      %1969 = vmatmul.mubr.bf16.gmra.mxu0 %v1771
      %v1970 = vpop.f32.mrf.mxu0
      %v1971 = vadd.f32 0.0, %v1970
      %v1972 = vpop.f32.mrf.mxu0
      %v1973 = vpop.f32.mrf.mxu0
      %v1974 = vpop.f32.mrf.mxu0
      %1975 = vdwg.mxu0
      %v1976 = vadd.f32 %v1605, %v1811
      %v1977 = vadd.f32 %v1606, %v1814
      %v1978 = vadd.f32 %v1607, %v1819
      %v1979 = vadd.f32 %v1608, %v1822
      %v1980 = vadd.f32 %v1609, %v1827
      %v1981 = vadd.f32 %v1610, %v1830
      %v1982 = vadd.f32 %v1611, %v1835
      %v1983 = vadd.f32 %v1612, %v1838
      %v1984 = vadd.f32 %v1613, %v1843
      %v1985 = vadd.f32 %v1614, %v1846
      %v1986 = vadd.f32 %v1615, %v1851
      %v1987 = vadd.f32 %v1616, %v1854
      %v1988 = vadd.f32 %v1617, %v1859
      %v1989 = vadd.f32 %v1618, %v1862
      %v1990 = vadd.f32 %v1619, %v1867
      %v1991 = vadd.f32 %v1620, %v1870
      %v1992 = vadd.f32 %v1621, %v1875
      %v1993 = vadd.f32 %v1622, %v1878
      %v1994 = vadd.f32 %v1623, %v1883
      %v1995 = vadd.f32 %v1624, %v1886
      %v1996 = vadd.f32 %v1625, %v1891
      %v1997 = vadd.f32 %v1626, %v1894
      %v1998 = vadd.f32 %v1627, %v1899
      %v1999 = vadd.f32 %v1628, %v1902
      %v2000 = vadd.f32 %v1629, %v1907
      %v2001 = vadd.f32 %v1630, %v1910
      %v2002 = vadd.f32 %v1631, %v1915
      %v2003 = vadd.f32 %v1632, %v1918
      %v2004 = vadd.f32 %v1633, %v1923
      %v2005 = vadd.f32 %v1634, %v1926
      %v2006 = vadd.f32 %v1635, %v1931
      %v2007 = vadd.f32 %v1636, %v1934
      %v2008 = vadd.f32 %v1637, %v1939
      %v2009 = vadd.f32 %v1638, %v1942
      %v2010 = vadd.f32 %v1639, %v1947
      %v2011 = vadd.f32 %v1640, %v1950
      %v2012 = vadd.f32 %v1641, %v1955
      %v2013 = vadd.f32 %v1642, %v1958
      %v2014 = vadd.f32 %v1643, %v1963
      %v2015 = vadd.f32 %v1644, %v1966
      %v2016 = vadd.f32 %v1645, %v1971
      %v2017 = vld [vmem:[%s230 + $0x19] sm:$0xff]
      %v2018 = vld [vmem:[%s230 + $0x21] sm:$0xff]
      %v2019 = vld [vmem:[%s230 + $0x29] sm:$0xff]
      %v2020 = vld [vmem:[%s230 + $0x31] sm:$0xff]
      %v2021 = vld [vmem:[%s230 + $0x39] sm:$0xff]
      %v2022 = vld [vmem:[%s230 + $0x41] sm:$0xff]
      %v2023 = vld [vmem:[%s230 + $0x49] sm:$0xff]
      %v2024 = vld [vmem:[%s230 + $0x51] sm:$0xff]
      %v2025 = vld [vmem:[%s230 + $0x59] sm:$0xff]
      %v2026 = vld [vmem:[%s230 + $0x61] sm:$0xff]
      %v2027 = vld [vmem:[%s230 + $0x69] sm:$0xff]
      %v2028 = vld [vmem:[%s230 + $0x71] sm:$0xff]
      %v2029 = vld [vmem:[%s230 + $0x79] sm:$0xff]
      %v2030 = vld [vmem:[%s230 + $0x81] sm:$0xff]
      %v2031 = vld [vmem:[%s230 + $0x89] sm:$0xff]
      %v2032 = vld [vmem:[%s230 + $0x91] sm:$0xff]
      %v2033 = vld [vmem:[%s230 + $0x99] sm:$0xff]
      %v2034 = vld [vmem:[%s230 + $0xa1] sm:$0xff]
      %v2035 = vld [vmem:[%s230 + $0xa9] sm:$0xff]
      %v2036 = vld [vmem:[%s230 + $0xb1] sm:$0xff]
      %v2037 = vld [vmem:[%s230 + $0xb9] sm:$0xff]
      %v2038 = vld [vmem:[%s230 + $0xc1] sm:$0xff]
      %v2039 = vld [vmem:[%s230 + $0xc9] sm:$0xff]
      %v2040 = vld [vmem:[%s230 + $0xd1] sm:$0xff]
      %v2041 = vld [vmem:[%s230 + $0xd9] sm:$0xff]
      %v2042 = vld [vmem:[%s230 + $0xe1] sm:$0xff]
      %v2043 = vld [vmem:[%s230 + $0xe9] sm:$0xff]
      %v2044 = vld [vmem:[%s230 + $0xf1] sm:$0xff]
      %v2045 = vld [vmem:[%s230 + $0xf9] sm:$0xff]
      %v2046 = vld [vmem:[%s230 + $0x101] sm:$0xff]
      %v2047 = vld [vmem:[%s230 + $0x109] sm:$0xff]
      %v2048 = vld [vmem:[%s230 + $0x111] sm:$0xff]
      %v2049 = vld [vmem:[%s230 + $0x119] sm:$0xff]
      %v2050 = vld [vmem:[%s230 + $0x121] sm:$0xff]
      %v2051 = vld [vmem:[%s230 + $0x129] sm:$0xff]
      %v2052 = vld [vmem:[%s230 + $0x131] sm:$0xff]
      %v2053 = vld [vmem:[%s230 + $0x139] sm:$0xff]
      %v2054 = vld [vmem:[%s230 + $0x141] sm:$0xff]
      %v2055 = vld [vmem:[%s230 + $0x149] sm:$0xff]
      %v2056 = vld [vmem:[%s230 + $0x151] sm:$0xff]
      %v2057 = vld [vmem:[%s230 + $0x159] sm:$0xf]
      %v2058 = vpack.c.bf16 %v2018, %v2017
      %v2059 = vpack.c.bf16 %v2020, %v2019
      %v2060 = vpack.c.bf16 %v2022, %v2021
      %v2061 = vpack.c.bf16 %v2024, %v2023
      %v2062 = vpack.c.bf16 %v2026, %v2025
      %v2063 = vpack.c.bf16 %v2028, %v2027
      %v2064 = vpack.c.bf16 %v2030, %v2029
      %v2065 = vpack.c.bf16 %v2032, %v2031
      %v2066 = vpack.c.bf16 %v2034, %v2033
      %v2067 = vpack.c.bf16 %v2036, %v2035
      %v2068 = vpack.c.bf16 %v2038, %v2037
      %v2069 = vpack.c.bf16 %v2040, %v2039
      %v2070 = vpack.c.bf16 %v2042, %v2041
      %v2071 = vpack.c.bf16 %v2044, %v2043
      %v2072 = vpack.c.bf16 %v2046, %v2045
      %v2073 = vpack.c.bf16 %v2048, %v2047
      %v2074 = vpack.c.bf16 %v2050, %v2049
      %v2075 = vpack.c.bf16 %v2052, %v2051
      %v2076 = vpack.c.bf16 %v2054, %v2053
      %v2077 = vpack.c.bf16 %v2056, %v2055
      %v2078 = vpack.c.bf16 %v2057, %v2057
      %s2079 = scalar_lea.vmem %s1, 10
      %v2080 = vld [vmem:[%s2079] sm:$0x3]
      %v2082 = vsel %vm370, %v2058, 0
      %v2085 = vsel %vm370, %v2059, 0
      %v2088 = vsel %vm370, %v2060, 0
      %v2091 = vsel %vm370, %v2061, 0
      %v2094 = vsel %vm370, %v2062, 0
      %v2097 = vsel %vm370, %v2063, 0
      %v2100 = vsel %vm370, %v2064, 0
      %v2103 = vsel %vm370, %v2065, 0
      %v2106 = vsel %vm370, %v2066, 0
      %v2109 = vsel %vm370, %v2067, 0
      %v2112 = vsel %vm370, %v2068, 0
      %v2115 = vsel %vm370, %v2069, 0
      %v2118 = vsel %vm370, %v2070, 0
      %v2121 = vsel %vm370, %v2071, 0
      %v2124 = vsel %vm370, %v2072, 0
      %v2127 = vsel %vm370, %v2073, 0
      %v2130 = vsel %vm370, %v2074, 0
      %v2133 = vsel %vm370, %v2075, 0
      %v2136 = vsel %vm370, %v2076, 0
      %v2139 = vsel %vm370, %v2077, 0
      %v2142 = vsel %vm370, %v2078, 0
      %v2145 = vsel %vm434, %v2080, 0
      %2147 = vmatprep.subr.bf16.mxu0 0
      %2148 = vmatpush1.bf16.msra.mxu0 0
      %2149 = vmatprep.subr.bf16.mxu0 0
      %2150 = vmatpush1.bf16.msra.mxu0 0
      %2151 = vmatprep.subr.bf16.mxu0 0
      %2152 = vmatpush1.bf16.msra.mxu0 0
      %2153 = vmatprep.subr.bf16.mxu0 0
      %2154 = vmatpush1.bf16.msra.mxu0 0
      %2155 = vmatprep.subr.bf16.mxu0 0
      %2156 = vmatpush1.bf16.msra.mxu0 0
      %2157 = vmatprep.subr.bf16.mxu0 0
      %2158 = vmatpush1.bf16.msra.mxu0 0
      %2159 = vmatprep.subr.bf16.mxu0 0
      %2160 = vmatpush1.bf16.msra.mxu0 0
      %2161 = vmatprep.subr.bf16.mxu0 0
      %2162 = vmatpush1.bf16.msra.mxu0 %v2145
      %2163 = vmatprep.subr.bf16.mxu0 0
      %2164 = vmatpush2.bf16.msra.mxu0 0
      %2165 = vmatprep.subr.bf16.mxu0 0
      %2166 = vmatpush2.bf16.msra.mxu0 0
      %2167 = vmatprep.subr.bf16.mxu0 0
      %2168 = vmatpush2.bf16.msra.mxu0 0
      %2169 = vmatprep.subr.bf16.mxu0 0
      %2170 = vmatpush2.bf16.msra.mxu0 0
      %2171 = vmatprep.subr.bf16.mxu0 0
      %2172 = vmatpush2.bf16.msra.mxu0 0
      %2173 = vmatprep.subr.bf16.mxu0 0
      %2174 = vmatpush2.bf16.msra.mxu0 0
      %2175 = vmatprep.subr.bf16.mxu0 0
      %2176 = vmatpush2.bf16.msra.mxu0 0
      %2177 = vmatprep.subr.bf16.mxu0 0
      %2178 = vmatpush2.bf16.msra.mxu0 0
      %2179 = vmatprep.mubr.bf16.mxu0 0
      %2180 = vmatmul.mubr.bf16.gmra.mxu0 %v2082
      %v2181 = vpop.f32.mrf.mxu0
      %v2182 = vadd.f32 0.0, %v2181
      %v2183 = vpop.f32.mrf.mxu0
      %v2184 = vpop.f32.mrf.mxu0
      %v2185 = vadd.f32 0.0, %v2184
      %v2186 = vpop.f32.mrf.mxu0
      %2187 = vmatprep.mubr.bf16.mxu0 0
      %2188 = vmatmul.mubr.bf16.gmra.mxu0 %v2085
      %v2189 = vpop.f32.mrf.mxu0
      %v2190 = vadd.f32 0.0, %v2189
      %v2191 = vpop.f32.mrf.mxu0
      %v2192 = vpop.f32.mrf.mxu0
      %v2193 = vadd.f32 0.0, %v2192
      %v2194 = vpop.f32.mrf.mxu0
      %2195 = vmatprep.mubr.bf16.mxu0 0
      %2196 = vmatmul.mubr.bf16.gmra.mxu0 %v2088
      %v2197 = vpop.f32.mrf.mxu0
      %v2198 = vadd.f32 0.0, %v2197
      %v2199 = vpop.f32.mrf.mxu0
      %v2200 = vpop.f32.mrf.mxu0
      %v2201 = vadd.f32 0.0, %v2200
      %v2202 = vpop.f32.mrf.mxu0
      %2203 = vmatprep.mubr.bf16.mxu0 0
      %2204 = vmatmul.mubr.bf16.gmra.mxu0 %v2091
      %v2205 = vpop.f32.mrf.mxu0
      %v2206 = vadd.f32 0.0, %v2205
      %v2207 = vpop.f32.mrf.mxu0
      %v2208 = vpop.f32.mrf.mxu0
      %v2209 = vadd.f32 0.0, %v2208
      %v2210 = vpop.f32.mrf.mxu0
      %2211 = vmatprep.mubr.bf16.mxu0 0
      %2212 = vmatmul.mubr.bf16.gmra.mxu0 %v2094
      %v2213 = vpop.f32.mrf.mxu0
      %v2214 = vadd.f32 0.0, %v2213
      %v2215 = vpop.f32.mrf.mxu0
      %v2216 = vpop.f32.mrf.mxu0
      %v2217 = vadd.f32 0.0, %v2216
      %v2218 = vpop.f32.mrf.mxu0
      %2219 = vmatprep.mubr.bf16.mxu0 0
      %2220 = vmatmul.mubr.bf16.gmra.mxu0 %v2097
      %v2221 = vpop.f32.mrf.mxu0
      %v2222 = vadd.f32 0.0, %v2221
      %v2223 = vpop.f32.mrf.mxu0
      %v2224 = vpop.f32.mrf.mxu0
      %v2225 = vadd.f32 0.0, %v2224
      %v2226 = vpop.f32.mrf.mxu0
      %2227 = vmatprep.mubr.bf16.mxu0 0
      %2228 = vmatmul.mubr.bf16.gmra.mxu0 %v2100
      %v2229 = vpop.f32.mrf.mxu0
      %v2230 = vadd.f32 0.0, %v2229
      %v2231 = vpop.f32.mrf.mxu0
      %v2232 = vpop.f32.mrf.mxu0
      %v2233 = vadd.f32 0.0, %v2232
      %v2234 = vpop.f32.mrf.mxu0
      %2235 = vmatprep.mubr.bf16.mxu0 0
      %2236 = vmatmul.mubr.bf16.gmra.mxu0 %v2103
      %v2237 = vpop.f32.mrf.mxu0
      %v2238 = vadd.f32 0.0, %v2237
      %v2239 = vpop.f32.mrf.mxu0
      %v2240 = vpop.f32.mrf.mxu0
      %v2241 = vadd.f32 0.0, %v2240
      %v2242 = vpop.f32.mrf.mxu0
      %2243 = vmatprep.mubr.bf16.mxu0 0
      %2244 = vmatmul.mubr.bf16.gmra.mxu0 %v2106
      %v2245 = vpop.f32.mrf.mxu0
      %v2246 = vadd.f32 0.0, %v2245
      %v2247 = vpop.f32.mrf.mxu0
      %v2248 = vpop.f32.mrf.mxu0
      %v2249 = vadd.f32 0.0, %v2248
      %v2250 = vpop.f32.mrf.mxu0
      %2251 = vmatprep.mubr.bf16.mxu0 0
      %2252 = vmatmul.mubr.bf16.gmra.mxu0 %v2109
      %v2253 = vpop.f32.mrf.mxu0
      %v2254 = vadd.f32 0.0, %v2253
      %v2255 = vpop.f32.mrf.mxu0
      %v2256 = vpop.f32.mrf.mxu0
      %v2257 = vadd.f32 0.0, %v2256
      %v2258 = vpop.f32.mrf.mxu0
      %2259 = vmatprep.mubr.bf16.mxu0 0
      %2260 = vmatmul.mubr.bf16.gmra.mxu0 %v2112
      %v2261 = vpop.f32.mrf.mxu0
      %v2262 = vadd.f32 0.0, %v2261
      %v2263 = vpop.f32.mrf.mxu0
      %v2264 = vpop.f32.mrf.mxu0
      %v2265 = vadd.f32 0.0, %v2264
      %v2266 = vpop.f32.mrf.mxu0
      %2267 = vmatprep.mubr.bf16.mxu0 0
      %2268 = vmatmul.mubr.bf16.gmra.mxu0 %v2115
      %v2269 = vpop.f32.mrf.mxu0
      %v2270 = vadd.f32 0.0, %v2269
      %v2271 = vpop.f32.mrf.mxu0
      %v2272 = vpop.f32.mrf.mxu0
      %v2273 = vadd.f32 0.0, %v2272
      %v2274 = vpop.f32.mrf.mxu0
      %2275 = vmatprep.mubr.bf16.mxu0 0
      %2276 = vmatmul.mubr.bf16.gmra.mxu0 %v2118
      %v2277 = vpop.f32.mrf.mxu0
      %v2278 = vadd.f32 0.0, %v2277
      %v2279 = vpop.f32.mrf.mxu0
      %v2280 = vpop.f32.mrf.mxu0
      %v2281 = vadd.f32 0.0, %v2280
      %v2282 = vpop.f32.mrf.mxu0
      %2283 = vmatprep.mubr.bf16.mxu0 0
      %2284 = vmatmul.mubr.bf16.gmra.mxu0 %v2121
      %v2285 = vpop.f32.mrf.mxu0
      %v2286 = vadd.f32 0.0, %v2285
      %v2287 = vpop.f32.mrf.mxu0
      %v2288 = vpop.f32.mrf.mxu0
      %v2289 = vadd.f32 0.0, %v2288
      %v2290 = vpop.f32.mrf.mxu0
      %2291 = vmatprep.mubr.bf16.mxu0 0
      %2292 = vmatmul.mubr.bf16.gmra.mxu0 %v2124
      %v2293 = vpop.f32.mrf.mxu0
      %v2294 = vadd.f32 0.0, %v2293
      %v2295 = vpop.f32.mrf.mxu0
      %v2296 = vpop.f32.mrf.mxu0
      %v2297 = vadd.f32 0.0, %v2296
      %v2298 = vpop.f32.mrf.mxu0
      %2299 = vmatprep.mubr.bf16.mxu0 0
      %2300 = vmatmul.mubr.bf16.gmra.mxu0 %v2127
      %v2301 = vpop.f32.mrf.mxu0
      %v2302 = vadd.f32 0.0, %v2301
      %v2303 = vpop.f32.mrf.mxu0
      %v2304 = vpop.f32.mrf.mxu0
      %v2305 = vadd.f32 0.0, %v2304
      %v2306 = vpop.f32.mrf.mxu0
      %2307 = vmatprep.mubr.bf16.mxu0 0
      %2308 = vmatmul.mubr.bf16.gmra.mxu0 %v2130
      %v2309 = vpop.f32.mrf.mxu0
      %v2310 = vadd.f32 0.0, %v2309
      %v2311 = vpop.f32.mrf.mxu0
      %v2312 = vpop.f32.mrf.mxu0
      %v2313 = vadd.f32 0.0, %v2312
      %v2314 = vpop.f32.mrf.mxu0
      %2315 = vmatprep.mubr.bf16.mxu0 0
      %2316 = vmatmul.mubr.bf16.gmra.mxu0 %v2133
      %v2317 = vpop.f32.mrf.mxu0
      %v2318 = vadd.f32 0.0, %v2317
      %v2319 = vpop.f32.mrf.mxu0
      %v2320 = vpop.f32.mrf.mxu0
      %v2321 = vadd.f32 0.0, %v2320
      %v2322 = vpop.f32.mrf.mxu0
      %2323 = vmatprep.mubr.bf16.mxu0 0
      %2324 = vmatmul.mubr.bf16.gmra.mxu0 %v2136
      %v2325 = vpop.f32.mrf.mxu0
      %v2326 = vadd.f32 0.0, %v2325
      %v2327 = vpop.f32.mrf.mxu0
      %v2328 = vpop.f32.mrf.mxu0
      %v2329 = vadd.f32 0.0, %v2328
      %v2330 = vpop.f32.mrf.mxu0
      %2331 = vmatprep.mubr.bf16.mxu0 0
      %2332 = vmatmul.mubr.bf16.gmra.mxu0 %v2139
      %v2333 = vpop.f32.mrf.mxu0
      %v2334 = vadd.f32 0.0, %v2333
      %v2335 = vpop.f32.mrf.mxu0
      %v2336 = vpop.f32.mrf.mxu0
      %v2337 = vadd.f32 0.0, %v2336
      %v2338 = vpop.f32.mrf.mxu0
      %2339 = vmatprep.mubr.bf16.mxu0 0
      %2340 = vmatmul.mubr.bf16.gmra.mxu0 %v2142
      %v2341 = vpop.f32.mrf.mxu0
      %v2342 = vadd.f32 0.0, %v2341
      %v2343 = vpop.f32.mrf.mxu0
      %v2344 = vpop.f32.mrf.mxu0
      %v2345 = vpop.f32.mrf.mxu0
      %2346 = vdwg.mxu0
      %v2347 = vadd.f32 %v1976, %v2182
      %v2348 = vadd.f32 %v1977, %v2185
      %v2349 = vadd.f32 %v1978, %v2190
      %v2350 = vadd.f32 %v1979, %v2193
      %v2351 = vadd.f32 %v1980, %v2198
      %v2352 = vadd.f32 %v1981, %v2201
      %v2353 = vadd.f32 %v1982, %v2206
      %v2354 = vadd.f32 %v1983, %v2209
      %v2355 = vadd.f32 %v1984, %v2214
      %v2356 = vadd.f32 %v1985, %v2217
      %v2357 = vadd.f32 %v1986, %v2222
      %v2358 = vadd.f32 %v1987, %v2225
      %v2359 = vadd.f32 %v1988, %v2230
      %v2360 = vadd.f32 %v1989, %v2233
      %v2361 = vadd.f32 %v1990, %v2238
      %v2362 = vadd.f32 %v1991, %v2241
      %v2363 = vadd.f32 %v1992, %v2246
      %v2364 = vadd.f32 %v1993, %v2249
      %v2365 = vadd.f32 %v1994, %v2254
      %v2366 = vadd.f32 %v1995, %v2257
      %v2367 = vadd.f32 %v1996, %v2262
      %v2368 = vadd.f32 %v1997, %v2265
      %v2369 = vadd.f32 %v1998, %v2270
      %v2370 = vadd.f32 %v1999, %v2273
      %v2371 = vadd.f32 %v2000, %v2278
      %v2372 = vadd.f32 %v2001, %v2281
      %v2373 = vadd.f32 %v2002, %v2286
      %v2374 = vadd.f32 %v2003, %v2289
      %v2375 = vadd.f32 %v2004, %v2294
      %v2376 = vadd.f32 %v2005, %v2297
      %v2377 = vadd.f32 %v2006, %v2302
      %v2378 = vadd.f32 %v2007, %v2305
      %v2379 = vadd.f32 %v2008, %v2310
      %v2380 = vadd.f32 %v2009, %v2313
      %v2381 = vadd.f32 %v2010, %v2318
      %v2382 = vadd.f32 %v2011, %v2321
      %v2383 = vadd.f32 %v2012, %v2326
      %v2384 = vadd.f32 %v2013, %v2329
      %v2385 = vadd.f32 %v2014, %v2334
      %v2386 = vadd.f32 %v2015, %v2337
      %v2387 = vadd.f32 %v2016, %v2342
      %v2388 = vld [vmem:[%s230 + $0x29] sm:$0xff]
      %v2389 = vld [vmem:[%s230 + $0x31] sm:$0xff]
      %v2390 = vld [vmem:[%s230 + $0x39] sm:$0xff]
      %v2391 = vld [vmem:[%s230 + $0x41] sm:$0xff]
      %v2392 = vld [vmem:[%s230 + $0x49] sm:$0xff]
      %v2393 = vld [vmem:[%s230 + $0x51] sm:$0xff]
      %v2394 = vld [vmem:[%s230 + $0x59] sm:$0xff]
      %v2395 = vld [vmem:[%s230 + $0x61] sm:$0xff]
      %v2396 = vld [vmem:[%s230 + $0x69] sm:$0xff]
      %v2397 = vld [vmem:[%s230 + $0x71] sm:$0xff]
      %v2398 = vld [vmem:[%s230 + $0x79] sm:$0xff]
      %v2399 = vld [vmem:[%s230 + $0x81] sm:$0xff]
      %v2400 = vld [vmem:[%s230 + $0x89] sm:$0xff]
      %v2401 = vld [vmem:[%s230 + $0x91] sm:$0xff]
      %v2402 = vld [vmem:[%s230 + $0x99] sm:$0xff]
      %v2403 = vld [vmem:[%s230 + $0xa1] sm:$0xff]
      %v2404 = vld [vmem:[%s230 + $0xa9] sm:$0xff]
      %v2405 = vld [vmem:[%s230 + $0xb1] sm:$0xff]
      %v2406 = vld [vmem:[%s230 + $0xb9] sm:$0xff]
      %v2407 = vld [vmem:[%s230 + $0xc1] sm:$0xff]
      %v2408 = vld [vmem:[%s230 + $0xc9] sm:$0xff]
      %v2409 = vld [vmem:[%s230 + $0xd1] sm:$0xff]
      %v2410 = vld [vmem:[%s230 + $0xd9] sm:$0xff]
      %v2411 = vld [vmem:[%s230 + $0xe1] sm:$0xff]
      %v2412 = vld [vmem:[%s230 + $0xe9] sm:$0xff]
      %v2413 = vld [vmem:[%s230 + $0xf1] sm:$0xff]
      %v2414 = vld [vmem:[%s230 + $0xf9] sm:$0xff]
      %v2415 = vld [vmem:[%s230 + $0x101] sm:$0xff]
      %v2416 = vld [vmem:[%s230 + $0x109] sm:$0xff]
      %v2417 = vld [vmem:[%s230 + $0x111] sm:$0xff]
      %v2418 = vld [vmem:[%s230 + $0x119] sm:$0xff]
      %v2419 = vld [vmem:[%s230 + $0x121] sm:$0xff]
      %v2420 = vld [vmem:[%s230 + $0x129] sm:$0xff]
      %v2421 = vld [vmem:[%s230 + $0x131] sm:$0xff]
      %v2422 = vld [vmem:[%s230 + $0x139] sm:$0xff]
      %v2423 = vld [vmem:[%s230 + $0x141] sm:$0xff]
      %v2424 = vld [vmem:[%s230 + $0x149] sm:$0xff]
      %v2425 = vld [vmem:[%s230 + $0x151] sm:$0xff]
      %v2426 = vld [vmem:[%s230 + $0x159] sm:$0xff]
      %v2427 = vld [vmem:[%s230 + $0x161] sm:$0xff]
      %v2428 = vld [vmem:[%s230 + $0x169] sm:$0xf]
      %v2429 = vpack.c.bf16 %v2389, %v2388
      %v2430 = vpack.c.bf16 %v2391, %v2390
      %v2431 = vpack.c.bf16 %v2393, %v2392
      %v2432 = vpack.c.bf16 %v2395, %v2394
      %v2433 = vpack.c.bf16 %v2397, %v2396
      %v2434 = vpack.c.bf16 %v2399, %v2398
      %v2435 = vpack.c.bf16 %v2401, %v2400
      %v2436 = vpack.c.bf16 %v2403, %v2402
      %v2437 = vpack.c.bf16 %v2405, %v2404
      %v2438 = vpack.c.bf16 %v2407, %v2406
      %v2439 = vpack.c.bf16 %v2409, %v2408
      %v2440 = vpack.c.bf16 %v2411, %v2410
      %v2441 = vpack.c.bf16 %v2413, %v2412
      %v2442 = vpack.c.bf16 %v2415, %v2414
      %v2443 = vpack.c.bf16 %v2417, %v2416
      %v2444 = vpack.c.bf16 %v2419, %v2418
      %v2445 = vpack.c.bf16 %v2421, %v2420
      %v2446 = vpack.c.bf16 %v2423, %v2422
      %v2447 = vpack.c.bf16 %v2425, %v2424
      %v2448 = vpack.c.bf16 %v2427, %v2426
      %v2449 = vpack.c.bf16 %v2428, %v2428
      %s2450 = scalar_lea.vmem %s1, 12
      %v2451 = vld [vmem:[%s2450] sm:$0x3]
      %v2453 = vsel %vm370, %v2429, 0
      %v2456 = vsel %vm370, %v2430, 0
      %v2459 = vsel %vm370, %v2431, 0
      %v2462 = vsel %vm370, %v2432, 0
      %v2465 = vsel %vm370, %v2433, 0
      %v2468 = vsel %vm370, %v2434, 0
      %v2471 = vsel %vm370, %v2435, 0
      %v2474 = vsel %vm370, %v2436, 0
      %v2477 = vsel %vm370, %v2437, 0
      %v2480 = vsel %vm370, %v2438, 0
      %v2483 = vsel %vm370, %v2439, 0
      %v2486 = vsel %vm370, %v2440, 0
      %v2489 = vsel %vm370, %v2441, 0
      %v2492 = vsel %vm370, %v2442, 0
      %v2495 = vsel %vm370, %v2443, 0
      %v2498 = vsel %vm370, %v2444, 0
      %v2501 = vsel %vm370, %v2445, 0
      %v2504 = vsel %vm370, %v2446, 0
      %v2507 = vsel %vm370, %v2447, 0
      %v2510 = vsel %vm370, %v2448, 0
      %v2513 = vsel %vm370, %v2449, 0
      %v2516 = vsel %vm434, %v2451, 0
      %2518 = vmatprep.subr.bf16.mxu0 0
      %2519 = vmatpush1.bf16.msra.mxu0 0
      %2520 = vmatprep.subr.bf16.mxu0 0
      %2521 = vmatpush1.bf16.msra.mxu0 0
      %2522 = vmatprep.subr.bf16.mxu0 0
      %2523 = vmatpush1.bf16.msra.mxu0 0
      %2524 = vmatprep.subr.bf16.mxu0 0
      %2525 = vmatpush1.bf16.msra.mxu0 0
      %2526 = vmatprep.subr.bf16.mxu0 0
      %2527 = vmatpush1.bf16.msra.mxu0 0
      %2528 = vmatprep.subr.bf16.mxu0 0
      %2529 = vmatpush1.bf16.msra.mxu0 0
      %2530 = vmatprep.subr.bf16.mxu0 0
      %2531 = vmatpush1.bf16.msra.mxu0 0
      %2532 = vmatprep.subr.bf16.mxu0 0
      %2533 = vmatpush1.bf16.msra.mxu0 %v2516
      %2534 = vmatprep.subr.bf16.mxu0 0
      %2535 = vmatpush2.bf16.msra.mxu0 0
      %2536 = vmatprep.subr.bf16.mxu0 0
      %2537 = vmatpush2.bf16.msra.mxu0 0
      %2538 = vmatprep.subr.bf16.mxu0 0
      %2539 = vmatpush2.bf16.msra.mxu0 0
      %2540 = vmatprep.subr.bf16.mxu0 0
      %2541 = vmatpush2.bf16.msra.mxu0 0
      %2542 = vmatprep.subr.bf16.mxu0 0
      %2543 = vmatpush2.bf16.msra.mxu0 0
      %2544 = vmatprep.subr.bf16.mxu0 0
      %2545 = vmatpush2.bf16.msra.mxu0 0
      %2546 = vmatprep.subr.bf16.mxu0 0
      %2547 = vmatpush2.bf16.msra.mxu0 0
      %2548 = vmatprep.subr.bf16.mxu0 0
      %2549 = vmatpush2.bf16.msra.mxu0 0
      %2550 = vmatprep.mubr.bf16.mxu0 0
      %2551 = vmatmul.mubr.bf16.gmra.mxu0 %v2453
      %v2552 = vpop.f32.mrf.mxu0
      %v2553 = vadd.f32 0.0, %v2552
      %v2554 = vpop.f32.mrf.mxu0
      %v2555 = vpop.f32.mrf.mxu0
      %v2556 = vadd.f32 0.0, %v2555
      %v2557 = vpop.f32.mrf.mxu0
      %2558 = vmatprep.mubr.bf16.mxu0 0
      %2559 = vmatmul.mubr.bf16.gmra.mxu0 %v2456
      %v2560 = vpop.f32.mrf.mxu0
      %v2561 = vadd.f32 0.0, %v2560
      %v2562 = vpop.f32.mrf.mxu0
      %v2563 = vpop.f32.mrf.mxu0
      %v2564 = vadd.f32 0.0, %v2563
      %v2565 = vpop.f32.mrf.mxu0
      %2566 = vmatprep.mubr.bf16.mxu0 0
      %2567 = vmatmul.mubr.bf16.gmra.mxu0 %v2459
      %v2568 = vpop.f32.mrf.mxu0
      %v2569 = vadd.f32 0.0, %v2568
      %v2570 = vpop.f32.mrf.mxu0
      %v2571 = vpop.f32.mrf.mxu0
      %v2572 = vadd.f32 0.0, %v2571
      %v2573 = vpop.f32.mrf.mxu0
      %2574 = vmatprep.mubr.bf16.mxu0 0
      %2575 = vmatmul.mubr.bf16.gmra.mxu0 %v2462
      %v2576 = vpop.f32.mrf.mxu0
      %v2577 = vadd.f32 0.0, %v2576
      %v2578 = vpop.f32.mrf.mxu0
      %v2579 = vpop.f32.mrf.mxu0
      %v2580 = vadd.f32 0.0, %v2579
      %v2581 = vpop.f32.mrf.mxu0
      %2582 = vmatprep.mubr.bf16.mxu0 0
      %2583 = vmatmul.mubr.bf16.gmra.mxu0 %v2465
      %v2584 = vpop.f32.mrf.mxu0
      %v2585 = vadd.f32 0.0, %v2584
      %v2586 = vpop.f32.mrf.mxu0
      %v2587 = vpop.f32.mrf.mxu0
      %v2588 = vadd.f32 0.0, %v2587
      %v2589 = vpop.f32.mrf.mxu0
      %2590 = vmatprep.mubr.bf16.mxu0 0
      %2591 = vmatmul.mubr.bf16.gmra.mxu0 %v2468
      %v2592 = vpop.f32.mrf.mxu0
      %v2593 = vadd.f32 0.0, %v2592
      %v2594 = vpop.f32.mrf.mxu0
      %v2595 = vpop.f32.mrf.mxu0
      %v2596 = vadd.f32 0.0, %v2595
      %v2597 = vpop.f32.mrf.mxu0
      %2598 = vmatprep.mubr.bf16.mxu0 0
      %2599 = vmatmul.mubr.bf16.gmra.mxu0 %v2471
      %v2600 = vpop.f32.mrf.mxu0
      %v2601 = vadd.f32 0.0, %v2600
      %v2602 = vpop.f32.mrf.mxu0
      %v2603 = vpop.f32.mrf.mxu0
      %v2604 = vadd.f32 0.0, %v2603
      %v2605 = vpop.f32.mrf.mxu0
      %2606 = vmatprep.mubr.bf16.mxu0 0
      %2607 = vmatmul.mubr.bf16.gmra.mxu0 %v2474
      %v2608 = vpop.f32.mrf.mxu0
      %v2609 = vadd.f32 0.0, %v2608
      %v2610 = vpop.f32.mrf.mxu0
      %v2611 = vpop.f32.mrf.mxu0
      %v2612 = vadd.f32 0.0, %v2611
      %v2613 = vpop.f32.mrf.mxu0
      %2614 = vmatprep.mubr.bf16.mxu0 0
      %2615 = vmatmul.mubr.bf16.gmra.mxu0 %v2477
      %v2616 = vpop.f32.mrf.mxu0
      %v2617 = vadd.f32 0.0, %v2616
      %v2618 = vpop.f32.mrf.mxu0
      %v2619 = vpop.f32.mrf.mxu0
      %v2620 = vadd.f32 0.0, %v2619
      %v2621 = vpop.f32.mrf.mxu0
      %2622 = vmatprep.mubr.bf16.mxu0 0
      %2623 = vmatmul.mubr.bf16.gmra.mxu0 %v2480
      %v2624 = vpop.f32.mrf.mxu0
      %v2625 = vadd.f32 0.0, %v2624
      %v2626 = vpop.f32.mrf.mxu0
      %v2627 = vpop.f32.mrf.mxu0
      %v2628 = vadd.f32 0.0, %v2627
      %v2629 = vpop.f32.mrf.mxu0
      %2630 = vmatprep.mubr.bf16.mxu0 0
      %2631 = vmatmul.mubr.bf16.gmra.mxu0 %v2483
      %v2632 = vpop.f32.mrf.mxu0
      %v2633 = vadd.f32 0.0, %v2632
      %v2634 = vpop.f32.mrf.mxu0
      %v2635 = vpop.f32.mrf.mxu0
      %v2636 = vadd.f32 0.0, %v2635
      %v2637 = vpop.f32.mrf.mxu0
      %2638 = vmatprep.mubr.bf16.mxu0 0
      %2639 = vmatmul.mubr.bf16.gmra.mxu0 %v2486
      %v2640 = vpop.f32.mrf.mxu0
      %v2641 = vadd.f32 0.0, %v2640
      %v2642 = vpop.f32.mrf.mxu0
      %v2643 = vpop.f32.mrf.mxu0
      %v2644 = vadd.f32 0.0, %v2643
      %v2645 = vpop.f32.mrf.mxu0
      %2646 = vmatprep.mubr.bf16.mxu0 0
      %2647 = vmatmul.mubr.bf16.gmra.mxu0 %v2489
      %v2648 = vpop.f32.mrf.mxu0
      %v2649 = vadd.f32 0.0, %v2648
      %v2650 = vpop.f32.mrf.mxu0
      %v2651 = vpop.f32.mrf.mxu0
      %v2652 = vadd.f32 0.0, %v2651
      %v2653 = vpop.f32.mrf.mxu0
      %2654 = vmatprep.mubr.bf16.mxu0 0
      %2655 = vmatmul.mubr.bf16.gmra.mxu0 %v2492
      %v2656 = vpop.f32.mrf.mxu0
      %v2657 = vadd.f32 0.0, %v2656
      %v2658 = vpop.f32.mrf.mxu0
      %v2659 = vpop.f32.mrf.mxu0
      %v2660 = vadd.f32 0.0, %v2659
      %v2661 = vpop.f32.mrf.mxu0
      %2662 = vmatprep.mubr.bf16.mxu0 0
      %2663 = vmatmul.mubr.bf16.gmra.mxu0 %v2495
      %v2664 = vpop.f32.mrf.mxu0
      %v2665 = vadd.f32 0.0, %v2664
      %v2666 = vpop.f32.mrf.mxu0
      %v2667 = vpop.f32.mrf.mxu0
      %v2668 = vadd.f32 0.0, %v2667
      %v2669 = vpop.f32.mrf.mxu0
      %2670 = vmatprep.mubr.bf16.mxu0 0
      %2671 = vmatmul.mubr.bf16.gmra.mxu0 %v2498
      %v2672 = vpop.f32.mrf.mxu0
      %v2673 = vadd.f32 0.0, %v2672
      %v2674 = vpop.f32.mrf.mxu0
      %v2675 = vpop.f32.mrf.mxu0
      %v2676 = vadd.f32 0.0, %v2675
      %v2677 = vpop.f32.mrf.mxu0
      %2678 = vmatprep.mubr.bf16.mxu0 0
      %2679 = vmatmul.mubr.bf16.gmra.mxu0 %v2501
      %v2680 = vpop.f32.mrf.mxu0
      %v2681 = vadd.f32 0.0, %v2680
      %v2682 = vpop.f32.mrf.mxu0
      %v2683 = vpop.f32.mrf.mxu0
      %v2684 = vadd.f32 0.0, %v2683
      %v2685 = vpop.f32.mrf.mxu0
      %2686 = vmatprep.mubr.bf16.mxu0 0
      %2687 = vmatmul.mubr.bf16.gmra.mxu0 %v2504
      %v2688 = vpop.f32.mrf.mxu0
      %v2689 = vadd.f32 0.0, %v2688
      %v2690 = vpop.f32.mrf.mxu0
      %v2691 = vpop.f32.mrf.mxu0
      %v2692 = vadd.f32 0.0, %v2691
      %v2693 = vpop.f32.mrf.mxu0
      %2694 = vmatprep.mubr.bf16.mxu0 0
      %2695 = vmatmul.mubr.bf16.gmra.mxu0 %v2507
      %v2696 = vpop.f32.mrf.mxu0
      %v2697 = vadd.f32 0.0, %v2696
      %v2698 = vpop.f32.mrf.mxu0
      %v2699 = vpop.f32.mrf.mxu0
      %v2700 = vadd.f32 0.0, %v2699
      %v2701 = vpop.f32.mrf.mxu0
      %2702 = vmatprep.mubr.bf16.mxu0 0
      %2703 = vmatmul.mubr.bf16.gmra.mxu0 %v2510
      %v2704 = vpop.f32.mrf.mxu0
      %v2705 = vadd.f32 0.0, %v2704
      %v2706 = vpop.f32.mrf.mxu0
      %v2707 = vpop.f32.mrf.mxu0
      %v2708 = vadd.f32 0.0, %v2707
      %v2709 = vpop.f32.mrf.mxu0
      %2710 = vmatprep.mubr.bf16.mxu0 0
      %2711 = vmatmul.mubr.bf16.gmra.mxu0 %v2513
      %v2712 = vpop.f32.mrf.mxu0
      %v2713 = vadd.f32 0.0, %v2712
      %v2714 = vpop.f32.mrf.mxu0
      %v2715 = vpop.f32.mrf.mxu0
      %v2716 = vpop.f32.mrf.mxu0
      %2717 = vdwg.mxu0
      %v2718 = vadd.f32 %v2347, %v2553
      %v2719 = vadd.f32 %v2348, %v2556
      %v2720 = vadd.f32 %v2349, %v2561
      %v2721 = vadd.f32 %v2350, %v2564
      %v2722 = vadd.f32 %v2351, %v2569
      %v2723 = vadd.f32 %v2352, %v2572
      %v2724 = vadd.f32 %v2353, %v2577
      %v2725 = vadd.f32 %v2354, %v2580
      %v2726 = vadd.f32 %v2355, %v2585
      %v2727 = vadd.f32 %v2356, %v2588
      %v2728 = vadd.f32 %v2357, %v2593
      %v2729 = vadd.f32 %v2358, %v2596
      %v2730 = vadd.f32 %v2359, %v2601
      %v2731 = vadd.f32 %v2360, %v2604
      %v2732 = vadd.f32 %v2361, %v2609
      %v2733 = vadd.f32 %v2362, %v2612
      %v2734 = vadd.f32 %v2363, %v2617
      %v2735 = vadd.f32 %v2364, %v2620
      %v2736 = vadd.f32 %v2365, %v2625
      %v2737 = vadd.f32 %v2366, %v2628
      %v2738 = vadd.f32 %v2367, %v2633
      %v2739 = vadd.f32 %v2368, %v2636
      %v2740 = vadd.f32 %v2369, %v2641
      %v2741 = vadd.f32 %v2370, %v2644
      %v2742 = vadd.f32 %v2371, %v2649
      %v2743 = vadd.f32 %v2372, %v2652
      %v2744 = vadd.f32 %v2373, %v2657
      %v2745 = vadd.f32 %v2374, %v2660
      %v2746 = vadd.f32 %v2375, %v2665
      %v2747 = vadd.f32 %v2376, %v2668
      %v2748 = vadd.f32 %v2377, %v2673
      %v2749 = vadd.f32 %v2378, %v2676
      %v2750 = vadd.f32 %v2379, %v2681
      %v2751 = vadd.f32 %v2380, %v2684
      %v2752 = vadd.f32 %v2381, %v2689
      %v2753 = vadd.f32 %v2382, %v2692
      %v2754 = vadd.f32 %v2383, %v2697
      %v2755 = vadd.f32 %v2384, %v2700
      %v2756 = vadd.f32 %v2385, %v2705
      %v2757 = vadd.f32 %v2386, %v2708
      %v2758 = vadd.f32 %v2387, %v2713
      %v2759 = vld [vmem:[%s230 + $0x2a] sm:$0xff]
      %v2760 = vld [vmem:[%s230 + $0x32] sm:$0xff]
      %v2761 = vld [vmem:[%s230 + $0x3a] sm:$0xff]
      %v2762 = vld [vmem:[%s230 + $0x42] sm:$0xff]
      %v2763 = vld [vmem:[%s230 + $0x4a] sm:$0xff]
      %v2764 = vld [vmem:[%s230 + $0x52] sm:$0xff]
      %v2765 = vld [vmem:[%s230 + $0x5a] sm:$0xff]
      %v2766 = vld [vmem:[%s230 + $0x62] sm:$0xff]
      %v2767 = vld [vmem:[%s230 + $0x6a] sm:$0xff]
      %v2768 = vld [vmem:[%s230 + $0x72] sm:$0xff]
      %v2769 = vld [vmem:[%s230 + $0x7a] sm:$0xff]
      %v2770 = vld [vmem:[%s230 + $0x82] sm:$0xff]
      %v2771 = vld [vmem:[%s230 + $0x8a] sm:$0xff]
      %v2772 = vld [vmem:[%s230 + $0x92] sm:$0xff]
      %v2773 = vld [vmem:[%s230 + $0x9a] sm:$0xff]
      %v2774 = vld [vmem:[%s230 + $0xa2] sm:$0xff]
      %v2775 = vld [vmem:[%s230 + $0xaa] sm:$0xff]
      %v2776 = vld [vmem:[%s230 + $0xb2] sm:$0xff]
      %v2777 = vld [vmem:[%s230 + $0xba] sm:$0xff]
      %v2778 = vld [vmem:[%s230 + $0xc2] sm:$0xff]
      %v2779 = vld [vmem:[%s230 + $0xca] sm:$0xff]
      %v2780 = vld [vmem:[%s230 + $0xd2] sm:$0xff]
      %v2781 = vld [vmem:[%s230 + $0xda] sm:$0xff]
      %v2782 = vld [vmem:[%s230 + $0xe2] sm:$0xff]
      %v2783 = vld [vmem:[%s230 + $0xea] sm:$0xff]
      %v2784 = vld [vmem:[%s230 + $0xf2] sm:$0xff]
      %v2785 = vld [vmem:[%s230 + $0xfa] sm:$0xff]
      %v2786 = vld [vmem:[%s230 + $0x102] sm:$0xff]
      %v2787 = vld [vmem:[%s230 + $0x10a] sm:$0xff]
      %v2788 = vld [vmem:[%s230 + $0x112] sm:$0xff]
      %v2789 = vld [vmem:[%s230 + $0x11a] sm:$0xff]
      %v2790 = vld [vmem:[%s230 + $0x122] sm:$0xff]
      %v2791 = vld [vmem:[%s230 + $0x12a] sm:$0xff]
      %v2792 = vld [vmem:[%s230 + $0x132] sm:$0xff]
      %v2793 = vld [vmem:[%s230 + $0x13a] sm:$0xff]
      %v2794 = vld [vmem:[%s230 + $0x142] sm:$0xff]
      %v2795 = vld [vmem:[%s230 + $0x14a] sm:$0xff]
      %v2796 = vld [vmem:[%s230 + $0x152] sm:$0xff]
      %v2797 = vld [vmem:[%s230 + $0x15a] sm:$0xff]
      %v2798 = vld [vmem:[%s230 + $0x162] sm:$0xff]
      %v2799 = vld [vmem:[%s230 + $0x16a] sm:$0xf]
      %v2800 = vpack.c.bf16 %v2760, %v2759
      %v2801 = vpack.c.bf16 %v2762, %v2761
      %v2802 = vpack.c.bf16 %v2764, %v2763
      %v2803 = vpack.c.bf16 %v2766, %v2765
      %v2804 = vpack.c.bf16 %v2768, %v2767
      %v2805 = vpack.c.bf16 %v2770, %v2769
      %v2806 = vpack.c.bf16 %v2772, %v2771
      %v2807 = vpack.c.bf16 %v2774, %v2773
      %v2808 = vpack.c.bf16 %v2776, %v2775
      %v2809 = vpack.c.bf16 %v2778, %v2777
      %v2810 = vpack.c.bf16 %v2780, %v2779
      %v2811 = vpack.c.bf16 %v2782, %v2781
      %v2812 = vpack.c.bf16 %v2784, %v2783
      %v2813 = vpack.c.bf16 %v2786, %v2785
      %v2814 = vpack.c.bf16 %v2788, %v2787
      %v2815 = vpack.c.bf16 %v2790, %v2789
      %v2816 = vpack.c.bf16 %v2792, %v2791
      %v2817 = vpack.c.bf16 %v2794, %v2793
      %v2818 = vpack.c.bf16 %v2796, %v2795
      %v2819 = vpack.c.bf16 %v2798, %v2797
      %v2820 = vpack.c.bf16 %v2799, %v2799
      %s2821 = scalar_lea.vmem %s1, 14
      %v2822 = vld [vmem:[%s2821] sm:$0x3]
      %v2824 = vsel %vm370, %v2800, 0
      %v2827 = vsel %vm370, %v2801, 0
      %v2830 = vsel %vm370, %v2802, 0
      %v2833 = vsel %vm370, %v2803, 0
      %v2836 = vsel %vm370, %v2804, 0
      %v2839 = vsel %vm370, %v2805, 0
      %v2842 = vsel %vm370, %v2806, 0
      %v2845 = vsel %vm370, %v2807, 0
      %v2848 = vsel %vm370, %v2808, 0
      %v2851 = vsel %vm370, %v2809, 0
      %v2854 = vsel %vm370, %v2810, 0
      %v2857 = vsel %vm370, %v2811, 0
      %v2860 = vsel %vm370, %v2812, 0
      %v2863 = vsel %vm370, %v2813, 0
      %v2866 = vsel %vm370, %v2814, 0
      %v2869 = vsel %vm370, %v2815, 0
      %v2872 = vsel %vm370, %v2816, 0
      %v2875 = vsel %vm370, %v2817, 0
      %v2878 = vsel %vm370, %v2818, 0
      %v2881 = vsel %vm370, %v2819, 0
      %v2884 = vsel %vm370, %v2820, 0
      %v2887 = vsel %vm434, %v2822, 0
      %2889 = vmatprep.subr.bf16.mxu0 0
      %2890 = vmatpush1.bf16.msra.mxu0 0
      %2891 = vmatprep.subr.bf16.mxu0 0
      %2892 = vmatpush1.bf16.msra.mxu0 0
      %2893 = vmatprep.subr.bf16.mxu0 0
      %2894 = vmatpush1.bf16.msra.mxu0 0
      %2895 = vmatprep.subr.bf16.mxu0 0
      %2896 = vmatpush1.bf16.msra.mxu0 0
      %2897 = vmatprep.subr.bf16.mxu0 0
      %2898 = vmatpush1.bf16.msra.mxu0 0
      %2899 = vmatprep.subr.bf16.mxu0 0
      %2900 = vmatpush1.bf16.msra.mxu0 0
      %2901 = vmatprep.subr.bf16.mxu0 0
      %2902 = vmatpush1.bf16.msra.mxu0 0
      %2903 = vmatprep.subr.bf16.mxu0 0
      %2904 = vmatpush1.bf16.msra.mxu0 %v2887
      %2905 = vmatprep.subr.bf16.mxu0 0
      %2906 = vmatpush2.bf16.msra.mxu0 0
      %2907 = vmatprep.subr.bf16.mxu0 0
      %2908 = vmatpush2.bf16.msra.mxu0 0
      %2909 = vmatprep.subr.bf16.mxu0 0
      %2910 = vmatpush2.bf16.msra.mxu0 0
      %2911 = vmatprep.subr.bf16.mxu0 0
      %2912 = vmatpush2.bf16.msra.mxu0 0
      %2913 = vmatprep.subr.bf16.mxu0 0
      %2914 = vmatpush2.bf16.msra.mxu0 0
      %2915 = vmatprep.subr.bf16.mxu0 0
      %2916 = vmatpush2.bf16.msra.mxu0 0
      %2917 = vmatprep.subr.bf16.mxu0 0
      %2918 = vmatpush2.bf16.msra.mxu0 0
      %2919 = vmatprep.subr.bf16.mxu0 0
      %2920 = vmatpush2.bf16.msra.mxu0 0
      %2921 = vmatprep.mubr.bf16.mxu0 0
      %2922 = vmatmul.mubr.bf16.gmra.mxu0 %v2824
      %v2923 = vpop.f32.mrf.mxu0
      %v2924 = vadd.f32 0.0, %v2923
      %v2925 = vpop.f32.mrf.mxu0
      %v2926 = vpop.f32.mrf.mxu0
      %v2927 = vadd.f32 0.0, %v2926
      %v2928 = vpop.f32.mrf.mxu0
      %2929 = vmatprep.mubr.bf16.mxu0 0
      %2930 = vmatmul.mubr.bf16.gmra.mxu0 %v2827
      %v2931 = vpop.f32.mrf.mxu0
      %v2932 = vadd.f32 0.0, %v2931
      %v2933 = vpop.f32.mrf.mxu0
      %v2934 = vpop.f32.mrf.mxu0
      %v2935 = vadd.f32 0.0, %v2934
      %v2936 = vpop.f32.mrf.mxu0
      %2937 = vmatprep.mubr.bf16.mxu0 0
      %2938 = vmatmul.mubr.bf16.gmra.mxu0 %v2830
      %v2939 = vpop.f32.mrf.mxu0
      %v2940 = vadd.f32 0.0, %v2939
      %v2941 = vpop.f32.mrf.mxu0
      %v2942 = vpop.f32.mrf.mxu0
      %v2943 = vadd.f32 0.0, %v2942
      %v2944 = vpop.f32.mrf.mxu0
      %2945 = vmatprep.mubr.bf16.mxu0 0
      %2946 = vmatmul.mubr.bf16.gmra.mxu0 %v2833
      %v2947 = vpop.f32.mrf.mxu0
      %v2948 = vadd.f32 0.0, %v2947
      %v2949 = vpop.f32.mrf.mxu0
      %v2950 = vpop.f32.mrf.mxu0
      %v2951 = vadd.f32 0.0, %v2950
      %v2952 = vpop.f32.mrf.mxu0
      %2953 = vmatprep.mubr.bf16.mxu0 0
      %2954 = vmatmul.mubr.bf16.gmra.mxu0 %v2836
      %v2955 = vpop.f32.mrf.mxu0
      %v2956 = vadd.f32 0.0, %v2955
      %v2957 = vpop.f32.mrf.mxu0
      %v2958 = vpop.f32.mrf.mxu0
      %v2959 = vadd.f32 0.0, %v2958
      %v2960 = vpop.f32.mrf.mxu0
      %2961 = vmatprep.mubr.bf16.mxu0 0
      %2962 = vmatmul.mubr.bf16.gmra.mxu0 %v2839
      %v2963 = vpop.f32.mrf.mxu0
      %v2964 = vadd.f32 0.0, %v2963
      %v2965 = vpop.f32.mrf.mxu0
      %v2966 = vpop.f32.mrf.mxu0
      %v2967 = vadd.f32 0.0, %v2966
      %v2968 = vpop.f32.mrf.mxu0
      %2969 = vmatprep.mubr.bf16.mxu0 0
      %2970 = vmatmul.mubr.bf16.gmra.mxu0 %v2842
      %v2971 = vpop.f32.mrf.mxu0
      %v2972 = vadd.f32 0.0, %v2971
      %v2973 = vpop.f32.mrf.mxu0
      %v2974 = vpop.f32.mrf.mxu0
      %v2975 = vadd.f32 0.0, %v2974
      %v2976 = vpop.f32.mrf.mxu0
      %2977 = vmatprep.mubr.bf16.mxu0 0
      %2978 = vmatmul.mubr.bf16.gmra.mxu0 %v2845
      %v2979 = vpop.f32.mrf.mxu0
      %v2980 = vadd.f32 0.0, %v2979
      %v2981 = vpop.f32.mrf.mxu0
      %v2982 = vpop.f32.mrf.mxu0
      %v2983 = vadd.f32 0.0, %v2982
      %v2984 = vpop.f32.mrf.mxu0
      %2985 = vmatprep.mubr.bf16.mxu0 0
      %2986 = vmatmul.mubr.bf16.gmra.mxu0 %v2848
      %v2987 = vpop.f32.mrf.mxu0
      %v2988 = vadd.f32 0.0, %v2987
      %v2989 = vpop.f32.mrf.mxu0
      %v2990 = vpop.f32.mrf.mxu0
      %v2991 = vadd.f32 0.0, %v2990
      %v2992 = vpop.f32.mrf.mxu0
      %2993 = vmatprep.mubr.bf16.mxu0 0
      %2994 = vmatmul.mubr.bf16.gmra.mxu0 %v2851
      %v2995 = vpop.f32.mrf.mxu0
      %v2996 = vadd.f32 0.0, %v2995
      %v2997 = vpop.f32.mrf.mxu0
      %v2998 = vpop.f32.mrf.mxu0
      %v2999 = vadd.f32 0.0, %v2998
      %v3000 = vpop.f32.mrf.mxu0
      %3001 = vmatprep.mubr.bf16.mxu0 0
      %3002 = vmatmul.mubr.bf16.gmra.mxu0 %v2854
      %v3003 = vpop.f32.mrf.mxu0
      %v3004 = vadd.f32 0.0, %v3003
      %v3005 = vpop.f32.mrf.mxu0
      %v3006 = vpop.f32.mrf.mxu0
      %v3007 = vadd.f32 0.0, %v3006
      %v3008 = vpop.f32.mrf.mxu0
      %3009 = vmatprep.mubr.bf16.mxu0 0
      %3010 = vmatmul.mubr.bf16.gmra.mxu0 %v2857
      %v3011 = vpop.f32.mrf.mxu0
      %v3012 = vadd.f32 0.0, %v3011
      %v3013 = vpop.f32.mrf.mxu0
      %v3014 = vpop.f32.mrf.mxu0
      %v3015 = vadd.f32 0.0, %v3014
      %v3016 = vpop.f32.mrf.mxu0
      %3017 = vmatprep.mubr.bf16.mxu0 0
      %3018 = vmatmul.mubr.bf16.gmra.mxu0 %v2860
      %v3019 = vpop.f32.mrf.mxu0
      %v3020 = vadd.f32 0.0, %v3019
      %v3021 = vpop.f32.mrf.mxu0
      %v3022 = vpop.f32.mrf.mxu0
      %v3023 = vadd.f32 0.0, %v3022
      %v3024 = vpop.f32.mrf.mxu0
      %3025 = vmatprep.mubr.bf16.mxu0 0
      %3026 = vmatmul.mubr.bf16.gmra.mxu0 %v2863
      %v3027 = vpop.f32.mrf.mxu0
      %v3028 = vadd.f32 0.0, %v3027
      %v3029 = vpop.f32.mrf.mxu0
      %v3030 = vpop.f32.mrf.mxu0
      %v3031 = vadd.f32 0.0, %v3030
      %v3032 = vpop.f32.mrf.mxu0
      %3033 = vmatprep.mubr.bf16.mxu0 0
      %3034 = vmatmul.mubr.bf16.gmra.mxu0 %v2866
      %v3035 = vpop.f32.mrf.mxu0
      %v3036 = vadd.f32 0.0, %v3035
      %v3037 = vpop.f32.mrf.mxu0
      %v3038 = vpop.f32.mrf.mxu0
      %v3039 = vadd.f32 0.0, %v3038
      %v3040 = vpop.f32.mrf.mxu0
      %3041 = vmatprep.mubr.bf16.mxu0 0
      %3042 = vmatmul.mubr.bf16.gmra.mxu0 %v2869
      %v3043 = vpop.f32.mrf.mxu0
      %v3044 = vadd.f32 0.0, %v3043
      %v3045 = vpop.f32.mrf.mxu0
      %v3046 = vpop.f32.mrf.mxu0
      %v3047 = vadd.f32 0.0, %v3046
      %v3048 = vpop.f32.mrf.mxu0
      %3049 = vmatprep.mubr.bf16.mxu0 0
      %3050 = vmatmul.mubr.bf16.gmra.mxu0 %v2872
      %v3051 = vpop.f32.mrf.mxu0
      %v3052 = vadd.f32 0.0, %v3051
      %v3053 = vpop.f32.mrf.mxu0
      %v3054 = vpop.f32.mrf.mxu0
      %v3055 = vadd.f32 0.0, %v3054
      %v3056 = vpop.f32.mrf.mxu0
      %3057 = vmatprep.mubr.bf16.mxu0 0
      %3058 = vmatmul.mubr.bf16.gmra.mxu0 %v2875
      %v3059 = vpop.f32.mrf.mxu0
      %v3060 = vadd.f32 0.0, %v3059
      %v3061 = vpop.f32.mrf.mxu0
      %v3062 = vpop.f32.mrf.mxu0
      %v3063 = vadd.f32 0.0, %v3062
      %v3064 = vpop.f32.mrf.mxu0
      %3065 = vmatprep.mubr.bf16.mxu0 0
      %3066 = vmatmul.mubr.bf16.gmra.mxu0 %v2878
      %v3067 = vpop.f32.mrf.mxu0
      %v3068 = vadd.f32 0.0, %v3067
      %v3069 = vpop.f32.mrf.mxu0
      %v3070 = vpop.f32.mrf.mxu0
      %v3071 = vadd.f32 0.0, %v3070
      %v3072 = vpop.f32.mrf.mxu0
      %3073 = vmatprep.mubr.bf16.mxu0 0
      %3074 = vmatmul.mubr.bf16.gmra.mxu0 %v2881
      %v3075 = vpop.f32.mrf.mxu0
      %v3076 = vadd.f32 0.0, %v3075
      %v3077 = vpop.f32.mrf.mxu0
      %v3078 = vpop.f32.mrf.mxu0
      %v3079 = vadd.f32 0.0, %v3078
      %v3080 = vpop.f32.mrf.mxu0
      %3081 = vmatprep.mubr.bf16.mxu0 0
      %3082 = vmatmul.mubr.bf16.gmra.mxu0 %v2884
      %v3083 = vpop.f32.mrf.mxu0
      %v3084 = vadd.f32 0.0, %v3083
      %v3085 = vpop.f32.mrf.mxu0
      %v3086 = vpop.f32.mrf.mxu0
      %v3087 = vpop.f32.mrf.mxu0
      %3088 = vdwg.mxu0
      %v3089 = vadd.f32 %v2718, %v2924
      %v3090 = vadd.f32 %v2719, %v2927
      %v3091 = vadd.f32 %v2720, %v2932
      %v3092 = vadd.f32 %v2721, %v2935
      %v3093 = vadd.f32 %v2722, %v2940
      %v3094 = vadd.f32 %v2723, %v2943
      %v3095 = vadd.f32 %v2724, %v2948
      %v3096 = vadd.f32 %v2725, %v2951
      %v3097 = vadd.f32 %v2726, %v2956
      %v3098 = vadd.f32 %v2727, %v2959
      %v3099 = vadd.f32 %v2728, %v2964
      %v3100 = vadd.f32 %v2729, %v2967
      %v3101 = vadd.f32 %v2730, %v2972
      %v3102 = vadd.f32 %v2731, %v2975
      %v3103 = vadd.f32 %v2732, %v2980
      %v3104 = vadd.f32 %v2733, %v2983
      %v3105 = vadd.f32 %v2734, %v2988
      %v3106 = vadd.f32 %v2735, %v2991
      %v3107 = vadd.f32 %v2736, %v2996
      %v3108 = vadd.f32 %v2737, %v2999
      %v3109 = vadd.f32 %v2738, %v3004
      %v3110 = vadd.f32 %v2739, %v3007
      %v3111 = vadd.f32 %v2740, %v3012
      %v3112 = vadd.f32 %v2741, %v3015
      %v3113 = vadd.f32 %v2742, %v3020
      %v3114 = vadd.f32 %v2743, %v3023
      %v3115 = vadd.f32 %v2744, %v3028
      %v3116 = vadd.f32 %v2745, %v3031
      %v3117 = vadd.f32 %v2746, %v3036
      %v3118 = vadd.f32 %v2747, %v3039
      %v3119 = vadd.f32 %v2748, %v3044
      %v3120 = vadd.f32 %v2749, %v3047
      %v3121 = vadd.f32 %v2750, %v3052
      %v3122 = vadd.f32 %v2751, %v3055
      %v3123 = vadd.f32 %v2752, %v3060
      %v3124 = vadd.f32 %v2753, %v3063
      %v3125 = vadd.f32 %v2754, %v3068
      %v3126 = vadd.f32 %v2755, %v3071
      %v3127 = vadd.f32 %v2756, %v3076
      %v3128 = vadd.f32 %v2757, %v3079
      %v3129 = vadd.f32 %v2758, %v3084
      %v3130 = vld [vmem:[%s230 + $0x2b] sm:$0xff]
      %v3131 = vld [vmem:[%s230 + $0x33] sm:$0xff]
      %v3132 = vld [vmem:[%s230 + $0x3b] sm:$0xff]
      %v3133 = vld [vmem:[%s230 + $0x43] sm:$0xff]
      %v3134 = vld [vmem:[%s230 + $0x4b] sm:$0xff]
      %v3135 = vld [vmem:[%s230 + $0x53] sm:$0xff]
      %v3136 = vld [vmem:[%s230 + $0x5b] sm:$0xff]
      %v3137 = vld [vmem:[%s230 + $0x63] sm:$0xff]
      %v3138 = vld [vmem:[%s230 + $0x6b] sm:$0xff]
      %v3139 = vld [vmem:[%s230 + $0x73] sm:$0xff]
      %v3140 = vld [vmem:[%s230 + $0x7b] sm:$0xff]
      %v3141 = vld [vmem:[%s230 + $0x83] sm:$0xff]
      %v3142 = vld [vmem:[%s230 + $0x8b] sm:$0xff]
      %v3143 = vld [vmem:[%s230 + $0x93] sm:$0xff]
      %v3144 = vld [vmem:[%s230 + $0x9b] sm:$0xff]
      %v3145 = vld [vmem:[%s230 + $0xa3] sm:$0xff]
      %v3146 = vld [vmem:[%s230 + $0xab] sm:$0xff]
      %v3147 = vld [vmem:[%s230 + $0xb3] sm:$0xff]
      %v3148 = vld [vmem:[%s230 + $0xbb] sm:$0xff]
      %v3149 = vld [vmem:[%s230 + $0xc3] sm:$0xff]
      %v3150 = vld [vmem:[%s230 + $0xcb] sm:$0xff]
      %v3151 = vld [vmem:[%s230 + $0xd3] sm:$0xff]
      %v3152 = vld [vmem:[%s230 + $0xdb] sm:$0xff]
      %v3153 = vld [vmem:[%s230 + $0xe3] sm:$0xff]
      %v3154 = vld [vmem:[%s230 + $0xeb] sm:$0xff]
      %v3155 = vld [vmem:[%s230 + $0xf3] sm:$0xff]
      %v3156 = vld [vmem:[%s230 + $0xfb] sm:$0xff]
      %v3157 = vld [vmem:[%s230 + $0x103] sm:$0xff]
      %v3158 = vld [vmem:[%s230 + $0x10b] sm:$0xff]
      %v3159 = vld [vmem:[%s230 + $0x113] sm:$0xff]
      %v3160 = vld [vmem:[%s230 + $0x11b] sm:$0xff]
      %v3161 = vld [vmem:[%s230 + $0x123] sm:$0xff]
      %v3162 = vld [vmem:[%s230 + $0x12b] sm:$0xff]
      %v3163 = vld [vmem:[%s230 + $0x133] sm:$0xff]
      %v3164 = vld [vmem:[%s230 + $0x13b] sm:$0xff]
      %v3165 = vld [vmem:[%s230 + $0x143] sm:$0xff]
      %v3166 = vld [vmem:[%s230 + $0x14b] sm:$0xff]
      %v3167 = vld [vmem:[%s230 + $0x153] sm:$0xff]
      %v3168 = vld [vmem:[%s230 + $0x15b] sm:$0xff]
      %v3169 = vld [vmem:[%s230 + $0x163] sm:$0xff]
      %v3170 = vld [vmem:[%s230 + $0x16b] sm:$0xf]
      %v3171 = vpack.c.bf16 %v3131, %v3130
      %v3172 = vpack.c.bf16 %v3133, %v3132
      %v3173 = vpack.c.bf16 %v3135, %v3134
      %v3174 = vpack.c.bf16 %v3137, %v3136
      %v3175 = vpack.c.bf16 %v3139, %v3138
      %v3176 = vpack.c.bf16 %v3141, %v3140
      %v3177 = vpack.c.bf16 %v3143, %v3142
      %v3178 = vpack.c.bf16 %v3145, %v3144
      %v3179 = vpack.c.bf16 %v3147, %v3146
      %v3180 = vpack.c.bf16 %v3149, %v3148
      %v3181 = vpack.c.bf16 %v3151, %v3150
      %v3182 = vpack.c.bf16 %v3153, %v3152
      %v3183 = vpack.c.bf16 %v3155, %v3154
      %v3184 = vpack.c.bf16 %v3157, %v3156
      %v3185 = vpack.c.bf16 %v3159, %v3158
      %v3186 = vpack.c.bf16 %v3161, %v3160
      %v3187 = vpack.c.bf16 %v3163, %v3162
      %v3188 = vpack.c.bf16 %v3165, %v3164
      %v3189 = vpack.c.bf16 %v3167, %v3166
      %v3190 = vpack.c.bf16 %v3169, %v3168
      %v3191 = vpack.c.bf16 %v3170, %v3170
      %s3192 = scalar_lea.vmem %s1, 16
      %v3193 = vld [vmem:[%s3192] sm:$0x3]
      %v3195 = vsel %vm370, %v3171, 0
      %v3198 = vsel %vm370, %v3172, 0
      %v3201 = vsel %vm370, %v3173, 0
      %v3204 = vsel %vm370, %v3174, 0
      %v3207 = vsel %vm370, %v3175, 0
      %v3210 = vsel %vm370, %v3176, 0
      %v3213 = vsel %vm370, %v3177, 0
      %v3216 = vsel %vm370, %v3178, 0
      %v3219 = vsel %vm370, %v3179, 0
      %v3222 = vsel %vm370, %v3180, 0
      %v3225 = vsel %vm370, %v3181, 0
      %v3228 = vsel %vm370, %v3182, 0
      %v3231 = vsel %vm370, %v3183, 0
      %v3234 = vsel %vm370, %v3184, 0
      %v3237 = vsel %vm370, %v3185, 0
      %v3240 = vsel %vm370, %v3186, 0
      %v3243 = vsel %vm370, %v3187, 0
      %v3246 = vsel %vm370, %v3188, 0
      %v3249 = vsel %vm370, %v3189, 0
      %v3252 = vsel %vm370, %v3190, 0
      %v3255 = vsel %vm370, %v3191, 0
      %v3258 = vsel %vm434, %v3193, 0
      %3260 = vmatprep.subr.bf16.mxu0 0
      %3261 = vmatpush1.bf16.msra.mxu0 0
      %3262 = vmatprep.subr.bf16.mxu0 0
      %3263 = vmatpush1.bf16.msra.mxu0 0
      %3264 = vmatprep.subr.bf16.mxu0 0
      %3265 = vmatpush1.bf16.msra.mxu0 0
      %3266 = vmatprep.subr.bf16.mxu0 0
      %3267 = vmatpush1.bf16.msra.mxu0 0
      %3268 = vmatprep.subr.bf16.mxu0 0
      %3269 = vmatpush1.bf16.msra.mxu0 0
      %3270 = vmatprep.subr.bf16.mxu0 0
      %3271 = vmatpush1.bf16.msra.mxu0 0
      %3272 = vmatprep.subr.bf16.mxu0 0
      %3273 = vmatpush1.bf16.msra.mxu0 0
      %3274 = vmatprep.subr.bf16.mxu0 0
      %3275 = vmatpush1.bf16.msra.mxu0 %v3258
      %3276 = vmatprep.subr.bf16.mxu0 0
      %3277 = vmatpush2.bf16.msra.mxu0 0
      %3278 = vmatprep.subr.bf16.mxu0 0
      %3279 = vmatpush2.bf16.msra.mxu0 0
      %3280 = vmatprep.subr.bf16.mxu0 0
      %3281 = vmatpush2.bf16.msra.mxu0 0
      %3282 = vmatprep.subr.bf16.mxu0 0
      %3283 = vmatpush2.bf16.msra.mxu0 0
      %3284 = vmatprep.subr.bf16.mxu0 0
      %3285 = vmatpush2.bf16.msra.mxu0 0
      %3286 = vmatprep.subr.bf16.mxu0 0
      %3287 = vmatpush2.bf16.msra.mxu0 0
      %3288 = vmatprep.subr.bf16.mxu0 0
      %3289 = vmatpush2.bf16.msra.mxu0 0
      %3290 = vmatprep.subr.bf16.mxu0 0
      %3291 = vmatpush2.bf16.msra.mxu0 0
      %3292 = vmatprep.mubr.bf16.mxu0 0
      %3293 = vmatmul.mubr.bf16.gmra.mxu0 %v3195
      %v3294 = vpop.f32.mrf.mxu0
      %v3295 = vadd.f32 0.0, %v3294
      %v3296 = vpop.f32.mrf.mxu0
      %v3297 = vpop.f32.mrf.mxu0
      %v3298 = vadd.f32 0.0, %v3297
      %v3299 = vpop.f32.mrf.mxu0
      %3300 = vmatprep.mubr.bf16.mxu0 0
      %3301 = vmatmul.mubr.bf16.gmra.mxu0 %v3198
      %v3302 = vpop.f32.mrf.mxu0
      %v3303 = vadd.f32 0.0, %v3302
      %v3304 = vpop.f32.mrf.mxu0
      %v3305 = vpop.f32.mrf.mxu0
      %v3306 = vadd.f32 0.0, %v3305
      %v3307 = vpop.f32.mrf.mxu0
      %3308 = vmatprep.mubr.bf16.mxu0 0
      %3309 = vmatmul.mubr.bf16.gmra.mxu0 %v3201
      %v3310 = vpop.f32.mrf.mxu0
      %v3311 = vadd.f32 0.0, %v3310
      %v3312 = vpop.f32.mrf.mxu0
      %v3313 = vpop.f32.mrf.mxu0
      %v3314 = vadd.f32 0.0, %v3313
      %v3315 = vpop.f32.mrf.mxu0
      %3316 = vmatprep.mubr.bf16.mxu0 0
      %3317 = vmatmul.mubr.bf16.gmra.mxu0 %v3204
      %v3318 = vpop.f32.mrf.mxu0
      %v3319 = vadd.f32 0.0, %v3318
      %v3320 = vpop.f32.mrf.mxu0
      %v3321 = vpop.f32.mrf.mxu0
      %v3322 = vadd.f32 0.0, %v3321
      %v3323 = vpop.f32.mrf.mxu0
      %3324 = vmatprep.mubr.bf16.mxu0 0
      %3325 = vmatmul.mubr.bf16.gmra.mxu0 %v3207
      %v3326 = vpop.f32.mrf.mxu0
      %v3327 = vadd.f32 0.0, %v3326
      %v3328 = vpop.f32.mrf.mxu0
      %v3329 = vpop.f32.mrf.mxu0
      %v3330 = vadd.f32 0.0, %v3329
      %v3331 = vpop.f32.mrf.mxu0
      %3332 = vmatprep.mubr.bf16.mxu0 0
      %3333 = vmatmul.mubr.bf16.gmra.mxu0 %v3210
      %v3334 = vpop.f32.mrf.mxu0
      %v3335 = vadd.f32 0.0, %v3334
      %v3336 = vpop.f32.mrf.mxu0
      %v3337 = vpop.f32.mrf.mxu0
      %v3338 = vadd.f32 0.0, %v3337
      %v3339 = vpop.f32.mrf.mxu0
      %3340 = vmatprep.mubr.bf16.mxu0 0
      %3341 = vmatmul.mubr.bf16.gmra.mxu0 %v3213
      %v3342 = vpop.f32.mrf.mxu0
      %v3343 = vadd.f32 0.0, %v3342
      %v3344 = vpop.f32.mrf.mxu0
      %v3345 = vpop.f32.mrf.mxu0
      %v3346 = vadd.f32 0.0, %v3345
      %v3347 = vpop.f32.mrf.mxu0
      %3348 = vmatprep.mubr.bf16.mxu0 0
      %3349 = vmatmul.mubr.bf16.gmra.mxu0 %v3216
      %v3350 = vpop.f32.mrf.mxu0
      %v3351 = vadd.f32 0.0, %v3350
      %v3352 = vpop.f32.mrf.mxu0
      %v3353 = vpop.f32.mrf.mxu0
      %v3354 = vadd.f32 0.0, %v3353
      %v3355 = vpop.f32.mrf.mxu0
      %3356 = vmatprep.mubr.bf16.mxu0 0
      %3357 = vmatmul.mubr.bf16.gmra.mxu0 %v3219
      %v3358 = vpop.f32.mrf.mxu0
      %v3359 = vadd.f32 0.0, %v3358
      %v3360 = vpop.f32.mrf.mxu0
      %v3361 = vpop.f32.mrf.mxu0
      %v3362 = vadd.f32 0.0, %v3361
      %v3363 = vpop.f32.mrf.mxu0
      %3364 = vmatprep.mubr.bf16.mxu0 0
      %3365 = vmatmul.mubr.bf16.gmra.mxu0 %v3222
      %v3366 = vpop.f32.mrf.mxu0
      %v3367 = vadd.f32 0.0, %v3366
      %v3368 = vpop.f32.mrf.mxu0
      %v3369 = vpop.f32.mrf.mxu0
      %v3370 = vadd.f32 0.0, %v3369
      %v3371 = vpop.f32.mrf.mxu0
      %3372 = vmatprep.mubr.bf16.mxu0 0
      %3373 = vmatmul.mubr.bf16.gmra.mxu0 %v3225
      %v3374 = vpop.f32.mrf.mxu0
      %v3375 = vadd.f32 0.0, %v3374
      %v3376 = vpop.f32.mrf.mxu0
      %v3377 = vpop.f32.mrf.mxu0
      %v3378 = vadd.f32 0.0, %v3377
      %v3379 = vpop.f32.mrf.mxu0
      %3380 = vmatprep.mubr.bf16.mxu0 0
      %3381 = vmatmul.mubr.bf16.gmra.mxu0 %v3228
      %v3382 = vpop.f32.mrf.mxu0
      %v3383 = vadd.f32 0.0, %v3382
      %v3384 = vpop.f32.mrf.mxu0
      %v3385 = vpop.f32.mrf.mxu0
      %v3386 = vadd.f32 0.0, %v3385
      %v3387 = vpop.f32.mrf.mxu0
      %3388 = vmatprep.mubr.bf16.mxu0 0
      %3389 = vmatmul.mubr.bf16.gmra.mxu0 %v3231
      %v3390 = vpop.f32.mrf.mxu0
      %v3391 = vadd.f32 0.0, %v3390
      %v3392 = vpop.f32.mrf.mxu0
      %v3393 = vpop.f32.mrf.mxu0
      %v3394 = vadd.f32 0.0, %v3393
      %v3395 = vpop.f32.mrf.mxu0
      %3396 = vmatprep.mubr.bf16.mxu0 0
      %3397 = vmatmul.mubr.bf16.gmra.mxu0 %v3234
      %v3398 = vpop.f32.mrf.mxu0
      %v3399 = vadd.f32 0.0, %v3398
      %v3400 = vpop.f32.mrf.mxu0
      %v3401 = vpop.f32.mrf.mxu0
      %v3402 = vadd.f32 0.0, %v3401
      %v3403 = vpop.f32.mrf.mxu0
      %3404 = vmatprep.mubr.bf16.mxu0 0
      %3405 = vmatmul.mubr.bf16.gmra.mxu0 %v3237
      %v3406 = vpop.f32.mrf.mxu0
      %v3407 = vadd.f32 0.0, %v3406
      %v3408 = vpop.f32.mrf.mxu0
      %v3409 = vpop.f32.mrf.mxu0
      %v3410 = vadd.f32 0.0, %v3409
      %v3411 = vpop.f32.mrf.mxu0
      %3412 = vmatprep.mubr.bf16.mxu0 0
      %3413 = vmatmul.mubr.bf16.gmra.mxu0 %v3240
      %v3414 = vpop.f32.mrf.mxu0
      %v3415 = vadd.f32 0.0, %v3414
      %v3416 = vpop.f32.mrf.mxu0
      %v3417 = vpop.f32.mrf.mxu0
      %v3418 = vadd.f32 0.0, %v3417
      %v3419 = vpop.f32.mrf.mxu0
      %3420 = vmatprep.mubr.bf16.mxu0 0
      %3421 = vmatmul.mubr.bf16.gmra.mxu0 %v3243
      %v3422 = vpop.f32.mrf.mxu0
      %v3423 = vadd.f32 0.0, %v3422
      %v3424 = vpop.f32.mrf.mxu0
      %v3425 = vpop.f32.mrf.mxu0
      %v3426 = vadd.f32 0.0, %v3425
      %v3427 = vpop.f32.mrf.mxu0
      %3428 = vmatprep.mubr.bf16.mxu0 0
      %3429 = vmatmul.mubr.bf16.gmra.mxu0 %v3246
      %v3430 = vpop.f32.mrf.mxu0
      %v3431 = vadd.f32 0.0, %v3430
      %v3432 = vpop.f32.mrf.mxu0
      %v3433 = vpop.f32.mrf.mxu0
      %v3434 = vadd.f32 0.0, %v3433
      %v3435 = vpop.f32.mrf.mxu0
      %3436 = vmatprep.mubr.bf16.mxu0 0
      %3437 = vmatmul.mubr.bf16.gmra.mxu0 %v3249
      %v3438 = vpop.f32.mrf.mxu0
      %v3439 = vadd.f32 0.0, %v3438
      %v3440 = vpop.f32.mrf.mxu0
      %v3441 = vpop.f32.mrf.mxu0
      %v3442 = vadd.f32 0.0, %v3441
      %v3443 = vpop.f32.mrf.mxu0
      %3444 = vmatprep.mubr.bf16.mxu0 0
      %3445 = vmatmul.mubr.bf16.gmra.mxu0 %v3252
      %v3446 = vpop.f32.mrf.mxu0
      %v3447 = vadd.f32 0.0, %v3446
      %v3448 = vpop.f32.mrf.mxu0
      %v3449 = vpop.f32.mrf.mxu0
      %v3450 = vadd.f32 0.0, %v3449
      %v3451 = vpop.f32.mrf.mxu0
      %3452 = vmatprep.mubr.bf16.mxu0 0
      %3453 = vmatmul.mubr.bf16.gmra.mxu0 %v3255
      %v3454 = vpop.f32.mrf.mxu0
      %v3455 = vadd.f32 0.0, %v3454
      %v3456 = vpop.f32.mrf.mxu0
      %v3457 = vpop.f32.mrf.mxu0
      %v3458 = vpop.f32.mrf.mxu0
      %3459 = vdwg.mxu0
      %v3460 = vadd.f32 %v3089, %v3295
      %v3461 = vadd.f32 %v3090, %v3298
      %v3462 = vadd.f32 %v3091, %v3303
      %v3463 = vadd.f32 %v3092, %v3306
      %v3464 = vadd.f32 %v3093, %v3311
      %v3465 = vadd.f32 %v3094, %v3314
      %v3466 = vadd.f32 %v3095, %v3319
      %v3467 = vadd.f32 %v3096, %v3322
      %v3468 = vadd.f32 %v3097, %v3327
      %v3469 = vadd.f32 %v3098, %v3330
      %v3470 = vadd.f32 %v3099, %v3335
      %v3471 = vadd.f32 %v3100, %v3338
      %v3472 = vadd.f32 %v3101, %v3343
      %v3473 = vadd.f32 %v3102, %v3346
      %v3474 = vadd.f32 %v3103, %v3351
      %v3475 = vadd.f32 %v3104, %v3354
      %v3476 = vadd.f32 %v3105, %v3359
      %v3477 = vadd.f32 %v3106, %v3362
      %v3478 = vadd.f32 %v3107, %v3367
      %v3479 = vadd.f32 %v3108, %v3370
      %v3480 = vadd.f32 %v3109, %v3375
      %v3481 = vadd.f32 %v3110, %v3378
      %v3482 = vadd.f32 %v3111, %v3383
      %v3483 = vadd.f32 %v3112, %v3386
      %v3484 = vadd.f32 %v3113, %v3391
      %v3485 = vadd.f32 %v3114, %v3394
      %v3486 = vadd.f32 %v3115, %v3399
      %v3487 = vadd.f32 %v3116, %v3402
      %v3488 = vadd.f32 %v3117, %v3407
      %v3489 = vadd.f32 %v3118, %v3410
      %v3490 = vadd.f32 %v3119, %v3415
      %v3491 = vadd.f32 %v3120, %v3418
      %v3492 = vadd.f32 %v3121, %v3423
      %v3493 = vadd.f32 %v3122, %v3426
      %v3494 = vadd.f32 %v3123, %v3431
      %v3495 = vadd.f32 %v3124, %v3434
      %v3496 = vadd.f32 %v3125, %v3439
      %v3497 = vadd.f32 %v3126, %v3442
      %v3498 = vadd.f32 %v3127, %v3447
      %v3499 = vadd.f32 %v3128, %v3450
      %v3500 = vadd.f32 %v3129, %v3455
      %vm3501 = vcmask 64512
      %3502 = vst.msk [vmem:[%s235] sm:$0xff] %vm3501, %v3460
      %3503 = vst.msk [vmem:[%s235 + $0x8] sm:$0xff] %vm3501, %v3461
      %3504 = vst.msk [vmem:[%s235 + $0x10] sm:$0xff] %vm3501, %v3462
      %3505 = vst.msk [vmem:[%s235 + $0x18] sm:$0xff] %vm3501, %v3463
      %3506 = vst.msk [vmem:[%s235 + $0x20] sm:$0xff] %vm3501, %v3464
      %3507 = vst.msk [vmem:[%s235 + $0x28] sm:$0xff] %vm3501, %v3465
      %3508 = vst.msk [vmem:[%s235 + $0x30] sm:$0xff] %vm3501, %v3466
      %3509 = vst.msk [vmem:[%s235 + $0x38] sm:$0xff] %vm3501, %v3467
      %3510 = vst.msk [vmem:[%s235 + $0x40] sm:$0xff] %vm3501, %v3468
      %3511 = vst.msk [vmem:[%s235 + $0x48] sm:$0xff] %vm3501, %v3469
      %3512 = vst.msk [vmem:[%s235 + $0x50] sm:$0xff] %vm3501, %v3470
      %3513 = vst.msk [vmem:[%s235 + $0x58] sm:$0xff] %vm3501, %v3471
      %3514 = vst.msk [vmem:[%s235 + $0x60] sm:$0xff] %vm3501, %v3472
      %3515 = vst.msk [vmem:[%s235 + $0x68] sm:$0xff] %vm3501, %v3473
      %3516 = vst.msk [vmem:[%s235 + $0x70] sm:$0xff] %vm3501, %v3474
      %3517 = vst.msk [vmem:[%s235 + $0x78] sm:$0xff] %vm3501, %v3475
      %3518 = vst.msk [vmem:[%s235 + $0x80] sm:$0xff] %vm3501, %v3476
      %3519 = vst.msk [vmem:[%s235 + $0x88] sm:$0xff] %vm3501, %v3477
      %3520 = vst.msk [vmem:[%s235 + $0x90] sm:$0xff] %vm3501, %v3478
      %3521 = vst.msk [vmem:[%s235 + $0x98] sm:$0xff] %vm3501, %v3479
      %3522 = vst.msk [vmem:[%s235 + $0xa0] sm:$0xff] %vm3501, %v3480
      %3523 = vst.msk [vmem:[%s235 + $0xa8] sm:$0xff] %vm3501, %v3481
      %3524 = vst.msk [vmem:[%s235 + $0xb0] sm:$0xff] %vm3501, %v3482
      %3525 = vst.msk [vmem:[%s235 + $0xb8] sm:$0xff] %vm3501, %v3483
      %3526 = vst.msk [vmem:[%s235 + $0xc0] sm:$0xff] %vm3501, %v3484
      %3527 = vst.msk [vmem:[%s235 + $0xc8] sm:$0xff] %vm3501, %v3485
      %3528 = vst.msk [vmem:[%s235 + $0xd0] sm:$0xff] %vm3501, %v3486
      %3529 = vst.msk [vmem:[%s235 + $0xd8] sm:$0xff] %vm3501, %v3487
      %3530 = vst.msk [vmem:[%s235 + $0xe0] sm:$0xff] %vm3501, %v3488
      %3531 = vst.msk [vmem:[%s235 + $0xe8] sm:$0xff] %vm3501, %v3489
      %3532 = vst.msk [vmem:[%s235 + $0xf0] sm:$0xff] %vm3501, %v3490
      %3533 = vst.msk [vmem:[%s235 + $0xf8] sm:$0xff] %vm3501, %v3491
      %3534 = vst.msk [vmem:[%s235 + $0x100] sm:$0xff] %vm3501, %v3492
      %3535 = vst.msk [vmem:[%s235 + $0x108] sm:$0xff] %vm3501, %v3493
      %3536 = vst.msk [vmem:[%s235 + $0x110] sm:$0xff] %vm3501, %v3494
      %3537 = vst.msk [vmem:[%s235 + $0x118] sm:$0xff] %vm3501, %v3495
      %3538 = vst.msk [vmem:[%s235 + $0x120] sm:$0xff] %vm3501, %v3496
      %3539 = vst.msk [vmem:[%s235 + $0x128] sm:$0xff] %vm3501, %v3497
      %3540 = vst.msk [vmem:[%s235 + $0x130] sm:$0xff] %vm3501, %v3498
      %3541 = vst.msk [vmem:[%s235 + $0x138] sm:$0xff] %vm3501, %v3499
      %vm3542 = vcmask 60416
      %3543 = vst.msk [vmem:[%s235 + $0x140] sm:$0xf] %vm3542, %v3500
      %v3544 = vld [vmem:[%s2] sm:$0xff]
      %v3545 = vld [vmem:[%s2 + $0x8] sm:$0xff]
      %v3546 = vld [vmem:[%s2 + $0x10] sm:$0xff]
      %v3547 = vld [vmem:[%s2 + $0x18] sm:$0xff]
      %v3548 = vld [vmem:[%s2 + $0x20] sm:$0xff]
      %v3549 = vld [vmem:[%s2 + $0x28] sm:$0xff]
      %v3550 = vld [vmem:[%s2 + $0x30] sm:$0xff]
      %v3551 = vld [vmem:[%s2 + $0x38] sm:$0xff]
      %v3552 = vld [vmem:[%s2 + $0x40] sm:$0xff]
      %v3553 = vld [vmem:[%s2 + $0x48] sm:$0xff]
      %v3554 = vld [vmem:[%s2 + $0x50] sm:$0xff]
      %v3555 = vld [vmem:[%s2 + $0x58] sm:$0xff]
      %v3556 = vld [vmem:[%s2 + $0x60] sm:$0xff]
      %v3557 = vld [vmem:[%s2 + $0x68] sm:$0xff]
      %v3558 = vld [vmem:[%s2 + $0x70] sm:$0xff]
      %v3559 = vld [vmem:[%s2 + $0x78] sm:$0xff]
      %v3560 = vld [vmem:[%s2 + $0x80] sm:$0xff]
      %v3561 = vld [vmem:[%s2 + $0x88] sm:$0xff]
      %v3562 = vld [vmem:[%s2 + $0x90] sm:$0xff]
      %v3563 = vld [vmem:[%s2 + $0x98] sm:$0xff]
      %v3564 = vld [vmem:[%s2 + $0xa0] sm:$0xff]
      %v3565 = vld [vmem:[%s2 + $0xa8] sm:$0xff]
      %v3566 = vld [vmem:[%s2 + $0xb0] sm:$0xff]
      %v3567 = vld [vmem:[%s2 + $0xb8] sm:$0xff]
      %v3568 = vld [vmem:[%s2 + $0xc0] sm:$0xff]
      %v3569 = vld [vmem:[%s2 + $0xc8] sm:$0xff]
      %v3570 = vld [vmem:[%s2 + $0xd0] sm:$0xff]
      %v3571 = vld [vmem:[%s2 + $0xd8] sm:$0xff]
      %v3572 = vld [vmem:[%s2 + $0xe0] sm:$0xff]
      %v3573 = vld [vmem:[%s2 + $0xe8] sm:$0xff]
      %v3574 = vld [vmem:[%s2 + $0xf0] sm:$0xff]
      %v3575 = vld [vmem:[%s2 + $0xf8] sm:$0xff]
      %v3576 = vld [vmem:[%s2 + $0x100] sm:$0xff]
      %v3577 = vld [vmem:[%s2 + $0x108] sm:$0xff]
      %v3578 = vld [vmem:[%s2 + $0x110] sm:$0xff]
      %v3579 = vld [vmem:[%s2 + $0x118] sm:$0xff]
      %v3580 = vld [vmem:[%s2 + $0x120] sm:$0xff]
      %v3581 = vld [vmem:[%s2 + $0x128] sm:$0xff]
      %v3582 = vld [vmem:[%s2 + $0x130] sm:$0xff]
      %v3583 = vld [vmem:[%s2 + $0x138] sm:$0xff]
      %v3584 = vld [vmem:[%s2 + $0x140] sm:$0xf]
      %vm3585 = vcmp.gt.f32.partialorder %v3544, 0.0
      %vm3586 = vcmp.gt.f32.partialorder %v3545, 0.0
      %vm3587 = vcmp.gt.f32.partialorder %v3546, 0.0
      %vm3588 = vcmp.gt.f32.partialorder %v3547, 0.0
      %vm3589 = vcmp.gt.f32.partialorder %v3548, 0.0
      %vm3590 = vcmp.gt.f32.partialorder %v3549, 0.0
      %vm3591 = vcmp.gt.f32.partialorder %v3550, 0.0
      %vm3592 = vcmp.gt.f32.partialorder %v3551, 0.0
      %vm3593 = vcmp.gt.f32.partialorder %v3552, 0.0
      %vm3594 = vcmp.gt.f32.partialorder %v3553, 0.0
      %vm3595 = vcmp.gt.f32.partialorder %v3554, 0.0
      %vm3596 = vcmp.gt.f32.partialorder %v3555, 0.0
      %vm3597 = vcmp.gt.f32.partialorder %v3556, 0.0
      %vm3598 = vcmp.gt.f32.partialorder %v3557, 0.0
      %vm3599 = vcmp.gt.f32.partialorder %v3558, 0.0
      %vm3600 = vcmp.gt.f32.partialorder %v3559, 0.0
      %vm3601 = vcmp.gt.f32.partialorder %v3560, 0.0
      %vm3602 = vcmp.gt.f32.partialorder %v3561, 0.0
      %vm3603 = vcmp.gt.f32.partialorder %v3562, 0.0
      %vm3604 = vcmp.gt.f32.partialorder %v3563, 0.0
      %vm3605 = vcmp.gt.f32.partialorder %v3564, 0.0
      %vm3606 = vcmp.gt.f32.partialorder %v3565, 0.0
      %vm3607 = vcmp.gt.f32.partialorder %v3566, 0.0
      %vm3608 = vcmp.gt.f32.partialorder %v3567, 0.0
      %vm3609 = vcmp.gt.f32.partialorder %v3568, 0.0
      %vm3610 = vcmp.gt.f32.partialorder %v3569, 0.0
      %vm3611 = vcmp.gt.f32.partialorder %v3570, 0.0
      %vm3612 = vcmp.gt.f32.partialorder %v3571, 0.0
      %vm3613 = vcmp.gt.f32.partialorder %v3572, 0.0
      %vm3614 = vcmp.gt.f32.partialorder %v3573, 0.0
      %vm3615 = vcmp.gt.f32.partialorder %v3574, 0.0
      %vm3616 = vcmp.gt.f32.partialorder %v3575, 0.0
      %vm3617 = vcmp.gt.f32.partialorder %v3576, 0.0
      %vm3618 = vcmp.gt.f32.partialorder %v3577, 0.0
      %vm3619 = vcmp.gt.f32.partialorder %v3578, 0.0
      %vm3620 = vcmp.gt.f32.partialorder %v3579, 0.0
      %vm3621 = vcmp.gt.f32.partialorder %v3580, 0.0
      %vm3622 = vcmp.gt.f32.partialorder %v3581, 0.0
      %vm3623 = vcmp.gt.f32.partialorder %v3582, 0.0
      %vm3624 = vcmp.gt.f32.partialorder %v3583, 0.0
      %vm3625 = vcmp.gt.f32.partialorder %v3584, 0.0
      %v3626 = vsel %vm3585, 1, 0
      %v3627 = vsel %vm3586, 1, 0
      %v3628 = vsel %vm3587, 1, 0
      %v3629 = vsel %vm3588, 1, 0
      %v3630 = vsel %vm3589, 1, 0
      %v3631 = vsel %vm3590, 1, 0
      %v3632 = vsel %vm3591, 1, 0
      %v3633 = vsel %vm3592, 1, 0
      %v3634 = vsel %vm3593, 1, 0
      %v3635 = vsel %vm3594, 1, 0
      %v3636 = vsel %vm3595, 1, 0
      %v3637 = vsel %vm3596, 1, 0
      %v3638 = vsel %vm3597, 1, 0
      %v3639 = vsel %vm3598, 1, 0
      %v3640 = vsel %vm3599, 1, 0
      %v3641 = vsel %vm3600, 1, 0
      %v3642 = vsel %vm3601, 1, 0
      %v3643 = vsel %vm3602, 1, 0
      %v3644 = vsel %vm3603, 1, 0
      %v3645 = vsel %vm3604, 1, 0
      %v3646 = vsel %vm3605, 1, 0
      %v3647 = vsel %vm3606, 1, 0
      %v3648 = vsel %vm3607, 1, 0
      %v3649 = vsel %vm3608, 1, 0
      %v3650 = vsel %vm3609, 1, 0
      %v3651 = vsel %vm3610, 1, 0
      %v3652 = vsel %vm3611, 1, 0
      %v3653 = vsel %vm3612, 1, 0
      %v3654 = vsel %vm3613, 1, 0
      %v3655 = vsel %vm3614, 1, 0
      %v3656 = vsel %vm3615, 1, 0
      %v3657 = vsel %vm3616, 1, 0
      %v3658 = vsel %vm3617, 1, 0
      %v3659 = vsel %vm3618, 1, 0
      %v3660 = vsel %vm3619, 1, 0
      %v3661 = vsel %vm3620, 1, 0
      %v3662 = vsel %vm3621, 1, 0
      %v3663 = vsel %vm3622, 1, 0
      %v3664 = vsel %vm3623, 1, 0
      %v3665 = vsel %vm3624, 1, 0
      %v3666 = vsel %vm3625, 1, 0
      %3667 = vset.pattern.permute.xlu0 0
      %3668 = vperm.xlu0 %3667, %v3626
      %v3669 = vpop.permute.xlu0 %3668
      %3670 = vset.pattern.permute.xlu0 0
      %3671 = vperm.xlu0 %3670, %v3627
      %v3672 = vpop.permute.xlu0 %3671
      %3673 = vset.pattern.permute.xlu0 0
      %3674 = vperm.xlu0 %3673, %v3628
      %v3675 = vpop.permute.xlu0 %3674
      %3676 = vset.pattern.permute.xlu0 0
      %3677 = vperm.xlu0 %3676, %v3629
      %v3678 = vpop.permute.xlu0 %3677
      %3679 = vset.pattern.permute.xlu0 0
      %3680 = vperm.xlu0 %3679, %v3630
      %v3681 = vpop.permute.xlu0 %3680
      %3682 = vset.pattern.permute.xlu0 0
      %3683 = vperm.xlu0 %3682, %v3631
      %v3684 = vpop.permute.xlu0 %3683
      %3685 = vset.pattern.permute.xlu0 0
      %3686 = vperm.xlu0 %3685, %v3632
      %v3687 = vpop.permute.xlu0 %3686
      %3688 = vset.pattern.permute.xlu0 0
      %3689 = vperm.xlu0 %3688, %v3633
      %v3690 = vpop.permute.xlu0 %3689
      %3691 = vset.pattern.permute.xlu0 0
      %3692 = vperm.xlu0 %3691, %v3634
      %v3693 = vpop.permute.xlu0 %3692
      %3694 = vset.pattern.permute.xlu0 0
      %3695 = vperm.xlu0 %3694, %v3635
      %v3696 = vpop.permute.xlu0 %3695
      %3697 = vset.pattern.permute.xlu0 0
      %3698 = vperm.xlu0 %3697, %v3636
      %v3699 = vpop.permute.xlu0 %3698
      %3700 = vset.pattern.permute.xlu0 0
      %3701 = vperm.xlu0 %3700, %v3637
      %v3702 = vpop.permute.xlu0 %3701
      %3703 = vset.pattern.permute.xlu0 0
      %3704 = vperm.xlu0 %3703, %v3638
      %v3705 = vpop.permute.xlu0 %3704
      %3706 = vset.pattern.permute.xlu0 0
      %3707 = vperm.xlu0 %3706, %v3639
      %v3708 = vpop.permute.xlu0 %3707
      %3709 = vset.pattern.permute.xlu0 0
      %3710 = vperm.xlu0 %3709, %v3640
      %v3711 = vpop.permute.xlu0 %3710
      %3712 = vset.pattern.permute.xlu0 0
      %3713 = vperm.xlu0 %3712, %v3641
      %v3714 = vpop.permute.xlu0 %3713
      %3715 = vset.pattern.permute.xlu0 0
      %3716 = vperm.xlu0 %3715, %v3642
      %v3717 = vpop.permute.xlu0 %3716
      %3718 = vset.pattern.permute.xlu0 0
      %3719 = vperm.xlu0 %3718, %v3643
      %v3720 = vpop.permute.xlu0 %3719
      %3721 = vset.pattern.permute.xlu0 0
      %3722 = vperm.xlu0 %3721, %v3644
      %v3723 = vpop.permute.xlu0 %3722
      %3724 = vset.pattern.permute.xlu0 0
      %3725 = vperm.xlu0 %3724, %v3645
      %v3726 = vpop.permute.xlu0 %3725
      %3727 = vset.pattern.permute.xlu0 0
      %3728 = vperm.xlu0 %3727, %v3646
      %v3729 = vpop.permute.xlu0 %3728
      %3730 = vset.pattern.permute.xlu0 0
      %3731 = vperm.xlu0 %3730, %v3647
      %v3732 = vpop.permute.xlu0 %3731
      %3733 = vset.pattern.permute.xlu0 0
      %3734 = vperm.xlu0 %3733, %v3648
      %v3735 = vpop.permute.xlu0 %3734
      %3736 = vset.pattern.permute.xlu0 0
      %3737 = vperm.xlu0 %3736, %v3649
      %v3738 = vpop.permute.xlu0 %3737
      %3739 = vset.pattern.permute.xlu0 0
      %3740 = vperm.xlu0 %3739, %v3650
      %v3741 = vpop.permute.xlu0 %3740
      %3742 = vset.pattern.permute.xlu0 0
      %3743 = vperm.xlu0 %3742, %v3651
      %v3744 = vpop.permute.xlu0 %3743
      %3745 = vset.pattern.permute.xlu0 0
      %3746 = vperm.xlu0 %3745, %v3652
      %v3747 = vpop.permute.xlu0 %3746
      %3748 = vset.pattern.permute.xlu0 0
      %3749 = vperm.xlu0 %3748, %v3653
      %v3750 = vpop.permute.xlu0 %3749
      %3751 = vset.pattern.permute.xlu0 0
      %3752 = vperm.xlu0 %3751, %v3654
      %v3753 = vpop.permute.xlu0 %3752
      %3754 = vset.pattern.permute.xlu0 0
      %3755 = vperm.xlu0 %3754, %v3655
      %v3756 = vpop.permute.xlu0 %3755
      %3757 = vset.pattern.permute.xlu0 0
      %3758 = vperm.xlu0 %3757, %v3656
      %v3759 = vpop.permute.xlu0 %3758
      %3760 = vset.pattern.permute.xlu0 0
      %3761 = vperm.xlu0 %3760, %v3657
      %v3762 = vpop.permute.xlu0 %3761
      %3763 = vset.pattern.permute.xlu0 0
      %3764 = vperm.xlu0 %3763, %v3658
      %v3765 = vpop.permute.xlu0 %3764
      %3766 = vset.pattern.permute.xlu0 0
      %3767 = vperm.xlu0 %3766, %v3659
      %v3768 = vpop.permute.xlu0 %3767
      %3769 = vset.pattern.permute.xlu0 0
      %3770 = vperm.xlu0 %3769, %v3660
      %v3771 = vpop.permute.xlu0 %3770
      %3772 = vset.pattern.permute.xlu0 0
      %3773 = vperm.xlu0 %3772, %v3661
      %v3774 = vpop.permute.xlu0 %3773
      %3775 = vset.pattern.permute.xlu0 0
      %3776 = vperm.xlu0 %3775, %v3662
      %v3777 = vpop.permute.xlu0 %3776
      %3778 = vset.pattern.permute.xlu0 0
      %3779 = vperm.xlu0 %3778, %v3663
      %v3780 = vpop.permute.xlu0 %3779
      %3781 = vset.pattern.permute.xlu0 0
      %3782 = vperm.xlu0 %3781, %v3664
      %v3783 = vpop.permute.xlu0 %3782
      %3784 = vset.pattern.permute.xlu0 0
      %3785 = vperm.xlu0 %3784, %v3665
      %v3786 = vpop.permute.xlu0 %3785
      %3787 = vset.pattern.permute.xlu0 0
      %3788 = vperm.xlu0 %3787, %v3666
      %v3789 = vpop.permute.xlu0 %3788
      %vm3790 = vcmp.eq.s32.totalorder %v3669, 1
      %vm3791 = vcmp.eq.s32.totalorder %v3672, 1
      %vm3792 = vcmp.eq.s32.totalorder %v3675, 1
      %vm3793 = vcmp.eq.s32.totalorder %v3678, 1
      %vm3794 = vcmp.eq.s32.totalorder %v3681, 1
      %vm3795 = vcmp.eq.s32.totalorder %v3684, 1
      %vm3796 = vcmp.eq.s32.totalorder %v3687, 1
      %vm3797 = vcmp.eq.s32.totalorder %v3690, 1
      %vm3798 = vcmp.eq.s32.totalorder %v3693, 1
      %vm3799 = vcmp.eq.s32.totalorder %v3696, 1
      %vm3800 = vcmp.eq.s32.totalorder %v3699, 1
      %vm3801 = vcmp.eq.s32.totalorder %v3702, 1
      %vm3802 = vcmp.eq.s32.totalorder %v3705, 1
      %vm3803 = vcmp.eq.s32.totalorder %v3708, 1
      %vm3804 = vcmp.eq.s32.totalorder %v3711, 1
      %vm3805 = vcmp.eq.s32.totalorder %v3714, 1
      %vm3806 = vcmp.eq.s32.totalorder %v3717, 1
      %vm3807 = vcmp.eq.s32.totalorder %v3720, 1
      %vm3808 = vcmp.eq.s32.totalorder %v3723, 1
      %vm3809 = vcmp.eq.s32.totalorder %v3726, 1
      %vm3810 = vcmp.eq.s32.totalorder %v3729, 1
      %vm3811 = vcmp.eq.s32.totalorder %v3732, 1
      %vm3812 = vcmp.eq.s32.totalorder %v3735, 1
      %vm3813 = vcmp.eq.s32.totalorder %v3738, 1
      %vm3814 = vcmp.eq.s32.totalorder %v3741, 1
      %vm3815 = vcmp.eq.s32.totalorder %v3744, 1
      %vm3816 = vcmp.eq.s32.totalorder %v3747, 1
      %vm3817 = vcmp.eq.s32.totalorder %v3750, 1
      %vm3818 = vcmp.eq.s32.totalorder %v3753, 1
      %vm3819 = vcmp.eq.s32.totalorder %v3756, 1
      %vm3820 = vcmp.eq.s32.totalorder %v3759, 1
      %vm3821 = vcmp.eq.s32.totalorder %v3762, 1
      %vm3822 = vcmp.eq.s32.totalorder %v3765, 1
      %vm3823 = vcmp.eq.s32.totalorder %v3768, 1
      %vm3824 = vcmp.eq.s32.totalorder %v3771, 1
      %vm3825 = vcmp.eq.s32.totalorder %v3774, 1
      %vm3826 = vcmp.eq.s32.totalorder %v3777, 1
      %vm3827 = vcmp.eq.s32.totalorder %v3780, 1
      %vm3828 = vcmp.eq.s32.totalorder %v3783, 1
      %vm3829 = vcmp.eq.s32.totalorder %v3786, 1
      %vm3830 = vcmp.eq.s32.totalorder %v3789, 1
      %v3831 = vsel %vm3790, %v3460, 0.0
      %v3832 = vsel %vm3791, %v3461, 0.0
      %v3833 = vsel %vm3792, %v3462, 0.0
      %v3834 = vsel %vm3793, %v3463, 0.0
      %v3835 = vsel %vm3794, %v3464, 0.0
      %v3836 = vsel %vm3795, %v3465, 0.0
      %v3837 = vsel %vm3796, %v3466, 0.0
      %v3838 = vsel %vm3797, %v3467, 0.0
      %v3839 = vsel %vm3798, %v3468, 0.0
      %v3840 = vsel %vm3799, %v3469, 0.0
      %v3841 = vsel %vm3800, %v3470, 0.0
      %v3842 = vsel %vm3801, %v3471, 0.0
      %v3843 = vsel %vm3802, %v3472, 0.0
      %v3844 = vsel %vm3803, %v3473, 0.0
      %v3845 = vsel %vm3804, %v3474, 0.0
      %v3846 = vsel %vm3805, %v3475, 0.0
      %v3847 = vsel %vm3806, %v3476, 0.0
      %v3848 = vsel %vm3807, %v3477, 0.0
      %v3849 = vsel %vm3808, %v3478, 0.0
      %v3850 = vsel %vm3809, %v3479, 0.0
      %v3851 = vsel %vm3810, %v3480, 0.0
      %v3852 = vsel %vm3811, %v3481, 0.0
      %v3853 = vsel %vm3812, %v3482, 0.0
      %v3854 = vsel %vm3813, %v3483, 0.0
      %v3855 = vsel %vm3814, %v3484, 0.0
      %v3856 = vsel %vm3815, %v3485, 0.0
      %v3857 = vsel %vm3816, %v3486, 0.0
      %v3858 = vsel %vm3817, %v3487, 0.0
      %v3859 = vsel %vm3818, %v3488, 0.0
      %v3860 = vsel %vm3819, %v3489, 0.0
      %v3861 = vsel %vm3820, %v3490, 0.0
      %v3862 = vsel %vm3821, %v3491, 0.0
      %v3863 = vsel %vm3822, %v3492, 0.0
      %v3864 = vsel %vm3823, %v3493, 0.0
      %v3865 = vsel %vm3824, %v3494, 0.0
      %v3866 = vsel %vm3825, %v3495, 0.0
      %v3867 = vsel %vm3826, %v3496, 0.0
      %v3868 = vsel %vm3827, %v3497, 0.0
      %v3869 = vsel %vm3828, %v3498, 0.0
      %v3870 = vsel %vm3829, %v3499, 0.0
      %v3871 = vsel %vm3830, %v3500, 0.0
      %v3872 = vsel %vm3501, %v3831, 0.0
      %v3873 = vsel %vm3501, %v3832, 0.0
      %v3874 = vadd.f32 %v3872, %v3873
      %v3875 = vsel %vm3501, %v3833, 0.0
      %v3876 = vadd.f32 %v3874, %v3875
      %v3877 = vsel %vm3501, %v3834, 0.0
      %v3878 = vadd.f32 %v3876, %v3877
      %v3879 = vsel %vm3501, %v3835, 0.0
      %v3880 = vadd.f32 %v3878, %v3879
      %v3881 = vsel %vm3501, %v3836, 0.0
      %v3882 = vadd.f32 %v3880, %v3881
      %v3883 = vsel %vm3501, %v3837, 0.0
      %v3884 = vadd.f32 %v3882, %v3883
      %v3885 = vsel %vm3501, %v3838, 0.0
      %v3886 = vadd.f32 %v3884, %v3885
      %v3887 = vsel %vm3501, %v3839, 0.0
      %v3888 = vadd.f32 %v3886, %v3887
      %v3889 = vsel %vm3501, %v3840, 0.0
      %v3890 = vadd.f32 %v3888, %v3889
      %v3891 = vsel %vm3501, %v3841, 0.0
      %v3892 = vadd.f32 %v3890, %v3891
      %v3893 = vsel %vm3501, %v3842, 0.0
      %v3894 = vadd.f32 %v3892, %v3893
      %v3895 = vsel %vm3501, %v3843, 0.0
      %v3896 = vadd.f32 %v3894, %v3895
      %v3897 = vsel %vm3501, %v3844, 0.0
      %v3898 = vadd.f32 %v3896, %v3897
      %v3899 = vsel %vm3501, %v3845, 0.0
      %v3900 = vadd.f32 %v3898, %v3899
      %v3901 = vsel %vm3501, %v3846, 0.0
      %v3902 = vadd.f32 %v3900, %v3901
      %v3903 = vsel %vm3501, %v3847, 0.0
      %v3904 = vadd.f32 %v3902, %v3903
      %v3905 = vsel %vm3501, %v3848, 0.0
      %v3906 = vadd.f32 %v3904, %v3905
      %v3907 = vsel %vm3501, %v3849, 0.0
      %v3908 = vadd.f32 %v3906, %v3907
      %v3909 = vsel %vm3501, %v3850, 0.0
      %v3910 = vadd.f32 %v3908, %v3909
      %v3911 = vsel %vm3501, %v3851, 0.0
      %v3912 = vadd.f32 %v3910, %v3911
      %v3913 = vsel %vm3501, %v3852, 0.0
      %v3914 = vadd.f32 %v3912, %v3913
      %v3915 = vsel %vm3501, %v3853, 0.0
      %v3916 = vadd.f32 %v3914, %v3915
      %v3917 = vsel %vm3501, %v3854, 0.0
      %v3918 = vadd.f32 %v3916, %v3917
      %v3919 = vsel %vm3501, %v3855, 0.0
      %v3920 = vadd.f32 %v3918, %v3919
      %v3921 = vsel %vm3501, %v3856, 0.0
      %v3922 = vadd.f32 %v3920, %v3921
      %v3923 = vsel %vm3501, %v3857, 0.0
      %v3924 = vadd.f32 %v3922, %v3923
      %v3925 = vsel %vm3501, %v3858, 0.0
      %v3926 = vadd.f32 %v3924, %v3925
      %v3927 = vsel %vm3501, %v3859, 0.0
      %v3928 = vadd.f32 %v3926, %v3927
      %v3929 = vsel %vm3501, %v3860, 0.0
      %v3930 = vadd.f32 %v3928, %v3929
      %v3931 = vsel %vm3501, %v3861, 0.0
      %v3932 = vadd.f32 %v3930, %v3931
      %v3933 = vsel %vm3501, %v3862, 0.0
      %v3934 = vadd.f32 %v3932, %v3933
      %v3935 = vsel %vm3501, %v3863, 0.0
      %v3936 = vadd.f32 %v3934, %v3935
      %v3937 = vsel %vm3501, %v3864, 0.0
      %v3938 = vadd.f32 %v3936, %v3937
      %v3939 = vsel %vm3501, %v3865, 0.0
      %v3940 = vadd.f32 %v3938, %v3939
      %v3941 = vsel %vm3501, %v3866, 0.0
      %v3942 = vadd.f32 %v3940, %v3941
      %v3943 = vsel %vm3501, %v3867, 0.0
      %v3944 = vadd.f32 %v3942, %v3943
      %v3945 = vsel %vm3501, %v3868, 0.0
      %v3946 = vadd.f32 %v3944, %v3945
      %v3947 = vsel %vm3501, %v3869, 0.0
      %v3948 = vadd.f32 %v3946, %v3947
      %v3949 = vsel %vm3501, %v3870, 0.0
      %v3950 = vadd.f32 %v3948, %v3949
      %v3951 = vsel %vm3542, %v3871, 0.0
      %v3952 = vadd.f32 %v3950, %v3951
      %v3953 = vrot.slane %v3952, 4
      %v3954 = vadd.f32 %v3952, %v3953
      %v3955 = vrot.slane %v3954, 2
      %v3956 = vadd.f32 %v3954, %v3955
      %v3957 = vrot.slane %v3956, 1
      %v3958 = vadd.f32 %v3956, %v3957
      %vm3959 = vcmask 57344
      %3960 = vst.msk [vmem:[%s238] sm:$0x1] %vm3959, %v3958
      %v3961 = vmul.f32 %v3831, %v3831
      %v3962 = vmul.f32 %v3832, %v3832
      %v3963 = vmul.f32 %v3833, %v3833
      %v3964 = vmul.f32 %v3834, %v3834
      %v3965 = vmul.f32 %v3835, %v3835
      %v3966 = vmul.f32 %v3836, %v3836
      %v3967 = vmul.f32 %v3837, %v3837
      %v3968 = vmul.f32 %v3838, %v3838
      %v3969 = vmul.f32 %v3839, %v3839
      %v3970 = vmul.f32 %v3840, %v3840
      %v3971 = vmul.f32 %v3841, %v3841
      %v3972 = vmul.f32 %v3842, %v3842
      %v3973 = vmul.f32 %v3843, %v3843
      %v3974 = vmul.f32 %v3844, %v3844
      %v3975 = vmul.f32 %v3845, %v3845
      %v3976 = vmul.f32 %v3846, %v3846
      %v3977 = vmul.f32 %v3847, %v3847
      %v3978 = vmul.f32 %v3848, %v3848
      %v3979 = vmul.f32 %v3849, %v3849
      %v3980 = vmul.f32 %v3850, %v3850
      %v3981 = vmul.f32 %v3851, %v3851
      %v3982 = vmul.f32 %v3852, %v3852
      %v3983 = vmul.f32 %v3853, %v3853
      %v3984 = vmul.f32 %v3854, %v3854
      %v3985 = vmul.f32 %v3855, %v3855
      %v3986 = vmul.f32 %v3856, %v3856
      %v3987 = vmul.f32 %v3857, %v3857
      %v3988 = vmul.f32 %v3858, %v3858
      %v3989 = vmul.f32 %v3859, %v3859
      %v3990 = vmul.f32 %v3860, %v3860
      %v3991 = vmul.f32 %v3861, %v3861
      %v3992 = vmul.f32 %v3862, %v3862
      %v3993 = vmul.f32 %v3863, %v3863
      %v3994 = vmul.f32 %v3864, %v3864
      %v3995 = vmul.f32 %v3865, %v3865
      %v3996 = vmul.f32 %v3866, %v3866
      %v3997 = vmul.f32 %v3867, %v3867
      %v3998 = vmul.f32 %v3868, %v3868
      %v3999 = vmul.f32 %v3869, %v3869
      %v4000 = vmul.f32 %v3870, %v3870
      %v4001 = vmul.f32 %v3871, %v3871
      %v4002 = vsel %vm3501, %v3961, 0.0
      %v4003 = vsel %vm3501, %v3962, 0.0
      %v4004 = vadd.f32 %v4002, %v4003
      %v4005 = vsel %vm3501, %v3963, 0.0
      %v4006 = vadd.f32 %v4004, %v4005
      %v4007 = vsel %vm3501, %v3964, 0.0
      %v4008 = vadd.f32 %v4006, %v4007
      %v4009 = vsel %vm3501, %v3965, 0.0
      %v4010 = vadd.f32 %v4008, %v4009
      %v4011 = vsel %vm3501, %v3966, 0.0
      %v4012 = vadd.f32 %v4010, %v4011
      %v4013 = vsel %vm3501, %v3967, 0.0
      %v4014 = vadd.f32 %v4012, %v4013
      %v4015 = vsel %vm3501, %v3968, 0.0
      %v4016 = vadd.f32 %v4014, %v4015
      %v4017 = vsel %vm3501, %v3969, 0.0
      %v4018 = vadd.f32 %v4016, %v4017
      %v4019 = vsel %vm3501, %v3970, 0.0
      %v4020 = vadd.f32 %v4018, %v4019
      %v4021 = vsel %vm3501, %v3971, 0.0
      %v4022 = vadd.f32 %v4020, %v4021
      %v4023 = vsel %vm3501, %v3972, 0.0
      %v4024 = vadd.f32 %v4022, %v4023
      %v4025 = vsel %vm3501, %v3973, 0.0
      %v4026 = vadd.f32 %v4024, %v4025
      %v4027 = vsel %vm3501, %v3974, 0.0
      %v4028 = vadd.f32 %v4026, %v4027
      %v4029 = vsel %vm3501, %v3975, 0.0
      %v4030 = vadd.f32 %v4028, %v4029
      %v4031 = vsel %vm3501, %v3976, 0.0
      %v4032 = vadd.f32 %v4030, %v4031
      %v4033 = vsel %vm3501, %v3977, 0.0
      %v4034 = vadd.f32 %v4032, %v4033
      %v4035 = vsel %vm3501, %v3978, 0.0
      %v4036 = vadd.f32 %v4034, %v4035
      %v4037 = vsel %vm3501, %v3979, 0.0
      %v4038 = vadd.f32 %v4036, %v4037
      %v4039 = vsel %vm3501, %v3980, 0.0
      %v4040 = vadd.f32 %v4038, %v4039
      %v4041 = vsel %vm3501, %v3981, 0.0
      %v4042 = vadd.f32 %v4040, %v4041
      %v4043 = vsel %vm3501, %v3982, 0.0
      %v4044 = vadd.f32 %v4042, %v4043
      %v4045 = vsel %vm3501, %v3983, 0.0
      %v4046 = vadd.f32 %v4044, %v4045
      %v4047 = vsel %vm3501, %v3984, 0.0
      %v4048 = vadd.f32 %v4046, %v4047
      %v4049 = vsel %vm3501, %v3985, 0.0
      %v4050 = vadd.f32 %v4048, %v4049
      %v4051 = vsel %vm3501, %v3986, 0.0
      %v4052 = vadd.f32 %v4050, %v4051
      %v4053 = vsel %vm3501, %v3987, 0.0
      %v4054 = vadd.f32 %v4052, %v4053
      %v4055 = vsel %vm3501, %v3988, 0.0
      %v4056 = vadd.f32 %v4054, %v4055
      %v4057 = vsel %vm3501, %v3989, 0.0
      %v4058 = vadd.f32 %v4056, %v4057
      %v4059 = vsel %vm3501, %v3990, 0.0
      %v4060 = vadd.f32 %v4058, %v4059
      %v4061 = vsel %vm3501, %v3991, 0.0
      %v4062 = vadd.f32 %v4060, %v4061
      %v4063 = vsel %vm3501, %v3992, 0.0
      %v4064 = vadd.f32 %v4062, %v4063
      %v4065 = vsel %vm3501, %v3993, 0.0
      %v4066 = vadd.f32 %v4064, %v4065
      %v4067 = vsel %vm3501, %v3994, 0.0
      %v4068 = vadd.f32 %v4066, %v4067
      %v4069 = vsel %vm3501, %v3995, 0.0
      %v4070 = vadd.f32 %v4068, %v4069
      %v4071 = vsel %vm3501, %v3996, 0.0
      %v4072 = vadd.f32 %v4070, %v4071
      %v4073 = vsel %vm3501, %v3997, 0.0
      %v4074 = vadd.f32 %v4072, %v4073
      %v4075 = vsel %vm3501, %v3998, 0.0
      %v4076 = vadd.f32 %v4074, %v4075
      %v4077 = vsel %vm3501, %v3999, 0.0
      %v4078 = vadd.f32 %v4076, %v4077
      %v4079 = vsel %vm3501, %v4000, 0.0
      %v4080 = vadd.f32 %v4078, %v4079
      %v4081 = vsel %vm3542, %v4001, 0.0
      %v4082 = vadd.f32 %v4080, %v4081
      %v4083 = vrot.slane %v4082, 4
      %v4084 = vadd.f32 %v4082, %v4083
      %v4085 = vrot.slane %v4084, 2
      %v4086 = vadd.f32 %v4084, %v4085
      %v4087 = vrot.slane %v4086, 1
      %v4088 = vadd.f32 %v4086, %v4087
      %4089 = vst.msk [vmem:[%s241] sm:$0x1] %vm3959, %v4088
      %p4090 = scmp.lt.s32.totalorder %s17, 1
      %s4091 = scalar_select %p4090, %s17, 1
      %s4092 = smul.addr %s4091, 41
      %s4093 = smul.addr %s4092, 8
      %s4094 = scalar_lea.vmem %s3, %s4093
      %p4095 = scmp.lt.s32.totalorder %s17, 1
      %s4096 = scalar_select %p4095, %s17, 1
      %s4097 = scalar_lea.vmem %s4, %s4096
      %p4098 = scmp.lt.s32.totalorder %s17, 1
      %s4099 = scalar_select %p4098, %s17, 1
      %s4100 = scalar_lea.vmem %s5, %s4099
      // Predicated region
      $region33: #{conv_block.3} parent=31 // pred_check
        %p4101 = pneg %p103
      $region34: #{conv_block.3} parent=31 // pred_check_branch
        %4103 = sbr.rel (%p4101) target = $region36
      $region35: #{conv_block.3} parent=31 // pred_region
        _
      $region36: #{conv_block.3} parent=31 // pred_fallthru
        _
      // Predicated region
      $region37: #{conv_block.3} parent=31 // pred_check
        %p4104 = pneg %p129
      $region38: #{conv_block.3} parent=31 // pred_check_branch
        %4106 = sbr.rel (%p4104) target = $region40
      $region39: #{conv_block.3} parent=31 // pred_region
        _
      $region40: #{conv_block.3} parent=31 // pred_fallthru
        _
      // Predicated region
      $region41: #{conv_block.3} parent=31 // pred_check
        %p4107 = pneg %p155
      $region42: #{conv_block.3} parent=31 // pred_check_branch
        %4109 = sbr.rel (%p4107) target = $region44
      $region43: #{conv_block.3} parent=31 // pred_region
        _
      $region44: #{conv_block.3} parent=31 // pred_fallthru
        _
    $region32: #{conv_block.3} parent=5 // pred_fallthru
      _
    %p4110 = scmp.le.s32.totalorder 2, %s12
    // Predicated region
    $region45: #{conv_block.3} parent=5 // pred_check
      %p4111 = pneg %p4110
    $region46: #{conv_block.3} parent=5 // pred_check_branch
      %4113 = sbr.rel (%p4111) target = $region48
    $region47: #{conv_block.3} parent=5 // pred_region
      %s4114 = ssub.s32 %s12, 2
      // Predicated region
      $region49: #{conv_block.3} parent=47 // pred_check
        %p4115 = pneg %p109
      $region50: #{conv_block.3} parent=47 // pred_check_branch
        %4117 = sbr.rel (%p4115) target = $region52
      $region51: #{conv_block.3} parent=47 // pred_region
        %p4118 = scmp.lt.s32.totalorder %s18, 1
        %s4119 = scalar_select %p4118, %s18, 1
        %s4120 = smul.addr %s4119, 41
        %s4121 = smul.addr %s4120, 8
        %s4122 = scalar_lea.vmem %s3, %s4121
      $region52: #{conv_block.3} parent=47 // pred_fallthru
        _
      // Predicated region
      $region53: #{conv_block.3} parent=47 // pred_check
        %p4123 = pneg %p135
      $region54: #{conv_block.3} parent=47 // pred_check_branch
        %4125 = sbr.rel (%p4123) target = $region56
      $region55: #{conv_block.3} parent=47 // pred_region
        %p4126 = scmp.lt.s32.totalorder %s18, 1
        %s4127 = scalar_select %p4126, %s18, 1
        %s4128 = scalar_lea.vmem %s4, %s4127
      $region56: #{conv_block.3} parent=47 // pred_fallthru
        _
      // Predicated region
      $region57: #{conv_block.3} parent=47 // pred_check
        %p4129 = pneg %p161
      $region58: #{conv_block.3} parent=47 // pred_check_branch
        %4131 = sbr.rel (%p4129) target = $region60
      $region59: #{conv_block.3} parent=47 // pred_region
        %p4132 = scmp.lt.s32.totalorder %s18, 1
        %s4133 = scalar_select %p4132, %s18, 1
        %s4134 = scalar_lea.vmem %s5, %s4133
      $region60: #{conv_block.3} parent=47 // pred_fallthru
        _
    $region48: #{conv_block.3} parent=5 // pred_fallthru
      _
  $region6: #{conv_block.3} parent=0 // loop_footer
    %s16 = sadd.s32 1, %s12
  $region7: #{conv_block.3} parent=0 // loop_footer_branch
    %11 = sbr.rel target = $region3
  $region8: #{conv_block.3} parent=0 // loop_exit
    _

</llo_original>
